<compile_context>
chip_gen: v7x
topology: tpu7x:2x2x1
jax: 0.10.0
libtpu: 0.0.40
codegen_flags: <defaults>
</compile_context>

<pallas_src>
import functools
import math

import jax
import jax.numpy as jnp
from jax.experimental import pallas as pl
from jax.experimental.pallas import tpu as pltpu

# Module defaults from the PyTorch spec.
NUM_CLASSES = 8
INPUT_SIZE = 1
D_MODEL = 64
NHEAD_WIDE = 8
NHEAD_DEEP = 4
NUM_LAYERS_WIDE = 1
NUM_LAYERS_DEEP = 4
DIM_FF = 256
CLS_HIDDEN = 64
LN_EPS = 1e-5
NEG_INF = -1e30


# ---------------------------------------------------------------------------
# Kernel helpers (traced inside the Pallas kernel).
# ---------------------------------------------------------------------------
def _layer_norm(x, g, b):
    mu = jnp.mean(x, axis=-1, keepdims=True)
    xc = x - mu
    var = jnp.mean(xc * xc, axis=-1, keepdims=True)
    return xc * jax.lax.rsqrt(var + LN_EPS) * g + b


def _encoder_layer(h, l, nhead, head_mask, attn_bias,
                   wq_ref, bq_ref, wk_ref, bk_ref, wv_ref, bv_ref,
                   wo_ref, bo_ref, ln1g_ref, ln1b_ref,
                   w1_ref, b1_ref, w2_ref, b2_ref, ln2g_ref, ln2b_ref):
    """One post-norm nn.TransformerEncoderLayer (eval mode) on a (B*T, D) stream.

    Attention is computed in a (batch, head)-packed layout:
      * head_mask  : (nhead*B*T, D) 0/1, row block h keeps only head h's lanes.
      * attn_bias  : (nhead*B*T, B*T) additive mask, 0 inside each query's own
                     batch block, -1e30 elsewhere (carves per-(b,h) softmax).
    (Q ⊙ mask_h) · K^T == Q_h · K_h^T exactly, and (P_h · V) already holds the
    correct context in head h's lanes, so one scores matmul + one context
    matmul + one Wo matmul cover every head of every batch element.
    """
    bt, d = h.shape
    hd = d // nhead
    scale = 1.0 / math.sqrt(hd)

    q = jnp.dot(h, wq_ref[l], preferred_element_type=jnp.float32) + bq_ref[l]
    k = jnp.dot(h, wk_ref[l], preferred_element_type=jnp.float32) + bk_ref[l]
    v = jnp.dot(h, wv_ref[l], preferred_element_type=jnp.float32) + bv_ref[l]

    # (nhead*B*T, D): replicate Q along sublanes, zero lanes outside each
    # block's own head (cheap VPU multiply with a precomputed mask).
    q_pack = jnp.concatenate([q] * nhead, axis=0) * head_mask

    # Scores for every (head, batch) block in ONE matmul (contract the lane
    # dim of both operands -> MXU-native "NT" form, no transpose needed).
    s = jax.lax.dot_general(q_pack, k, (((1,), (1,)), ((), ())),
                            preferred_element_type=jnp.float32) * scale
    s = s + attn_bias
    s = s - jnp.max(s, axis=-1, keepdims=True)          # keep max-subtraction
    p = jnp.exp(s)
    p = p * pl.reciprocal(jnp.sum(p, axis=-1, keepdims=True), approx=True)

    # Context for every block in ONE matmul against the *full* V; each row
    # block's own head lanes already hold the correct values, so mask and sum
    # the head blocks back into the (B*T, D) head-concatenated layout.
    ctx_all = jnp.dot(p, v, preferred_element_type=jnp.float32) * head_mask
    ctx = jnp.sum(ctx_all.reshape(nhead, bt, d), axis=0)

    attn = jnp.dot(ctx, wo_ref[l], preferred_element_type=jnp.float32) + bo_ref[l]

    # Residual + LayerNorm, FFN (Linear -> ReLU -> Linear), residual + LN.
    h = _layer_norm(h + attn, ln1g_ref[l], ln1b_ref[l])
    ff = jnp.maximum(
        jnp.dot(h, w1_ref[l], preferred_element_type=jnp.float32) + b1_ref[l], 0.0)
    ff = jnp.dot(ff, w2_ref[l], preferred_element_type=jnp.float32) + b2_ref[l]
    h = _layer_norm(h + ff, ln2g_ref[l], ln2b_ref[l])
    return h


def wide_deep_kernel(x_ref, pe_ref, emb_w_ref, emb_b_ref,
                     wq_ref, bq_ref, wk_ref, bk_ref, wv_ref, bv_ref,
                     wo_ref, bo_ref, ln1g_ref, ln1b_ref,
                     w1_ref, b1_ref, w2_ref, b2_ref, ln2g_ref, ln2b_ref,
                     hm_wide_ref, bias_wide_ref, hm_deep_ref, bias_deep_ref,
                     sel_ref, wfw_ref, wfd_ref, bf_ref,
                     wc1_ref, bc1_ref, wc2_ref, bc2_ref,
                     out_ref,
                     *, batch, seq_len, nhead_wide, nhead_deep, num_layers_deep):
    # Embedding: Linear(1, D) is a broadcast multiply-add (VPU), not a rank-1
    # MXU matmul.  Positional encoding is (T, D), broadcast over the batch in
    # kernel (sublane copies) instead of a host-side B-times-larger tile.
    x = x_ref[...]                                           # (B*T, 1)
    h0 = x * emb_w_ref[...] + emb_b_ref[...]                 # (B*T, D)
    pe = jnp.concatenate([pe_ref[...]] * batch, axis=0)      # (B*T, D)
    h0 = h0 + pe                                             # dropout = identity

    # Packing masks / block-diagonal biases: loaded ONCE, reused by all layers.
    hm_w, bias_w = hm_wide_ref[...], bias_wide_ref[...]
    hm_d, bias_d = hm_deep_ref[...], bias_deep_ref[...]

    layer_refs = (wq_ref, bq_ref, wk_ref, bk_ref, wv_ref, bv_ref, wo_ref, bo_ref,
                  ln1g_ref, ln1b_ref, w1_ref, b1_ref, w2_ref, b2_ref,
                  ln2g_ref, ln2b_ref)

    # Wide path: 1 encoder layer (layer index 0) with nhead_wide heads.
    h_wide = _encoder_layer(h0, 0, nhead_wide, hm_w, bias_w, *layer_refs)

    # Deep path: num_layers_deep encoder layers (indices 1..) with nhead_deep.
    h_deep = h0
    for l in range(1, 1 + num_layers_deep):
        h_deep = _encoder_layer(h_deep, l, nhead_deep, hm_d, bias_d, *layer_refs)

    # Last time step per batch element via a one-hot selector matmul (avoids
    # per-batch single-row slices + sublane concats; MXU is idle anyway).
    sel = sel_ref[...]                                       # (B, B*T)
    wide_last = jnp.dot(sel, h_wide, preferred_element_type=jnp.float32)
    deep_last = jnp.dot(sel, h_deep, preferred_element_type=jnp.float32)

    # Fusion Linear on concat([wide_last, deep_last]) without the concat.
    fused = (jnp.dot(wide_last, wfw_ref[...], preferred_element_type=jnp.float32)
             + jnp.dot(deep_last, wfd_ref[...], preferred_element_type=jnp.float32)
             + bf_ref[...])

    # Classifier: Linear -> ReLU -> (Dropout = id) -> Linear.
    z = jnp.maximum(
        jnp.dot(fused, wc1_ref[...], preferred_element_type=jnp.float32)
        + bc1_ref[...], 0.0)
    out_ref[...] = (jnp.dot(z, wc2_ref[...], preferred_element_type=jnp.float32)
                    + bc2_ref[...]).astype(out_ref.dtype)


# ---------------------------------------------------------------------------
# Host-side helpers.
# ---------------------------------------------------------------------------
def _positional_encoding(seq_len, d_model):
    pos = jnp.arange(seq_len, dtype=jnp.float32)[:, None]
    div = jnp.exp(jnp.arange(0, d_model, 2, dtype=jnp.float32)
                  * (-math.log(10000.0) / d_model))
    pe = jnp.zeros((seq_len, d_model), jnp.float32)
    pe = pe.at[:, 0::2].set(jnp.sin(pos * div))
    pe = pe.at[:, 1::2].set(jnp.cos(pos * div))
    return pe


def _head_mask(nhead, batch, seq_len, d_model):
    """(nhead*B*T, D) 0/1 mask: row block h keeps only head h's lanes."""
    hd = d_model // nhead
    head_of_row = jnp.arange(nhead * batch * seq_len) // (batch * seq_len)
    head_of_col = jnp.arange(d_model) // hd
    return (head_of_row[:, None] == head_of_col[None, :]).astype(jnp.float32)


def _attn_bias(nhead, batch, seq_len):
    """(nhead*B*T, B*T) additive mask: 0 inside own batch block, -1e30 else."""
    rows = nhead * batch * seq_len
    b_of_row = (jnp.arange(rows) % (batch * seq_len)) // seq_len
    b_of_col = jnp.arange(batch * seq_len) // seq_len
    return jnp.where(b_of_row[:, None] == b_of_col[None, :],
                     0.0, NEG_INF).astype(jnp.float32)


def _last_step_selector(batch, seq_len):
    """(B, B*T) one-hot rows selecting time step T-1 of each batch element."""
    cols = jnp.arange(batch * seq_len)
    tgt = jnp.arange(batch) * seq_len + (seq_len - 1)
    return (cols[None, :] == tgt[:, None]).astype(jnp.float32)


def init_params(key):
    """Deterministic parameter init; weights pre-transposed to (in, out)."""
    D, FF = D_MODEL, DIM_FF
    n_layers = NUM_LAYERS_WIDE + NUM_LAYERS_DEEP
    keys = iter(jax.random.split(key, 128))

    def u(shape, scale):
        return jax.random.uniform(next(keys), shape, jnp.float32, -scale, scale)

    s_d = 1.0 / math.sqrt(D)
    s_ff = 1.0 / math.sqrt(FF)

    def layer():
        return dict(
            wq=u((D, D), s_d), bq=u((1, D), s_d),
            wk=u((D, D), s_d), bk=u((1, D), s_d),
            wv=u((D, D), s_d), bv=u((1, D), s_d),
            wo=u((D, D), s_d), bo=u((1, D), s_d),
            ln1g=1.0 + u((1, D), 0.1), ln1b=u((1, D), 0.1),
            w1=u((D, FF), s_d), b1=u((1, FF), s_d),
            w2=u((FF, D), s_ff), b2=u((1, D), s_ff),
            ln2g=1.0 + u((1, D), 0.1), ln2b=u((1, D), 0.1),
        )

    layers = [layer() for _ in range(n_layers)]        # layer 0 = wide, 1..4 = deep
    stacked = {k: jnp.stack([lyr[k] for lyr in layers]) for k in layers[0]}

    s_fuse = 1.0 / math.sqrt(2 * D)
    s_cls = 1.0 / math.sqrt(CLS_HIDDEN)
    params = dict(
        emb_w=u((1, D), 1.0), emb_b=u((1, D), 1.0),
        **stacked,
        wf_w=u((D, D), s_fuse), wf_d=u((D, D), s_fuse), bf=u((1, D), s_fuse),
        wc1=u((D, CLS_HIDDEN), s_d), bc1=u((1, CLS_HIDDEN), s_d),
        wc2=u((CLS_HIDDEN, NUM_CLASSES), s_cls), bc2=u((1, NUM_CLASSES), s_cls),
    )
    return params


def wide_deep_transformer_forward(x, params):
    """x: (B, T) or (B, T, 1). Returns logits (B, NUM_CLASSES)."""
    if x.ndim == 2:
        x = x[..., None]
    B, T, C = x.shape
    assert C == INPUT_SIZE

    x2 = x.reshape(B * T, C).astype(jnp.float32)                 # (B*T, 1)
    pe = _positional_encoding(T, D_MODEL)                        # (T, D)

    # Precomputed (hoisted) packing masks, softmax biases, last-step selector.
    hm_w = _head_mask(NHEAD_WIDE, B, T, D_MODEL)                 # (8*B*T, D)
    bias_w = _attn_bias(NHEAD_WIDE, B, T)                        # (8*B*T, B*T)
    hm_d = _head_mask(NHEAD_DEEP, B, T, D_MODEL)                 # (4*B*T, D)
    bias_d = _attn_bias(NHEAD_DEEP, B, T)                        # (4*B*T, B*T)
    sel = _last_step_selector(B, T)                              # (B, B*T)

    kernel = functools.partial(
        wide_deep_kernel, batch=B, seq_len=T,
        nhead_wide=NHEAD_WIDE, nhead_deep=NHEAD_DEEP,
        num_layers_deep=NUM_LAYERS_DEEP)

    args = (x2, pe, params["emb_w"], params["emb_b"],
            params["wq"], params["bq"], params["wk"], params["bk"],
            params["wv"], params["bv"], params["wo"], params["bo"],
            params["ln1g"], params["ln1b"], params["w1"], params["b1"],
            params["w2"], params["b2"], params["ln2g"], params["ln2b"],
            hm_w, bias_w, hm_d, bias_d, sel,
            params["wf_w"], params["wf_d"], params["bf"],
            params["wc1"], params["bc1"], params["wc2"], params["bc2"])

    vmem_specs = [pl.BlockSpec(memory_space=pltpu.MemorySpace.VMEM) for _ in args]

    return pl.pallas_call(
        kernel,
        out_shape=jax.ShapeDtypeStruct((B, NUM_CLASSES), jnp.float32),
        in_specs=vmem_specs,
        out_specs=pl.BlockSpec(memory_space=pltpu.MemorySpace.VMEM),
        # Actual resident footprint is < 2 MiB; 32 MiB is safe on every
        # generation (v7x has 64 MiB physical VMEM).
        compiler_params=pltpu.CompilerParams(vmem_limit_bytes=32 * 1024 * 1024),
    )(*args)


# ---------------------------------------------------------------------------
# Pure-JAX reference (same math, standard multi-head formulation).
# ---------------------------------------------------------------------------
def _ref_layer_norm(x, g, b):
    mu = jnp.mean(x, axis=-1, keepdims=True)
    xc = x - mu
    var = jnp.mean(xc * xc, axis=-1, keepdims=True)
    return xc * jax.lax.rsqrt(var + LN_EPS) * g + b


def _ref_encoder_layer(x, p, l, nhead):
    B, T, D = x.shape
    hd = D // nhead
    q = x @ p["wq"][l] + p["bq"][l]
    k = x @ p["wk"][l] + p["bk"][l]
    v = x @ p["wv"][l] + p["bv"][l]

    def heads(t):
        return t.reshape(B, T, nhead, hd).transpose(0, 2, 1, 3)

    qh, kh, vh = heads(q), heads(k), heads(v)
    s = jnp.einsum("bhqd,bhkd->bhqk", qh, kh) / math.sqrt(hd)
    a = jax.nn.softmax(s, axis=-1)
    ctx = jnp.einsum("bhqk,bhkd->bhqd", a, vh).transpose(0, 2, 1, 3).reshape(B, T, D)
    attn = ctx @ p["wo"][l] + p["bo"][l]

    x = _ref_layer_norm(x + attn, p["ln1g"][l], p["ln1b"][l])
    ff = jax.nn.relu(x @ p["w1"][l] + p["b1"][l]) @ p["w2"][l] + p["b2"][l]
    return _ref_layer_norm(x + ff, p["ln2g"][l], p["ln2b"][l])


def wide_deep_transformer_reference(x, params):
    if x.ndim == 2:
        x = x[..., None]
    B, T, _ = x.shape
    h = x.astype(jnp.float32) @ params["emb_w"] + params["emb_b"]
    h = h + _positional_encoding(T, D_MODEL)[None]

    h_wide = _ref_encoder_layer(h, params, 0, NHEAD_WIDE)
    h_deep = h
    for l in range(1, 1 + NUM_LAYERS_DEEP):
        h_deep = _ref_encoder_layer(h_deep, params, l, NHEAD_DEEP)

    wide_last = h_wide[:, -1, :]
    deep_last = h_deep[:, -1, :]
    fused = wide_last @ params["wf_w"] + deep_last @ params["wf_d"] + params["bf"]
    z = jax.nn.relu(fused @ params["wc1"] + params["bc1"])
    return z @ params["wc2"] + params["bc2"]


if __name__ == "__main__":
    key = jax.random.PRNGKey(0)
    k_param, k_data = jax.random.split(key)

    B, T = 2, 8
    # 2-D seismic traces (B, T); forward unsqueezes to (B, T, 1) like the module.
    x = jax.random.normal(k_data, (B, T), jnp.float32)
    params = init_params(k_param)

    out = jax.block_until_ready(wide_deep_transformer_forward(x, params))
    assert out.shape == (B, NUM_CLASSES)

    ref = wide_deep_transformer_reference(x, params)
    max_diff = float(jnp.max(jnp.abs(out - ref)))
    # All-f32 kernel; 1e-2 covers the approx-reciprocal softmax and the XLA
    # reference path's default (bf16-pass) matmul precision on TPU.
    assert jnp.allclose(out, ref, atol=1e-2, rtol=1e-2), (
        f"Pallas output mismatch vs reference (max abs diff {max_diff})")

    print("KERNEL_OK")
</pallas_src>

<mosaic_0001>
module attributes {stable_mosaic.version = 11 : i64} {
  func.func @wide_deep_kernel(%arg0: memref<16x1xf32, #tpu.memory_space<vmem>>, %arg1: memref<8x64xf32, #tpu.memory_space<vmem>>, %arg2: memref<1x64xf32, #tpu.memory_space<vmem>>, %arg3: memref<1x64xf32, #tpu.memory_space<vmem>>, %arg4: memref<5x64x64xf32, #tpu.memory_space<vmem>>, %arg5: memref<5x1x64xf32, #tpu.memory_space<vmem>>, %arg6: memref<5x64x64xf32, #tpu.memory_space<vmem>>, %arg7: memref<5x1x64xf32, #tpu.memory_space<vmem>>, %arg8: memref<5x64x64xf32, #tpu.memory_space<vmem>>, %arg9: memref<5x1x64xf32, #tpu.memory_space<vmem>>, %arg10: memref<5x64x64xf32, #tpu.memory_space<vmem>>, %arg11: memref<5x1x64xf32, #tpu.memory_space<vmem>>, %arg12: memref<5x1x64xf32, #tpu.memory_space<vmem>>, %arg13: memref<5x1x64xf32, #tpu.memory_space<vmem>>, %arg14: memref<5x64x256xf32, #tpu.memory_space<vmem>>, %arg15: memref<5x1x256xf32, #tpu.memory_space<vmem>>, %arg16: memref<5x256x64xf32, #tpu.memory_space<vmem>>, %arg17: memref<5x1x64xf32, #tpu.memory_space<vmem>>, %arg18: memref<5x1x64xf32, #tpu.memory_space<vmem>>, %arg19: memref<5x1x64xf32, #tpu.memory_space<vmem>>, %arg20: memref<128x64xf32, #tpu.memory_space<vmem>>, %arg21: memref<128x16xf32, #tpu.memory_space<vmem>>, %arg22: memref<64x64xf32, #tpu.memory_space<vmem>>, %arg23: memref<64x16xf32, #tpu.memory_space<vmem>>, %arg24: memref<2x16xf32, #tpu.memory_space<vmem>>, %arg25: memref<64x64xf32, #tpu.memory_space<vmem>>, %arg26: memref<64x64xf32, #tpu.memory_space<vmem>>, %arg27: memref<1x64xf32, #tpu.memory_space<vmem>>, %arg28: memref<64x64xf32, #tpu.memory_space<vmem>>, %arg29: memref<1x64xf32, #tpu.memory_space<vmem>>, %arg30: memref<64x8xf32, #tpu.memory_space<vmem>>, %arg31: memref<1x8xf32, #tpu.memory_space<vmem>>, %arg32: memref<2x8xf32, #tpu.memory_space<vmem>>) attributes {dimension_semantics = [], scalar_prefetch = 0 : i64, scratch_operands = 0 : i64, tpu.core_type = #tpu.core_type<tc>} {
    %c0 = arith.constant 0 : index
    %c0_0 = arith.constant 0 : index
    %0 = vector.load %arg0[%c0, %c0_0] : memref<16x1xf32, #tpu.memory_space<vmem>>, vector<16x1xf32>
    %c0_1 = arith.constant 0 : index
    %c0_2 = arith.constant 0 : index
    %1 = vector.load %arg2[%c0_1, %c0_2] : memref<1x64xf32, #tpu.memory_space<vmem>>, vector<1x64xf32>
    %2 = vector.broadcast %0 : vector<16x1xf32> to vector<16x64xf32>
    %3 = vector.broadcast %1 : vector<1x64xf32> to vector<16x64xf32>
    %4 = arith.mulf %2, %3 : vector<16x64xf32>
    %c0_3 = arith.constant 0 : index
    %c0_4 = arith.constant 0 : index
    %5 = vector.load %arg3[%c0_3, %c0_4] : memref<1x64xf32, #tpu.memory_space<vmem>>, vector<1x64xf32>
    %6 = vector.broadcast %5 : vector<1x64xf32> to vector<16x64xf32>
    %7 = arith.addf %4, %6 : vector<16x64xf32>
    %c0_5 = arith.constant 0 : index
    %c0_6 = arith.constant 0 : index
    %8 = vector.load %arg1[%c0_5, %c0_6] : memref<8x64xf32, #tpu.memory_space<vmem>>, vector<8x64xf32>
    %9 = tpu.concatenate %8, %8 in 0 : vector<8x64xf32>, vector<8x64xf32> -> vector<16x64xf32>
    %10 = arith.addf %7, %9 : vector<16x64xf32>
    %c0_7 = arith.constant 0 : index
    %c0_8 = arith.constant 0 : index
    %11 = vector.load %arg20[%c0_7, %c0_8] : memref<128x64xf32, #tpu.memory_space<vmem>>, vector<128x64xf32>
    %c0_9 = arith.constant 0 : index
    %c0_10 = arith.constant 0 : index
    %12 = vector.load %arg21[%c0_9, %c0_10] : memref<128x16xf32, #tpu.memory_space<vmem>>, vector<128x16xf32>
    %c0_11 = arith.constant 0 : index
    %c0_12 = arith.constant 0 : index
    %13 = vector.load %arg22[%c0_11, %c0_12] : memref<64x64xf32, #tpu.memory_space<vmem>>, vector<64x64xf32>
    %c0_13 = arith.constant 0 : index
    %c0_14 = arith.constant 0 : index
    %14 = vector.load %arg23[%c0_13, %c0_14] : memref<64x16xf32, #tpu.memory_space<vmem>>, vector<64x16xf32>
    %c0_15 = arith.constant 0 : index
    %c0_16 = arith.constant 0 : index
    %c0_17 = arith.constant 0 : index
    %15 = vector.load %arg4[%c0_15, %c0_16, %c0_17] : memref<5x64x64xf32, #tpu.memory_space<vmem>>, vector<1x64x64xf32>
    %16 = vector.shape_cast %15 : vector<1x64x64xf32> to vector<64x64xf32>
    %cst = arith.constant dense<0.000000e+00> : vector<16x64xf32>
    %17 = tpu.matmul %10, %16, %cst {dimension_numbers = #tpu.dot_dimension_numbers<[1], [0], [0], [1], [0, 0, 1, 1], [], []>} : vector<16x64xf32>, vector<64x64xf32>, vector<16x64xf32> -> vector<16x64xf32>
    %c0_18 = arith.constant 0 : index
    %c0_19 = arith.constant 0 : index
    %c0_20 = arith.constant 0 : index
    %18 = vector.load %arg5[%c0_18, %c0_19, %c0_20] : memref<5x1x64xf32, #tpu.memory_space<vmem>>, vector<1x1x64xf32>
    %19 = vector.shape_cast %18 : vector<1x1x64xf32> to vector<1x64xf32>
    %20 = vector.broadcast %19 : vector<1x64xf32> to vector<16x64xf32>
    %21 = arith.addf %17, %20 : vector<16x64xf32>
    %c0_21 = arith.constant 0 : index
    %c0_22 = arith.constant 0 : index
    %c0_23 = arith.constant 0 : index
    %22 = vector.load %arg6[%c0_21, %c0_22, %c0_23] : memref<5x64x64xf32, #tpu.memory_space<vmem>>, vector<1x64x64xf32>
    %23 = vector.shape_cast %22 : vector<1x64x64xf32> to vector<64x64xf32>
    %cst_24 = arith.constant dense<0.000000e+00> : vector<16x64xf32>
    %24 = tpu.matmul %10, %23, %cst_24 {dimension_numbers = #tpu.dot_dimension_numbers<[1], [0], [0], [1], [0, 0, 1, 1], [], []>} : vector<16x64xf32>, vector<64x64xf32>, vector<16x64xf32> -> vector<16x64xf32>
    %c0_25 = arith.constant 0 : index
    %c0_26 = arith.constant 0 : index
    %c0_27 = arith.constant 0 : index
    %25 = vector.load %arg7[%c0_25, %c0_26, %c0_27] : memref<5x1x64xf32, #tpu.memory_space<vmem>>, vector<1x1x64xf32>
    %26 = vector.shape_cast %25 : vector<1x1x64xf32> to vector<1x64xf32>
    %27 = vector.broadcast %26 : vector<1x64xf32> to vector<16x64xf32>
    %28 = arith.addf %24, %27 : vector<16x64xf32>
    %c0_28 = arith.constant 0 : index
    %c0_29 = arith.constant 0 : index
    %c0_30 = arith.constant 0 : index
    %29 = vector.load %arg8[%c0_28, %c0_29, %c0_30] : memref<5x64x64xf32, #tpu.memory_space<vmem>>, vector<1x64x64xf32>
    %30 = vector.shape_cast %29 : vector<1x64x64xf32> to vector<64x64xf32>
    %cst_31 = arith.constant dense<0.000000e+00> : vector<16x64xf32>
    %31 = tpu.matmul %10, %30, %cst_31 {dimension_numbers = #tpu.dot_dimension_numbers<[1], [0], [0], [1], [0, 0, 1, 1], [], []>} : vector<16x64xf32>, vector<64x64xf32>, vector<16x64xf32> -> vector<16x64xf32>
    %c0_32 = arith.constant 0 : index
    %c0_33 = arith.constant 0 : index
    %c0_34 = arith.constant 0 : index
    %32 = vector.load %arg9[%c0_32, %c0_33, %c0_34] : memref<5x1x64xf32, #tpu.memory_space<vmem>>, vector<1x1x64xf32>
    %33 = vector.shape_cast %32 : vector<1x1x64xf32> to vector<1x64xf32>
    %34 = vector.broadcast %33 : vector<1x64xf32> to vector<16x64xf32>
    %35 = arith.addf %31, %34 : vector<16x64xf32>
    %36 = tpu.concatenate %21, %21, %21, %21, %21, %21, %21, %21 in 0 : vector<16x64xf32>, vector<16x64xf32>, vector<16x64xf32>, vector<16x64xf32>, vector<16x64xf32>, vector<16x64xf32>, vector<16x64xf32>, vector<16x64xf32> -> vector<128x64xf32>
    %37 = arith.mulf %36, %11 : vector<128x64xf32>
    %cst_35 = arith.constant dense<0.000000e+00> : vector<128x16xf32>
    %38 = tpu.matmul %37, %28, %cst_35 {dimension_numbers = #tpu.dot_dimension_numbers<[1], [1], [0], [0], [0, 0, 1, 0], [], []>} : vector<128x64xf32>, vector<16x64xf32>, vector<128x16xf32> -> vector<128x16xf32>
    %cst_36 = arith.constant 0.353553385 : f32
    %39 = vector.broadcast %cst_36 : f32 to vector<128x16xf32>
    %40 = arith.mulf %38, %39 : vector<128x16xf32>
    %41 = arith.addf %40, %12 : vector<128x16xf32>
    %cst_37 = arith.constant dense<0xFF800000> : vector<128xf32>
    %42 = vector.multi_reduction <maximumf>, %41, %cst_37 [1] : vector<128x16xf32> to vector<128xf32>
    %43 = vector.shape_cast %42 : vector<128xf32> to vector<128x1xf32>
    %44 = vector.broadcast %43 : vector<128x1xf32> to vector<128x16xf32>
    %45 = arith.subf %41, %44 : vector<128x16xf32>
    %46 = math.exp %45 : vector<128x16xf32>
    %cst_38 = arith.constant dense<0.000000e+00> : vector<128xf32>
    %47 = vector.multi_reduction <add>, %46, %cst_38 [1] : vector<128x16xf32> to vector<128xf32>
    %48 = vector.shape_cast %47 : vector<128xf32> to vector<128x1xf32>
    %49 = tpu.reciprocal %48 {approx = true} : vector<128x1xf32> -> vector<128x1xf32>
    %50 = vector.broadcast %49 : vector<128x1xf32> to vector<128x16xf32>
    %51 = arith.mulf %46, %50 : vector<128x16xf32>
    %cst_39 = arith.constant dense<0.000000e+00> : vector<128x64xf32>
    %52 = tpu.matmul %51, %35, %cst_39 {dimension_numbers = #tpu.dot_dimension_numbers<[1], [0], [0], [1], [0, 0, 1, 1], [], []>} : vector<128x16xf32>, vector<16x64xf32>, vector<128x64xf32> -> vector<128x64xf32>
    %53 = arith.mulf %52, %11 : vector<128x64xf32>
    %54 = vector.shape_cast %53 : vector<128x64xf32> to vector<8x16x64xf32>
    %cst_40 = arith.constant dense<0.000000e+00> : vector<16x64xf32>
    %55 = vector.multi_reduction <add>, %54, %cst_40 [0] : vector<8x16x64xf32> to vector<16x64xf32>
    %c0_41 = arith.constant 0 : index
    %c0_42 = arith.constant 0 : index
    %c0_43 = arith.constant 0 : index
    %56 = vector.load %arg10[%c0_41, %c0_42, %c0_43] : memref<5x64x64xf32, #tpu.memory_space<vmem>>, vector<1x64x64xf32>
    %57 = vector.shape_cast %56 : vector<1x64x64xf32> to vector<64x64xf32>
    %cst_44 = arith.constant dense<0.000000e+00> : vector<16x64xf32>
    %58 = tpu.matmul %55, %57, %cst_44 {dimension_numbers = #tpu.dot_dimension_numbers<[1], [0], [0], [1], [0, 0, 1, 1], [], []>} : vector<16x64xf32>, vector<64x64xf32>, vector<16x64xf32> -> vector<16x64xf32>
    %c0_45 = arith.constant 0 : index
    %c0_46 = arith.constant 0 : index
    %c0_47 = arith.constant 0 : index
    %59 = vector.load %arg11[%c0_45, %c0_46, %c0_47] : memref<5x1x64xf32, #tpu.memory_space<vmem>>, vector<1x1x64xf32>
    %60 = vector.shape_cast %59 : vector<1x1x64xf32> to vector<1x64xf32>
    %61 = vector.broadcast %60 : vector<1x64xf32> to vector<16x64xf32>
    %62 = arith.addf %58, %61 : vector<16x64xf32>
    %63 = arith.addf %10, %62 : vector<16x64xf32>
    %c0_48 = arith.constant 0 : index
    %c0_49 = arith.constant 0 : index
    %c0_50 = arith.constant 0 : index
    %64 = vector.load %arg12[%c0_48, %c0_49, %c0_50] : memref<5x1x64xf32, #tpu.memory_space<vmem>>, vector<1x1x64xf32>
    %65 = vector.shape_cast %64 : vector<1x1x64xf32> to vector<1x64xf32>
    %c0_51 = arith.constant 0 : index
    %c0_52 = arith.constant 0 : index
    %c0_53 = arith.constant 0 : index
    %66 = vector.load %arg13[%c0_51, %c0_52, %c0_53] : memref<5x1x64xf32, #tpu.memory_space<vmem>>, vector<1x1x64xf32>
    %67 = vector.shape_cast %66 : vector<1x1x64xf32> to vector<1x64xf32>
    %cst_54 = arith.constant dense<0.000000e+00> : vector<16xf32>
    %68 = vector.multi_reduction <add>, %63, %cst_54 [1] : vector<16x64xf32> to vector<16xf32>
    %69 = vector.shape_cast %68 : vector<16xf32> to vector<16x1xf32>
    %cst_55 = arith.constant 6.400000e+01 : f32
    %70 = vector.broadcast %cst_55 : f32 to vector<16x1xf32>
    %71 = arith.divf %69, %70 : vector<16x1xf32>
    %72 = vector.broadcast %71 : vector<16x1xf32> to vector<16x64xf32>
    %73 = arith.subf %63, %72 : vector<16x64xf32>
    %74 = arith.mulf %73, %73 : vector<16x64xf32>
    %cst_56 = arith.constant dense<0.000000e+00> : vector<16xf32>
    %75 = vector.multi_reduction <add>, %74, %cst_56 [1] : vector<16x64xf32> to vector<16xf32>
    %76 = vector.shape_cast %75 : vector<16xf32> to vector<16x1xf32>
    %cst_57 = arith.constant 6.400000e+01 : f32
    %77 = vector.broadcast %cst_57 : f32 to vector<16x1xf32>
    %78 = arith.divf %76, %77 : vector<16x1xf32>
    %cst_58 = arith.constant 9.99999974E-6 : f32
    %79 = vector.broadcast %cst_58 : f32 to vector<16x1xf32>
    %80 = arith.addf %78, %79 : vector<16x1xf32>
    %81 = math.rsqrt %80 : vector<16x1xf32>
    %82 = vector.broadcast %81 : vector<16x1xf32> to vector<16x64xf32>
    %83 = arith.mulf %73, %82 : vector<16x64xf32>
    %84 = vector.broadcast %65 : vector<1x64xf32> to vector<16x64xf32>
    %85 = arith.mulf %83, %84 : vector<16x64xf32>
    %86 = vector.broadcast %67 : vector<1x64xf32> to vector<16x64xf32>
    %87 = arith.addf %85, %86 : vector<16x64xf32>
    %c0_59 = arith.constant 0 : index
    %c0_60 = arith.constant 0 : index
    %c0_61 = arith.constant 0 : index
    %88 = vector.load %arg14[%c0_59, %c0_60, %c0_61] : memref<5x64x256xf32, #tpu.memory_space<vmem>>, vector<1x64x256xf32>
    %89 = vector.shape_cast %88 : vector<1x64x256xf32> to vector<64x256xf32>
    %cst_62 = arith.constant dense<0.000000e+00> : vector<16x256xf32>
    %90 = tpu.matmul %87, %89, %cst_62 {dimension_numbers = #tpu.dot_dimension_numbers<[1], [0], [0], [1], [0, 0, 1, 1], [], []>} : vector<16x64xf32>, vector<64x256xf32>, vector<16x256xf32> -> vector<16x256xf32>
    %c0_63 = arith.constant 0 : index
    %c0_64 = arith.constant 0 : index
    %c0_65 = arith.constant 0 : index
    %91 = vector.load %arg15[%c0_63, %c0_64, %c0_65] : memref<5x1x256xf32, #tpu.memory_space<vmem>>, vector<1x1x256xf32>
    %92 = vector.shape_cast %91 : vector<1x1x256xf32> to vector<1x256xf32>
    %93 = vector.broadcast %92 : vector<1x256xf32> to vector<16x256xf32>
    %94 = arith.addf %90, %93 : vector<16x256xf32>
    %cst_66 = arith.constant 0.000000e+00 : f32
    %95 = vector.broadcast %cst_66 : f32 to vector<16x256xf32>
    %96 = arith.maximumf %94, %95 : vector<16x256xf32>
    %c0_67 = arith.constant 0 : index
    %c0_68 = arith.constant 0 : index
    %c0_69 = arith.constant 0 : index
    %97 = vector.load %arg16[%c0_67, %c0_68, %c0_69] : memref<5x256x64xf32, #tpu.memory_space<vmem>>, vector<1x256x64xf32>
    %98 = vector.shape_cast %97 : vector<1x256x64xf32> to vector<256x64xf32>
    %cst_70 = arith.constant dense<0.000000e+00> : vector<16x64xf32>
    %99 = tpu.matmul %96, %98, %cst_70 {dimension_numbers = #tpu.dot_dimension_numbers<[1], [0], [0], [1], [0, 0, 1, 1], [], []>} : vector<16x256xf32>, vector<256x64xf32>, vector<16x64xf32> -> vector<16x64xf32>
    %c0_71 = arith.constant 0 : index
    %c0_72 = arith.constant 0 : index
    %c0_73 = arith.constant 0 : index
    %100 = vector.load %arg17[%c0_71, %c0_72, %c0_73] : memref<5x1x64xf32, #tpu.memory_space<vmem>>, vector<1x1x64xf32>
    %101 = vector.shape_cast %100 : vector<1x1x64xf32> to vector<1x64xf32>
    %102 = vector.broadcast %101 : vector<1x64xf32> to vector<16x64xf32>
    %103 = arith.addf %99, %102 : vector<16x64xf32>
    %104 = arith.addf %87, %103 : vector<16x64xf32>
    %c0_74 = arith.constant 0 : index
    %c0_75 = arith.constant 0 : index
    %c0_76 = arith.constant 0 : index
    %105 = vector.load %arg18[%c0_74, %c0_75, %c0_76] : memref<5x1x64xf32, #tpu.memory_space<vmem>>, vector<1x1x64xf32>
    %106 = vector.shape_cast %105 : vector<1x1x64xf32> to vector<1x64xf32>
    %c0_77 = arith.constant 0 : index
    %c0_78 = arith.constant 0 : index
    %c0_79 = arith.constant 0 : index
    %107 = vector.load %arg19[%c0_77, %c0_78, %c0_79] : memref<5x1x64xf32, #tpu.memory_space<vmem>>, vector<1x1x64xf32>
    %108 = vector.shape_cast %107 : vector<1x1x64xf32> to vector<1x64xf32>
    %cst_80 = arith.constant dense<0.000000e+00> : vector<16xf32>
    %109 = vector.multi_reduction <add>, %104, %cst_80 [1] : vector<16x64xf32> to vector<16xf32>
    %110 = vector.shape_cast %109 : vector<16xf32> to vector<16x1xf32>
    %cst_81 = arith.constant 6.400000e+01 : f32
    %111 = vector.broadcast %cst_81 : f32 to vector<16x1xf32>
    %112 = arith.divf %110, %111 : vector<16x1xf32>
    %113 = vector.broadcast %112 : vector<16x1xf32> to vector<16x64xf32>
    %114 = arith.subf %104, %113 : vector<16x64xf32>
    %115 = arith.mulf %114, %114 : vector<16x64xf32>
    %cst_82 = arith.constant dense<0.000000e+00> : vector<16xf32>
    %116 = vector.multi_reduction <add>, %115, %cst_82 [1] : vector<16x64xf32> to vector<16xf32>
    %117 = vector.shape_cast %116 : vector<16xf32> to vector<16x1xf32>
    %cst_83 = arith.constant 6.400000e+01 : f32
    %118 = vector.broadcast %cst_83 : f32 to vector<16x1xf32>
    %119 = arith.divf %117, %118 : vector<16x1xf32>
    %cst_84 = arith.constant 9.99999974E-6 : f32
    %120 = vector.broadcast %cst_84 : f32 to vector<16x1xf32>
    %121 = arith.addf %119, %120 : vector<16x1xf32>
    %122 = math.rsqrt %121 : vector<16x1xf32>
    %123 = vector.broadcast %122 : vector<16x1xf32> to vector<16x64xf32>
    %124 = arith.mulf %114, %123 : vector<16x64xf32>
    %125 = vector.broadcast %106 : vector<1x64xf32> to vector<16x64xf32>
    %126 = arith.mulf %124, %125 : vector<16x64xf32>
    %127 = vector.broadcast %108 : vector<1x64xf32> to vector<16x64xf32>
    %128 = arith.addf %126, %127 : vector<16x64xf32>
    %c1 = arith.constant 1 : index
    %c0_85 = arith.constant 0 : index
    %c0_86 = arith.constant 0 : index
    %129 = vector.load %arg4[%c1, %c0_85, %c0_86] : memref<5x64x64xf32, #tpu.memory_space<vmem>>, vector<1x64x64xf32>
    %130 = vector.shape_cast %129 : vector<1x64x64xf32> to vector<64x64xf32>
    %cst_87 = arith.constant dense<0.000000e+00> : vector<16x64xf32>
    %131 = tpu.matmul %10, %130, %cst_87 {dimension_numbers = #tpu.dot_dimension_numbers<[1], [0], [0], [1], [0, 0, 1, 1], [], []>} : vector<16x64xf32>, vector<64x64xf32>, vector<16x64xf32> -> vector<16x64xf32>
    %c1_88 = arith.constant 1 : index
    %c0_89 = arith.constant 0 : index
    %c0_90 = arith.constant 0 : index
    %132 = vector.load %arg5[%c1_88, %c0_89, %c0_90] : memref<5x1x64xf32, #tpu.memory_space<vmem>>, vector<1x1x64xf32>
    %133 = vector.shape_cast %132 : vector<1x1x64xf32> to vector<1x64xf32>
    %134 = vector.broadcast %133 : vector<1x64xf32> to vector<16x64xf32>
    %135 = arith.addf %131, %134 : vector<16x64xf32>
    %c1_91 = arith.constant 1 : index
    %c0_92 = arith.constant 0 : index
    %c0_93 = arith.constant 0 : index
    %136 = vector.load %arg6[%c1_91, %c0_92, %c0_93] : memref<5x64x64xf32, #tpu.memory_space<vmem>>, vector<1x64x64xf32>
    %137 = vector.shape_cast %136 : vector<1x64x64xf32> to vector<64x64xf32>
    %cst_94 = arith.constant dense<0.000000e+00> : vector<16x64xf32>
    %138 = tpu.matmul %10, %137, %cst_94 {dimension_numbers = #tpu.dot_dimension_numbers<[1], [0], [0], [1], [0, 0, 1, 1], [], []>} : vector<16x64xf32>, vector<64x64xf32>, vector<16x64xf32> -> vector<16x64xf32>
    %c1_95 = arith.constant 1 : index
    %c0_96 = arith.constant 0 : index
    %c0_97 = arith.constant 0 : index
    %139 = vector.load %arg7[%c1_95, %c0_96, %c0_97] : memref<5x1x64xf32, #tpu.memory_space<vmem>>, vector<1x1x64xf32>
    %140 = vector.shape_cast %139 : vector<1x1x64xf32> to vector<1x64xf32>
    %141 = vector.broadcast %140 : vector<1x64xf32> to vector<16x64xf32>
    %142 = arith.addf %138, %141 : vector<16x64xf32>
    %c1_98 = arith.constant 1 : index
    %c0_99 = arith.constant 0 : index
    %c0_100 = arith.constant 0 : index
    %143 = vector.load %arg8[%c1_98, %c0_99, %c0_100] : memref<5x64x64xf32, #tpu.memory_space<vmem>>, vector<1x64x64xf32>
    %144 = vector.shape_cast %143 : vector<1x64x64xf32> to vector<64x64xf32>
    %cst_101 = arith.constant dense<0.000000e+00> : vector<16x64xf32>
    %145 = tpu.matmul %10, %144, %cst_101 {dimension_numbers = #tpu.dot_dimension_numbers<[1], [0], [0], [1], [0, 0, 1, 1], [], []>} : vector<16x64xf32>, vector<64x64xf32>, vector<16x64xf32> -> vector<16x64xf32>
    %c1_102 = arith.constant 1 : index
    %c0_103 = arith.constant 0 : index
    %c0_104 = arith.constant 0 : index
    %146 = vector.load %arg9[%c1_102, %c0_103, %c0_104] : memref<5x1x64xf32, #tpu.memory_space<vmem>>, vector<1x1x64xf32>
    %147 = vector.shape_cast %146 : vector<1x1x64xf32> to vector<1x64xf32>
    %148 = vector.broadcast %147 : vector<1x64xf32> to vector<16x64xf32>
    %149 = arith.addf %145, %148 : vector<16x64xf32>
    %150 = tpu.concatenate %135, %135, %135, %135 in 0 : vector<16x64xf32>, vector<16x64xf32>, vector<16x64xf32>, vector<16x64xf32> -> vector<64x64xf32>
    %151 = arith.mulf %150, %13 : vector<64x64xf32>
    %cst_105 = arith.constant dense<0.000000e+00> : vector<64x16xf32>
    %152 = tpu.matmul %151, %142, %cst_105 {dimension_numbers = #tpu.dot_dimension_numbers<[1], [1], [0], [0], [0, 0, 1, 0], [], []>} : vector<64x64xf32>, vector<16x64xf32>, vector<64x16xf32> -> vector<64x16xf32>
    %cst_106 = arith.constant 2.500000e-01 : f32
    %153 = vector.broadcast %cst_106 : f32 to vector<64x16xf32>
    %154 = arith.mulf %152, %153 : vector<64x16xf32>
    %155 = arith.addf %154, %14 : vector<64x16xf32>
    %cst_107 = arith.constant dense<0xFF800000> : vector<64xf32>
    %156 = vector.multi_reduction <maximumf>, %155, %cst_107 [1] : vector<64x16xf32> to vector<64xf32>
    %157 = vector.shape_cast %156 : vector<64xf32> to vector<64x1xf32>
    %158 = vector.broadcast %157 : vector<64x1xf32> to vector<64x16xf32>
    %159 = arith.subf %155, %158 : vector<64x16xf32>
    %160 = math.exp %159 : vector<64x16xf32>
    %cst_108 = arith.constant dense<0.000000e+00> : vector<64xf32>
    %161 = vector.multi_reduction <add>, %160, %cst_108 [1] : vector<64x16xf32> to vector<64xf32>
    %162 = vector.shape_cast %161 : vector<64xf32> to vector<64x1xf32>
    %163 = tpu.reciprocal %162 {approx = true} : vector<64x1xf32> -> vector<64x1xf32>
    %164 = vector.broadcast %163 : vector<64x1xf32> to vector<64x16xf32>
    %165 = arith.mulf %160, %164 : vector<64x16xf32>
    %cst_109 = arith.constant dense<0.000000e+00> : vector<64x64xf32>
    %166 = tpu.matmul %165, %149, %cst_109 {dimension_numbers = #tpu.dot_dimension_numbers<[1], [0], [0], [1], [0, 0, 1, 1], [], []>} : vector<64x16xf32>, vector<16x64xf32>, vector<64x64xf32> -> vector<64x64xf32>
    %167 = arith.mulf %166, %13 : vector<64x64xf32>
    %168 = vector.shape_cast %167 : vector<64x64xf32> to vector<4x16x64xf32>
    %cst_110 = arith.constant dense<0.000000e+00> : vector<16x64xf32>
    %169 = vector.multi_reduction <add>, %168, %cst_110 [0] : vector<4x16x64xf32> to vector<16x64xf32>
    %c1_111 = arith.constant 1 : index
    %c0_112 = arith.constant 0 : index
    %c0_113 = arith.constant 0 : index
    %170 = vector.load %arg10[%c1_111, %c0_112, %c0_113] : memref<5x64x64xf32, #tpu.memory_space<vmem>>, vector<1x64x64xf32>
    %171 = vector.shape_cast %170 : vector<1x64x64xf32> to vector<64x64xf32>
    %cst_114 = arith.constant dense<0.000000e+00> : vector<16x64xf32>
    %172 = tpu.matmul %169, %171, %cst_114 {dimension_numbers = #tpu.dot_dimension_numbers<[1], [0], [0], [1], [0, 0, 1, 1], [], []>} : vector<16x64xf32>, vector<64x64xf32>, vector<16x64xf32> -> vector<16x64xf32>
    %c1_115 = arith.constant 1 : index
    %c0_116 = arith.constant 0 : index
    %c0_117 = arith.constant 0 : index
    %173 = vector.load %arg11[%c1_115, %c0_116, %c0_117] : memref<5x1x64xf32, #tpu.memory_space<vmem>>, vector<1x1x64xf32>
    %174 = vector.shape_cast %173 : vector<1x1x64xf32> to vector<1x64xf32>
    %175 = vector.broadcast %174 : vector<1x64xf32> to vector<16x64xf32>
    %176 = arith.addf %172, %175 : vector<16x64xf32>
    %177 = arith.addf %10, %176 : vector<16x64xf32>
    %c1_118 = arith.constant 1 : index
    %c0_119 = arith.constant 0 : index
    %c0_120 = arith.constant 0 : index
    %178 = vector.load %arg12[%c1_118, %c0_119, %c0_120] : memref<5x1x64xf32, #tpu.memory_space<vmem>>, vector<1x1x64xf32>
    %179 = vector.shape_cast %178 : vector<1x1x64xf32> to vector<1x64xf32>
    %c1_121 = arith.constant 1 : index
    %c0_122 = arith.constant 0 : index
    %c0_123 = arith.constant 0 : index
    %180 = vector.load %arg13[%c1_121, %c0_122, %c0_123] : memref<5x1x64xf32, #tpu.memory_space<vmem>>, vector<1x1x64xf32>
    %181 = vector.shape_cast %180 : vector<1x1x64xf32> to vector<1x64xf32>
    %cst_124 = arith.constant dense<0.000000e+00> : vector<16xf32>
    %182 = vector.multi_reduction <add>, %177, %cst_124 [1] : vector<16x64xf32> to vector<16xf32>
    %183 = vector.shape_cast %182 : vector<16xf32> to vector<16x1xf32>
    %cst_125 = arith.constant 6.400000e+01 : f32
    %184 = vector.broadcast %cst_125 : f32 to vector<16x1xf32>
    %185 = arith.divf %183, %184 : vector<16x1xf32>
    %186 = vector.broadcast %185 : vector<16x1xf32> to vector<16x64xf32>
    %187 = arith.subf %177, %186 : vector<16x64xf32>
    %188 = arith.mulf %187, %187 : vector<16x64xf32>
    %cst_126 = arith.constant dense<0.000000e+00> : vector<16xf32>
    %189 = vector.multi_reduction <add>, %188, %cst_126 [1] : vector<16x64xf32> to vector<16xf32>
    %190 = vector.shape_cast %189 : vector<16xf32> to vector<16x1xf32>
    %cst_127 = arith.constant 6.400000e+01 : f32
    %191 = vector.broadcast %cst_127 : f32 to vector<16x1xf32>
    %192 = arith.divf %190, %191 : vector<16x1xf32>
    %cst_128 = arith.constant 9.99999974E-6 : f32
    %193 = vector.broadcast %cst_128 : f32 to vector<16x1xf32>
    %194 = arith.addf %192, %193 : vector<16x1xf32>
    %195 = math.rsqrt %194 : vector<16x1xf32>
    %196 = vector.broadcast %195 : vector<16x1xf32> to vector<16x64xf32>
    %197 = arith.mulf %187, %196 : vector<16x64xf32>
    %198 = vector.broadcast %179 : vector<1x64xf32> to vector<16x64xf32>
    %199 = arith.mulf %197, %198 : vector<16x64xf32>
    %200 = vector.broadcast %181 : vector<1x64xf32> to vector<16x64xf32>
    %201 = arith.addf %199, %200 : vector<16x64xf32>
    %c1_129 = arith.constant 1 : index
    %c0_130 = arith.constant 0 : index
    %c0_131 = arith.constant 0 : index
    %202 = vector.load %arg14[%c1_129, %c0_130, %c0_131] : memref<5x64x256xf32, #tpu.memory_space<vmem>>, vector<1x64x256xf32>
    %203 = vector.shape_cast %202 : vector<1x64x256xf32> to vector<64x256xf32>
    %cst_132 = arith.constant dense<0.000000e+00> : vector<16x256xf32>
    %204 = tpu.matmul %201, %203, %cst_132 {dimension_numbers = #tpu.dot_dimension_numbers<[1], [0], [0], [1], [0, 0, 1, 1], [], []>} : vector<16x64xf32>, vector<64x256xf32>, vector<16x256xf32> -> vector<16x256xf32>
    %c1_133 = arith.constant 1 : index
    %c0_134 = arith.constant 0 : index
    %c0_135 = arith.constant 0 : index
    %205 = vector.load %arg15[%c1_133, %c0_134, %c0_135] : memref<5x1x256xf32, #tpu.memory_space<vmem>>, vector<1x1x256xf32>
    %206 = vector.shape_cast %205 : vector<1x1x256xf32> to vector<1x256xf32>
    %207 = vector.broadcast %206 : vector<1x256xf32> to vector<16x256xf32>
    %208 = arith.addf %204, %207 : vector<16x256xf32>
    %cst_136 = arith.constant 0.000000e+00 : f32
    %209 = vector.broadcast %cst_136 : f32 to vector<16x256xf32>
    %210 = arith.maximumf %208, %209 : vector<16x256xf32>
    %c1_137 = arith.constant 1 : index
    %c0_138 = arith.constant 0 : index
    %c0_139 = arith.constant 0 : index
    %211 = vector.load %arg16[%c1_137, %c0_138, %c0_139] : memref<5x256x64xf32, #tpu.memory_space<vmem>>, vector<1x256x64xf32>
    %212 = vector.shape_cast %211 : vector<1x256x64xf32> to vector<256x64xf32>
    %cst_140 = arith.constant dense<0.000000e+00> : vector<16x64xf32>
    %213 = tpu.matmul %210, %212, %cst_140 {dimension_numbers = #tpu.dot_dimension_numbers<[1], [0], [0], [1], [0, 0, 1, 1], [], []>} : vector<16x256xf32>, vector<256x64xf32>, vector<16x64xf32> -> vector<16x64xf32>
    %c1_141 = arith.constant 1 : index
    %c0_142 = arith.constant 0 : index
    %c0_143 = arith.constant 0 : index
    %214 = vector.load %arg17[%c1_141, %c0_142, %c0_143] : memref<5x1x64xf32, #tpu.memory_space<vmem>>, vector<1x1x64xf32>
    %215 = vector.shape_cast %214 : vector<1x1x64xf32> to vector<1x64xf32>
    %216 = vector.broadcast %215 : vector<1x64xf32> to vector<16x64xf32>
    %217 = arith.addf %213, %216 : vector<16x64xf32>
    %218 = arith.addf %201, %217 : vector<16x64xf32>
    %c1_144 = arith.constant 1 : index
    %c0_145 = arith.constant 0 : index
    %c0_146 = arith.constant 0 : index
    %219 = vector.load %arg18[%c1_144, %c0_145, %c0_146] : memref<5x1x64xf32, #tpu.memory_space<vmem>>, vector<1x1x64xf32>
    %220 = vector.shape_cast %219 : vector<1x1x64xf32> to vector<1x64xf32>
    %c1_147 = arith.constant 1 : index
    %c0_148 = arith.constant 0 : index
    %c0_149 = arith.constant 0 : index
    %221 = vector.load %arg19[%c1_147, %c0_148, %c0_149] : memref<5x1x64xf32, #tpu.memory_space<vmem>>, vector<1x1x64xf32>
    %222 = vector.shape_cast %221 : vector<1x1x64xf32> to vector<1x64xf32>
    %cst_150 = arith.constant dense<0.000000e+00> : vector<16xf32>
    %223 = vector.multi_reduction <add>, %218, %cst_150 [1] : vector<16x64xf32> to vector<16xf32>
    %224 = vector.shape_cast %223 : vector<16xf32> to vector<16x1xf32>
    %cst_151 = arith.constant 6.400000e+01 : f32
    %225 = vector.broadcast %cst_151 : f32 to vector<16x1xf32>
    %226 = arith.divf %224, %225 : vector<16x1xf32>
    %227 = vector.broadcast %226 : vector<16x1xf32> to vector<16x64xf32>
    %228 = arith.subf %218, %227 : vector<16x64xf32>
    %229 = arith.mulf %228, %228 : vector<16x64xf32>
    %cst_152 = arith.constant dense<0.000000e+00> : vector<16xf32>
    %230 = vector.multi_reduction <add>, %229, %cst_152 [1] : vector<16x64xf32> to vector<16xf32>
    %231 = vector.shape_cast %230 : vector<16xf32> to vector<16x1xf32>
    %cst_153 = arith.constant 6.400000e+01 : f32
    %232 = vector.broadcast %cst_153 : f32 to vector<16x1xf32>
    %233 = arith.divf %231, %232 : vector<16x1xf32>
    %cst_154 = arith.constant 9.99999974E-6 : f32
    %234 = vector.broadcast %cst_154 : f32 to vector<16x1xf32>
    %235 = arith.addf %233, %234 : vector<16x1xf32>
    %236 = math.rsqrt %235 : vector<16x1xf32>
    %237 = vector.broadcast %236 : vector<16x1xf32> to vector<16x64xf32>
    %238 = arith.mulf %228, %237 : vector<16x64xf32>
    %239 = vector.broadcast %220 : vector<1x64xf32> to vector<16x64xf32>
    %240 = arith.mulf %238, %239 : vector<16x64xf32>
    %241 = vector.broadcast %222 : vector<1x64xf32> to vector<16x64xf32>
    %242 = arith.addf %240, %241 : vector<16x64xf32>
    %c2 = arith.constant 2 : index
    %c0_155 = arith.constant 0 : index
    %c0_156 = arith.constant 0 : index
    %243 = vector.load %arg4[%c2, %c0_155, %c0_156] : memref<5x64x64xf32, #tpu.memory_space<vmem>>, vector<1x64x64xf32>
    %244 = vector.shape_cast %243 : vector<1x64x64xf32> to vector<64x64xf32>
    %cst_157 = arith.constant dense<0.000000e+00> : vector<16x64xf32>
    %245 = tpu.matmul %242, %244, %cst_157 {dimension_numbers = #tpu.dot_dimension_numbers<[1], [0], [0], [1], [0, 0, 1, 1], [], []>} : vector<16x64xf32>, vector<64x64xf32>, vector<16x64xf32> -> vector<16x64xf32>
    %c2_158 = arith.constant 2 : index
    %c0_159 = arith.constant 0 : index
    %c0_160 = arith.constant 0 : index
    %246 = vector.load %arg5[%c2_158, %c0_159, %c0_160] : memref<5x1x64xf32, #tpu.memory_space<vmem>>, vector<1x1x64xf32>
    %247 = vector.shape_cast %246 : vector<1x1x64xf32> to vector<1x64xf32>
    %248 = vector.broadcast %247 : vector<1x64xf32> to vector<16x64xf32>
    %249 = arith.addf %245, %248 : vector<16x64xf32>
    %c2_161 = arith.constant 2 : index
    %c0_162 = arith.constant 0 : index
    %c0_163 = arith.constant 0 : index
    %250 = vector.load %arg6[%c2_161, %c0_162, %c0_163] : memref<5x64x64xf32, #tpu.memory_space<vmem>>, vector<1x64x64xf32>
    %251 = vector.shape_cast %250 : vector<1x64x64xf32> to vector<64x64xf32>
    %cst_164 = arith.constant dense<0.000000e+00> : vector<16x64xf32>
    %252 = tpu.matmul %242, %251, %cst_164 {dimension_numbers = #tpu.dot_dimension_numbers<[1], [0], [0], [1], [0, 0, 1, 1], [], []>} : vector<16x64xf32>, vector<64x64xf32>, vector<16x64xf32> -> vector<16x64xf32>
    %c2_165 = arith.constant 2 : index
    %c0_166 = arith.constant 0 : index
    %c0_167 = arith.constant 0 : index
    %253 = vector.load %arg7[%c2_165, %c0_166, %c0_167] : memref<5x1x64xf32, #tpu.memory_space<vmem>>, vector<1x1x64xf32>
    %254 = vector.shape_cast %253 : vector<1x1x64xf32> to vector<1x64xf32>
    %255 = vector.broadcast %254 : vector<1x64xf32> to vector<16x64xf32>
    %256 = arith.addf %252, %255 : vector<16x64xf32>
    %c2_168 = arith.constant 2 : index
    %c0_169 = arith.constant 0 : index
    %c0_170 = arith.constant 0 : index
    %257 = vector.load %arg8[%c2_168, %c0_169, %c0_170] : memref<5x64x64xf32, #tpu.memory_space<vmem>>, vector<1x64x64xf32>
    %258 = vector.shape_cast %257 : vector<1x64x64xf32> to vector<64x64xf32>
    %cst_171 = arith.constant dense<0.000000e+00> : vector<16x64xf32>
    %259 = tpu.matmul %242, %258, %cst_171 {dimension_numbers = #tpu.dot_dimension_numbers<[1], [0], [0], [1], [0, 0, 1, 1], [], []>} : vector<16x64xf32>, vector<64x64xf32>, vector<16x64xf32> -> vector<16x64xf32>
    %c2_172 = arith.constant 2 : index
    %c0_173 = arith.constant 0 : index
    %c0_174 = arith.constant 0 : index
    %260 = vector.load %arg9[%c2_172, %c0_173, %c0_174] : memref<5x1x64xf32, #tpu.memory_space<vmem>>, vector<1x1x64xf32>
    %261 = vector.shape_cast %260 : vector<1x1x64xf32> to vector<1x64xf32>
    %262 = vector.broadcast %261 : vector<1x64xf32> to vector<16x64xf32>
    %263 = arith.addf %259, %262 : vector<16x64xf32>
    %264 = tpu.concatenate %249, %249, %249, %249 in 0 : vector<16x64xf32>, vector<16x64xf32>, vector<16x64xf32>, vector<16x64xf32> -> vector<64x64xf32>
    %265 = arith.mulf %264, %13 : vector<64x64xf32>
    %cst_175 = arith.constant dense<0.000000e+00> : vector<64x16xf32>
    %266 = tpu.matmul %265, %256, %cst_175 {dimension_numbers = #tpu.dot_dimension_numbers<[1], [1], [0], [0], [0, 0, 1, 0], [], []>} : vector<64x64xf32>, vector<16x64xf32>, vector<64x16xf32> -> vector<64x16xf32>
    %cst_176 = arith.constant 2.500000e-01 : f32
    %267 = vector.broadcast %cst_176 : f32 to vector<64x16xf32>
    %268 = arith.mulf %266, %267 : vector<64x16xf32>
    %269 = arith.addf %268, %14 : vector<64x16xf32>
    %cst_177 = arith.constant dense<0xFF800000> : vector<64xf32>
    %270 = vector.multi_reduction <maximumf>, %269, %cst_177 [1] : vector<64x16xf32> to vector<64xf32>
    %271 = vector.shape_cast %270 : vector<64xf32> to vector<64x1xf32>
    %272 = vector.broadcast %271 : vector<64x1xf32> to vector<64x16xf32>
    %273 = arith.subf %269, %272 : vector<64x16xf32>
    %274 = math.exp %273 : vector<64x16xf32>
    %cst_178 = arith.constant dense<0.000000e+00> : vector<64xf32>
    %275 = vector.multi_reduction <add>, %274, %cst_178 [1] : vector<64x16xf32> to vector<64xf32>
    %276 = vector.shape_cast %275 : vector<64xf32> to vector<64x1xf32>
    %277 = tpu.reciprocal %276 {approx = true} : vector<64x1xf32> -> vector<64x1xf32>
    %278 = vector.broadcast %277 : vector<64x1xf32> to vector<64x16xf32>
    %279 = arith.mulf %274, %278 : vector<64x16xf32>
    %cst_179 = arith.constant dense<0.000000e+00> : vector<64x64xf32>
    %280 = tpu.matmul %279, %263, %cst_179 {dimension_numbers = #tpu.dot_dimension_numbers<[1], [0], [0], [1], [0, 0, 1, 1], [], []>} : vector<64x16xf32>, vector<16x64xf32>, vector<64x64xf32> -> vector<64x64xf32>
    %281 = arith.mulf %280, %13 : vector<64x64xf32>
    %282 = vector.shape_cast %281 : vector<64x64xf32> to vector<4x16x64xf32>
    %cst_180 = arith.constant dense<0.000000e+00> : vector<16x64xf32>
    %283 = vector.multi_reduction <add>, %282, %cst_180 [0] : vector<4x16x64xf32> to vector<16x64xf32>
    %c2_181 = arith.constant 2 : index
    %c0_182 = arith.constant 0 : index
    %c0_183 = arith.constant 0 : index
    %284 = vector.load %arg10[%c2_181, %c0_182, %c0_183] : memref<5x64x64xf32, #tpu.memory_space<vmem>>, vector<1x64x64xf32>
    %285 = vector.shape_cast %284 : vector<1x64x64xf32> to vector<64x64xf32>
    %cst_184 = arith.constant dense<0.000000e+00> : vector<16x64xf32>
    %286 = tpu.matmul %283, %285, %cst_184 {dimension_numbers = #tpu.dot_dimension_numbers<[1], [0], [0], [1], [0, 0, 1, 1], [], []>} : vector<16x64xf32>, vector<64x64xf32>, vector<16x64xf32> -> vector<16x64xf32>
    %c2_185 = arith.constant 2 : index
    %c0_186 = arith.constant 0 : index
    %c0_187 = arith.constant 0 : index
    %287 = vector.load %arg11[%c2_185, %c0_186, %c0_187] : memref<5x1x64xf32, #tpu.memory_space<vmem>>, vector<1x1x64xf32>
    %288 = vector.shape_cast %287 : vector<1x1x64xf32> to vector<1x64xf32>
    %289 = vector.broadcast %288 : vector<1x64xf32> to vector<16x64xf32>
    %290 = arith.addf %286, %289 : vector<16x64xf32>
    %291 = arith.addf %242, %290 : vector<16x64xf32>
    %c2_188 = arith.constant 2 : index
    %c0_189 = arith.constant 0 : index
    %c0_190 = arith.constant 0 : index
    %292 = vector.load %arg12[%c2_188, %c0_189, %c0_190] : memref<5x1x64xf32, #tpu.memory_space<vmem>>, vector<1x1x64xf32>
    %293 = vector.shape_cast %292 : vector<1x1x64xf32> to vector<1x64xf32>
    %c2_191 = arith.constant 2 : index
    %c0_192 = arith.constant 0 : index
    %c0_193 = arith.constant 0 : index
    %294 = vector.load %arg13[%c2_191, %c0_192, %c0_193] : memref<5x1x64xf32, #tpu.memory_space<vmem>>, vector<1x1x64xf32>
    %295 = vector.shape_cast %294 : vector<1x1x64xf32> to vector<1x64xf32>
    %cst_194 = arith.constant dense<0.000000e+00> : vector<16xf32>
    %296 = vector.multi_reduction <add>, %291, %cst_194 [1] : vector<16x64xf32> to vector<16xf32>
    %297 = vector.shape_cast %296 : vector<16xf32> to vector<16x1xf32>
    %cst_195 = arith.constant 6.400000e+01 : f32
    %298 = vector.broadcast %cst_195 : f32 to vector<16x1xf32>
    %299 = arith.divf %297, %298 : vector<16x1xf32>
    %300 = vector.broadcast %299 : vector<16x1xf32> to vector<16x64xf32>
    %301 = arith.subf %291, %300 : vector<16x64xf32>
    %302 = arith.mulf %301, %301 : vector<16x64xf32>
    %cst_196 = arith.constant dense<0.000000e+00> : vector<16xf32>
    %303 = vector.multi_reduction <add>, %302, %cst_196 [1] : vector<16x64xf32> to vector<16xf32>
    %304 = vector.shape_cast %303 : vector<16xf32> to vector<16x1xf32>
    %cst_197 = arith.constant 6.400000e+01 : f32
    %305 = vector.broadcast %cst_197 : f32 to vector<16x1xf32>
    %306 = arith.divf %304, %305 : vector<16x1xf32>
    %cst_198 = arith.constant 9.99999974E-6 : f32
    %307 = vector.broadcast %cst_198 : f32 to vector<16x1xf32>
    %308 = arith.addf %306, %307 : vector<16x1xf32>
    %309 = math.rsqrt %308 : vector<16x1xf32>
    %310 = vector.broadcast %309 : vector<16x1xf32> to vector<16x64xf32>
    %311 = arith.mulf %301, %310 : vector<16x64xf32>
    %312 = vector.broadcast %293 : vector<1x64xf32> to vector<16x64xf32>
    %313 = arith.mulf %311, %312 : vector<16x64xf32>
    %314 = vector.broadcast %295 : vector<1x64xf32> to vector<16x64xf32>
    %315 = arith.addf %313, %314 : vector<16x64xf32>
    %c2_199 = arith.constant 2 : index
    %c0_200 = arith.constant 0 : index
    %c0_201 = arith.constant 0 : index
    %316 = vector.load %arg14[%c2_199, %c0_200, %c0_201] : memref<5x64x256xf32, #tpu.memory_space<vmem>>, vector<1x64x256xf32>
    %317 = vector.shape_cast %316 : vector<1x64x256xf32> to vector<64x256xf32>
    %cst_202 = arith.constant dense<0.000000e+00> : vector<16x256xf32>
    %318 = tpu.matmul %315, %317, %cst_202 {dimension_numbers = #tpu.dot_dimension_numbers<[1], [0], [0], [1], [0, 0, 1, 1], [], []>} : vector<16x64xf32>, vector<64x256xf32>, vector<16x256xf32> -> vector<16x256xf32>
    %c2_203 = arith.constant 2 : index
    %c0_204 = arith.constant 0 : index
    %c0_205 = arith.constant 0 : index
    %319 = vector.load %arg15[%c2_203, %c0_204, %c0_205] : memref<5x1x256xf32, #tpu.memory_space<vmem>>, vector<1x1x256xf32>
    %320 = vector.shape_cast %319 : vector<1x1x256xf32> to vector<1x256xf32>
    %321 = vector.broadcast %320 : vector<1x256xf32> to vector<16x256xf32>
    %322 = arith.addf %318, %321 : vector<16x256xf32>
    %cst_206 = arith.constant 0.000000e+00 : f32
    %323 = vector.broadcast %cst_206 : f32 to vector<16x256xf32>
    %324 = arith.maximumf %322, %323 : vector<16x256xf32>
    %c2_207 = arith.constant 2 : index
    %c0_208 = arith.constant 0 : index
    %c0_209 = arith.constant 0 : index
    %325 = vector.load %arg16[%c2_207, %c0_208, %c0_209] : memref<5x256x64xf32, #tpu.memory_space<vmem>>, vector<1x256x64xf32>
    %326 = vector.shape_cast %325 : vector<1x256x64xf32> to vector<256x64xf32>
    %cst_210 = arith.constant dense<0.000000e+00> : vector<16x64xf32>
    %327 = tpu.matmul %324, %326, %cst_210 {dimension_numbers = #tpu.dot_dimension_numbers<[1], [0], [0], [1], [0, 0, 1, 1], [], []>} : vector<16x256xf32>, vector<256x64xf32>, vector<16x64xf32> -> vector<16x64xf32>
    %c2_211 = arith.constant 2 : index
    %c0_212 = arith.constant 0 : index
    %c0_213 = arith.constant 0 : index
    %328 = vector.load %arg17[%c2_211, %c0_212, %c0_213] : memref<5x1x64xf32, #tpu.memory_space<vmem>>, vector<1x1x64xf32>
    %329 = vector.shape_cast %328 : vector<1x1x64xf32> to vector<1x64xf32>
    %330 = vector.broadcast %329 : vector<1x64xf32> to vector<16x64xf32>
    %331 = arith.addf %327, %330 : vector<16x64xf32>
    %332 = arith.addf %315, %331 : vector<16x64xf32>
    %c2_214 = arith.constant 2 : index
    %c0_215 = arith.constant 0 : index
    %c0_216 = arith.constant 0 : index
    %333 = vector.load %arg18[%c2_214, %c0_215, %c0_216] : memref<5x1x64xf32, #tpu.memory_space<vmem>>, vector<1x1x64xf32>
    %334 = vector.shape_cast %333 : vector<1x1x64xf32> to vector<1x64xf32>
    %c2_217 = arith.constant 2 : index
    %c0_218 = arith.constant 0 : index
    %c0_219 = arith.constant 0 : index
    %335 = vector.load %arg19[%c2_217, %c0_218, %c0_219] : memref<5x1x64xf32, #tpu.memory_space<vmem>>, vector<1x1x64xf32>
    %336 = vector.shape_cast %335 : vector<1x1x64xf32> to vector<1x64xf32>
    %cst_220 = arith.constant dense<0.000000e+00> : vector<16xf32>
    %337 = vector.multi_reduction <add>, %332, %cst_220 [1] : vector<16x64xf32> to vector<16xf32>
    %338 = vector.shape_cast %337 : vector<16xf32> to vector<16x1xf32>
    %cst_221 = arith.constant 6.400000e+01 : f32
    %339 = vector.broadcast %cst_221 : f32 to vector<16x1xf32>
    %340 = arith.divf %338, %339 : vector<16x1xf32>
    %341 = vector.broadcast %340 : vector<16x1xf32> to vector<16x64xf32>
    %342 = arith.subf %332, %341 : vector<16x64xf32>
    %343 = arith.mulf %342, %342 : vector<16x64xf32>
    %cst_222 = arith.constant dense<0.000000e+00> : vector<16xf32>
    %344 = vector.multi_reduction <add>, %343, %cst_222 [1] : vector<16x64xf32> to vector<16xf32>
    %345 = vector.shape_cast %344 : vector<16xf32> to vector<16x1xf32>
    %cst_223 = arith.constant 6.400000e+01 : f32
    %346 = vector.broadcast %cst_223 : f32 to vector<16x1xf32>
    %347 = arith.divf %345, %346 : vector<16x1xf32>
    %cst_224 = arith.constant 9.99999974E-6 : f32
    %348 = vector.broadcast %cst_224 : f32 to vector<16x1xf32>
    %349 = arith.addf %347, %348 : vector<16x1xf32>
    %350 = math.rsqrt %349 : vector<16x1xf32>
    %351 = vector.broadcast %350 : vector<16x1xf32> to vector<16x64xf32>
    %352 = arith.mulf %342, %351 : vector<16x64xf32>
    %353 = vector.broadcast %334 : vector<1x64xf32> to vector<16x64xf32>
    %354 = arith.mulf %352, %353 : vector<16x64xf32>
    %355 = vector.broadcast %336 : vector<1x64xf32> to vector<16x64xf32>
    %356 = arith.addf %354, %355 : vector<16x64xf32>
    %c3 = arith.constant 3 : index
    %c0_225 = arith.constant 0 : index
    %c0_226 = arith.constant 0 : index
    %357 = vector.load %arg4[%c3, %c0_225, %c0_226] : memref<5x64x64xf32, #tpu.memory_space<vmem>>, vector<1x64x64xf32>
    %358 = vector.shape_cast %357 : vector<1x64x64xf32> to vector<64x64xf32>
    %cst_227 = arith.constant dense<0.000000e+00> : vector<16x64xf32>
    %359 = tpu.matmul %356, %358, %cst_227 {dimension_numbers = #tpu.dot_dimension_numbers<[1], [0], [0], [1], [0, 0, 1, 1], [], []>} : vector<16x64xf32>, vector<64x64xf32>, vector<16x64xf32> -> vector<16x64xf32>
    %c3_228 = arith.constant 3 : index
    %c0_229 = arith.constant 0 : index
    %c0_230 = arith.constant 0 : index
    %360 = vector.load %arg5[%c3_228, %c0_229, %c0_230] : memref<5x1x64xf32, #tpu.memory_space<vmem>>, vector<1x1x64xf32>
    %361 = vector.shape_cast %360 : vector<1x1x64xf32> to vector<1x64xf32>
    %362 = vector.broadcast %361 : vector<1x64xf32> to vector<16x64xf32>
    %363 = arith.addf %359, %362 : vector<16x64xf32>
    %c3_231 = arith.constant 3 : index
    %c0_232 = arith.constant 0 : index
    %c0_233 = arith.constant 0 : index
    %364 = vector.load %arg6[%c3_231, %c0_232, %c0_233] : memref<5x64x64xf32, #tpu.memory_space<vmem>>, vector<1x64x64xf32>
    %365 = vector.shape_cast %364 : vector<1x64x64xf32> to vector<64x64xf32>
    %cst_234 = arith.constant dense<0.000000e+00> : vector<16x64xf32>
    %366 = tpu.matmul %356, %365, %cst_234 {dimension_numbers = #tpu.dot_dimension_numbers<[1], [0], [0], [1], [0, 0, 1, 1], [], []>} : vector<16x64xf32>, vector<64x64xf32>, vector<16x64xf32> -> vector<16x64xf32>
    %c3_235 = arith.constant 3 : index
    %c0_236 = arith.constant 0 : index
    %c0_237 = arith.constant 0 : index
    %367 = vector.load %arg7[%c3_235, %c0_236, %c0_237] : memref<5x1x64xf32, #tpu.memory_space<vmem>>, vector<1x1x64xf32>
    %368 = vector.shape_cast %367 : vector<1x1x64xf32> to vector<1x64xf32>
    %369 = vector.broadcast %368 : vector<1x64xf32> to vector<16x64xf32>
    %370 = arith.addf %366, %369 : vector<16x64xf32>
    %c3_238 = arith.constant 3 : index
    %c0_239 = arith.constant 0 : index
    %c0_240 = arith.constant 0 : index
    %371 = vector.load %arg8[%c3_238, %c0_239, %c0_240] : memref<5x64x64xf32, #tpu.memory_space<vmem>>, vector<1x64x64xf32>
    %372 = vector.shape_cast %371 : vector<1x64x64xf32> to vector<64x64xf32>
    %cst_241 = arith.constant dense<0.000000e+00> : vector<16x64xf32>
    %373 = tpu.matmul %356, %372, %cst_241 {dimension_numbers = #tpu.dot_dimension_numbers<[1], [0], [0], [1], [0, 0, 1, 1], [], []>} : vector<16x64xf32>, vector<64x64xf32>, vector<16x64xf32> -> vector<16x64xf32>
    %c3_242 = arith.constant 3 : index
    %c0_243 = arith.constant 0 : index
    %c0_244 = arith.constant 0 : index
    %374 = vector.load %arg9[%c3_242, %c0_243, %c0_244] : memref<5x1x64xf32, #tpu.memory_space<vmem>>, vector<1x1x64xf32>
    %375 = vector.shape_cast %374 : vector<1x1x64xf32> to vector<1x64xf32>
    %376 = vector.broadcast %375 : vector<1x64xf32> to vector<16x64xf32>
    %377 = arith.addf %373, %376 : vector<16x64xf32>
    %378 = tpu.concatenate %363, %363, %363, %363 in 0 : vector<16x64xf32>, vector<16x64xf32>, vector<16x64xf32>, vector<16x64xf32> -> vector<64x64xf32>
    %379 = arith.mulf %378, %13 : vector<64x64xf32>
    %cst_245 = arith.constant dense<0.000000e+00> : vector<64x16xf32>
    %380 = tpu.matmul %379, %370, %cst_245 {dimension_numbers = #tpu.dot_dimension_numbers<[1], [1], [0], [0], [0, 0, 1, 0], [], []>} : vector<64x64xf32>, vector<16x64xf32>, vector<64x16xf32> -> vector<64x16xf32>
    %cst_246 = arith.constant 2.500000e-01 : f32
    %381 = vector.broadcast %cst_246 : f32 to vector<64x16xf32>
    %382 = arith.mulf %380, %381 : vector<64x16xf32>
    %383 = arith.addf %382, %14 : vector<64x16xf32>
    %cst_247 = arith.constant dense<0xFF800000> : vector<64xf32>
    %384 = vector.multi_reduction <maximumf>, %383, %cst_247 [1] : vector<64x16xf32> to vector<64xf32>
    %385 = vector.shape_cast %384 : vector<64xf32> to vector<64x1xf32>
    %386 = vector.broadcast %385 : vector<64x1xf32> to vector<64x16xf32>
    %387 = arith.subf %383, %386 : vector<64x16xf32>
    %388 = math.exp %387 : vector<64x16xf32>
    %cst_248 = arith.constant dense<0.000000e+00> : vector<64xf32>
    %389 = vector.multi_reduction <add>, %388, %cst_248 [1] : vector<64x16xf32> to vector<64xf32>
    %390 = vector.shape_cast %389 : vector<64xf32> to vector<64x1xf32>
    %391 = tpu.reciprocal %390 {approx = true} : vector<64x1xf32> -> vector<64x1xf32>
    %392 = vector.broadcast %391 : vector<64x1xf32> to vector<64x16xf32>
    %393 = arith.mulf %388, %392 : vector<64x16xf32>
    %cst_249 = arith.constant dense<0.000000e+00> : vector<64x64xf32>
    %394 = tpu.matmul %393, %377, %cst_249 {dimension_numbers = #tpu.dot_dimension_numbers<[1], [0], [0], [1], [0, 0, 1, 1], [], []>} : vector<64x16xf32>, vector<16x64xf32>, vector<64x64xf32> -> vector<64x64xf32>
    %395 = arith.mulf %394, %13 : vector<64x64xf32>
    %396 = vector.shape_cast %395 : vector<64x64xf32> to vector<4x16x64xf32>
    %cst_250 = arith.constant dense<0.000000e+00> : vector<16x64xf32>
    %397 = vector.multi_reduction <add>, %396, %cst_250 [0] : vector<4x16x64xf32> to vector<16x64xf32>
    %c3_251 = arith.constant 3 : index
    %c0_252 = arith.constant 0 : index
    %c0_253 = arith.constant 0 : index
    %398 = vector.load %arg10[%c3_251, %c0_252, %c0_253] : memref<5x64x64xf32, #tpu.memory_space<vmem>>, vector<1x64x64xf32>
    %399 = vector.shape_cast %398 : vector<1x64x64xf32> to vector<64x64xf32>
    %cst_254 = arith.constant dense<0.000000e+00> : vector<16x64xf32>
    %400 = tpu.matmul %397, %399, %cst_254 {dimension_numbers = #tpu.dot_dimension_numbers<[1], [0], [0], [1], [0, 0, 1, 1], [], []>} : vector<16x64xf32>, vector<64x64xf32>, vector<16x64xf32> -> vector<16x64xf32>
    %c3_255 = arith.constant 3 : index
    %c0_256 = arith.constant 0 : index
    %c0_257 = arith.constant 0 : index
    %401 = vector.load %arg11[%c3_255, %c0_256, %c0_257] : memref<5x1x64xf32, #tpu.memory_space<vmem>>, vector<1x1x64xf32>
    %402 = vector.shape_cast %401 : vector<1x1x64xf32> to vector<1x64xf32>
    %403 = vector.broadcast %402 : vector<1x64xf32> to vector<16x64xf32>
    %404 = arith.addf %400, %403 : vector<16x64xf32>
    %405 = arith.addf %356, %404 : vector<16x64xf32>
    %c3_258 = arith.constant 3 : index
    %c0_259 = arith.constant 0 : index
    %c0_260 = arith.constant 0 : index
    %406 = vector.load %arg12[%c3_258, %c0_259, %c0_260] : memref<5x1x64xf32, #tpu.memory_space<vmem>>, vector<1x1x64xf32>
    %407 = vector.shape_cast %406 : vector<1x1x64xf32> to vector<1x64xf32>
    %c3_261 = arith.constant 3 : index
    %c0_262 = arith.constant 0 : index
    %c0_263 = arith.constant 0 : index
    %408 = vector.load %arg13[%c3_261, %c0_262, %c0_263] : memref<5x1x64xf32, #tpu.memory_space<vmem>>, vector<1x1x64xf32>
    %409 = vector.shape_cast %408 : vector<1x1x64xf32> to vector<1x64xf32>
    %cst_264 = arith.constant dense<0.000000e+00> : vector<16xf32>
    %410 = vector.multi_reduction <add>, %405, %cst_264 [1] : vector<16x64xf32> to vector<16xf32>
    %411 = vector.shape_cast %410 : vector<16xf32> to vector<16x1xf32>
    %cst_265 = arith.constant 6.400000e+01 : f32
    %412 = vector.broadcast %cst_265 : f32 to vector<16x1xf32>
    %413 = arith.divf %411, %412 : vector<16x1xf32>
    %414 = vector.broadcast %413 : vector<16x1xf32> to vector<16x64xf32>
    %415 = arith.subf %405, %414 : vector<16x64xf32>
    %416 = arith.mulf %415, %415 : vector<16x64xf32>
    %cst_266 = arith.constant dense<0.000000e+00> : vector<16xf32>
    %417 = vector.multi_reduction <add>, %416, %cst_266 [1] : vector<16x64xf32> to vector<16xf32>
    %418 = vector.shape_cast %417 : vector<16xf32> to vector<16x1xf32>
    %cst_267 = arith.constant 6.400000e+01 : f32
    %419 = vector.broadcast %cst_267 : f32 to vector<16x1xf32>
    %420 = arith.divf %418, %419 : vector<16x1xf32>
    %cst_268 = arith.constant 9.99999974E-6 : f32
    %421 = vector.broadcast %cst_268 : f32 to vector<16x1xf32>
    %422 = arith.addf %420, %421 : vector<16x1xf32>
    %423 = math.rsqrt %422 : vector<16x1xf32>
    %424 = vector.broadcast %423 : vector<16x1xf32> to vector<16x64xf32>
    %425 = arith.mulf %415, %424 : vector<16x64xf32>
    %426 = vector.broadcast %407 : vector<1x64xf32> to vector<16x64xf32>
    %427 = arith.mulf %425, %426 : vector<16x64xf32>
    %428 = vector.broadcast %409 : vector<1x64xf32> to vector<16x64xf32>
    %429 = arith.addf %427, %428 : vector<16x64xf32>
    %c3_269 = arith.constant 3 : index
    %c0_270 = arith.constant 0 : index
    %c0_271 = arith.constant 0 : index
    %430 = vector.load %arg14[%c3_269, %c0_270, %c0_271] : memref<5x64x256xf32, #tpu.memory_space<vmem>>, vector<1x64x256xf32>
    %431 = vector.shape_cast %430 : vector<1x64x256xf32> to vector<64x256xf32>
    %cst_272 = arith.constant dense<0.000000e+00> : vector<16x256xf32>
    %432 = tpu.matmul %429, %431, %cst_272 {dimension_numbers = #tpu.dot_dimension_numbers<[1], [0], [0], [1], [0, 0, 1, 1], [], []>} : vector<16x64xf32>, vector<64x256xf32>, vector<16x256xf32> -> vector<16x256xf32>
    %c3_273 = arith.constant 3 : index
    %c0_274 = arith.constant 0 : index
    %c0_275 = arith.constant 0 : index
    %433 = vector.load %arg15[%c3_273, %c0_274, %c0_275] : memref<5x1x256xf32, #tpu.memory_space<vmem>>, vector<1x1x256xf32>
    %434 = vector.shape_cast %433 : vector<1x1x256xf32> to vector<1x256xf32>
    %435 = vector.broadcast %434 : vector<1x256xf32> to vector<16x256xf32>
    %436 = arith.addf %432, %435 : vector<16x256xf32>
    %cst_276 = arith.constant 0.000000e+00 : f32
    %437 = vector.broadcast %cst_276 : f32 to vector<16x256xf32>
    %438 = arith.maximumf %436, %437 : vector<16x256xf32>
    %c3_277 = arith.constant 3 : index
    %c0_278 = arith.constant 0 : index
    %c0_279 = arith.constant 0 : index
    %439 = vector.load %arg16[%c3_277, %c0_278, %c0_279] : memref<5x256x64xf32, #tpu.memory_space<vmem>>, vector<1x256x64xf32>
    %440 = vector.shape_cast %439 : vector<1x256x64xf32> to vector<256x64xf32>
    %cst_280 = arith.constant dense<0.000000e+00> : vector<16x64xf32>
    %441 = tpu.matmul %438, %440, %cst_280 {dimension_numbers = #tpu.dot_dimension_numbers<[1], [0], [0], [1], [0, 0, 1, 1], [], []>} : vector<16x256xf32>, vector<256x64xf32>, vector<16x64xf32> -> vector<16x64xf32>
    %c3_281 = arith.constant 3 : index
    %c0_282 = arith.constant 0 : index
    %c0_283 = arith.constant 0 : index
    %442 = vector.load %arg17[%c3_281, %c0_282, %c0_283] : memref<5x1x64xf32, #tpu.memory_space<vmem>>, vector<1x1x64xf32>
    %443 = vector.shape_cast %442 : vector<1x1x64xf32> to vector<1x64xf32>
    %444 = vector.broadcast %443 : vector<1x64xf32> to vector<16x64xf32>
    %445 = arith.addf %441, %444 : vector<16x64xf32>
    %446 = arith.addf %429, %445 : vector<16x64xf32>
    %c3_284 = arith.constant 3 : index
    %c0_285 = arith.constant 0 : index
    %c0_286 = arith.constant 0 : index
    %447 = vector.load %arg18[%c3_284, %c0_285, %c0_286] : memref<5x1x64xf32, #tpu.memory_space<vmem>>, vector<1x1x64xf32>
    %448 = vector.shape_cast %447 : vector<1x1x64xf32> to vector<1x64xf32>
    %c3_287 = arith.constant 3 : index
    %c0_288 = arith.constant 0 : index
    %c0_289 = arith.constant 0 : index
    %449 = vector.load %arg19[%c3_287, %c0_288, %c0_289] : memref<5x1x64xf32, #tpu.memory_space<vmem>>, vector<1x1x64xf32>
    %450 = vector.shape_cast %449 : vector<1x1x64xf32> to vector<1x64xf32>
    %cst_290 = arith.constant dense<0.000000e+00> : vector<16xf32>
    %451 = vector.multi_reduction <add>, %446, %cst_290 [1] : vector<16x64xf32> to vector<16xf32>
    %452 = vector.shape_cast %451 : vector<16xf32> to vector<16x1xf32>
    %cst_291 = arith.constant 6.400000e+01 : f32
    %453 = vector.broadcast %cst_291 : f32 to vector<16x1xf32>
    %454 = arith.divf %452, %453 : vector<16x1xf32>
    %455 = vector.broadcast %454 : vector<16x1xf32> to vector<16x64xf32>
    %456 = arith.subf %446, %455 : vector<16x64xf32>
    %457 = arith.mulf %456, %456 : vector<16x64xf32>
    %cst_292 = arith.constant dense<0.000000e+00> : vector<16xf32>
    %458 = vector.multi_reduction <add>, %457, %cst_292 [1] : vector<16x64xf32> to vector<16xf32>
    %459 = vector.shape_cast %458 : vector<16xf32> to vector<16x1xf32>
    %cst_293 = arith.constant 6.400000e+01 : f32
    %460 = vector.broadcast %cst_293 : f32 to vector<16x1xf32>
    %461 = arith.divf %459, %460 : vector<16x1xf32>
    %cst_294 = arith.constant 9.99999974E-6 : f32
    %462 = vector.broadcast %cst_294 : f32 to vector<16x1xf32>
    %463 = arith.addf %461, %462 : vector<16x1xf32>
    %464 = math.rsqrt %463 : vector<16x1xf32>
    %465 = vector.broadcast %464 : vector<16x1xf32> to vector<16x64xf32>
    %466 = arith.mulf %456, %465 : vector<16x64xf32>
    %467 = vector.broadcast %448 : vector<1x64xf32> to vector<16x64xf32>
    %468 = arith.mulf %466, %467 : vector<16x64xf32>
    %469 = vector.broadcast %450 : vector<1x64xf32> to vector<16x64xf32>
    %470 = arith.addf %468, %469 : vector<16x64xf32>
    %c4 = arith.constant 4 : index
    %c0_295 = arith.constant 0 : index
    %c0_296 = arith.constant 0 : index
    %471 = vector.load %arg4[%c4, %c0_295, %c0_296] : memref<5x64x64xf32, #tpu.memory_space<vmem>>, vector<1x64x64xf32>
    %472 = vector.shape_cast %471 : vector<1x64x64xf32> to vector<64x64xf32>
    %cst_297 = arith.constant dense<0.000000e+00> : vector<16x64xf32>
    %473 = tpu.matmul %470, %472, %cst_297 {dimension_numbers = #tpu.dot_dimension_numbers<[1], [0], [0], [1], [0, 0, 1, 1], [], []>} : vector<16x64xf32>, vector<64x64xf32>, vector<16x64xf32> -> vector<16x64xf32>
    %c4_298 = arith.constant 4 : index
    %c0_299 = arith.constant 0 : index
    %c0_300 = arith.constant 0 : index
    %474 = vector.load %arg5[%c4_298, %c0_299, %c0_300] : memref<5x1x64xf32, #tpu.memory_space<vmem>>, vector<1x1x64xf32>
    %475 = vector.shape_cast %474 : vector<1x1x64xf32> to vector<1x64xf32>
    %476 = vector.broadcast %475 : vector<1x64xf32> to vector<16x64xf32>
    %477 = arith.addf %473, %476 : vector<16x64xf32>
    %c4_301 = arith.constant 4 : index
    %c0_302 = arith.constant 0 : index
    %c0_303 = arith.constant 0 : index
    %478 = vector.load %arg6[%c4_301, %c0_302, %c0_303] : memref<5x64x64xf32, #tpu.memory_space<vmem>>, vector<1x64x64xf32>
    %479 = vector.shape_cast %478 : vector<1x64x64xf32> to vector<64x64xf32>
    %cst_304 = arith.constant dense<0.000000e+00> : vector<16x64xf32>
    %480 = tpu.matmul %470, %479, %cst_304 {dimension_numbers = #tpu.dot_dimension_numbers<[1], [0], [0], [1], [0, 0, 1, 1], [], []>} : vector<16x64xf32>, vector<64x64xf32>, vector<16x64xf32> -> vector<16x64xf32>
    %c4_305 = arith.constant 4 : index
    %c0_306 = arith.constant 0 : index
    %c0_307 = arith.constant 0 : index
    %481 = vector.load %arg7[%c4_305, %c0_306, %c0_307] : memref<5x1x64xf32, #tpu.memory_space<vmem>>, vector<1x1x64xf32>
    %482 = vector.shape_cast %481 : vector<1x1x64xf32> to vector<1x64xf32>
    %483 = vector.broadcast %482 : vector<1x64xf32> to vector<16x64xf32>
    %484 = arith.addf %480, %483 : vector<16x64xf32>
    %c4_308 = arith.constant 4 : index
    %c0_309 = arith.constant 0 : index
    %c0_310 = arith.constant 0 : index
    %485 = vector.load %arg8[%c4_308, %c0_309, %c0_310] : memref<5x64x64xf32, #tpu.memory_space<vmem>>, vector<1x64x64xf32>
    %486 = vector.shape_cast %485 : vector<1x64x64xf32> to vector<64x64xf32>
    %cst_311 = arith.constant dense<0.000000e+00> : vector<16x64xf32>
    %487 = tpu.matmul %470, %486, %cst_311 {dimension_numbers = #tpu.dot_dimension_numbers<[1], [0], [0], [1], [0, 0, 1, 1], [], []>} : vector<16x64xf32>, vector<64x64xf32>, vector<16x64xf32> -> vector<16x64xf32>
    %c4_312 = arith.constant 4 : index
    %c0_313 = arith.constant 0 : index
    %c0_314 = arith.constant 0 : index
    %488 = vector.load %arg9[%c4_312, %c0_313, %c0_314] : memref<5x1x64xf32, #tpu.memory_space<vmem>>, vector<1x1x64xf32>
    %489 = vector.shape_cast %488 : vector<1x1x64xf32> to vector<1x64xf32>
    %490 = vector.broadcast %489 : vector<1x64xf32> to vector<16x64xf32>
    %491 = arith.addf %487, %490 : vector<16x64xf32>
    %492 = tpu.concatenate %477, %477, %477, %477 in 0 : vector<16x64xf32>, vector<16x64xf32>, vector<16x64xf32>, vector<16x64xf32> -> vector<64x64xf32>
    %493 = arith.mulf %492, %13 : vector<64x64xf32>
    %cst_315 = arith.constant dense<0.000000e+00> : vector<64x16xf32>
    %494 = tpu.matmul %493, %484, %cst_315 {dimension_numbers = #tpu.dot_dimension_numbers<[1], [1], [0], [0], [0, 0, 1, 0], [], []>} : vector<64x64xf32>, vector<16x64xf32>, vector<64x16xf32> -> vector<64x16xf32>
    %cst_316 = arith.constant 2.500000e-01 : f32
    %495 = vector.broadcast %cst_316 : f32 to vector<64x16xf32>
    %496 = arith.mulf %494, %495 : vector<64x16xf32>
    %497 = arith.addf %496, %14 : vector<64x16xf32>
    %cst_317 = arith.constant dense<0xFF800000> : vector<64xf32>
    %498 = vector.multi_reduction <maximumf>, %497, %cst_317 [1] : vector<64x16xf32> to vector<64xf32>
    %499 = vector.shape_cast %498 : vector<64xf32> to vector<64x1xf32>
    %500 = vector.broadcast %499 : vector<64x1xf32> to vector<64x16xf32>
    %501 = arith.subf %497, %500 : vector<64x16xf32>
    %502 = math.exp %501 : vector<64x16xf32>
    %cst_318 = arith.constant dense<0.000000e+00> : vector<64xf32>
    %503 = vector.multi_reduction <add>, %502, %cst_318 [1] : vector<64x16xf32> to vector<64xf32>
    %504 = vector.shape_cast %503 : vector<64xf32> to vector<64x1xf32>
    %505 = tpu.reciprocal %504 {approx = true} : vector<64x1xf32> -> vector<64x1xf32>
    %506 = vector.broadcast %505 : vector<64x1xf32> to vector<64x16xf32>
    %507 = arith.mulf %502, %506 : vector<64x16xf32>
    %cst_319 = arith.constant dense<0.000000e+00> : vector<64x64xf32>
    %508 = tpu.matmul %507, %491, %cst_319 {dimension_numbers = #tpu.dot_dimension_numbers<[1], [0], [0], [1], [0, 0, 1, 1], [], []>} : vector<64x16xf32>, vector<16x64xf32>, vector<64x64xf32> -> vector<64x64xf32>
    %509 = arith.mulf %508, %13 : vector<64x64xf32>
    %510 = vector.shape_cast %509 : vector<64x64xf32> to vector<4x16x64xf32>
    %cst_320 = arith.constant dense<0.000000e+00> : vector<16x64xf32>
    %511 = vector.multi_reduction <add>, %510, %cst_320 [0] : vector<4x16x64xf32> to vector<16x64xf32>
    %c4_321 = arith.constant 4 : index
    %c0_322 = arith.constant 0 : index
    %c0_323 = arith.constant 0 : index
    %512 = vector.load %arg10[%c4_321, %c0_322, %c0_323] : memref<5x64x64xf32, #tpu.memory_space<vmem>>, vector<1x64x64xf32>
    %513 = vector.shape_cast %512 : vector<1x64x64xf32> to vector<64x64xf32>
    %cst_324 = arith.constant dense<0.000000e+00> : vector<16x64xf32>
    %514 = tpu.matmul %511, %513, %cst_324 {dimension_numbers = #tpu.dot_dimension_numbers<[1], [0], [0], [1], [0, 0, 1, 1], [], []>} : vector<16x64xf32>, vector<64x64xf32>, vector<16x64xf32> -> vector<16x64xf32>
    %c4_325 = arith.constant 4 : index
    %c0_326 = arith.constant 0 : index
    %c0_327 = arith.constant 0 : index
    %515 = vector.load %arg11[%c4_325, %c0_326, %c0_327] : memref<5x1x64xf32, #tpu.memory_space<vmem>>, vector<1x1x64xf32>
    %516 = vector.shape_cast %515 : vector<1x1x64xf32> to vector<1x64xf32>
    %517 = vector.broadcast %516 : vector<1x64xf32> to vector<16x64xf32>
    %518 = arith.addf %514, %517 : vector<16x64xf32>
    %519 = arith.addf %470, %518 : vector<16x64xf32>
    %c4_328 = arith.constant 4 : index
    %c0_329 = arith.constant 0 : index
    %c0_330 = arith.constant 0 : index
    %520 = vector.load %arg12[%c4_328, %c0_329, %c0_330] : memref<5x1x64xf32, #tpu.memory_space<vmem>>, vector<1x1x64xf32>
    %521 = vector.shape_cast %520 : vector<1x1x64xf32> to vector<1x64xf32>
    %c4_331 = arith.constant 4 : index
    %c0_332 = arith.constant 0 : index
    %c0_333 = arith.constant 0 : index
    %522 = vector.load %arg13[%c4_331, %c0_332, %c0_333] : memref<5x1x64xf32, #tpu.memory_space<vmem>>, vector<1x1x64xf32>
    %523 = vector.shape_cast %522 : vector<1x1x64xf32> to vector<1x64xf32>
    %cst_334 = arith.constant dense<0.000000e+00> : vector<16xf32>
    %524 = vector.multi_reduction <add>, %519, %cst_334 [1] : vector<16x64xf32> to vector<16xf32>
    %525 = vector.shape_cast %524 : vector<16xf32> to vector<16x1xf32>
    %cst_335 = arith.constant 6.400000e+01 : f32
    %526 = vector.broadcast %cst_335 : f32 to vector<16x1xf32>
    %527 = arith.divf %525, %526 : vector<16x1xf32>
    %528 = vector.broadcast %527 : vector<16x1xf32> to vector<16x64xf32>
    %529 = arith.subf %519, %528 : vector<16x64xf32>
    %530 = arith.mulf %529, %529 : vector<16x64xf32>
    %cst_336 = arith.constant dense<0.000000e+00> : vector<16xf32>
    %531 = vector.multi_reduction <add>, %530, %cst_336 [1] : vector<16x64xf32> to vector<16xf32>
    %532 = vector.shape_cast %531 : vector<16xf32> to vector<16x1xf32>
    %cst_337 = arith.constant 6.400000e+01 : f32
    %533 = vector.broadcast %cst_337 : f32 to vector<16x1xf32>
    %534 = arith.divf %532, %533 : vector<16x1xf32>
    %cst_338 = arith.constant 9.99999974E-6 : f32
    %535 = vector.broadcast %cst_338 : f32 to vector<16x1xf32>
    %536 = arith.addf %534, %535 : vector<16x1xf32>
    %537 = math.rsqrt %536 : vector<16x1xf32>
    %538 = vector.broadcast %537 : vector<16x1xf32> to vector<16x64xf32>
    %539 = arith.mulf %529, %538 : vector<16x64xf32>
    %540 = vector.broadcast %521 : vector<1x64xf32> to vector<16x64xf32>
    %541 = arith.mulf %539, %540 : vector<16x64xf32>
    %542 = vector.broadcast %523 : vector<1x64xf32> to vector<16x64xf32>
    %543 = arith.addf %541, %542 : vector<16x64xf32>
    %c4_339 = arith.constant 4 : index
    %c0_340 = arith.constant 0 : index
    %c0_341 = arith.constant 0 : index
    %544 = vector.load %arg14[%c4_339, %c0_340, %c0_341] : memref<5x64x256xf32, #tpu.memory_space<vmem>>, vector<1x64x256xf32>
    %545 = vector.shape_cast %544 : vector<1x64x256xf32> to vector<64x256xf32>
    %cst_342 = arith.constant dense<0.000000e+00> : vector<16x256xf32>
    %546 = tpu.matmul %543, %545, %cst_342 {dimension_numbers = #tpu.dot_dimension_numbers<[1], [0], [0], [1], [0, 0, 1, 1], [], []>} : vector<16x64xf32>, vector<64x256xf32>, vector<16x256xf32> -> vector<16x256xf32>
    %c4_343 = arith.constant 4 : index
    %c0_344 = arith.constant 0 : index
    %c0_345 = arith.constant 0 : index
    %547 = vector.load %arg15[%c4_343, %c0_344, %c0_345] : memref<5x1x256xf32, #tpu.memory_space<vmem>>, vector<1x1x256xf32>
    %548 = vector.shape_cast %547 : vector<1x1x256xf32> to vector<1x256xf32>
    %549 = vector.broadcast %548 : vector<1x256xf32> to vector<16x256xf32>
    %550 = arith.addf %546, %549 : vector<16x256xf32>
    %cst_346 = arith.constant 0.000000e+00 : f32
    %551 = vector.broadcast %cst_346 : f32 to vector<16x256xf32>
    %552 = arith.maximumf %550, %551 : vector<16x256xf32>
    %c4_347 = arith.constant 4 : index
    %c0_348 = arith.constant 0 : index
    %c0_349 = arith.constant 0 : index
    %553 = vector.load %arg16[%c4_347, %c0_348, %c0_349] : memref<5x256x64xf32, #tpu.memory_space<vmem>>, vector<1x256x64xf32>
    %554 = vector.shape_cast %553 : vector<1x256x64xf32> to vector<256x64xf32>
    %cst_350 = arith.constant dense<0.000000e+00> : vector<16x64xf32>
    %555 = tpu.matmul %552, %554, %cst_350 {dimension_numbers = #tpu.dot_dimension_numbers<[1], [0], [0], [1], [0, 0, 1, 1], [], []>} : vector<16x256xf32>, vector<256x64xf32>, vector<16x64xf32> -> vector<16x64xf32>
    %c4_351 = arith.constant 4 : index
    %c0_352 = arith.constant 0 : index
    %c0_353 = arith.constant 0 : index
    %556 = vector.load %arg17[%c4_351, %c0_352, %c0_353] : memref<5x1x64xf32, #tpu.memory_space<vmem>>, vector<1x1x64xf32>
    %557 = vector.shape_cast %556 : vector<1x1x64xf32> to vector<1x64xf32>
    %558 = vector.broadcast %557 : vector<1x64xf32> to vector<16x64xf32>
    %559 = arith.addf %555, %558 : vector<16x64xf32>
    %560 = arith.addf %543, %559 : vector<16x64xf32>
    %c4_354 = arith.constant 4 : index
    %c0_355 = arith.constant 0 : index
    %c0_356 = arith.constant 0 : index
    %561 = vector.load %arg18[%c4_354, %c0_355, %c0_356] : memref<5x1x64xf32, #tpu.memory_space<vmem>>, vector<1x1x64xf32>
    %562 = vector.shape_cast %561 : vector<1x1x64xf32> to vector<1x64xf32>
    %c4_357 = arith.constant 4 : index
    %c0_358 = arith.constant 0 : index
    %c0_359 = arith.constant 0 : index
    %563 = vector.load %arg19[%c4_357, %c0_358, %c0_359] : memref<5x1x64xf32, #tpu.memory_space<vmem>>, vector<1x1x64xf32>
    %564 = vector.shape_cast %563 : vector<1x1x64xf32> to vector<1x64xf32>
    %cst_360 = arith.constant dense<0.000000e+00> : vector<16xf32>
    %565 = vector.multi_reduction <add>, %560, %cst_360 [1] : vector<16x64xf32> to vector<16xf32>
    %566 = vector.shape_cast %565 : vector<16xf32> to vector<16x1xf32>
    %cst_361 = arith.constant 6.400000e+01 : f32
    %567 = vector.broadcast %cst_361 : f32 to vector<16x1xf32>
    %568 = arith.divf %566, %567 : vector<16x1xf32>
    %569 = vector.broadcast %568 : vector<16x1xf32> to vector<16x64xf32>
    %570 = arith.subf %560, %569 : vector<16x64xf32>
    %571 = arith.mulf %570, %570 : vector<16x64xf32>
    %cst_362 = arith.constant dense<0.000000e+00> : vector<16xf32>
    %572 = vector.multi_reduction <add>, %571, %cst_362 [1] : vector<16x64xf32> to vector<16xf32>
    %573 = vector.shape_cast %572 : vector<16xf32> to vector<16x1xf32>
    %cst_363 = arith.constant 6.400000e+01 : f32
    %574 = vector.broadcast %cst_363 : f32 to vector<16x1xf32>
    %575 = arith.divf %573, %574 : vector<16x1xf32>
    %cst_364 = arith.constant 9.99999974E-6 : f32
    %576 = vector.broadcast %cst_364 : f32 to vector<16x1xf32>
    %577 = arith.addf %575, %576 : vector<16x1xf32>
    %578 = math.rsqrt %577 : vector<16x1xf32>
    %579 = vector.broadcast %578 : vector<16x1xf32> to vector<16x64xf32>
    %580 = arith.mulf %570, %579 : vector<16x64xf32>
    %581 = vector.broadcast %562 : vector<1x64xf32> to vector<16x64xf32>
    %582 = arith.mulf %580, %581 : vector<16x64xf32>
    %583 = vector.broadcast %564 : vector<1x64xf32> to vector<16x64xf32>
    %584 = arith.addf %582, %583 : vector<16x64xf32>
    %c0_365 = arith.constant 0 : index
    %c0_366 = arith.constant 0 : index
    %585 = vector.load %arg24[%c0_365, %c0_366] : memref<2x16xf32, #tpu.memory_space<vmem>>, vector<2x16xf32>
    %cst_367 = arith.constant dense<0.000000e+00> : vector<2x64xf32>
    %586 = tpu.matmul %585, %128, %cst_367 {dimension_numbers = #tpu.dot_dimension_numbers<[1], [0], [0], [1], [0, 0, 1, 1], [], []>} : vector<2x16xf32>, vector<16x64xf32>, vector<2x64xf32> -> vector<2x64xf32>
    %cst_368 = arith.constant dense<0.000000e+00> : vector<2x64xf32>
    %587 = tpu.matmul %585, %584, %cst_368 {dimension_numbers = #tpu.dot_dimension_numbers<[1], [0], [0], [1], [0, 0, 1, 1], [], []>} : vector<2x16xf32>, vector<16x64xf32>, vector<2x64xf32> -> vector<2x64xf32>
    %c0_369 = arith.constant 0 : index
    %c0_370 = arith.constant 0 : index
    %588 = vector.load %arg25[%c0_369, %c0_370] : memref<64x64xf32, #tpu.memory_space<vmem>>, vector<64x64xf32>
    %cst_371 = arith.constant dense<0.000000e+00> : vector<2x64xf32>
    %589 = tpu.matmul %586, %588, %cst_371 {dimension_numbers = #tpu.dot_dimension_numbers<[1], [0], [0], [1], [0, 0, 1, 1], [], []>} : vector<2x64xf32>, vector<64x64xf32>, vector<2x64xf32> -> vector<2x64xf32>
    %c0_372 = arith.constant 0 : index
    %c0_373 = arith.constant 0 : index
    %590 = vector.load %arg26[%c0_372, %c0_373] : memref<64x64xf32, #tpu.memory_space<vmem>>, vector<64x64xf32>
    %cst_374 = arith.constant dense<0.000000e+00> : vector<2x64xf32>
    %591 = tpu.matmul %587, %590, %cst_374 {dimension_numbers = #tpu.dot_dimension_numbers<[1], [0], [0], [1], [0, 0, 1, 1], [], []>} : vector<2x64xf32>, vector<64x64xf32>, vector<2x64xf32> -> vector<2x64xf32>
    %592 = arith.addf %589, %591 : vector<2x64xf32>
    %c0_375 = arith.constant 0 : index
    %c0_376 = arith.constant 0 : index
    %593 = vector.load %arg27[%c0_375, %c0_376] : memref<1x64xf32, #tpu.memory_space<vmem>>, vector<1x64xf32>
    %594 = vector.broadcast %593 : vector<1x64xf32> to vector<2x64xf32>
    %595 = arith.addf %592, %594 : vector<2x64xf32>
    %c0_377 = arith.constant 0 : index
    %c0_378 = arith.constant 0 : index
    %596 = vector.load %arg28[%c0_377, %c0_378] : memref<64x64xf32, #tpu.memory_space<vmem>>, vector<64x64xf32>
    %cst_379 = arith.constant dense<0.000000e+00> : vector<2x64xf32>
    %597 = tpu.matmul %595, %596, %cst_379 {dimension_numbers = #tpu.dot_dimension_numbers<[1], [0], [0], [1], [0, 0, 1, 1], [], []>} : vector<2x64xf32>, vector<64x64xf32>, vector<2x64xf32> -> vector<2x64xf32>
    %c0_380 = arith.constant 0 : index
    %c0_381 = arith.constant 0 : index
    %598 = vector.load %arg29[%c0_380, %c0_381] : memref<1x64xf32, #tpu.memory_space<vmem>>, vector<1x64xf32>
    %599 = vector.broadcast %598 : vector<1x64xf32> to vector<2x64xf32>
    %600 = arith.addf %597, %599 : vector<2x64xf32>
    %cst_382 = arith.constant 0.000000e+00 : f32
    %601 = vector.broadcast %cst_382 : f32 to vector<2x64xf32>
    %602 = arith.maximumf %600, %601 : vector<2x64xf32>
    %c0_383 = arith.constant 0 : index
    %c0_384 = arith.constant 0 : index
    %603 = vector.load %arg30[%c0_383, %c0_384] : memref<64x8xf32, #tpu.memory_space<vmem>>, vector<64x8xf32>
    %cst_385 = arith.constant dense<0.000000e+00> : vector<2x8xf32>
    %604 = tpu.matmul %602, %603, %cst_385 {dimension_numbers = #tpu.dot_dimension_numbers<[1], [0], [0], [1], [0, 0, 1, 1], [], []>} : vector<2x64xf32>, vector<64x8xf32>, vector<2x8xf32> -> vector<2x8xf32>
    %c0_386 = arith.constant 0 : index
    %c0_387 = arith.constant 0 : index
    %605 = vector.load %arg31[%c0_386, %c0_387] : memref<1x8xf32, #tpu.memory_space<vmem>>, vector<1x8xf32>
    %606 = vector.broadcast %605 : vector<1x8xf32> to vector<2x8xf32>
    %607 = arith.addf %604, %606 : vector<2x8xf32>
    %c0_388 = arith.constant 0 : index
    %c0_389 = arith.constant 0 : index
    %608 = vector.load %arg32[%c0_388, %c0_389] : memref<2x8xf32, #tpu.memory_space<vmem>>, vector<2x8xf32>
    tpu.vector_store %arg32[%c0_388, %c0_389], %607 {strides = array<i32>} : memref<2x8xf32, #tpu.memory_space<vmem>>, vector<2x8xf32>,
    return
  }
}

</mosaic_0001>

<llo_original>
// kernel: tpu_custom_call.1
$region0: #{tpu_custom_call.1}
  #allocation0 [shape = 'u32[]', space=smem, size = 0x4, offset = 0x4, fixed_abs, tag = 'smem constant byte address 0x4 - core index']
  #allocation1 [shape = 'u32[144,128]{1,0:T(1,128)}', space=vmem, size = 0x12000, scoped, tag = 'internal scratch']
  %s0 = inlined_call_operand.smem [shape: u32[33], index: -1, kind: input, shape index: {}]
  %s1 = sld [smem:[%s0]]
  %s2 = scalar_lea.smem %s0, 1
  %s3 = sld [smem:[%s2]]
  %s4 = scalar_lea.smem %s0, 2
  %s5 = sld [smem:[%s4]]
  %s6 = scalar_lea.smem %s0, 3
  %s7 = sld [smem:[%s6]]
  %s8 = scalar_lea.smem %s0, 4
  %s9 = sld [smem:[%s8]]
  %s10 = scalar_lea.smem %s0, 5
  %s11 = sld [smem:[%s10]]
  %s12 = scalar_lea.smem %s0, 6
  %s13 = sld [smem:[%s12]]
  %s14 = scalar_lea.smem %s0, 7
  %s15 = sld [smem:[%s14]]
  %s16 = scalar_lea.smem %s0, 8
  %s17 = sld [smem:[%s16]]
  %s18 = scalar_lea.smem %s0, 9
  %s19 = sld [smem:[%s18]]
  %s20 = scalar_lea.smem %s0, 10
  %s21 = sld [smem:[%s20]]
  %s22 = scalar_lea.smem %s0, 11
  %s23 = sld [smem:[%s22]]
  %s24 = scalar_lea.smem %s0, 12
  %s25 = sld [smem:[%s24]]
  %s26 = scalar_lea.smem %s0, 13
  %s27 = sld [smem:[%s26]]
  %s28 = scalar_lea.smem %s0, 14
  %s29 = sld [smem:[%s28]]
  %s30 = scalar_lea.smem %s0, 15
  %s31 = sld [smem:[%s30]]
  %s32 = scalar_lea.smem %s0, 16
  %s33 = sld [smem:[%s32]]
  %s34 = scalar_lea.smem %s0, 17
  %s35 = sld [smem:[%s34]]
  %s36 = scalar_lea.smem %s0, 18
  %s37 = sld [smem:[%s36]]
  %s38 = scalar_lea.smem %s0, 19
  %s39 = sld [smem:[%s38]]
  %s40 = scalar_lea.smem %s0, 20
  %s41 = sld [smem:[%s40]]
  %s42 = scalar_lea.smem %s0, 21
  %s43 = sld [smem:[%s42]]
  %s44 = scalar_lea.smem %s0, 22
  %s45 = sld [smem:[%s44]]
  %s46 = scalar_lea.smem %s0, 23
  %s47 = sld [smem:[%s46]]
  %s48 = scalar_lea.smem %s0, 24
  %s49 = sld [smem:[%s48]]
  %s50 = scalar_lea.smem %s0, 25
  %s51 = sld [smem:[%s50]]
  %s52 = scalar_lea.smem %s0, 26
  %s53 = sld [smem:[%s52]]
  %s54 = scalar_lea.smem %s0, 27
  %s55 = sld [smem:[%s54]]
  %s56 = scalar_lea.smem %s0, 28
  %s57 = sld [smem:[%s56]]
  %s58 = scalar_lea.smem %s0, 29
  %s59 = sld [smem:[%s58]]
  %s60 = scalar_lea.smem %s0, 30
  %s61 = sld [smem:[%s60]]
  %s62 = scalar_lea.smem %s0, 31
  %s63 = sld [smem:[%s62]]
  %s64 = scalar_lea.smem %s0, 32
  %s65 = sld [smem:[%s64]]
  %s66 = sld [smem:[#allocation0]]
  $region138: #{tpu_custom_call.1} parent=0
    _
  %s68 = ssub.s32 1, %s66
  %s69 = scalar_select 0, %s68, %s66
  $region1: #{tpu_custom_call.1} parent=0
    #allocation2 [shape = 'u8[1024]{0}', space=vmem, size = 0x400, scoped, tag = 'output window, operand 0, single buffered']
    #allocation3 [shape = 's32[1]{0}', space=sflag, size = 0x4, scoped, tag = 'scoped memory for tpu_custom_call.1']
    %70 = vsyncpa [#allocation3], 0
    // Predicated region
    $region2: #{tpu_custom_call.1} parent=1 // pred_check
      _
    $region3: #{tpu_custom_call.1} parent=1 // pred_check_branch
      %72 = sbr.rel (0) target = $region5
    $region4: #{tpu_custom_call.1} parent=1 // pred_region
      _
    $region5: #{tpu_custom_call.1} parent=1 // pred_fallthru
      _
    // Predicated region
    $region6: #{tpu_custom_call.1} parent=1 // pred_check
      _
    $region7: #{tpu_custom_call.1} parent=1 // pred_check_branch
      %74 = sbr.rel (0) target = $region9
    $region8: #{tpu_custom_call.1} parent=1 // pred_region
      _
    $region9: #{tpu_custom_call.1} parent=1 // pred_fallthru
      _
    // Predicated region
    $region10: #{tpu_custom_call.1} parent=1 // pred_check
      _
    $region11: #{tpu_custom_call.1} parent=1 // pred_check_branch
      %76 = sbr.rel (0) target = $region13
    $region12: #{tpu_custom_call.1} parent=1 // pred_region
      _
    $region13: #{tpu_custom_call.1} parent=1 // pred_fallthru
      _
    // Predicated region
    $region14: #{tpu_custom_call.1} parent=1 // pred_check
      _
    $region15: #{tpu_custom_call.1} parent=1 // pred_check_branch
      %78 = sbr.rel (0) target = $region17
    $region16: #{tpu_custom_call.1} parent=1 // pred_region
      _
    $region17: #{tpu_custom_call.1} parent=1 // pred_fallthru
      _
    // Predicated region
    $region18: #{tpu_custom_call.1} parent=1 // pred_check
      _
    $region19: #{tpu_custom_call.1} parent=1 // pred_check_branch
      %80 = sbr.rel (0) target = $region21
    $region20: #{tpu_custom_call.1} parent=1 // pred_region
      _
    $region21: #{tpu_custom_call.1} parent=1 // pred_fallthru
      _
    // Predicated region
    $region22: #{tpu_custom_call.1} parent=1 // pred_check
      _
    $region23: #{tpu_custom_call.1} parent=1 // pred_check_branch
      %82 = sbr.rel (0) target = $region25
    $region24: #{tpu_custom_call.1} parent=1 // pred_region
      _
    $region25: #{tpu_custom_call.1} parent=1 // pred_fallthru
      _
    // Predicated region
    $region26: #{tpu_custom_call.1} parent=1 // pred_check
      _
    $region27: #{tpu_custom_call.1} parent=1 // pred_check_branch
      %84 = sbr.rel (0) target = $region29
    $region28: #{tpu_custom_call.1} parent=1 // pred_region
      _
    $region29: #{tpu_custom_call.1} parent=1 // pred_fallthru
      _
    // Predicated region
    $region30: #{tpu_custom_call.1} parent=1 // pred_check
      _
    $region31: #{tpu_custom_call.1} parent=1 // pred_check_branch
      %86 = sbr.rel (0) target = $region33
    $region32: #{tpu_custom_call.1} parent=1 // pred_region
      _
    $region33: #{tpu_custom_call.1} parent=1 // pred_fallthru
      _
    // Predicated region
    $region34: #{tpu_custom_call.1} parent=1 // pred_check
      _
    $region35: #{tpu_custom_call.1} parent=1 // pred_check_branch
      %88 = sbr.rel (0) target = $region37
    $region36: #{tpu_custom_call.1} parent=1 // pred_region
      _
    $region37: #{tpu_custom_call.1} parent=1 // pred_fallthru
      _
    // Predicated region
    $region38: #{tpu_custom_call.1} parent=1 // pred_check
      _
    $region39: #{tpu_custom_call.1} parent=1 // pred_check_branch
      %90 = sbr.rel (0) target = $region41
    $region40: #{tpu_custom_call.1} parent=1 // pred_region
      _
    $region41: #{tpu_custom_call.1} parent=1 // pred_fallthru
      _
    // Predicated region
    $region42: #{tpu_custom_call.1} parent=1 // pred_check
      _
    $region43: #{tpu_custom_call.1} parent=1 // pred_check_branch
      %92 = sbr.rel (0) target = $region45
    $region44: #{tpu_custom_call.1} parent=1 // pred_region
      _
    $region45: #{tpu_custom_call.1} parent=1 // pred_fallthru
      _
    // Predicated region
    $region46: #{tpu_custom_call.1} parent=1 // pred_check
      _
    $region47: #{tpu_custom_call.1} parent=1 // pred_check_branch
      %94 = sbr.rel (0) target = $region49
    $region48: #{tpu_custom_call.1} parent=1 // pred_region
      _
    $region49: #{tpu_custom_call.1} parent=1 // pred_fallthru
      _
    // Predicated region
    $region50: #{tpu_custom_call.1} parent=1 // pred_check
      _
    $region51: #{tpu_custom_call.1} parent=1 // pred_check_branch
      %96 = sbr.rel (0) target = $region53
    $region52: #{tpu_custom_call.1} parent=1 // pred_region
      _
    $region53: #{tpu_custom_call.1} parent=1 // pred_fallthru
      _
    // Predicated region
    $region54: #{tpu_custom_call.1} parent=1 // pred_check
      _
    $region55: #{tpu_custom_call.1} parent=1 // pred_check_branch
      %98 = sbr.rel (0) target = $region57
    $region56: #{tpu_custom_call.1} parent=1 // pred_region
      _
    $region57: #{tpu_custom_call.1} parent=1 // pred_fallthru
      _
    // Predicated region
    $region58: #{tpu_custom_call.1} parent=1 // pred_check
      _
    $region59: #{tpu_custom_call.1} parent=1 // pred_check_branch
      %100 = sbr.rel (0) target = $region61
    $region60: #{tpu_custom_call.1} parent=1 // pred_region
      _
    $region61: #{tpu_custom_call.1} parent=1 // pred_fallthru
      _
    // Predicated region
    $region62: #{tpu_custom_call.1} parent=1 // pred_check
      _
    $region63: #{tpu_custom_call.1} parent=1 // pred_check_branch
      %102 = sbr.rel (0) target = $region65
    $region64: #{tpu_custom_call.1} parent=1 // pred_region
      _
    $region65: #{tpu_custom_call.1} parent=1 // pred_fallthru
      _
    // Predicated region
    $region66: #{tpu_custom_call.1} parent=1 // pred_check
      _
    $region67: #{tpu_custom_call.1} parent=1 // pred_check_branch
      %104 = sbr.rel (0) target = $region69
    $region68: #{tpu_custom_call.1} parent=1 // pred_region
      _
    $region69: #{tpu_custom_call.1} parent=1 // pred_fallthru
      _
    // Predicated region
    $region70: #{tpu_custom_call.1} parent=1 // pred_check
      _
    $region71: #{tpu_custom_call.1} parent=1 // pred_check_branch
      %106 = sbr.rel (0) target = $region73
    $region72: #{tpu_custom_call.1} parent=1 // pred_region
      _
    $region73: #{tpu_custom_call.1} parent=1 // pred_fallthru
      _
    // Predicated region
    $region74: #{tpu_custom_call.1} parent=1 // pred_check
      _
    $region75: #{tpu_custom_call.1} parent=1 // pred_check_branch
      %108 = sbr.rel (0) target = $region77
    $region76: #{tpu_custom_call.1} parent=1 // pred_region
      _
    $region77: #{tpu_custom_call.1} parent=1 // pred_fallthru
      _
    // Predicated region
    $region78: #{tpu_custom_call.1} parent=1 // pred_check
      _
    $region79: #{tpu_custom_call.1} parent=1 // pred_check_branch
      %110 = sbr.rel (0) target = $region81
    $region80: #{tpu_custom_call.1} parent=1 // pred_region
      _
    $region81: #{tpu_custom_call.1} parent=1 // pred_fallthru
      _
    // Predicated region
    $region82: #{tpu_custom_call.1} parent=1 // pred_check
      _
    $region83: #{tpu_custom_call.1} parent=1 // pred_check_branch
      %112 = sbr.rel (0) target = $region85
    $region84: #{tpu_custom_call.1} parent=1 // pred_region
      _
    $region85: #{tpu_custom_call.1} parent=1 // pred_fallthru
      _
    // Predicated region
    $region86: #{tpu_custom_call.1} parent=1 // pred_check
      _
    $region87: #{tpu_custom_call.1} parent=1 // pred_check_branch
      %114 = sbr.rel (0) target = $region89
    $region88: #{tpu_custom_call.1} parent=1 // pred_region
      _
    $region89: #{tpu_custom_call.1} parent=1 // pred_fallthru
      _
    // Predicated region
    $region90: #{tpu_custom_call.1} parent=1 // pred_check
      _
    $region91: #{tpu_custom_call.1} parent=1 // pred_check_branch
      %116 = sbr.rel (0) target = $region93
    $region92: #{tpu_custom_call.1} parent=1 // pred_region
      _
    $region93: #{tpu_custom_call.1} parent=1 // pred_fallthru
      _
    // Predicated region
    $region94: #{tpu_custom_call.1} parent=1 // pred_check
      _
    $region95: #{tpu_custom_call.1} parent=1 // pred_check_branch
      %118 = sbr.rel (0) target = $region97
    $region96: #{tpu_custom_call.1} parent=1 // pred_region
      _
    $region97: #{tpu_custom_call.1} parent=1 // pred_fallthru
      _
    // Predicated region
    $region98: #{tpu_custom_call.1} parent=1 // pred_check
      _
    $region99: #{tpu_custom_call.1} parent=1 // pred_check_branch
      %120 = sbr.rel (0) target = $region101
    $region100: #{tpu_custom_call.1} parent=1 // pred_region
      _
    $region101: #{tpu_custom_call.1} parent=1 // pred_fallthru
      _
    // Predicated region
    $region102: #{tpu_custom_call.1} parent=1 // pred_check
      _
    $region103: #{tpu_custom_call.1} parent=1 // pred_check_branch
      %122 = sbr.rel (0) target = $region105
    $region104: #{tpu_custom_call.1} parent=1 // pred_region
      _
    $region105: #{tpu_custom_call.1} parent=1 // pred_fallthru
      _
    // Predicated region
    $region106: #{tpu_custom_call.1} parent=1 // pred_check
      _
    $region107: #{tpu_custom_call.1} parent=1 // pred_check_branch
      %124 = sbr.rel (0) target = $region109
    $region108: #{tpu_custom_call.1} parent=1 // pred_region
      _
    $region109: #{tpu_custom_call.1} parent=1 // pred_fallthru
      _
    // Predicated region
    $region110: #{tpu_custom_call.1} parent=1 // pred_check
      _
    $region111: #{tpu_custom_call.1} parent=1 // pred_check_branch
      %126 = sbr.rel (0) target = $region113
    $region112: #{tpu_custom_call.1} parent=1 // pred_region
      _
    $region113: #{tpu_custom_call.1} parent=1 // pred_fallthru
      _
    // Predicated region
    $region114: #{tpu_custom_call.1} parent=1 // pred_check
      _
    $region115: #{tpu_custom_call.1} parent=1 // pred_check_branch
      %128 = sbr.rel (0) target = $region117
    $region116: #{tpu_custom_call.1} parent=1 // pred_region
      _
    $region117: #{tpu_custom_call.1} parent=1 // pred_fallthru
      _
    // Predicated region
    $region118: #{tpu_custom_call.1} parent=1 // pred_check
      _
    $region119: #{tpu_custom_call.1} parent=1 // pred_check_branch
      %130 = sbr.rel (0) target = $region121
    $region120: #{tpu_custom_call.1} parent=1 // pred_region
      _
    $region121: #{tpu_custom_call.1} parent=1 // pred_fallthru
      _
    // Predicated region
    $region122: #{tpu_custom_call.1} parent=1 // pred_check
      _
    $region123: #{tpu_custom_call.1} parent=1 // pred_check_branch
      %132 = sbr.rel (0) target = $region125
    $region124: #{tpu_custom_call.1} parent=1 // pred_region
      _
    $region125: #{tpu_custom_call.1} parent=1 // pred_fallthru
      _
    // Predicated region
    $region126: #{tpu_custom_call.1} parent=1 // pred_check
      _
    $region127: #{tpu_custom_call.1} parent=1 // pred_check_branch
      %134 = sbr.rel (0) target = $region129
    $region128: #{tpu_custom_call.1} parent=1 // pred_region
      _
    $region129: #{tpu_custom_call.1} parent=1 // pred_fallthru
      _
    %v135 = vld [vmem:[%s1] sm:$0xff]
    %v136 = vld [vmem:[%s1 + $0x8] sm:$0xff]
    %v137 = vld [vmem:[%s5] sm:$0x1]
    %139 = vset.pattern.permute.xlu0 0
    %140 = vperm.xlu0 %139, %v135
    %v141 = vpop.permute.xlu0 %140
    %144 = vset.pattern.permute.xlu0 0
    %145 = vperm.xlu0 %144, %v136
    %v146 = vpop.permute.xlu0 %145
    %v149 = vlaneseq
    %v150 = vshrl.u32 %v149, 7
    %v151 = vsub.s32 0, %v150
    %v152 = vrot.slane %v137, %v151
    %v154 = vmul.f32 %v141, %v152
    %v155 = vmul.f32 %v146, %v152
    %v156 = vld [vmem:[%s7] sm:$0x1]
    %v158 = vlaneseq
    %v159 = vshrl.u32 %v158, 7
    %v160 = vsub.s32 0, %v159
    %v161 = vrot.slane %v156, %v160
    %v163 = vadd.f32 %v154, %v161
    %v164 = vadd.f32 %v155, %v161
    %v165 = vld [vmem:[%s3] sm:$0xff]
    %v166 = vadd.f32 %v163, %v165
    %v167 = vadd.f32 %v164, %v165
    %v168 = vld [vmem:[%s41] sm:$0xff]
    %v169 = vld [vmem:[%s41 + $0x8] sm:$0xff]
    %v170 = vld [vmem:[%s41 + $0x10] sm:$0xff]
    %v171 = vld [vmem:[%s41 + $0x18] sm:$0xff]
    %v172 = vld [vmem:[%s41 + $0x20] sm:$0xff]
    %v173 = vld [vmem:[%s41 + $0x28] sm:$0xff]
    %v174 = vld [vmem:[%s41 + $0x30] sm:$0xff]
    %v175 = vld [vmem:[%s41 + $0x38] sm:$0xff]
    %v176 = vld [vmem:[%s41 + $0x40] sm:$0xff]
    %v177 = vld [vmem:[%s41 + $0x48] sm:$0xff]
    %v178 = vld [vmem:[%s41 + $0x50] sm:$0xff]
    %v179 = vld [vmem:[%s41 + $0x58] sm:$0xff]
    %v180 = vld [vmem:[%s41 + $0x60] sm:$0xff]
    %v181 = vld [vmem:[%s41 + $0x68] sm:$0xff]
    %v182 = vld [vmem:[%s41 + $0x70] sm:$0xff]
    %v183 = vld [vmem:[%s41 + $0x78] sm:$0xff]
    %v184 = vld [vmem:[%s43] sm:$0xff]
    %v185 = vld [vmem:[%s43 + $0x8] sm:$0xff]
    %v186 = vld [vmem:[%s43 + $0x10] sm:$0xff]
    %v187 = vld [vmem:[%s43 + $0x18] sm:$0xff]
    %v188 = vld [vmem:[%s43 + $0x20] sm:$0xff]
    %v189 = vld [vmem:[%s43 + $0x28] sm:$0xff]
    %v190 = vld [vmem:[%s43 + $0x30] sm:$0xff]
    %v191 = vld [vmem:[%s43 + $0x38] sm:$0xff]
    %v192 = vld [vmem:[%s43 + $0x40] sm:$0xff]
    %v193 = vld [vmem:[%s43 + $0x48] sm:$0xff]
    %v194 = vld [vmem:[%s43 + $0x50] sm:$0xff]
    %v195 = vld [vmem:[%s43 + $0x58] sm:$0xff]
    %v196 = vld [vmem:[%s43 + $0x60] sm:$0xff]
    %v197 = vld [vmem:[%s43 + $0x68] sm:$0xff]
    %v198 = vld [vmem:[%s43 + $0x70] sm:$0xff]
    %v199 = vld [vmem:[%s43 + $0x78] sm:$0xff]
    %v200 = vld [vmem:[%s45] sm:$0xff]
    %v201 = vld [vmem:[%s45 + $0x8] sm:$0xff]
    %v202 = vld [vmem:[%s45 + $0x10] sm:$0xff]
    %v203 = vld [vmem:[%s45 + $0x18] sm:$0xff]
    %v204 = vld [vmem:[%s45 + $0x20] sm:$0xff]
    %v205 = vld [vmem:[%s45 + $0x28] sm:$0xff]
    %v206 = vld [vmem:[%s45 + $0x30] sm:$0xff]
    %v207 = vld [vmem:[%s45 + $0x38] sm:$0xff]
    %v208 = vld [vmem:[%s47] sm:$0xff]
    %v209 = vld [vmem:[%s47 + $0x8] sm:$0xff]
    %v210 = vld [vmem:[%s47 + $0x10] sm:$0xff]
    %v211 = vld [vmem:[%s47 + $0x18] sm:$0xff]
    %v212 = vld [vmem:[%s47 + $0x20] sm:$0xff]
    %v213 = vld [vmem:[%s47 + $0x28] sm:$0xff]
    %v214 = vld [vmem:[%s47 + $0x30] sm:$0xff]
    %v215 = vld [vmem:[%s47 + $0x38] sm:$0xff]
    %v216 = vld [vmem:[%s9] sm:$0xff]
    %v217 = vld [vmem:[%s9 + $0x8] sm:$0xff]
    %v218 = vld [vmem:[%s9 + $0x10] sm:$0xff]
    %v219 = vld [vmem:[%s9 + $0x18] sm:$0xff]
    %v220 = vld [vmem:[%s9 + $0x20] sm:$0xff]
    %v221 = vld [vmem:[%s9 + $0x28] sm:$0xff]
    %v222 = vld [vmem:[%s9 + $0x30] sm:$0xff]
    %v223 = vld [vmem:[%s9 + $0x38] sm:$0xff]
    %v224 = vld [vmem:[%s11] sm:$0x1]
    %v226 = vlaneseq
    %v227 = vshrl.u32 %v226, 7
    %v228 = vsub.s32 0, %v227
    %v229 = vrot.slane %v224, %v228
    %vm231 = vcmask 523264
    %v233 = vsel %vm231, %v166, 0
    %v236 = vsel %vm231, %v167, 0
    %238 = vmatprep.subr.mxu0 0.0
    %239 = vmatpush1.msra.mxu0 %v216
    %240 = vmatprep.subr.mxu0 0.0
    %241 = vmatpush1.msra.mxu0 %v217
    %242 = vmatprep.subr.mxu0 0.0
    %243 = vmatpush1.msra.mxu0 %v218
    %244 = vmatprep.subr.mxu0 0.0
    %245 = vmatpush1.msra.mxu0 %v219
    %246 = vmatprep.subr.mxu0 0.0
    %247 = vmatpush1.msra.mxu0 %v220
    %248 = vmatprep.subr.mxu0 0.0
    %249 = vmatpush1.msra.mxu0 %v221
    %250 = vmatprep.subr.mxu0 0.0
    %251 = vmatpush1.msra.mxu0 %v222
    %252 = vmatprep.subr.mxu0 0.0
    %253 = vmatpush1.msra.mxu0 %v223
    %254 = vmatprep.subr.mxu0 0.0
    %255 = vmatpush1.msra.mxu0 0.0
    %256 = vmatprep.subr.mxu0 0.0
    %257 = vmatpush1.msra.mxu0 0.0
    %258 = vmatprep.subr.mxu0 0.0
    %259 = vmatpush1.msra.mxu0 0.0
    %260 = vmatprep.subr.mxu0 0.0
    %261 = vmatpush1.msra.mxu0 0.0
    %262 = vmatprep.subr.mxu0 0.0
    %263 = vmatpush1.msra.mxu0 0.0
    %264 = vmatprep.subr.mxu0 0.0
    %265 = vmatpush1.msra.mxu0 0.0
    %266 = vmatprep.subr.mxu0 0.0
    %267 = vmatpush1.msra.mxu0 0.0
    %268 = vmatprep.subr.mxu0 0.0
    %269 = vmatpush1.msra.mxu0 0.0
    %270 = vmatprep.subr.mxu0 0.0
    %271 = vmatpush1.msra.mxu0 0.0
    %272 = vmatprep.subr.mxu0 0.0
    %273 = vmatpush1.msra.mxu0 0.0
    %274 = vmatprep.subr.mxu0 0.0
    %275 = vmatpush1.msra.mxu0 0.0
    %276 = vmatprep.subr.mxu0 0.0
    %277 = vmatpush1.msra.mxu0 0.0
    %278 = vmatprep.subr.mxu0 0.0
    %279 = vmatpush1.msra.mxu0 0.0
    %280 = vmatprep.subr.mxu0 0.0
    %281 = vmatpush1.msra.mxu0 0.0
    %282 = vmatprep.subr.mxu0 0.0
    %283 = vmatpush1.msra.mxu0 0.0
    %284 = vmatprep.subr.mxu0 0.0
    %285 = vmatpush1.msra.mxu0 0.0
    %286 = vmatprep.subr.mxu0 0.0
    %287 = vmatpush1.msra.mxu0 0.0
    %288 = vmatprep.subr.mxu0 0.0
    %289 = vmatpush1.msra.mxu0 0.0
    %290 = vmatprep.subr.mxu0 0.0
    %291 = vmatpush1.msra.mxu0 0.0
    %292 = vmatprep.subr.mxu0 0.0
    %293 = vmatpush1.msra.mxu0 0.0
    %294 = vmatprep.subr.mxu0 0.0
    %295 = vmatpush1.msra.mxu0 0.0
    %296 = vmatprep.subr.mxu0 0.0
    %297 = vmatpush1.msra.mxu0 0.0
    %298 = vmatprep.subr.mxu0 0.0
    %299 = vmatpush1.msra.mxu0 0.0
    %300 = vmatprep.subr.mxu0 0.0
    %301 = vmatpush1.msra.mxu0 0.0
    %302 = vmatprep.mubr.f32.mxu0 0.0
    %303 = vmatmul.mubr.f32.gmra.mrb[0].mxu0 %v233
    %v304 = vpop.f32.mrb[0].mxu0
    %v305 = vadd.f32 %v229, %v304
    %v306 = vpop.f32.mrb[0].mxu0
    %307 = vmatprep.mubr.f32.mxu0 0.0
    %308 = vmatmul.mubr.f32.gmra.mrb[0].mxu0 %v236
    %v309 = vpop.f32.mrb[0].mxu0
    %v310 = vadd.f32 %v229, %v309
    %v311 = vpop.f32.mrb[0].mxu0
    %312 = vdwg.mxu0
    %v313 = vld [vmem:[%s13] sm:$0xff]
    %v314 = vld [vmem:[%s13 + $0x8] sm:$0xff]
    %v315 = vld [vmem:[%s13 + $0x10] sm:$0xff]
    %v316 = vld [vmem:[%s13 + $0x18] sm:$0xff]
    %v317 = vld [vmem:[%s13 + $0x20] sm:$0xff]
    %v318 = vld [vmem:[%s13 + $0x28] sm:$0xff]
    %v319 = vld [vmem:[%s13 + $0x30] sm:$0xff]
    %v320 = vld [vmem:[%s13 + $0x38] sm:$0xff]
    %v321 = vld [vmem:[%s15] sm:$0x1]
    %v323 = vlaneseq
    %v324 = vshrl.u32 %v323, 7
    %v325 = vsub.s32 0, %v324
    %v326 = vrot.slane %v321, %v325
    %328 = vmatprep.subr.mxu0 0.0
    %329 = vmatpush1.msra.mxu0 %v313
    %330 = vmatprep.subr.mxu0 0.0
    %331 = vmatpush1.msra.mxu0 %v314
    %332 = vmatprep.subr.mxu0 0.0
    %333 = vmatpush1.msra.mxu0 %v315
    %334 = vmatprep.subr.mxu0 0.0
    %335 = vmatpush1.msra.mxu0 %v316
    %336 = vmatprep.subr.mxu0 0.0
    %337 = vmatpush1.msra.mxu0 %v317
    %338 = vmatprep.subr.mxu0 0.0
    %339 = vmatpush1.msra.mxu0 %v318
    %340 = vmatprep.subr.mxu0 0.0
    %341 = vmatpush1.msra.mxu0 %v319
    %342 = vmatprep.subr.mxu0 0.0
    %343 = vmatpush1.msra.mxu0 %v320
    %344 = vmatprep.subr.mxu0 0.0
    %345 = vmatpush1.msra.mxu0 0.0
    %346 = vmatprep.subr.mxu0 0.0
    %347 = vmatpush1.msra.mxu0 0.0
    %348 = vmatprep.subr.mxu0 0.0
    %349 = vmatpush1.msra.mxu0 0.0
    %350 = vmatprep.subr.mxu0 0.0
    %351 = vmatpush1.msra.mxu0 0.0
    %352 = vmatprep.subr.mxu0 0.0
    %353 = vmatpush1.msra.mxu0 0.0
    %354 = vmatprep.subr.mxu0 0.0
    %355 = vmatpush1.msra.mxu0 0.0
    %356 = vmatprep.subr.mxu0 0.0
    %357 = vmatpush1.msra.mxu0 0.0
    %358 = vmatprep.subr.mxu0 0.0
    %359 = vmatpush1.msra.mxu0 0.0
    %360 = vmatprep.subr.mxu0 0.0
    %361 = vmatpush1.msra.mxu0 0.0
    %362 = vmatprep.subr.mxu0 0.0
    %363 = vmatpush1.msra.mxu0 0.0
    %364 = vmatprep.subr.mxu0 0.0
    %365 = vmatpush1.msra.mxu0 0.0
    %366 = vmatprep.subr.mxu0 0.0
    %367 = vmatpush1.msra.mxu0 0.0
    %368 = vmatprep.subr.mxu0 0.0
    %369 = vmatpush1.msra.mxu0 0.0
    %370 = vmatprep.subr.mxu0 0.0
    %371 = vmatpush1.msra.mxu0 0.0
    %372 = vmatprep.subr.mxu0 0.0
    %373 = vmatpush1.msra.mxu0 0.0
    %374 = vmatprep.subr.mxu0 0.0
    %375 = vmatpush1.msra.mxu0 0.0
    %376 = vmatprep.subr.mxu0 0.0
    %377 = vmatpush1.msra.mxu0 0.0
    %378 = vmatprep.subr.mxu0 0.0
    %379 = vmatpush1.msra.mxu0 0.0
    %380 = vmatprep.subr.mxu0 0.0
    %381 = vmatpush1.msra.mxu0 0.0
    %382 = vmatprep.subr.mxu0 0.0
    %383 = vmatpush1.msra.mxu0 0.0
    %384 = vmatprep.subr.mxu0 0.0
    %385 = vmatpush1.msra.mxu0 0.0
    %386 = vmatprep.subr.mxu0 0.0
    %387 = vmatpush1.msra.mxu0 0.0
    %388 = vmatprep.subr.mxu0 0.0
    %389 = vmatpush1.msra.mxu0 0.0
    %390 = vmatprep.subr.mxu0 0.0
    %391 = vmatpush1.msra.mxu0 0.0
    %392 = vmatprep.mubr.f32.mxu0 0.0
    %393 = vmatmul.mubr.f32.gmra.mrb[0].mxu0 %v233
    %v394 = vpop.f32.mrb[0].mxu0
    %v395 = vadd.f32 %v326, %v394
    %v396 = vpop.f32.mrb[0].mxu0
    %397 = vmatprep.mubr.f32.mxu0 0.0
    %398 = vmatmul.mubr.f32.gmra.mrb[0].mxu0 %v236
    %v399 = vpop.f32.mrb[0].mxu0
    %v400 = vadd.f32 %v326, %v399
    %v401 = vpop.f32.mrb[0].mxu0
    %402 = vdwg.mxu0
    %v403 = vld [vmem:[%s17] sm:$0xff]
    %v404 = vld [vmem:[%s17 + $0x8] sm:$0xff]
    %v405 = vld [vmem:[%s17 + $0x10] sm:$0xff]
    %v406 = vld [vmem:[%s17 + $0x18] sm:$0xff]
    %v407 = vld [vmem:[%s17 + $0x20] sm:$0xff]
    %v408 = vld [vmem:[%s17 + $0x28] sm:$0xff]
    %v409 = vld [vmem:[%s17 + $0x30] sm:$0xff]
    %v410 = vld [vmem:[%s17 + $0x38] sm:$0xff]
    %v411 = vld [vmem:[%s19] sm:$0x1]
    %v413 = vlaneseq
    %v414 = vshrl.u32 %v413, 7
    %v415 = vsub.s32 0, %v414
    %v416 = vrot.slane %v411, %v415
    %418 = vmatprep.subr.mxu0 0.0
    %419 = vmatpush1.msra.mxu0 %v403
    %420 = vmatprep.subr.mxu0 0.0
    %421 = vmatpush1.msra.mxu0 %v404
    %422 = vmatprep.subr.mxu0 0.0
    %423 = vmatpush1.msra.mxu0 %v405
    %424 = vmatprep.subr.mxu0 0.0
    %425 = vmatpush1.msra.mxu0 %v406
    %426 = vmatprep.subr.mxu0 0.0
    %427 = vmatpush1.msra.mxu0 %v407
    %428 = vmatprep.subr.mxu0 0.0
    %429 = vmatpush1.msra.mxu0 %v408
    %430 = vmatprep.subr.mxu0 0.0
    %431 = vmatpush1.msra.mxu0 %v409
    %432 = vmatprep.subr.mxu0 0.0
    %433 = vmatpush1.msra.mxu0 %v410
    %434 = vmatprep.subr.mxu0 0.0
    %435 = vmatpush1.msra.mxu0 0.0
    %436 = vmatprep.subr.mxu0 0.0
    %437 = vmatpush1.msra.mxu0 0.0
    %438 = vmatprep.subr.mxu0 0.0
    %439 = vmatpush1.msra.mxu0 0.0
    %440 = vmatprep.subr.mxu0 0.0
    %441 = vmatpush1.msra.mxu0 0.0
    %442 = vmatprep.subr.mxu0 0.0
    %443 = vmatpush1.msra.mxu0 0.0
    %444 = vmatprep.subr.mxu0 0.0
    %445 = vmatpush1.msra.mxu0 0.0
    %446 = vmatprep.subr.mxu0 0.0
    %447 = vmatpush1.msra.mxu0 0.0
    %448 = vmatprep.subr.mxu0 0.0
    %449 = vmatpush1.msra.mxu0 0.0
    %450 = vmatprep.subr.mxu0 0.0
    %451 = vmatpush1.msra.mxu0 0.0
    %452 = vmatprep.subr.mxu0 0.0
    %453 = vmatpush1.msra.mxu0 0.0
    %454 = vmatprep.subr.mxu0 0.0
    %455 = vmatpush1.msra.mxu0 0.0
    %456 = vmatprep.subr.mxu0 0.0
    %457 = vmatpush1.msra.mxu0 0.0
    %458 = vmatprep.subr.mxu0 0.0
    %459 = vmatpush1.msra.mxu0 0.0
    %460 = vmatprep.subr.mxu0 0.0
    %461 = vmatpush1.msra.mxu0 0.0
    %462 = vmatprep.subr.mxu0 0.0
    %463 = vmatpush1.msra.mxu0 0.0
    %464 = vmatprep.subr.mxu0 0.0
    %465 = vmatpush1.msra.mxu0 0.0
    %466 = vmatprep.subr.mxu0 0.0
    %467 = vmatpush1.msra.mxu0 0.0
    %468 = vmatprep.subr.mxu0 0.0
    %469 = vmatpush1.msra.mxu0 0.0
    %470 = vmatprep.subr.mxu0 0.0
    %471 = vmatpush1.msra.mxu0 0.0
    %472 = vmatprep.subr.mxu0 0.0
    %473 = vmatpush1.msra.mxu0 0.0
    %474 = vmatprep.subr.mxu0 0.0
    %475 = vmatpush1.msra.mxu0 0.0
    %476 = vmatprep.subr.mxu0 0.0
    %477 = vmatpush1.msra.mxu0 0.0
    %478 = vmatprep.subr.mxu0 0.0
    %479 = vmatpush1.msra.mxu0 0.0
    %480 = vmatprep.subr.mxu0 0.0
    %481 = vmatpush1.msra.mxu0 0.0
    %482 = vmatprep.mubr.f32.mxu0 0.0
    %483 = vmatmul.mubr.f32.gmra.mrb[0].mxu0 %v233
    %v484 = vpop.f32.mrb[0].mxu0
    %v485 = vadd.f32 %v416, %v484
    %v486 = vpop.f32.mrb[0].mxu0
    %487 = vmatprep.mubr.f32.mxu0 0.0
    %488 = vmatmul.mubr.f32.gmra.mrb[0].mxu0 %v236
    %v489 = vpop.f32.mrb[0].mxu0
    %v490 = vadd.f32 %v416, %v489
    %v491 = vpop.f32.mrb[0].mxu0
    %492 = vdwg.mxu0
    %v493 = vmul.f32 %v305, %v168
    %v494 = vmul.f32 %v310, %v169
    %v495 = vmul.f32 %v305, %v170
    %v496 = vmul.f32 %v310, %v171
    %v497 = vmul.f32 %v305, %v172
    %v498 = vmul.f32 %v310, %v173
    %v499 = vmul.f32 %v305, %v174
    %v500 = vmul.f32 %v310, %v175
    %v501 = vmul.f32 %v305, %v176
    %v502 = vmul.f32 %v310, %v177
    %v503 = vmul.f32 %v305, %v178
    %v504 = vmul.f32 %v310, %v179
    %v505 = vmul.f32 %v305, %v180
    %v506 = vmul.f32 %v310, %v181
    %v507 = vmul.f32 %v305, %v182
    %v508 = vmul.f32 %v310, %v183
    %v510 = vsel %vm231, %v493, 0
    %v513 = vsel %vm231, %v494, 0
    %v516 = vsel %vm231, %v495, 0
    %v519 = vsel %vm231, %v496, 0
    %v522 = vsel %vm231, %v497, 0
    %v525 = vsel %vm231, %v498, 0
    %v528 = vsel %vm231, %v499, 0
    %v531 = vsel %vm231, %v500, 0
    %v534 = vsel %vm231, %v501, 0
    %v537 = vsel %vm231, %v502, 0
    %v540 = vsel %vm231, %v503, 0
    %v543 = vsel %vm231, %v504, 0
    %v546 = vsel %vm231, %v505, 0
    %v549 = vsel %vm231, %v506, 0
    %v552 = vsel %vm231, %v507, 0
    %v555 = vsel %vm231, %v508, 0
    %v558 = vsel %vm231, %v395, 0
    %v561 = vsel %vm231, %v400, 0
    %563 = vmatprep.subr.mxu0 0.0
    %564 = vmatpush1.xpose.msra.mxu0 %v558
    %565 = vmatprep.subr.mxu0 0.0
    %566 = vmatpush1.xpose.msra.mxu0 %v561
    %567 = vmatprep.subr.mxu0 0.0
    %568 = vmatpush1.xpose.msra.mxu0 0.0
    %569 = vmatprep.subr.mxu0 0.0
    %570 = vmatpush1.xpose.msra.mxu0 0.0
    %571 = vmatprep.subr.mxu0 0.0
    %572 = vmatpush1.xpose.msra.mxu0 0.0
    %573 = vmatprep.subr.mxu0 0.0
    %574 = vmatpush1.xpose.msra.mxu0 0.0
    %575 = vmatprep.subr.mxu0 0.0
    %576 = vmatpush1.xpose.msra.mxu0 0.0
    %577 = vmatprep.subr.mxu0 0.0
    %578 = vmatpush1.xpose.msra.mxu0 0.0
    %579 = vmatprep.subr.mxu0 0.0
    %580 = vmatpush1.xpose.msra.mxu0 0.0
    %581 = vmatprep.subr.mxu0 0.0
    %582 = vmatpush1.xpose.msra.mxu0 0.0
    %583 = vmatprep.subr.mxu0 0.0
    %584 = vmatpush1.xpose.msra.mxu0 0.0
    %585 = vmatprep.subr.mxu0 0.0
    %586 = vmatpush1.xpose.msra.mxu0 0.0
    %587 = vmatprep.subr.mxu0 0.0
    %588 = vmatpush1.xpose.msra.mxu0 0.0
    %589 = vmatprep.subr.mxu0 0.0
    %590 = vmatpush1.xpose.msra.mxu0 0.0
    %591 = vmatprep.subr.mxu0 0.0
    %592 = vmatpush1.xpose.msra.mxu0 0.0
    %593 = vmatprep.subr.mxu0 0.0
    %594 = vmatpush1.xpose.msra.mxu0 0.0
    %595 = vmatprep.subr.mxu0 0.0
    %596 = vmatpush1.xpose.msra.mxu0 0.0
    %597 = vmatprep.subr.mxu0 0.0
    %598 = vmatpush1.xpose.msra.mxu0 0.0
    %599 = vmatprep.subr.mxu0 0.0
    %600 = vmatpush1.xpose.msra.mxu0 0.0
    %601 = vmatprep.subr.mxu0 0.0
    %602 = vmatpush1.xpose.msra.mxu0 0.0
    %603 = vmatprep.subr.mxu0 0.0
    %604 = vmatpush1.xpose.msra.mxu0 0.0
    %605 = vmatprep.subr.mxu0 0.0
    %606 = vmatpush1.xpose.msra.mxu0 0.0
    %607 = vmatprep.subr.mxu0 0.0
    %608 = vmatpush1.xpose.msra.mxu0 0.0
    %609 = vmatprep.subr.mxu0 0.0
    %610 = vmatpush1.xpose.msra.mxu0 0.0
    %611 = vmatprep.subr.mxu0 0.0
    %612 = vmatpush1.xpose.msra.mxu0 0.0
    %613 = vmatprep.subr.mxu0 0.0
    %614 = vmatpush1.xpose.msra.mxu0 0.0
    %615 = vmatprep.subr.mxu0 0.0
    %616 = vmatpush1.xpose.msra.mxu0 0.0
    %617 = vmatprep.subr.mxu0 0.0
    %618 = vmatpush1.xpose.msra.mxu0 0.0
    %619 = vmatprep.subr.mxu0 0.0
    %620 = vmatpush1.xpose.msra.mxu0 0.0
    %621 = vmatprep.subr.mxu0 0.0
    %622 = vmatpush1.xpose.msra.mxu0 0.0
    %623 = vmatprep.subr.mxu0 0.0
    %624 = vmatpush1.xpose.msra.mxu0 0.0
    %625 = vmatprep.subr.mxu0 0.0
    %626 = vmatpush1.xpose.msra.mxu0 0.0
    %627 = vmatprep.mubr.f32.mxu0 0.0
    %628 = vmatmul.mubr.f32.gmra.mrb[0].mxu0 %v510
    %v629 = vpop.f32.mrb[0].mxu0
    %v630 = vadd.f32 0.0, %v629
    %v631 = vpop.f32.mrb[0].mxu0
    %632 = vmatprep.mubr.f32.mxu0 0.0
    %633 = vmatmul.mubr.f32.gmra.mrb[0].mxu0 %v513
    %v634 = vpop.f32.mrb[0].mxu0
    %v635 = vadd.f32 0.0, %v634
    %v636 = vpop.f32.mrb[0].mxu0
    %637 = vmatprep.mubr.f32.mxu0 0.0
    %638 = vmatmul.mubr.f32.gmra.mrb[0].mxu0 %v516
    %v639 = vpop.f32.mrb[0].mxu0
    %v640 = vadd.f32 0.0, %v639
    %v641 = vpop.f32.mrb[0].mxu0
    %642 = vmatprep.mubr.f32.mxu0 0.0
    %643 = vmatmul.mubr.f32.gmra.mrb[0].mxu0 %v519
    %v644 = vpop.f32.mrb[0].mxu0
    %v645 = vadd.f32 0.0, %v644
    %v646 = vpop.f32.mrb[0].mxu0
    %647 = vmatprep.mubr.f32.mxu0 0.0
    %648 = vmatmul.mubr.f32.gmra.mrb[0].mxu0 %v522
    %v649 = vpop.f32.mrb[0].mxu0
    %v650 = vadd.f32 0.0, %v649
    %v651 = vpop.f32.mrb[0].mxu0
    %652 = vmatprep.mubr.f32.mxu0 0.0
    %653 = vmatmul.mubr.f32.gmra.mrb[0].mxu0 %v525
    %v654 = vpop.f32.mrb[0].mxu0
    %v655 = vadd.f32 0.0, %v654
    %v656 = vpop.f32.mrb[0].mxu0
    %657 = vmatprep.mubr.f32.mxu0 0.0
    %658 = vmatmul.mubr.f32.gmra.mrb[0].mxu0 %v528
    %v659 = vpop.f32.mrb[0].mxu0
    %v660 = vadd.f32 0.0, %v659
    %v661 = vpop.f32.mrb[0].mxu0
    %662 = vmatprep.mubr.f32.mxu0 0.0
    %663 = vmatmul.mubr.f32.gmra.mrb[0].mxu0 %v531
    %v664 = vpop.f32.mrb[0].mxu0
    %v665 = vadd.f32 0.0, %v664
    %v666 = vpop.f32.mrb[0].mxu0
    %667 = vmatprep.mubr.f32.mxu0 0.0
    %668 = vmatmul.mubr.f32.gmra.mrb[0].mxu0 %v534
    %v669 = vpop.f32.mrb[0].mxu0
    %v670 = vadd.f32 0.0, %v669
    %v671 = vpop.f32.mrb[0].mxu0
    %672 = vmatprep.mubr.f32.mxu0 0.0
    %673 = vmatmul.mubr.f32.gmra.mrb[0].mxu0 %v537
    %v674 = vpop.f32.mrb[0].mxu0
    %v675 = vadd.f32 0.0, %v674
    %v676 = vpop.f32.mrb[0].mxu0
    %677 = vmatprep.mubr.f32.mxu0 0.0
    %678 = vmatmul.mubr.f32.gmra.mrb[0].mxu0 %v540
    %v679 = vpop.f32.mrb[0].mxu0
    %v680 = vadd.f32 0.0, %v679
    %v681 = vpop.f32.mrb[0].mxu0
    %682 = vmatprep.mubr.f32.mxu0 0.0
    %683 = vmatmul.mubr.f32.gmra.mrb[0].mxu0 %v543
    %v684 = vpop.f32.mrb[0].mxu0
    %v685 = vadd.f32 0.0, %v684
    %v686 = vpop.f32.mrb[0].mxu0
    %687 = vmatprep.mubr.f32.mxu0 0.0
    %688 = vmatmul.mubr.f32.gmra.mrb[0].mxu0 %v546
    %v689 = vpop.f32.mrb[0].mxu0
    %v690 = vadd.f32 0.0, %v689
    %v691 = vpop.f32.mrb[0].mxu0
    %692 = vmatprep.mubr.f32.mxu0 0.0
    %693 = vmatmul.mubr.f32.gmra.mrb[0].mxu0 %v549
    %v694 = vpop.f32.mrb[0].mxu0
    %v695 = vadd.f32 0.0, %v694
    %v696 = vpop.f32.mrb[0].mxu0
    %697 = vmatprep.mubr.f32.mxu0 0.0
    %698 = vmatmul.mubr.f32.gmra.mrb[0].mxu0 %v552
    %v699 = vpop.f32.mrb[0].mxu0
    %v700 = vadd.f32 0.0, %v699
    %v701 = vpop.f32.mrb[0].mxu0
    %702 = vmatprep.mubr.f32.mxu0 0.0
    %703 = vmatmul.mubr.f32.gmra.mrb[0].mxu0 %v555
    %v704 = vpop.f32.mrb[0].mxu0
    %v705 = vadd.f32 0.0, %v704
    %v706 = vpop.f32.mrb[0].mxu0
    %707 = vdwg.mxu0
    %v708 = vmul.f32 %v630, 0.35355338
    %v709 = vmul.f32 %v635, 0.35355338
    %v710 = vmul.f32 %v640, 0.35355338
    %v711 = vmul.f32 %v645, 0.35355338
    %v712 = vmul.f32 %v650, 0.35355338
    %v713 = vmul.f32 %v655, 0.35355338
    %v714 = vmul.f32 %v660, 0.35355338
    %v715 = vmul.f32 %v665, 0.35355338
    %v716 = vmul.f32 %v670, 0.35355338
    %v717 = vmul.f32 %v675, 0.35355338
    %v718 = vmul.f32 %v680, 0.35355338
    %v719 = vmul.f32 %v685, 0.35355338
    %v720 = vmul.f32 %v690, 0.35355338
    %v721 = vmul.f32 %v695, 0.35355338
    %v722 = vmul.f32 %v700, 0.35355338
    %v723 = vmul.f32 %v705, 0.35355338
    %v724 = vadd.f32 %v708, %v184
    %v725 = vadd.f32 %v709, %v185
    %v726 = vadd.f32 %v710, %v186
    %v727 = vadd.f32 %v711, %v187
    %v728 = vadd.f32 %v712, %v188
    %v729 = vadd.f32 %v713, %v189
    %v730 = vadd.f32 %v714, %v190
    %v731 = vadd.f32 %v715, %v191
    %v732 = vadd.f32 %v716, %v192
    %v733 = vadd.f32 %v717, %v193
    %v734 = vadd.f32 %v718, %v194
    %v735 = vadd.f32 %v719, %v195
    %v736 = vadd.f32 %v720, %v196
    %v737 = vadd.f32 %v721, %v197
    %v738 = vadd.f32 %v722, %v198
    %v739 = vadd.f32 %v723, %v199
    %vm740 = vcmask 130048
    %v741 = vsel %vm740, %v724, -inf
    %742 = vmax.xlane.f32.xlu0 %v741
    %v743 = vpop.xlane.xlu0 %742
    %v744 = vsel %vm740, %v725, -inf
    %745 = vmax.xlane.f32.xlu0 %v744
    %v746 = vpop.xlane.xlu0 %745
    %v747 = vsel %vm740, %v726, -inf
    %748 = vmax.xlane.f32.xlu0 %v747
    %v749 = vpop.xlane.xlu0 %748
    %v750 = vsel %vm740, %v727, -inf
    %751 = vmax.xlane.f32.xlu0 %v750
    %v752 = vpop.xlane.xlu0 %751
    %v753 = vsel %vm740, %v728, -inf
    %754 = vmax.xlane.f32.xlu0 %v753
    %v755 = vpop.xlane.xlu0 %754
    %v756 = vsel %vm740, %v729, -inf
    %757 = vmax.xlane.f32.xlu0 %v756
    %v758 = vpop.xlane.xlu0 %757
    %v759 = vsel %vm740, %v730, -inf
    %760 = vmax.xlane.f32.xlu0 %v759
    %v761 = vpop.xlane.xlu0 %760
    %v762 = vsel %vm740, %v731, -inf
    %763 = vmax.xlane.f32.xlu0 %v762
    %v764 = vpop.xlane.xlu0 %763
    %v765 = vsel %vm740, %v732, -inf
    %766 = vmax.xlane.f32.xlu0 %v765
    %v767 = vpop.xlane.xlu0 %766
    %v768 = vsel %vm740, %v733, -inf
    %769 = vmax.xlane.f32.xlu0 %v768
    %v770 = vpop.xlane.xlu0 %769
    %v771 = vsel %vm740, %v734, -inf
    %772 = vmax.xlane.f32.xlu0 %v771
    %v773 = vpop.xlane.xlu0 %772
    %v774 = vsel %vm740, %v735, -inf
    %775 = vmax.xlane.f32.xlu0 %v774
    %v776 = vpop.xlane.xlu0 %775
    %v777 = vsel %vm740, %v736, -inf
    %778 = vmax.xlane.f32.xlu0 %v777
    %v779 = vpop.xlane.xlu0 %778
    %v780 = vsel %vm740, %v737, -inf
    %781 = vmax.xlane.f32.xlu0 %v780
    %v782 = vpop.xlane.xlu0 %781
    %v783 = vsel %vm740, %v738, -inf
    %784 = vmax.xlane.f32.xlu0 %v783
    %v785 = vpop.xlane.xlu0 %784
    %v786 = vsel %vm740, %v739, -inf
    %787 = vmax.xlane.f32.xlu0 %v786
    %v788 = vpop.xlane.xlu0 %787
    %v789 = vsub.f32 %v724, %v743
    %v790 = vsub.f32 %v725, %v746
    %v791 = vsub.f32 %v726, %v749
    %v792 = vsub.f32 %v727, %v752
    %v793 = vsub.f32 %v728, %v755
    %v794 = vsub.f32 %v729, %v758
    %v795 = vsub.f32 %v730, %v761
    %v796 = vsub.f32 %v731, %v764
    %v797 = vsub.f32 %v732, %v767
    %v798 = vsub.f32 %v733, %v770
    %v799 = vsub.f32 %v734, %v773
    %v800 = vsub.f32 %v735, %v776
    %v801 = vsub.f32 %v736, %v779
    %v802 = vsub.f32 %v737, %v782
    %v803 = vsub.f32 %v738, %v785
    %v804 = vsub.f32 %v739, %v788
    %v805 = vmul.f32 %v789, 1.442695
    %v806 = vpow.pop %v805
    %v807 = vmul.f32 %v790, 1.442695
    %v808 = vpow.pop %v807
    %v809 = vmul.f32 %v791, 1.442695
    %v810 = vpow.pop %v809
    %v811 = vmul.f32 %v792, 1.442695
    %v812 = vpow.pop %v811
    %v813 = vmul.f32 %v793, 1.442695
    %v814 = vpow.pop %v813
    %v815 = vmul.f32 %v794, 1.442695
    %v816 = vpow.pop %v815
    %v817 = vmul.f32 %v795, 1.442695
    %v818 = vpow.pop %v817
    %v819 = vmul.f32 %v796, 1.442695
    %v820 = vpow.pop %v819
    %v821 = vmul.f32 %v797, 1.442695
    %v822 = vpow.pop %v821
    %v823 = vmul.f32 %v798, 1.442695
    %v824 = vpow.pop %v823
    %v825 = vmul.f32 %v799, 1.442695
    %v826 = vpow.pop %v825
    %v827 = vmul.f32 %v800, 1.442695
    %v828 = vpow.pop %v827
    %v829 = vmul.f32 %v801, 1.442695
    %v830 = vpow.pop %v829
    %v831 = vmul.f32 %v802, 1.442695
    %v832 = vpow.pop %v831
    %v833 = vmul.f32 %v803, 1.442695
    %v834 = vpow.pop %v833
    %v835 = vmul.f32 %v804, 1.442695
    %v836 = vpow.pop %v835
    %v837 = vsel %vm740, %v806, 0.0
    %838 = vadd.xlane.f32.xlu0 %v837
    %v839 = vpop.xlane.xlu0 %838
    %v840 = vsel %vm740, %v808, 0.0
    %841 = vadd.xlane.f32.xlu0 %v840
    %v842 = vpop.xlane.xlu0 %841
    %v843 = vsel %vm740, %v810, 0.0
    %844 = vadd.xlane.f32.xlu0 %v843
    %v845 = vpop.xlane.xlu0 %844
    %v846 = vsel %vm740, %v812, 0.0
    %847 = vadd.xlane.f32.xlu0 %v846
    %v848 = vpop.xlane.xlu0 %847
    %v849 = vsel %vm740, %v814, 0.0
    %850 = vadd.xlane.f32.xlu0 %v849
    %v851 = vpop.xlane.xlu0 %850
    %v852 = vsel %vm740, %v816, 0.0
    %853 = vadd.xlane.f32.xlu0 %v852
    %v854 = vpop.xlane.xlu0 %853
    %v855 = vsel %vm740, %v818, 0.0
    %856 = vadd.xlane.f32.xlu0 %v855
    %v857 = vpop.xlane.xlu0 %856
    %v858 = vsel %vm740, %v820, 0.0
    %859 = vadd.xlane.f32.xlu0 %v858
    %v860 = vpop.xlane.xlu0 %859
    %v861 = vsel %vm740, %v822, 0.0
    %862 = vadd.xlane.f32.xlu0 %v861
    %v863 = vpop.xlane.xlu0 %862
    %v864 = vsel %vm740, %v824, 0.0
    %865 = vadd.xlane.f32.xlu0 %v864
    %v866 = vpop.xlane.xlu0 %865
    %v867 = vsel %vm740, %v826, 0.0
    %868 = vadd.xlane.f32.xlu0 %v867
    %v869 = vpop.xlane.xlu0 %868
    %v870 = vsel %vm740, %v828, 0.0
    %871 = vadd.xlane.f32.xlu0 %v870
    %v872 = vpop.xlane.xlu0 %871
    %v873 = vsel %vm740, %v830, 0.0
    %874 = vadd.xlane.f32.xlu0 %v873
    %v875 = vpop.xlane.xlu0 %874
    %v876 = vsel %vm740, %v832, 0.0
    %877 = vadd.xlane.f32.xlu0 %v876
    %v878 = vpop.xlane.xlu0 %877
    %v879 = vsel %vm740, %v834, 0.0
    %880 = vadd.xlane.f32.xlu0 %v879
    %v881 = vpop.xlane.xlu0 %880
    %v882 = vsel %vm740, %v836, 0.0
    %883 = vadd.xlane.f32.xlu0 %v882
    %v884 = vpop.xlane.xlu0 %883
    %v885 = vrcp.pop %v839
    %v886 = vrcp.pop %v842
    %v887 = vrcp.pop %v845
    %v888 = vrcp.pop %v848
    %v889 = vrcp.pop %v851
    %v890 = vrcp.pop %v854
    %v891 = vrcp.pop %v857
    %v892 = vrcp.pop %v860
    %v893 = vrcp.pop %v863
    %v894 = vrcp.pop %v866
    %v895 = vrcp.pop %v869
    %v896 = vrcp.pop %v872
    %v897 = vrcp.pop %v875
    %v898 = vrcp.pop %v878
    %v899 = vrcp.pop %v881
    %v900 = vrcp.pop %v884
    %v901 = vmul.f32 %v806, %v885
    %v902 = vmul.f32 %v808, %v886
    %v903 = vmul.f32 %v810, %v887
    %v904 = vmul.f32 %v812, %v888
    %v905 = vmul.f32 %v814, %v889
    %v906 = vmul.f32 %v816, %v890
    %v907 = vmul.f32 %v818, %v891
    %v908 = vmul.f32 %v820, %v892
    %v909 = vmul.f32 %v822, %v893
    %v910 = vmul.f32 %v824, %v894
    %v911 = vmul.f32 %v826, %v895
    %v912 = vmul.f32 %v828, %v896
    %v913 = vmul.f32 %v830, %v897
    %v914 = vmul.f32 %v832, %v898
    %v915 = vmul.f32 %v834, %v899
    %v916 = vmul.f32 %v836, %v900
    %v918 = vsel %vm740, %v901, 0
    %v921 = vsel %vm740, %v902, 0
    %v924 = vsel %vm740, %v903, 0
    %v927 = vsel %vm740, %v904, 0
    %v930 = vsel %vm740, %v905, 0
    %v933 = vsel %vm740, %v906, 0
    %v936 = vsel %vm740, %v907, 0
    %v939 = vsel %vm740, %v908, 0
    %v942 = vsel %vm740, %v909, 0
    %v945 = vsel %vm740, %v910, 0
    %v948 = vsel %vm740, %v911, 0
    %v951 = vsel %vm740, %v912, 0
    %v954 = vsel %vm740, %v913, 0
    %v957 = vsel %vm740, %v914, 0
    %v960 = vsel %vm740, %v915, 0
    %v963 = vsel %vm740, %v916, 0
    %965 = vmatprep.subr.mxu0 0.0
    %966 = vmatpush1.msra.mxu0 %v485
    %967 = vmatprep.subr.mxu0 0.0
    %968 = vmatpush1.msra.mxu0 %v490
    %969 = vmatprep.subr.mxu0 0.0
    %970 = vmatpush1.msra.mxu0 0.0
    %971 = vmatprep.subr.mxu0 0.0
    %972 = vmatpush1.msra.mxu0 0.0
    %973 = vmatprep.subr.mxu0 0.0
    %974 = vmatpush1.msra.mxu0 0.0
    %975 = vmatprep.subr.mxu0 0.0
    %976 = vmatpush1.msra.mxu0 0.0
    %977 = vmatprep.subr.mxu0 0.0
    %978 = vmatpush1.msra.mxu0 0.0
    %979 = vmatprep.subr.mxu0 0.0
    %980 = vmatpush1.msra.mxu0 0.0
    %981 = vmatprep.subr.mxu0 0.0
    %982 = vmatpush1.msra.mxu0 0.0
    %983 = vmatprep.subr.mxu0 0.0
    %984 = vmatpush1.msra.mxu0 0.0
    %985 = vmatprep.subr.mxu0 0.0
    %986 = vmatpush1.msra.mxu0 0.0
    %987 = vmatprep.subr.mxu0 0.0
    %988 = vmatpush1.msra.mxu0 0.0
    %989 = vmatprep.subr.mxu0 0.0
    %990 = vmatpush1.msra.mxu0 0.0
    %991 = vmatprep.subr.mxu0 0.0
    %992 = vmatpush1.msra.mxu0 0.0
    %993 = vmatprep.subr.mxu0 0.0
    %994 = vmatpush1.msra.mxu0 0.0
    %995 = vmatprep.subr.mxu0 0.0
    %996 = vmatpush1.msra.mxu0 0.0
    %997 = vmatprep.subr.mxu0 0.0
    %998 = vmatpush1.msra.mxu0 0.0
    %999 = vmatprep.subr.mxu0 0.0
    %1000 = vmatpush1.msra.mxu0 0.0
    %1001 = vmatprep.subr.mxu0 0.0
    %1002 = vmatpush1.msra.mxu0 0.0
    %1003 = vmatprep.subr.mxu0 0.0
    %1004 = vmatpush1.msra.mxu0 0.0
    %1005 = vmatprep.subr.mxu0 0.0
    %1006 = vmatpush1.msra.mxu0 0.0
    %1007 = vmatprep.subr.mxu0 0.0
    %1008 = vmatpush1.msra.mxu0 0.0
    %1009 = vmatprep.subr.mxu0 0.0
    %1010 = vmatpush1.msra.mxu0 0.0
    %1011 = vmatprep.subr.mxu0 0.0
    %1012 = vmatpush1.msra.mxu0 0.0
    %1013 = vmatprep.subr.mxu0 0.0
    %1014 = vmatpush1.msra.mxu0 0.0
    %1015 = vmatprep.subr.mxu0 0.0
    %1016 = vmatpush1.msra.mxu0 0.0
    %1017 = vmatprep.subr.mxu0 0.0
    %1018 = vmatpush1.msra.mxu0 0.0
    %1019 = vmatprep.subr.mxu0 0.0
    %1020 = vmatpush1.msra.mxu0 0.0
    %1021 = vmatprep.subr.mxu0 0.0
    %1022 = vmatpush1.msra.mxu0 0.0
    %1023 = vmatprep.subr.mxu0 0.0
    %1024 = vmatpush1.msra.mxu0 0.0
    %1025 = vmatprep.subr.mxu0 0.0
    %1026 = vmatpush1.msra.mxu0 0.0
    %1027 = vmatprep.subr.mxu0 0.0
    %1028 = vmatpush1.msra.mxu0 0.0
    %1029 = vmatprep.mubr.f32.mxu0 0.0
    %1030 = vmatmul.mubr.f32.gmra.mrb[0].mxu0 %v918
    %v1031 = vpop.f32.mrb[0].mxu0
    %v1032 = vadd.f32 0.0, %v1031
    %v1033 = vpop.f32.mrb[0].mxu0
    %1034 = vmatprep.mubr.f32.mxu0 0.0
    %1035 = vmatmul.mubr.f32.gmra.mrb[0].mxu0 %v921
    %v1036 = vpop.f32.mrb[0].mxu0
    %v1037 = vadd.f32 0.0, %v1036
    %v1038 = vpop.f32.mrb[0].mxu0
    %1039 = vmatprep.mubr.f32.mxu0 0.0
    %1040 = vmatmul.mubr.f32.gmra.mrb[0].mxu0 %v924
    %v1041 = vpop.f32.mrb[0].mxu0
    %v1042 = vadd.f32 0.0, %v1041
    %v1043 = vpop.f32.mrb[0].mxu0
    %1044 = vmatprep.mubr.f32.mxu0 0.0
    %1045 = vmatmul.mubr.f32.gmra.mrb[0].mxu0 %v927
    %v1046 = vpop.f32.mrb[0].mxu0
    %v1047 = vadd.f32 0.0, %v1046
    %v1048 = vpop.f32.mrb[0].mxu0
    %1049 = vmatprep.mubr.f32.mxu0 0.0
    %1050 = vmatmul.mubr.f32.gmra.mrb[0].mxu0 %v930
    %v1051 = vpop.f32.mrb[0].mxu0
    %v1052 = vadd.f32 0.0, %v1051
    %v1053 = vpop.f32.mrb[0].mxu0
    %1054 = vmatprep.mubr.f32.mxu0 0.0
    %1055 = vmatmul.mubr.f32.gmra.mrb[0].mxu0 %v933
    %v1056 = vpop.f32.mrb[0].mxu0
    %v1057 = vadd.f32 0.0, %v1056
    %v1058 = vpop.f32.mrb[0].mxu0
    %1059 = vmatprep.mubr.f32.mxu0 0.0
    %1060 = vmatmul.mubr.f32.gmra.mrb[0].mxu0 %v936
    %v1061 = vpop.f32.mrb[0].mxu0
    %v1062 = vadd.f32 0.0, %v1061
    %v1063 = vpop.f32.mrb[0].mxu0
    %1064 = vmatprep.mubr.f32.mxu0 0.0
    %1065 = vmatmul.mubr.f32.gmra.mrb[0].mxu0 %v939
    %v1066 = vpop.f32.mrb[0].mxu0
    %v1067 = vadd.f32 0.0, %v1066
    %v1068 = vpop.f32.mrb[0].mxu0
    %1069 = vmatprep.mubr.f32.mxu0 0.0
    %1070 = vmatmul.mubr.f32.gmra.mrb[0].mxu0 %v942
    %v1071 = vpop.f32.mrb[0].mxu0
    %v1072 = vadd.f32 0.0, %v1071
    %v1073 = vpop.f32.mrb[0].mxu0
    %1074 = vmatprep.mubr.f32.mxu0 0.0
    %1075 = vmatmul.mubr.f32.gmra.mrb[0].mxu0 %v945
    %v1076 = vpop.f32.mrb[0].mxu0
    %v1077 = vadd.f32 0.0, %v1076
    %v1078 = vpop.f32.mrb[0].mxu0
    %1079 = vmatprep.mubr.f32.mxu0 0.0
    %1080 = vmatmul.mubr.f32.gmra.mrb[0].mxu0 %v948
    %v1081 = vpop.f32.mrb[0].mxu0
    %v1082 = vadd.f32 0.0, %v1081
    %v1083 = vpop.f32.mrb[0].mxu0
    %1084 = vmatprep.mubr.f32.mxu0 0.0
    %1085 = vmatmul.mubr.f32.gmra.mrb[0].mxu0 %v951
    %v1086 = vpop.f32.mrb[0].mxu0
    %v1087 = vadd.f32 0.0, %v1086
    %v1088 = vpop.f32.mrb[0].mxu0
    %1089 = vmatprep.mubr.f32.mxu0 0.0
    %1090 = vmatmul.mubr.f32.gmra.mrb[0].mxu0 %v954
    %v1091 = vpop.f32.mrb[0].mxu0
    %v1092 = vadd.f32 0.0, %v1091
    %v1093 = vpop.f32.mrb[0].mxu0
    %1094 = vmatprep.mubr.f32.mxu0 0.0
    %1095 = vmatmul.mubr.f32.gmra.mrb[0].mxu0 %v957
    %v1096 = vpop.f32.mrb[0].mxu0
    %v1097 = vadd.f32 0.0, %v1096
    %v1098 = vpop.f32.mrb[0].mxu0
    %1099 = vmatprep.mubr.f32.mxu0 0.0
    %1100 = vmatmul.mubr.f32.gmra.mrb[0].mxu0 %v960
    %v1101 = vpop.f32.mrb[0].mxu0
    %v1102 = vadd.f32 0.0, %v1101
    %v1103 = vpop.f32.mrb[0].mxu0
    %1104 = vmatprep.mubr.f32.mxu0 0.0
    %1105 = vmatmul.mubr.f32.gmra.mrb[0].mxu0 %v963
    %v1106 = vpop.f32.mrb[0].mxu0
    %v1107 = vadd.f32 0.0, %v1106
    %v1108 = vpop.f32.mrb[0].mxu0
    %1109 = vdwg.mxu0
    %v1110 = vmul.f32 %v1032, %v168
    %v1111 = vmul.f32 %v1037, %v169
    %v1112 = vmul.f32 %v1042, %v170
    %v1113 = vmul.f32 %v1047, %v171
    %v1114 = vmul.f32 %v1052, %v172
    %v1115 = vmul.f32 %v1057, %v173
    %v1116 = vmul.f32 %v1062, %v174
    %v1117 = vmul.f32 %v1067, %v175
    %v1118 = vmul.f32 %v1072, %v176
    %v1119 = vmul.f32 %v1077, %v177
    %v1120 = vmul.f32 %v1082, %v178
    %v1121 = vmul.f32 %v1087, %v179
    %v1122 = vmul.f32 %v1092, %v180
    %v1123 = vmul.f32 %v1097, %v181
    %v1124 = vmul.f32 %v1102, %v182
    %v1125 = vmul.f32 %v1107, %v183
    %v1126 = vsel %vm231, %v1110, 0.0
    %v1127 = vsel %vm231, %v1112, 0.0
    %v1128 = vadd.f32 %v1126, %v1127
    %v1129 = vsel %vm231, %v1114, 0.0
    %v1130 = vadd.f32 %v1128, %v1129
    %v1131 = vsel %vm231, %v1116, 0.0
    %v1132 = vadd.f32 %v1130, %v1131
    %v1133 = vsel %vm231, %v1118, 0.0
    %v1134 = vadd.f32 %v1132, %v1133
    %v1135 = vsel %vm231, %v1120, 0.0
    %v1136 = vadd.f32 %v1134, %v1135
    %v1137 = vsel %vm231, %v1122, 0.0
    %v1138 = vadd.f32 %v1136, %v1137
    %v1139 = vsel %vm231, %v1124, 0.0
    %v1140 = vadd.f32 %v1138, %v1139
    %v1141 = vsel %vm231, %v1111, 0.0
    %v1142 = vsel %vm231, %v1113, 0.0
    %v1143 = vadd.f32 %v1141, %v1142
    %v1144 = vsel %vm231, %v1115, 0.0
    %v1145 = vadd.f32 %v1143, %v1144
    %v1146 = vsel %vm231, %v1117, 0.0
    %v1147 = vadd.f32 %v1145, %v1146
    %v1148 = vsel %vm231, %v1119, 0.0
    %v1149 = vadd.f32 %v1147, %v1148
    %v1150 = vsel %vm231, %v1121, 0.0
    %v1151 = vadd.f32 %v1149, %v1150
    %v1152 = vsel %vm231, %v1123, 0.0
    %v1153 = vadd.f32 %v1151, %v1152
    %v1154 = vsel %vm231, %v1125, 0.0
    %v1155 = vadd.f32 %v1153, %v1154
    %v1156 = vld [vmem:[%s21] sm:$0xff]
    %v1157 = vld [vmem:[%s21 + $0x8] sm:$0xff]
    %v1158 = vld [vmem:[%s21 + $0x10] sm:$0xff]
    %v1159 = vld [vmem:[%s21 + $0x18] sm:$0xff]
    %v1160 = vld [vmem:[%s21 + $0x20] sm:$0xff]
    %v1161 = vld [vmem:[%s21 + $0x28] sm:$0xff]
    %v1162 = vld [vmem:[%s21 + $0x30] sm:$0xff]
    %v1163 = vld [vmem:[%s21 + $0x38] sm:$0xff]
    %v1164 = vld [vmem:[%s23] sm:$0x1]
    %v1166 = vlaneseq
    %v1167 = vshrl.u32 %v1166, 7
    %v1168 = vsub.s32 0, %v1167
    %v1169 = vrot.slane %v1164, %v1168
    %v1172 = vsel %vm231, %v1140, 0
    %v1175 = vsel %vm231, %v1155, 0
    %1177 = vmatprep.subr.mxu0 0.0
    %1178 = vmatpush1.msra.mxu0 %v1156
    %1179 = vmatprep.subr.mxu0 0.0
    %1180 = vmatpush1.msra.mxu0 %v1157
    %1181 = vmatprep.subr.mxu0 0.0
    %1182 = vmatpush1.msra.mxu0 %v1158
    %1183 = vmatprep.subr.mxu0 0.0
    %1184 = vmatpush1.msra.mxu0 %v1159
    %1185 = vmatprep.subr.mxu0 0.0
    %1186 = vmatpush1.msra.mxu0 %v1160
    %1187 = vmatprep.subr.mxu0 0.0
    %1188 = vmatpush1.msra.mxu0 %v1161
    %1189 = vmatprep.subr.mxu0 0.0
    %1190 = vmatpush1.msra.mxu0 %v1162
    %1191 = vmatprep.subr.mxu0 0.0
    %1192 = vmatpush1.msra.mxu0 %v1163
    %1193 = vmatprep.subr.mxu0 0.0
    %1194 = vmatpush1.msra.mxu0 0.0
    %1195 = vmatprep.subr.mxu0 0.0
    %1196 = vmatpush1.msra.mxu0 0.0
    %1197 = vmatprep.subr.mxu0 0.0
    %1198 = vmatpush1.msra.mxu0 0.0
    %1199 = vmatprep.subr.mxu0 0.0
    %1200 = vmatpush1.msra.mxu0 0.0
    %1201 = vmatprep.subr.mxu0 0.0
    %1202 = vmatpush1.msra.mxu0 0.0
    %1203 = vmatprep.subr.mxu0 0.0
    %1204 = vmatpush1.msra.mxu0 0.0
    %1205 = vmatprep.subr.mxu0 0.0
    %1206 = vmatpush1.msra.mxu0 0.0
    %1207 = vmatprep.subr.mxu0 0.0
    %1208 = vmatpush1.msra.mxu0 0.0
    %1209 = vmatprep.subr.mxu0 0.0
    %1210 = vmatpush1.msra.mxu0 0.0
    %1211 = vmatprep.subr.mxu0 0.0
    %1212 = vmatpush1.msra.mxu0 0.0
    %1213 = vmatprep.subr.mxu0 0.0
    %1214 = vmatpush1.msra.mxu0 0.0
    %1215 = vmatprep.subr.mxu0 0.0
    %1216 = vmatpush1.msra.mxu0 0.0
    %1217 = vmatprep.subr.mxu0 0.0
    %1218 = vmatpush1.msra.mxu0 0.0
    %1219 = vmatprep.subr.mxu0 0.0
    %1220 = vmatpush1.msra.mxu0 0.0
    %1221 = vmatprep.subr.mxu0 0.0
    %1222 = vmatpush1.msra.mxu0 0.0
    %1223 = vmatprep.subr.mxu0 0.0
    %1224 = vmatpush1.msra.mxu0 0.0
    %1225 = vmatprep.subr.mxu0 0.0
    %1226 = vmatpush1.msra.mxu0 0.0
    %1227 = vmatprep.subr.mxu0 0.0
    %1228 = vmatpush1.msra.mxu0 0.0
    %1229 = vmatprep.subr.mxu0 0.0
    %1230 = vmatpush1.msra.mxu0 0.0
    %1231 = vmatprep.subr.mxu0 0.0
    %1232 = vmatpush1.msra.mxu0 0.0
    %1233 = vmatprep.subr.mxu0 0.0
    %1234 = vmatpush1.msra.mxu0 0.0
    %1235 = vmatprep.subr.mxu0 0.0
    %1236 = vmatpush1.msra.mxu0 0.0
    %1237 = vmatprep.subr.mxu0 0.0
    %1238 = vmatpush1.msra.mxu0 0.0
    %1239 = vmatprep.subr.mxu0 0.0
    %1240 = vmatpush1.msra.mxu0 0.0
    %1241 = vmatprep.mubr.f32.mxu0 0.0
    %1242 = vmatmul.mubr.f32.gmra.mrb[0].mxu0 %v1172
    %v1243 = vpop.f32.mrb[0].mxu0
    %v1244 = vadd.f32 %v1169, %v1243
    %v1245 = vpop.f32.mrb[0].mxu0
    %1246 = vmatprep.mubr.f32.mxu0 0.0
    %1247 = vmatmul.mubr.f32.gmra.mrb[0].mxu0 %v1175
    %v1248 = vpop.f32.mrb[0].mxu0
    %v1249 = vadd.f32 %v1169, %v1248
    %v1250 = vpop.f32.mrb[0].mxu0
    %1251 = vdwg.mxu0
    %v1252 = vadd.f32 %v166, %v1244
    %v1253 = vadd.f32 %v167, %v1249
    %v1254 = vld [vmem:[%s25] sm:$0x1]
    %v1255 = vld [vmem:[%s27] sm:$0x1]
    %v1256 = vsel %vm231, %v1252, 0.0
    %1257 = vadd.xlane.f32.xlu0 %v1256
    %v1258 = vpop.xlane.xlu0 %1257
    %v1259 = vsel %vm231, %v1253, 0.0
    %1260 = vadd.xlane.f32.xlu0 %v1259
    %v1261 = vpop.xlane.xlu0 %1260
    %v1262 = vrcp.pop 64.0
    %v1263 = vmul.f32 %v1258, %v1262
    %v1264 = vmul.f32 %v1261, %v1262
    %v1265 = vsub.f32 %v1252, %v1263
    %v1266 = vsub.f32 %v1253, %v1264
    %v1267 = vmul.f32 %v1265, %v1265
    %v1268 = vmul.f32 %v1266, %v1266
    %v1269 = vsel %vm231, %v1267, 0.0
    %1270 = vadd.xlane.f32.xlu0 %v1269
    %v1271 = vpop.xlane.xlu0 %1270
    %v1272 = vsel %vm231, %v1268, 0.0
    %1273 = vadd.xlane.f32.xlu0 %v1272
    %v1274 = vpop.xlane.xlu0 %1273
    %v1275 = vmul.f32 %v1271, %v1262
    %v1276 = vmul.f32 %v1274, %v1262
    %v1277 = vadd.f32 %v1275, 1e-05
    %v1278 = vadd.f32 %v1276, 1e-05
    %v1279 = vrsqrt.pop %v1277
    %v1280 = vrsqrt.pop %v1278
    %v1281 = vmul.f32 %v1265, %v1279
    %v1282 = vmul.f32 %v1266, %v1280
    %v1284 = vlaneseq
    %v1285 = vshrl.u32 %v1284, 7
    %v1286 = vsub.s32 0, %v1285
    %v1287 = vrot.slane %v1254, %v1286
    %v1289 = vmul.f32 %v1281, %v1287
    %v1290 = vmul.f32 %v1282, %v1287
    %v1292 = vlaneseq
    %v1293 = vshrl.u32 %v1292, 7
    %v1294 = vsub.s32 0, %v1293
    %v1295 = vrot.slane %v1255, %v1294
    %v1297 = vadd.f32 %v1289, %v1295
    %v1298 = vadd.f32 %v1290, %v1295
    %v1299 = vld [vmem:[%s29] sm:$0xff]
    %v1300 = vld [vmem:[%s29 + $0x8] sm:$0xff]
    %v1301 = vld [vmem:[%s29 + $0x10] sm:$0xff]
    %v1302 = vld [vmem:[%s29 + $0x18] sm:$0xff]
    %v1303 = vld [vmem:[%s29 + $0x20] sm:$0xff]
    %v1304 = vld [vmem:[%s29 + $0x28] sm:$0xff]
    %v1305 = vld [vmem:[%s29 + $0x30] sm:$0xff]
    %v1306 = vld [vmem:[%s29 + $0x38] sm:$0xff]
    %v1307 = vld [vmem:[%s29 + $0x40] sm:$0xff]
    %v1308 = vld [vmem:[%s29 + $0x48] sm:$0xff]
    %v1309 = vld [vmem:[%s29 + $0x50] sm:$0xff]
    %v1310 = vld [vmem:[%s29 + $0x58] sm:$0xff]
    %v1311 = vld [vmem:[%s29 + $0x60] sm:$0xff]
    %v1312 = vld [vmem:[%s29 + $0x68] sm:$0xff]
    %v1313 = vld [vmem:[%s29 + $0x70] sm:$0xff]
    %v1314 = vld [vmem:[%s29 + $0x78] sm:$0xff]
    %v1315 = vld [vmem:[%s31] sm:$0x3]
    %v1317 = vlaneseq
    %v1318 = vshrl.u32 %v1317, 7
    %v1319 = vsub.s32 0, %v1318
    %v1320 = vrot.slane %v1315, %v1319
    %v1321 = vlaneseq
    %v1322 = vshrl.u32 %v1321, 7
    %v1323 = vsub.s32 1, %v1322
    %v1324 = vrot.slane %v1315, %v1323
    %v1328 = vsel %vm231, %v1297, 0
    %v1331 = vsel %vm231, %v1298, 0
    %1333 = vmatprep.subr.mxu0 %v1300
    %1334 = vmatpush1.msra.mxu0 %v1299
    %1335 = vmatprep.subr.mxu0 %v1302
    %1336 = vmatpush1.msra.mxu0 %v1301
    %1337 = vmatprep.subr.mxu0 %v1304
    %1338 = vmatpush1.msra.mxu0 %v1303
    %1339 = vmatprep.subr.mxu0 %v1306
    %1340 = vmatpush1.msra.mxu0 %v1305
    %1341 = vmatprep.subr.mxu0 %v1308
    %1342 = vmatpush1.msra.mxu0 %v1307
    %1343 = vmatprep.subr.mxu0 %v1310
    %1344 = vmatpush1.msra.mxu0 %v1309
    %1345 = vmatprep.subr.mxu0 %v1312
    %1346 = vmatpush1.msra.mxu0 %v1311
    %1347 = vmatprep.subr.mxu0 %v1314
    %1348 = vmatpush1.msra.mxu0 %v1313
    %1349 = vmatprep.subr.mxu0 0.0
    %1350 = vmatpush1.msra.mxu0 0.0
    %1351 = vmatprep.subr.mxu0 0.0
    %1352 = vmatpush1.msra.mxu0 0.0
    %1353 = vmatprep.subr.mxu0 0.0
    %1354 = vmatpush1.msra.mxu0 0.0
    %1355 = vmatprep.subr.mxu0 0.0
    %1356 = vmatpush1.msra.mxu0 0.0
    %1357 = vmatprep.subr.mxu0 0.0
    %1358 = vmatpush1.msra.mxu0 0.0
    %1359 = vmatprep.subr.mxu0 0.0
    %1360 = vmatpush1.msra.mxu0 0.0
    %1361 = vmatprep.subr.mxu0 0.0
    %1362 = vmatpush1.msra.mxu0 0.0
    %1363 = vmatprep.subr.mxu0 0.0
    %1364 = vmatpush1.msra.mxu0 0.0
    %1365 = vmatprep.subr.mxu0 0.0
    %1366 = vmatpush1.msra.mxu0 0.0
    %1367 = vmatprep.subr.mxu0 0.0
    %1368 = vmatpush1.msra.mxu0 0.0
    %1369 = vmatprep.subr.mxu0 0.0
    %1370 = vmatpush1.msra.mxu0 0.0
    %1371 = vmatprep.subr.mxu0 0.0
    %1372 = vmatpush1.msra.mxu0 0.0
    %1373 = vmatprep.subr.mxu0 0.0
    %1374 = vmatpush1.msra.mxu0 0.0
    %1375 = vmatprep.subr.mxu0 0.0
    %1376 = vmatpush1.msra.mxu0 0.0
    %1377 = vmatprep.subr.mxu0 0.0
    %1378 = vmatpush1.msra.mxu0 0.0
    %1379 = vmatprep.subr.mxu0 0.0
    %1380 = vmatpush1.msra.mxu0 0.0
    %1381 = vmatprep.subr.mxu0 0.0
    %1382 = vmatpush1.msra.mxu0 0.0
    %1383 = vmatprep.subr.mxu0 0.0
    %1384 = vmatpush1.msra.mxu0 0.0
    %1385 = vmatprep.subr.mxu0 0.0
    %1386 = vmatpush1.msra.mxu0 0.0
    %1387 = vmatprep.subr.mxu0 0.0
    %1388 = vmatpush1.msra.mxu0 0.0
    %1389 = vmatprep.subr.mxu0 0.0
    %1390 = vmatpush1.msra.mxu0 0.0
    %1391 = vmatprep.subr.mxu0 0.0
    %1392 = vmatpush1.msra.mxu0 0.0
    %1393 = vmatprep.subr.mxu0 0.0
    %1394 = vmatpush1.msra.mxu0 0.0
    %1395 = vmatprep.subr.mxu0 0.0
    %1396 = vmatpush1.msra.mxu0 0.0
    %1397 = vmatprep.mubr.f32.mxu0 0.0
    %1398 = vmatmul.mubr.f32.gmra.mrb[0].mxu0 %v1328
    %v1399 = vpop.f32.mrb[0].mxu0
    %v1400 = vadd.f32 %v1320, %v1399
    %v1401 = vpop.f32.mrb[0].mxu0
    %v1402 = vadd.f32 %v1324, %v1401
    %1403 = vmatprep.mubr.f32.mxu0 0.0
    %1404 = vmatmul.mubr.f32.gmra.mrb[0].mxu0 %v1331
    %v1405 = vpop.f32.mrb[0].mxu0
    %v1406 = vadd.f32 %v1320, %v1405
    %v1407 = vpop.f32.mrb[0].mxu0
    %v1408 = vadd.f32 %v1324, %v1407
    %1409 = vdwg.mxu0
    %v1410 = vmax.f32 %v1400, 0.0
    %v1411 = vmax.f32 %v1402, 0.0
    %v1412 = vmax.f32 %v1406, 0.0
    %v1413 = vmax.f32 %v1408, 0.0
    %v1414 = vld [vmem:[%s33] sm:$0xff]
    %v1415 = vld [vmem:[%s33 + $0x8] sm:$0xff]
    %v1416 = vld [vmem:[%s33 + $0x10] sm:$0xff]
    %v1417 = vld [vmem:[%s33 + $0x18] sm:$0xff]
    %v1418 = vld [vmem:[%s33 + $0x20] sm:$0xff]
    %v1419 = vld [vmem:[%s33 + $0x28] sm:$0xff]
    %v1420 = vld [vmem:[%s33 + $0x30] sm:$0xff]
    %v1421 = vld [vmem:[%s33 + $0x38] sm:$0xff]
    %v1422 = vld [vmem:[%s33 + $0x40] sm:$0xff]
    %v1423 = vld [vmem:[%s33 + $0x48] sm:$0xff]
    %v1424 = vld [vmem:[%s33 + $0x50] sm:$0xff]
    %v1425 = vld [vmem:[%s33 + $0x58] sm:$0xff]
    %v1426 = vld [vmem:[%s33 + $0x60] sm:$0xff]
    %v1427 = vld [vmem:[%s33 + $0x68] sm:$0xff]
    %v1428 = vld [vmem:[%s33 + $0x70] sm:$0xff]
    %v1429 = vld [vmem:[%s33 + $0x78] sm:$0xff]
    %v1430 = vld [vmem:[%s33 + $0x80] sm:$0xff]
    %v1431 = vld [vmem:[%s33 + $0x88] sm:$0xff]
    %v1432 = vld [vmem:[%s33 + $0x90] sm:$0xff]
    %v1433 = vld [vmem:[%s33 + $0x98] sm:$0xff]
    %v1434 = vld [vmem:[%s33 + $0xa0] sm:$0xff]
    %v1435 = vld [vmem:[%s33 + $0xa8] sm:$0xff]
    %v1436 = vld [vmem:[%s33 + $0xb0] sm:$0xff]
    %v1437 = vld [vmem:[%s33 + $0xb8] sm:$0xff]
    %v1438 = vld [vmem:[%s33 + $0xc0] sm:$0xff]
    %v1439 = vld [vmem:[%s33 + $0xc8] sm:$0xff]
    %v1440 = vld [vmem:[%s33 + $0xd0] sm:$0xff]
    %v1441 = vld [vmem:[%s33 + $0xd8] sm:$0xff]
    %v1442 = vld [vmem:[%s33 + $0xe0] sm:$0xff]
    %v1443 = vld [vmem:[%s33 + $0xe8] sm:$0xff]
    %v1444 = vld [vmem:[%s33 + $0xf0] sm:$0xff]
    %v1445 = vld [vmem:[%s33 + $0xf8] sm:$0xff]
    %v1446 = vld [vmem:[%s35] sm:$0x1]
    %v1448 = vlaneseq
    %v1449 = vshrl.u32 %v1448, 7
    %v1450 = vsub.s32 0, %v1449
    %v1451 = vrot.slane %v1446, %v1450
    %1453 = vmatprep.subr.mxu0 0.0
    %1454 = vmatpush1.msra.mxu0 %v1414
    %1455 = vmatprep.subr.mxu0 0.0
    %1456 = vmatpush1.msra.mxu0 %v1415
    %1457 = vmatprep.subr.mxu0 0.0
    %1458 = vmatpush1.msra.mxu0 %v1416
    %1459 = vmatprep.subr.mxu0 0.0
    %1460 = vmatpush1.msra.mxu0 %v1417
    %1461 = vmatprep.subr.mxu0 0.0
    %1462 = vmatpush1.msra.mxu0 %v1418
    %1463 = vmatprep.subr.mxu0 0.0
    %1464 = vmatpush1.msra.mxu0 %v1419
    %1465 = vmatprep.subr.mxu0 0.0
    %1466 = vmatpush1.msra.mxu0 %v1420
    %1467 = vmatprep.subr.mxu0 0.0
    %1468 = vmatpush1.msra.mxu0 %v1421
    %1469 = vmatprep.subr.mxu0 0.0
    %1470 = vmatpush1.msra.mxu0 %v1422
    %1471 = vmatprep.subr.mxu0 0.0
    %1472 = vmatpush1.msra.mxu0 %v1423
    %1473 = vmatprep.subr.mxu0 0.0
    %1474 = vmatpush1.msra.mxu0 %v1424
    %1475 = vmatprep.subr.mxu0 0.0
    %1476 = vmatpush1.msra.mxu0 %v1425
    %1477 = vmatprep.subr.mxu0 0.0
    %1478 = vmatpush1.msra.mxu0 %v1426
    %1479 = vmatprep.subr.mxu0 0.0
    %1480 = vmatpush1.msra.mxu0 %v1427
    %1481 = vmatprep.subr.mxu0 0.0
    %1482 = vmatpush1.msra.mxu0 %v1428
    %1483 = vmatprep.subr.mxu0 0.0
    %1484 = vmatpush1.msra.mxu0 %v1429
    %1485 = vmatprep.subr.mxu0 0.0
    %1486 = vmatpush1.msra.mxu0 %v1430
    %1487 = vmatprep.subr.mxu0 0.0
    %1488 = vmatpush1.msra.mxu0 %v1431
    %1489 = vmatprep.subr.mxu0 0.0
    %1490 = vmatpush1.msra.mxu0 %v1432
    %1491 = vmatprep.subr.mxu0 0.0
    %1492 = vmatpush1.msra.mxu0 %v1433
    %1493 = vmatprep.subr.mxu0 0.0
    %1494 = vmatpush1.msra.mxu0 %v1434
    %1495 = vmatprep.subr.mxu0 0.0
    %1496 = vmatpush1.msra.mxu0 %v1435
    %1497 = vmatprep.subr.mxu0 0.0
    %1498 = vmatpush1.msra.mxu0 %v1436
    %1499 = vmatprep.subr.mxu0 0.0
    %1500 = vmatpush1.msra.mxu0 %v1437
    %1501 = vmatprep.subr.mxu0 0.0
    %1502 = vmatpush1.msra.mxu0 %v1438
    %1503 = vmatprep.subr.mxu0 0.0
    %1504 = vmatpush1.msra.mxu0 %v1439
    %1505 = vmatprep.subr.mxu0 0.0
    %1506 = vmatpush1.msra.mxu0 %v1440
    %1507 = vmatprep.subr.mxu0 0.0
    %1508 = vmatpush1.msra.mxu0 %v1441
    %1509 = vmatprep.subr.mxu0 0.0
    %1510 = vmatpush1.msra.mxu0 %v1442
    %1511 = vmatprep.subr.mxu0 0.0
    %1512 = vmatpush1.msra.mxu0 %v1443
    %1513 = vmatprep.subr.mxu0 0.0
    %1514 = vmatpush1.msra.mxu0 %v1444
    %1515 = vmatprep.subr.mxu0 0.0
    %1516 = vmatpush1.msra.mxu0 %v1445
    %1517 = vmatprep.mubr.f32.mxu0 %v1411
    %1518 = vmatmul.mubr.f32.gmra.mrb[0].mxu0 %v1410
    %v1519 = vpop.f32.mrb[0].mxu0
    %v1520 = vadd.f32 %v1451, %v1519
    %v1521 = vpop.f32.mrb[0].mxu0
    %1522 = vmatprep.mubr.f32.mxu0 %v1413
    %1523 = vmatmul.mubr.f32.gmra.mrb[0].mxu0 %v1412
    %v1524 = vpop.f32.mrb[0].mxu0
    %v1525 = vadd.f32 %v1451, %v1524
    %v1526 = vpop.f32.mrb[0].mxu0
    %1527 = vdwg.mxu0
    %v1528 = vadd.f32 %v1297, %v1520
    %v1529 = vadd.f32 %v1298, %v1525
    %v1530 = vld [vmem:[%s37] sm:$0x1]
    %v1531 = vld [vmem:[%s39] sm:$0x1]
    %v1532 = vsel %vm231, %v1528, 0.0
    %1533 = vadd.xlane.f32.xlu0 %v1532
    %v1534 = vpop.xlane.xlu0 %1533
    %v1535 = vsel %vm231, %v1529, 0.0
    %1536 = vadd.xlane.f32.xlu0 %v1535
    %v1537 = vpop.xlane.xlu0 %1536
    %v1538 = vmul.f32 %v1534, %v1262
    %v1539 = vmul.f32 %v1537, %v1262
    %v1540 = vsub.f32 %v1528, %v1538
    %v1541 = vsub.f32 %v1529, %v1539
    %v1542 = vmul.f32 %v1540, %v1540
    %v1543 = vmul.f32 %v1541, %v1541
    %v1544 = vsel %vm231, %v1542, 0.0
    %1545 = vadd.xlane.f32.xlu0 %v1544
    %v1546 = vpop.xlane.xlu0 %1545
    %v1547 = vsel %vm231, %v1543, 0.0
    %1548 = vadd.xlane.f32.xlu0 %v1547
    %v1549 = vpop.xlane.xlu0 %1548
    %v1550 = vmul.f32 %v1546, %v1262
    %v1551 = vmul.f32 %v1549, %v1262
    %v1552 = vadd.f32 %v1550, 1e-05
    %v1553 = vadd.f32 %v1551, 1e-05
    %v1554 = vrsqrt.pop %v1552
    %v1555 = vrsqrt.pop %v1553
    %v1556 = vmul.f32 %v1540, %v1554
    %v1557 = vmul.f32 %v1541, %v1555
    %v1559 = vlaneseq
    %v1560 = vshrl.u32 %v1559, 7
    %v1561 = vsub.s32 0, %v1560
    %v1562 = vrot.slane %v1530, %v1561
    %v1564 = vmul.f32 %v1556, %v1562
    %v1565 = vmul.f32 %v1557, %v1562
    %v1567 = vlaneseq
    %v1568 = vshrl.u32 %v1567, 7
    %v1569 = vsub.s32 0, %v1568
    %v1570 = vrot.slane %v1531, %v1569
    %v1572 = vadd.f32 %v1564, %v1570
    %v1573 = vadd.f32 %v1565, %v1570
    %s1574 = scalar_lea.vmem %s9, 64
    %v1575 = vld [vmem:[%s1574] sm:$0xff]
    %v1576 = vld [vmem:[%s1574 + $0x8] sm:$0xff]
    %v1577 = vld [vmem:[%s1574 + $0x10] sm:$0xff]
    %v1578 = vld [vmem:[%s1574 + $0x18] sm:$0xff]
    %v1579 = vld [vmem:[%s1574 + $0x20] sm:$0xff]
    %v1580 = vld [vmem:[%s1574 + $0x28] sm:$0xff]
    %v1581 = vld [vmem:[%s1574 + $0x30] sm:$0xff]
    %v1582 = vld [vmem:[%s1574 + $0x38] sm:$0xff]
    %s1583 = scalar_lea.vmem %s11, 1
    %v1584 = vld [vmem:[%s1583] sm:$0x1]
    %v1586 = vlaneseq
    %v1587 = vshrl.u32 %v1586, 7
    %v1588 = vsub.s32 0, %v1587
    %v1589 = vrot.slane %v1584, %v1588
    %1591 = vmatprep.subr.mxu0 0.0
    %1592 = vmatpush1.msra.mxu0 %v1575
    %1593 = vmatprep.subr.mxu0 0.0
    %1594 = vmatpush1.msra.mxu0 %v1576
    %1595 = vmatprep.subr.mxu0 0.0
    %1596 = vmatpush1.msra.mxu0 %v1577
    %1597 = vmatprep.subr.mxu0 0.0
    %1598 = vmatpush1.msra.mxu0 %v1578
    %1599 = vmatprep.subr.mxu0 0.0
    %1600 = vmatpush1.msra.mxu0 %v1579
    %1601 = vmatprep.subr.mxu0 0.0
    %1602 = vmatpush1.msra.mxu0 %v1580
    %1603 = vmatprep.subr.mxu0 0.0
    %1604 = vmatpush1.msra.mxu0 %v1581
    %1605 = vmatprep.subr.mxu0 0.0
    %1606 = vmatpush1.msra.mxu0 %v1582
    %1607 = vmatprep.subr.mxu0 0.0
    %1608 = vmatpush1.msra.mxu0 0.0
    %1609 = vmatprep.subr.mxu0 0.0
    %1610 = vmatpush1.msra.mxu0 0.0
    %1611 = vmatprep.subr.mxu0 0.0
    %1612 = vmatpush1.msra.mxu0 0.0
    %1613 = vmatprep.subr.mxu0 0.0
    %1614 = vmatpush1.msra.mxu0 0.0
    %1615 = vmatprep.subr.mxu0 0.0
    %1616 = vmatpush1.msra.mxu0 0.0
    %1617 = vmatprep.subr.mxu0 0.0
    %1618 = vmatpush1.msra.mxu0 0.0
    %1619 = vmatprep.subr.mxu0 0.0
    %1620 = vmatpush1.msra.mxu0 0.0
    %1621 = vmatprep.subr.mxu0 0.0
    %1622 = vmatpush1.msra.mxu0 0.0
    %1623 = vmatprep.subr.mxu0 0.0
    %1624 = vmatpush1.msra.mxu0 0.0
    %1625 = vmatprep.subr.mxu0 0.0
    %1626 = vmatpush1.msra.mxu0 0.0
    %1627 = vmatprep.subr.mxu0 0.0
    %1628 = vmatpush1.msra.mxu0 0.0
    %1629 = vmatprep.subr.mxu0 0.0
    %1630 = vmatpush1.msra.mxu0 0.0
    %1631 = vmatprep.subr.mxu0 0.0
    %1632 = vmatpush1.msra.mxu0 0.0
    %1633 = vmatprep.subr.mxu0 0.0
    %1634 = vmatpush1.msra.mxu0 0.0
    %1635 = vmatprep.subr.mxu0 0.0
    %1636 = vmatpush1.msra.mxu0 0.0
    %1637 = vmatprep.subr.mxu0 0.0
    %1638 = vmatpush1.msra.mxu0 0.0
    %1639 = vmatprep.subr.mxu0 0.0
    %1640 = vmatpush1.msra.mxu0 0.0
    %1641 = vmatprep.subr.mxu0 0.0
    %1642 = vmatpush1.msra.mxu0 0.0
    %1643 = vmatprep.subr.mxu0 0.0
    %1644 = vmatpush1.msra.mxu0 0.0
    %1645 = vmatprep.subr.mxu0 0.0
    %1646 = vmatpush1.msra.mxu0 0.0
    %1647 = vmatprep.subr.mxu0 0.0
    %1648 = vmatpush1.msra.mxu0 0.0
    %1649 = vmatprep.subr.mxu0 0.0
    %1650 = vmatpush1.msra.mxu0 0.0
    %1651 = vmatprep.subr.mxu0 0.0
    %1652 = vmatpush1.msra.mxu0 0.0
    %1653 = vmatprep.subr.mxu0 0.0
    %1654 = vmatpush1.msra.mxu0 0.0
    %1655 = vmatprep.mubr.f32.mxu0 0.0
    %1656 = vmatmul.mubr.f32.gmra.mrb[0].mxu0 %v233
    %v1657 = vpop.f32.mrb[0].mxu0
    %v1658 = vadd.f32 %v1589, %v1657
    %v1659 = vpop.f32.mrb[0].mxu0
    %1660 = vmatprep.mubr.f32.mxu0 0.0
    %1661 = vmatmul.mubr.f32.gmra.mrb[0].mxu0 %v236
    %v1662 = vpop.f32.mrb[0].mxu0
    %v1663 = vadd.f32 %v1589, %v1662
    %v1664 = vpop.f32.mrb[0].mxu0
    %1665 = vdwg.mxu0
    %s1666 = scalar_lea.vmem %s13, 64
    %v1667 = vld [vmem:[%s1666] sm:$0xff]
    %v1668 = vld [vmem:[%s1666 + $0x8] sm:$0xff]
    %v1669 = vld [vmem:[%s1666 + $0x10] sm:$0xff]
    %v1670 = vld [vmem:[%s1666 + $0x18] sm:$0xff]
    %v1671 = vld [vmem:[%s1666 + $0x20] sm:$0xff]
    %v1672 = vld [vmem:[%s1666 + $0x28] sm:$0xff]
    %v1673 = vld [vmem:[%s1666 + $0x30] sm:$0xff]
    %v1674 = vld [vmem:[%s1666 + $0x38] sm:$0xff]
    %s1675 = scalar_lea.vmem %s15, 1
    %v1676 = vld [vmem:[%s1675] sm:$0x1]
    %v1678 = vlaneseq
    %v1679 = vshrl.u32 %v1678, 7
    %v1680 = vsub.s32 0, %v1679
    %v1681 = vrot.slane %v1676, %v1680
    %1683 = vmatprep.subr.mxu0 0.0
    %1684 = vmatpush1.msra.mxu0 %v1667
    %1685 = vmatprep.subr.mxu0 0.0
    %1686 = vmatpush1.msra.mxu0 %v1668
    %1687 = vmatprep.subr.mxu0 0.0
    %1688 = vmatpush1.msra.mxu0 %v1669
    %1689 = vmatprep.subr.mxu0 0.0
    %1690 = vmatpush1.msra.mxu0 %v1670
    %1691 = vmatprep.subr.mxu0 0.0
    %1692 = vmatpush1.msra.mxu0 %v1671
    %1693 = vmatprep.subr.mxu0 0.0
    %1694 = vmatpush1.msra.mxu0 %v1672
    %1695 = vmatprep.subr.mxu0 0.0
    %1696 = vmatpush1.msra.mxu0 %v1673
    %1697 = vmatprep.subr.mxu0 0.0
    %1698 = vmatpush1.msra.mxu0 %v1674
    %1699 = vmatprep.subr.mxu0 0.0
    %1700 = vmatpush1.msra.mxu0 0.0
    %1701 = vmatprep.subr.mxu0 0.0
    %1702 = vmatpush1.msra.mxu0 0.0
    %1703 = vmatprep.subr.mxu0 0.0
    %1704 = vmatpush1.msra.mxu0 0.0
    %1705 = vmatprep.subr.mxu0 0.0
    %1706 = vmatpush1.msra.mxu0 0.0
    %1707 = vmatprep.subr.mxu0 0.0
    %1708 = vmatpush1.msra.mxu0 0.0
    %1709 = vmatprep.subr.mxu0 0.0
    %1710 = vmatpush1.msra.mxu0 0.0
    %1711 = vmatprep.subr.mxu0 0.0
    %1712 = vmatpush1.msra.mxu0 0.0
    %1713 = vmatprep.subr.mxu0 0.0
    %1714 = vmatpush1.msra.mxu0 0.0
    %1715 = vmatprep.subr.mxu0 0.0
    %1716 = vmatpush1.msra.mxu0 0.0
    %1717 = vmatprep.subr.mxu0 0.0
    %1718 = vmatpush1.msra.mxu0 0.0
    %1719 = vmatprep.subr.mxu0 0.0
    %1720 = vmatpush1.msra.mxu0 0.0
    %1721 = vmatprep.subr.mxu0 0.0
    %1722 = vmatpush1.msra.mxu0 0.0
    %1723 = vmatprep.subr.mxu0 0.0
    %1724 = vmatpush1.msra.mxu0 0.0
    %1725 = vmatprep.subr.mxu0 0.0
    %1726 = vmatpush1.msra.mxu0 0.0
    %1727 = vmatprep.subr.mxu0 0.0
    %1728 = vmatpush1.msra.mxu0 0.0
    %1729 = vmatprep.subr.mxu0 0.0
    %1730 = vmatpush1.msra.mxu0 0.0
    %1731 = vmatprep.subr.mxu0 0.0
    %1732 = vmatpush1.msra.mxu0 0.0
    %1733 = vmatprep.subr.mxu0 0.0
    %1734 = vmatpush1.msra.mxu0 0.0
    %1735 = vmatprep.subr.mxu0 0.0
    %1736 = vmatpush1.msra.mxu0 0.0
    %1737 = vmatprep.subr.mxu0 0.0
    %1738 = vmatpush1.msra.mxu0 0.0
    %1739 = vmatprep.subr.mxu0 0.0
    %1740 = vmatpush1.msra.mxu0 0.0
    %1741 = vmatprep.subr.mxu0 0.0
    %1742 = vmatpush1.msra.mxu0 0.0
    %1743 = vmatprep.subr.mxu0 0.0
    %1744 = vmatpush1.msra.mxu0 0.0
    %1745 = vmatprep.subr.mxu0 0.0
    %1746 = vmatpush1.msra.mxu0 0.0
    %1747 = vmatprep.mubr.f32.mxu0 0.0
    %1748 = vmatmul.mubr.f32.gmra.mrb[0].mxu0 %v233
    %v1749 = vpop.f32.mrb[0].mxu0
    %v1750 = vadd.f32 %v1681, %v1749
    %v1751 = vpop.f32.mrb[0].mxu0
    %1752 = vmatprep.mubr.f32.mxu0 0.0
    %1753 = vmatmul.mubr.f32.gmra.mrb[0].mxu0 %v236
    %v1754 = vpop.f32.mrb[0].mxu0
    %v1755 = vadd.f32 %v1681, %v1754
    %v1756 = vpop.f32.mrb[0].mxu0
    %1757 = vdwg.mxu0
    %s1758 = scalar_lea.vmem %s17, 64
    %v1759 = vld [vmem:[%s1758] sm:$0xff]
    %v1760 = vld [vmem:[%s1758 + $0x8] sm:$0xff]
    %v1761 = vld [vmem:[%s1758 + $0x10] sm:$0xff]
    %v1762 = vld [vmem:[%s1758 + $0x18] sm:$0xff]
    %v1763 = vld [vmem:[%s1758 + $0x20] sm:$0xff]
    %v1764 = vld [vmem:[%s1758 + $0x28] sm:$0xff]
    %v1765 = vld [vmem:[%s1758 + $0x30] sm:$0xff]
    %v1766 = vld [vmem:[%s1758 + $0x38] sm:$0xff]
    %s1767 = scalar_lea.vmem %s19, 1
    %v1768 = vld [vmem:[%s1767] sm:$0x1]
    %v1770 = vlaneseq
    %v1771 = vshrl.u32 %v1770, 7
    %v1772 = vsub.s32 0, %v1771
    %v1773 = vrot.slane %v1768, %v1772
    %1775 = vmatprep.subr.mxu0 0.0
    %1776 = vmatpush1.msra.mxu0 %v1759
    %1777 = vmatprep.subr.mxu0 0.0
    %1778 = vmatpush1.msra.mxu0 %v1760
    %1779 = vmatprep.subr.mxu0 0.0
    %1780 = vmatpush1.msra.mxu0 %v1761
    %1781 = vmatprep.subr.mxu0 0.0
    %1782 = vmatpush1.msra.mxu0 %v1762
    %1783 = vmatprep.subr.mxu0 0.0
    %1784 = vmatpush1.msra.mxu0 %v1763
    %1785 = vmatprep.subr.mxu0 0.0
    %1786 = vmatpush1.msra.mxu0 %v1764
    %1787 = vmatprep.subr.mxu0 0.0
    %1788 = vmatpush1.msra.mxu0 %v1765
    %1789 = vmatprep.subr.mxu0 0.0
    %1790 = vmatpush1.msra.mxu0 %v1766
    %1791 = vmatprep.subr.mxu0 0.0
    %1792 = vmatpush1.msra.mxu0 0.0
    %1793 = vmatprep.subr.mxu0 0.0
    %1794 = vmatpush1.msra.mxu0 0.0
    %1795 = vmatprep.subr.mxu0 0.0
    %1796 = vmatpush1.msra.mxu0 0.0
    %1797 = vmatprep.subr.mxu0 0.0
    %1798 = vmatpush1.msra.mxu0 0.0
    %1799 = vmatprep.subr.mxu0 0.0
    %1800 = vmatpush1.msra.mxu0 0.0
    %1801 = vmatprep.subr.mxu0 0.0
    %1802 = vmatpush1.msra.mxu0 0.0
    %1803 = vmatprep.subr.mxu0 0.0
    %1804 = vmatpush1.msra.mxu0 0.0
    %1805 = vmatprep.subr.mxu0 0.0
    %1806 = vmatpush1.msra.mxu0 0.0
    %1807 = vmatprep.subr.mxu0 0.0
    %1808 = vmatpush1.msra.mxu0 0.0
    %1809 = vmatprep.subr.mxu0 0.0
    %1810 = vmatpush1.msra.mxu0 0.0
    %1811 = vmatprep.subr.mxu0 0.0
    %1812 = vmatpush1.msra.mxu0 0.0
    %1813 = vmatprep.subr.mxu0 0.0
    %1814 = vmatpush1.msra.mxu0 0.0
    %1815 = vmatprep.subr.mxu0 0.0
    %1816 = vmatpush1.msra.mxu0 0.0
    %1817 = vmatprep.subr.mxu0 0.0
    %1818 = vmatpush1.msra.mxu0 0.0
    %1819 = vmatprep.subr.mxu0 0.0
    %1820 = vmatpush1.msra.mxu0 0.0
    %1821 = vmatprep.subr.mxu0 0.0
    %1822 = vmatpush1.msra.mxu0 0.0
    %1823 = vmatprep.subr.mxu0 0.0
    %1824 = vmatpush1.msra.mxu0 0.0
    %1825 = vmatprep.subr.mxu0 0.0
    %1826 = vmatpush1.msra.mxu0 0.0
    %1827 = vmatprep.subr.mxu0 0.0
    %1828 = vmatpush1.msra.mxu0 0.0
    %1829 = vmatprep.subr.mxu0 0.0
    %1830 = vmatpush1.msra.mxu0 0.0
    %1831 = vmatprep.subr.mxu0 0.0
    %1832 = vmatpush1.msra.mxu0 0.0
    %1833 = vmatprep.subr.mxu0 0.0
    %1834 = vmatpush1.msra.mxu0 0.0
    %1835 = vmatprep.subr.mxu0 0.0
    %1836 = vmatpush1.msra.mxu0 0.0
    %1837 = vmatprep.subr.mxu0 0.0
    %1838 = vmatpush1.msra.mxu0 0.0
    %1839 = vmatprep.mubr.f32.mxu0 0.0
    %1840 = vmatmul.mubr.f32.gmra.mrb[0].mxu0 %v233
    %v1841 = vpop.f32.mrb[0].mxu0
    %v1842 = vadd.f32 %v1773, %v1841
    %v1843 = vpop.f32.mrb[0].mxu0
    %1844 = vmatprep.mubr.f32.mxu0 0.0
    %1845 = vmatmul.mubr.f32.gmra.mrb[0].mxu0 %v236
    %v1846 = vpop.f32.mrb[0].mxu0
    %v1847 = vadd.f32 %v1773, %v1846
    %v1848 = vpop.f32.mrb[0].mxu0
    %1849 = vdwg.mxu0
    %v1850 = vmul.f32 %v1658, %v200
    %v1851 = vmul.f32 %v1663, %v201
    %v1852 = vmul.f32 %v1658, %v202
    %v1853 = vmul.f32 %v1663, %v203
    %v1854 = vmul.f32 %v1658, %v204
    %v1855 = vmul.f32 %v1663, %v205
    %v1856 = vmul.f32 %v1658, %v206
    %v1857 = vmul.f32 %v1663, %v207
    %v1859 = vsel %vm231, %v1850, 0
    %v1862 = vsel %vm231, %v1851, 0
    %v1865 = vsel %vm231, %v1852, 0
    %v1868 = vsel %vm231, %v1853, 0
    %v1871 = vsel %vm231, %v1854, 0
    %v1874 = vsel %vm231, %v1855, 0
    %v1877 = vsel %vm231, %v1856, 0
    %v1880 = vsel %vm231, %v1857, 0
    %v1883 = vsel %vm231, %v1750, 0
    %v1886 = vsel %vm231, %v1755, 0
    %1888 = vmatprep.subr.mxu0 0.0
    %1889 = vmatpush1.xpose.msra.mxu0 %v1883
    %1890 = vmatprep.subr.mxu0 0.0
    %1891 = vmatpush1.xpose.msra.mxu0 %v1886
    %1892 = vmatprep.subr.mxu0 0.0
    %1893 = vmatpush1.xpose.msra.mxu0 0.0
    %1894 = vmatprep.subr.mxu0 0.0
    %1895 = vmatpush1.xpose.msra.mxu0 0.0
    %1896 = vmatprep.subr.mxu0 0.0
    %1897 = vmatpush1.xpose.msra.mxu0 0.0
    %1898 = vmatprep.subr.mxu0 0.0
    %1899 = vmatpush1.xpose.msra.mxu0 0.0
    %1900 = vmatprep.subr.mxu0 0.0
    %1901 = vmatpush1.xpose.msra.mxu0 0.0
    %1902 = vmatprep.subr.mxu0 0.0
    %1903 = vmatpush1.xpose.msra.mxu0 0.0
    %1904 = vmatprep.subr.mxu0 0.0
    %1905 = vmatpush1.xpose.msra.mxu0 0.0
    %1906 = vmatprep.subr.mxu0 0.0
    %1907 = vmatpush1.xpose.msra.mxu0 0.0
    %1908 = vmatprep.subr.mxu0 0.0
    %1909 = vmatpush1.xpose.msra.mxu0 0.0
    %1910 = vmatprep.subr.mxu0 0.0
    %1911 = vmatpush1.xpose.msra.mxu0 0.0
    %1912 = vmatprep.subr.mxu0 0.0
    %1913 = vmatpush1.xpose.msra.mxu0 0.0
    %1914 = vmatprep.subr.mxu0 0.0
    %1915 = vmatpush1.xpose.msra.mxu0 0.0
    %1916 = vmatprep.subr.mxu0 0.0
    %1917 = vmatpush1.xpose.msra.mxu0 0.0
    %1918 = vmatprep.subr.mxu0 0.0
    %1919 = vmatpush1.xpose.msra.mxu0 0.0
    %1920 = vmatprep.subr.mxu0 0.0
    %1921 = vmatpush1.xpose.msra.mxu0 0.0
    %1922 = vmatprep.subr.mxu0 0.0
    %1923 = vmatpush1.xpose.msra.mxu0 0.0
    %1924 = vmatprep.subr.mxu0 0.0
    %1925 = vmatpush1.xpose.msra.mxu0 0.0
    %1926 = vmatprep.subr.mxu0 0.0
    %1927 = vmatpush1.xpose.msra.mxu0 0.0
    %1928 = vmatprep.subr.mxu0 0.0
    %1929 = vmatpush1.xpose.msra.mxu0 0.0
    %1930 = vmatprep.subr.mxu0 0.0
    %1931 = vmatpush1.xpose.msra.mxu0 0.0
    %1932 = vmatprep.subr.mxu0 0.0
    %1933 = vmatpush1.xpose.msra.mxu0 0.0
    %1934 = vmatprep.subr.mxu0 0.0
    %1935 = vmatpush1.xpose.msra.mxu0 0.0
    %1936 = vmatprep.subr.mxu0 0.0
    %1937 = vmatpush1.xpose.msra.mxu0 0.0
    %1938 = vmatprep.subr.mxu0 0.0
    %1939 = vmatpush1.xpose.msra.mxu0 0.0
    %1940 = vmatprep.subr.mxu0 0.0
    %1941 = vmatpush1.xpose.msra.mxu0 0.0
    %1942 = vmatprep.subr.mxu0 0.0
    %1943 = vmatpush1.xpose.msra.mxu0 0.0
    %1944 = vmatprep.subr.mxu0 0.0
    %1945 = vmatpush1.xpose.msra.mxu0 0.0
    %1946 = vmatprep.subr.mxu0 0.0
    %1947 = vmatpush1.xpose.msra.mxu0 0.0
    %1948 = vmatprep.subr.mxu0 0.0
    %1949 = vmatpush1.xpose.msra.mxu0 0.0
    %1950 = vmatprep.subr.mxu0 0.0
    %1951 = vmatpush1.xpose.msra.mxu0 0.0
    %1952 = vmatprep.mubr.f32.mxu0 0.0
    %1953 = vmatmul.mubr.f32.gmra.mrb[0].mxu0 %v1859
    %v1954 = vpop.f32.mrb[0].mxu0
    %v1955 = vadd.f32 0.0, %v1954
    %v1956 = vpop.f32.mrb[0].mxu0
    %1957 = vmatprep.mubr.f32.mxu0 0.0
    %1958 = vmatmul.mubr.f32.gmra.mrb[0].mxu0 %v1862
    %v1959 = vpop.f32.mrb[0].mxu0
    %v1960 = vadd.f32 0.0, %v1959
    %v1961 = vpop.f32.mrb[0].mxu0
    %1962 = vmatprep.mubr.f32.mxu0 0.0
    %1963 = vmatmul.mubr.f32.gmra.mrb[0].mxu0 %v1865
    %v1964 = vpop.f32.mrb[0].mxu0
    %v1965 = vadd.f32 0.0, %v1964
    %v1966 = vpop.f32.mrb[0].mxu0
    %1967 = vmatprep.mubr.f32.mxu0 0.0
    %1968 = vmatmul.mubr.f32.gmra.mrb[0].mxu0 %v1868
    %v1969 = vpop.f32.mrb[0].mxu0
    %v1970 = vadd.f32 0.0, %v1969
    %v1971 = vpop.f32.mrb[0].mxu0
    %1972 = vmatprep.mubr.f32.mxu0 0.0
    %1973 = vmatmul.mubr.f32.gmra.mrb[0].mxu0 %v1871
    %v1974 = vpop.f32.mrb[0].mxu0
    %v1975 = vadd.f32 0.0, %v1974
    %v1976 = vpop.f32.mrb[0].mxu0
    %1977 = vmatprep.mubr.f32.mxu0 0.0
    %1978 = vmatmul.mubr.f32.gmra.mrb[0].mxu0 %v1874
    %v1979 = vpop.f32.mrb[0].mxu0
    %v1980 = vadd.f32 0.0, %v1979
    %v1981 = vpop.f32.mrb[0].mxu0
    %1982 = vmatprep.mubr.f32.mxu0 0.0
    %1983 = vmatmul.mubr.f32.gmra.mrb[0].mxu0 %v1877
    %v1984 = vpop.f32.mrb[0].mxu0
    %v1985 = vadd.f32 0.0, %v1984
    %v1986 = vpop.f32.mrb[0].mxu0
    %1987 = vmatprep.mubr.f32.mxu0 0.0
    %1988 = vmatmul.mubr.f32.gmra.mrb[0].mxu0 %v1880
    %v1989 = vpop.f32.mrb[0].mxu0
    %v1990 = vadd.f32 0.0, %v1989
    %v1991 = vpop.f32.mrb[0].mxu0
    %1992 = vdwg.mxu0
    %v1993 = vmul.f32 %v1955, 0.25
    %v1994 = vmul.f32 %v1960, 0.25
    %v1995 = vmul.f32 %v1965, 0.25
    %v1996 = vmul.f32 %v1970, 0.25
    %v1997 = vmul.f32 %v1975, 0.25
    %v1998 = vmul.f32 %v1980, 0.25
    %v1999 = vmul.f32 %v1985, 0.25
    %v2000 = vmul.f32 %v1990, 0.25
    %v2001 = vadd.f32 %v1993, %v208
    %v2002 = vadd.f32 %v1994, %v209
    %v2003 = vadd.f32 %v1995, %v210
    %v2004 = vadd.f32 %v1996, %v211
    %v2005 = vadd.f32 %v1997, %v212
    %v2006 = vadd.f32 %v1998, %v213
    %v2007 = vadd.f32 %v1999, %v214
    %v2008 = vadd.f32 %v2000, %v215
    %v2009 = vsel %vm740, %v2001, -inf
    %2010 = vmax.xlane.f32.xlu0 %v2009
    %v2011 = vpop.xlane.xlu0 %2010
    %v2012 = vsel %vm740, %v2002, -inf
    %2013 = vmax.xlane.f32.xlu0 %v2012
    %v2014 = vpop.xlane.xlu0 %2013
    %v2015 = vsel %vm740, %v2003, -inf
    %2016 = vmax.xlane.f32.xlu0 %v2015
    %v2017 = vpop.xlane.xlu0 %2016
    %v2018 = vsel %vm740, %v2004, -inf
    %2019 = vmax.xlane.f32.xlu0 %v2018
    %v2020 = vpop.xlane.xlu0 %2019
    %v2021 = vsel %vm740, %v2005, -inf
    %2022 = vmax.xlane.f32.xlu0 %v2021
    %v2023 = vpop.xlane.xlu0 %2022
    %v2024 = vsel %vm740, %v2006, -inf
    %2025 = vmax.xlane.f32.xlu0 %v2024
    %v2026 = vpop.xlane.xlu0 %2025
    %v2027 = vsel %vm740, %v2007, -inf
    %2028 = vmax.xlane.f32.xlu0 %v2027
    %v2029 = vpop.xlane.xlu0 %2028
    %v2030 = vsel %vm740, %v2008, -inf
    %2031 = vmax.xlane.f32.xlu0 %v2030
    %v2032 = vpop.xlane.xlu0 %2031
    %v2033 = vsub.f32 %v2001, %v2011
    %v2034 = vsub.f32 %v2002, %v2014
    %v2035 = vsub.f32 %v2003, %v2017
    %v2036 = vsub.f32 %v2004, %v2020
    %v2037 = vsub.f32 %v2005, %v2023
    %v2038 = vsub.f32 %v2006, %v2026
    %v2039 = vsub.f32 %v2007, %v2029
    %v2040 = vsub.f32 %v2008, %v2032
    %v2041 = vmul.f32 %v2033, 1.442695
    %v2042 = vpow.pop %v2041
    %v2043 = vmul.f32 %v2034, 1.442695
    %v2044 = vpow.pop %v2043
    %v2045 = vmul.f32 %v2035, 1.442695
    %v2046 = vpow.pop %v2045
    %v2047 = vmul.f32 %v2036, 1.442695
    %v2048 = vpow.pop %v2047
    %v2049 = vmul.f32 %v2037, 1.442695
    %v2050 = vpow.pop %v2049
    %v2051 = vmul.f32 %v2038, 1.442695
    %v2052 = vpow.pop %v2051
    %v2053 = vmul.f32 %v2039, 1.442695
    %v2054 = vpow.pop %v2053
    %v2055 = vmul.f32 %v2040, 1.442695
    %v2056 = vpow.pop %v2055
    %v2057 = vsel %vm740, %v2042, 0.0
    %2058 = vadd.xlane.f32.xlu0 %v2057
    %v2059 = vpop.xlane.xlu0 %2058
    %v2060 = vsel %vm740, %v2044, 0.0
    %2061 = vadd.xlane.f32.xlu0 %v2060
    %v2062 = vpop.xlane.xlu0 %2061
    %v2063 = vsel %vm740, %v2046, 0.0
    %2064 = vadd.xlane.f32.xlu0 %v2063
    %v2065 = vpop.xlane.xlu0 %2064
    %v2066 = vsel %vm740, %v2048, 0.0
    %2067 = vadd.xlane.f32.xlu0 %v2066
    %v2068 = vpop.xlane.xlu0 %2067
    %v2069 = vsel %vm740, %v2050, 0.0
    %2070 = vadd.xlane.f32.xlu0 %v2069
    %v2071 = vpop.xlane.xlu0 %2070
    %v2072 = vsel %vm740, %v2052, 0.0
    %2073 = vadd.xlane.f32.xlu0 %v2072
    %v2074 = vpop.xlane.xlu0 %2073
    %v2075 = vsel %vm740, %v2054, 0.0
    %2076 = vadd.xlane.f32.xlu0 %v2075
    %v2077 = vpop.xlane.xlu0 %2076
    %v2078 = vsel %vm740, %v2056, 0.0
    %2079 = vadd.xlane.f32.xlu0 %v2078
    %v2080 = vpop.xlane.xlu0 %2079
    %v2081 = vrcp.pop %v2059
    %v2082 = vrcp.pop %v2062
    %v2083 = vrcp.pop %v2065
    %v2084 = vrcp.pop %v2068
    %v2085 = vrcp.pop %v2071
    %v2086 = vrcp.pop %v2074
    %v2087 = vrcp.pop %v2077
    %v2088 = vrcp.pop %v2080
    %v2089 = vmul.f32 %v2042, %v2081
    %v2090 = vmul.f32 %v2044, %v2082
    %v2091 = vmul.f32 %v2046, %v2083
    %v2092 = vmul.f32 %v2048, %v2084
    %v2093 = vmul.f32 %v2050, %v2085
    %v2094 = vmul.f32 %v2052, %v2086
    %v2095 = vmul.f32 %v2054, %v2087
    %v2096 = vmul.f32 %v2056, %v2088
    %v2098 = vsel %vm740, %v2089, 0
    %v2101 = vsel %vm740, %v2090, 0
    %v2104 = vsel %vm740, %v2091, 0
    %v2107 = vsel %vm740, %v2092, 0
    %v2110 = vsel %vm740, %v2093, 0
    %v2113 = vsel %vm740, %v2094, 0
    %v2116 = vsel %vm740, %v2095, 0
    %v2119 = vsel %vm740, %v2096, 0
    %2121 = vmatprep.subr.mxu0 0.0
    %2122 = vmatpush1.msra.mxu0 %v1842
    %2123 = vmatprep.subr.mxu0 0.0
    %2124 = vmatpush1.msra.mxu0 %v1847
    %2125 = vmatprep.subr.mxu0 0.0
    %2126 = vmatpush1.msra.mxu0 0.0
    %2127 = vmatprep.subr.mxu0 0.0
    %2128 = vmatpush1.msra.mxu0 0.0
    %2129 = vmatprep.subr.mxu0 0.0
    %2130 = vmatpush1.msra.mxu0 0.0
    %2131 = vmatprep.subr.mxu0 0.0
    %2132 = vmatpush1.msra.mxu0 0.0
    %2133 = vmatprep.subr.mxu0 0.0
    %2134 = vmatpush1.msra.mxu0 0.0
    %2135 = vmatprep.subr.mxu0 0.0
    %2136 = vmatpush1.msra.mxu0 0.0
    %2137 = vmatprep.subr.mxu0 0.0
    %2138 = vmatpush1.msra.mxu0 0.0
    %2139 = vmatprep.subr.mxu0 0.0
    %2140 = vmatpush1.msra.mxu0 0.0
    %2141 = vmatprep.subr.mxu0 0.0
    %2142 = vmatpush1.msra.mxu0 0.0
    %2143 = vmatprep.subr.mxu0 0.0
    %2144 = vmatpush1.msra.mxu0 0.0
    %2145 = vmatprep.subr.mxu0 0.0
    %2146 = vmatpush1.msra.mxu0 0.0
    %2147 = vmatprep.subr.mxu0 0.0
    %2148 = vmatpush1.msra.mxu0 0.0
    %2149 = vmatprep.subr.mxu0 0.0
    %2150 = vmatpush1.msra.mxu0 0.0
    %2151 = vmatprep.subr.mxu0 0.0
    %2152 = vmatpush1.msra.mxu0 0.0
    %2153 = vmatprep.subr.mxu0 0.0
    %2154 = vmatpush1.msra.mxu0 0.0
    %2155 = vmatprep.subr.mxu0 0.0
    %2156 = vmatpush1.msra.mxu0 0.0
    %2157 = vmatprep.subr.mxu0 0.0
    %2158 = vmatpush1.msra.mxu0 0.0
    %2159 = vmatprep.subr.mxu0 0.0
    %2160 = vmatpush1.msra.mxu0 0.0
    %2161 = vmatprep.subr.mxu0 0.0
    %2162 = vmatpush1.msra.mxu0 0.0
    %2163 = vmatprep.subr.mxu0 0.0
    %2164 = vmatpush1.msra.mxu0 0.0
    %2165 = vmatprep.subr.mxu0 0.0
    %2166 = vmatpush1.msra.mxu0 0.0
    %2167 = vmatprep.subr.mxu0 0.0
    %2168 = vmatpush1.msra.mxu0 0.0
    %2169 = vmatprep.subr.mxu0 0.0
    %2170 = vmatpush1.msra.mxu0 0.0
    %2171 = vmatprep.subr.mxu0 0.0
    %2172 = vmatpush1.msra.mxu0 0.0
    %2173 = vmatprep.subr.mxu0 0.0
    %2174 = vmatpush1.msra.mxu0 0.0
    %2175 = vmatprep.subr.mxu0 0.0
    %2176 = vmatpush1.msra.mxu0 0.0
    %2177 = vmatprep.subr.mxu0 0.0
    %2178 = vmatpush1.msra.mxu0 0.0
    %2179 = vmatprep.subr.mxu0 0.0
    %2180 = vmatpush1.msra.mxu0 0.0
    %2181 = vmatprep.subr.mxu0 0.0
    %2182 = vmatpush1.msra.mxu0 0.0
    %2183 = vmatprep.subr.mxu0 0.0
    %2184 = vmatpush1.msra.mxu0 0.0
    %2185 = vmatprep.mubr.f32.mxu0 0.0
    %2186 = vmatmul.mubr.f32.gmra.mrb[0].mxu0 %v2098
    %v2187 = vpop.f32.mrb[0].mxu0
    %v2188 = vadd.f32 0.0, %v2187
    %v2189 = vpop.f32.mrb[0].mxu0
    %2190 = vmatprep.mubr.f32.mxu0 0.0
    %2191 = vmatmul.mubr.f32.gmra.mrb[0].mxu0 %v2101
    %v2192 = vpop.f32.mrb[0].mxu0
    %v2193 = vadd.f32 0.0, %v2192
    %v2194 = vpop.f32.mrb[0].mxu0
    %2195 = vmatprep.mubr.f32.mxu0 0.0
    %2196 = vmatmul.mubr.f32.gmra.mrb[0].mxu0 %v2104
    %v2197 = vpop.f32.mrb[0].mxu0
    %v2198 = vadd.f32 0.0, %v2197
    %v2199 = vpop.f32.mrb[0].mxu0
    %2200 = vmatprep.mubr.f32.mxu0 0.0
    %2201 = vmatmul.mubr.f32.gmra.mrb[0].mxu0 %v2107
    %v2202 = vpop.f32.mrb[0].mxu0
    %v2203 = vadd.f32 0.0, %v2202
    %v2204 = vpop.f32.mrb[0].mxu0
    %2205 = vmatprep.mubr.f32.mxu0 0.0
    %2206 = vmatmul.mubr.f32.gmra.mrb[0].mxu0 %v2110
    %v2207 = vpop.f32.mrb[0].mxu0
    %v2208 = vadd.f32 0.0, %v2207
    %v2209 = vpop.f32.mrb[0].mxu0
    %2210 = vmatprep.mubr.f32.mxu0 0.0
    %2211 = vmatmul.mubr.f32.gmra.mrb[0].mxu0 %v2113
    %v2212 = vpop.f32.mrb[0].mxu0
    %v2213 = vadd.f32 0.0, %v2212
    %v2214 = vpop.f32.mrb[0].mxu0
    %2215 = vmatprep.mubr.f32.mxu0 0.0
    %2216 = vmatmul.mubr.f32.gmra.mrb[0].mxu0 %v2116
    %v2217 = vpop.f32.mrb[0].mxu0
    %v2218 = vadd.f32 0.0, %v2217
    %v2219 = vpop.f32.mrb[0].mxu0
    %2220 = vmatprep.mubr.f32.mxu0 0.0
    %2221 = vmatmul.mubr.f32.gmra.mrb[0].mxu0 %v2119
    %v2222 = vpop.f32.mrb[0].mxu0
    %v2223 = vadd.f32 0.0, %v2222
    %v2224 = vpop.f32.mrb[0].mxu0
    %2225 = vdwg.mxu0
    %v2226 = vmul.f32 %v2188, %v200
    %v2227 = vmul.f32 %v2193, %v201
    %v2228 = vmul.f32 %v2198, %v202
    %v2229 = vmul.f32 %v2203, %v203
    %v2230 = vmul.f32 %v2208, %v204
    %v2231 = vmul.f32 %v2213, %v205
    %v2232 = vmul.f32 %v2218, %v206
    %v2233 = vmul.f32 %v2223, %v207
    %v2234 = vsel %vm231, %v2226, 0.0
    %v2235 = vsel %vm231, %v2228, 0.0
    %v2236 = vadd.f32 %v2234, %v2235
    %v2237 = vsel %vm231, %v2230, 0.0
    %v2238 = vadd.f32 %v2236, %v2237
    %v2239 = vsel %vm231, %v2232, 0.0
    %v2240 = vadd.f32 %v2238, %v2239
    %v2241 = vsel %vm231, %v2227, 0.0
    %v2242 = vsel %vm231, %v2229, 0.0
    %v2243 = vadd.f32 %v2241, %v2242
    %v2244 = vsel %vm231, %v2231, 0.0
    %v2245 = vadd.f32 %v2243, %v2244
    %v2246 = vsel %vm231, %v2233, 0.0
    %v2247 = vadd.f32 %v2245, %v2246
    %s2248 = scalar_lea.vmem %s21, 64
    %v2249 = vld [vmem:[%s2248] sm:$0xff]
    %v2250 = vld [vmem:[%s2248 + $0x8] sm:$0xff]
    %v2251 = vld [vmem:[%s2248 + $0x10] sm:$0xff]
    %v2252 = vld [vmem:[%s2248 + $0x18] sm:$0xff]
    %v2253 = vld [vmem:[%s2248 + $0x20] sm:$0xff]
    %v2254 = vld [vmem:[%s2248 + $0x28] sm:$0xff]
    %v2255 = vld [vmem:[%s2248 + $0x30] sm:$0xff]
    %v2256 = vld [vmem:[%s2248 + $0x38] sm:$0xff]
    %s2257 = scalar_lea.vmem %s23, 1
    %v2258 = vld [vmem:[%s2257] sm:$0x1]
    %v2260 = vlaneseq
    %v2261 = vshrl.u32 %v2260, 7
    %v2262 = vsub.s32 0, %v2261
    %v2263 = vrot.slane %v2258, %v2262
    %v2266 = vsel %vm231, %v2240, 0
    %v2269 = vsel %vm231, %v2247, 0
    %2271 = vmatprep.subr.mxu0 0.0
    %2272 = vmatpush1.msra.mxu0 %v2249
    %2273 = vmatprep.subr.mxu0 0.0
    %2274 = vmatpush1.msra.mxu0 %v2250
    %2275 = vmatprep.subr.mxu0 0.0
    %2276 = vmatpush1.msra.mxu0 %v2251
    %2277 = vmatprep.subr.mxu0 0.0
    %2278 = vmatpush1.msra.mxu0 %v2252
    %2279 = vmatprep.subr.mxu0 0.0
    %2280 = vmatpush1.msra.mxu0 %v2253
    %2281 = vmatprep.subr.mxu0 0.0
    %2282 = vmatpush1.msra.mxu0 %v2254
    %2283 = vmatprep.subr.mxu0 0.0
    %2284 = vmatpush1.msra.mxu0 %v2255
    %2285 = vmatprep.subr.mxu0 0.0
    %2286 = vmatpush1.msra.mxu0 %v2256
    %2287 = vmatprep.subr.mxu0 0.0
    %2288 = vmatpush1.msra.mxu0 0.0
    %2289 = vmatprep.subr.mxu0 0.0
    %2290 = vmatpush1.msra.mxu0 0.0
    %2291 = vmatprep.subr.mxu0 0.0
    %2292 = vmatpush1.msra.mxu0 0.0
    %2293 = vmatprep.subr.mxu0 0.0
    %2294 = vmatpush1.msra.mxu0 0.0
    %2295 = vmatprep.subr.mxu0 0.0
    %2296 = vmatpush1.msra.mxu0 0.0
    %2297 = vmatprep.subr.mxu0 0.0
    %2298 = vmatpush1.msra.mxu0 0.0
    %2299 = vmatprep.subr.mxu0 0.0
    %2300 = vmatpush1.msra.mxu0 0.0
    %2301 = vmatprep.subr.mxu0 0.0
    %2302 = vmatpush1.msra.mxu0 0.0
    %2303 = vmatprep.subr.mxu0 0.0
    %2304 = vmatpush1.msra.mxu0 0.0
    %2305 = vmatprep.subr.mxu0 0.0
    %2306 = vmatpush1.msra.mxu0 0.0
    %2307 = vmatprep.subr.mxu0 0.0
    %2308 = vmatpush1.msra.mxu0 0.0
    %2309 = vmatprep.subr.mxu0 0.0
    %2310 = vmatpush1.msra.mxu0 0.0
    %2311 = vmatprep.subr.mxu0 0.0
    %2312 = vmatpush1.msra.mxu0 0.0
    %2313 = vmatprep.subr.mxu0 0.0
    %2314 = vmatpush1.msra.mxu0 0.0
    %2315 = vmatprep.subr.mxu0 0.0
    %2316 = vmatpush1.msra.mxu0 0.0
    %2317 = vmatprep.subr.mxu0 0.0
    %2318 = vmatpush1.msra.mxu0 0.0
    %2319 = vmatprep.subr.mxu0 0.0
    %2320 = vmatpush1.msra.mxu0 0.0
    %2321 = vmatprep.subr.mxu0 0.0
    %2322 = vmatpush1.msra.mxu0 0.0
    %2323 = vmatprep.subr.mxu0 0.0
    %2324 = vmatpush1.msra.mxu0 0.0
    %2325 = vmatprep.subr.mxu0 0.0
    %2326 = vmatpush1.msra.mxu0 0.0
    %2327 = vmatprep.subr.mxu0 0.0
    %2328 = vmatpush1.msra.mxu0 0.0
    %2329 = vmatprep.subr.mxu0 0.0
    %2330 = vmatpush1.msra.mxu0 0.0
    %2331 = vmatprep.subr.mxu0 0.0
    %2332 = vmatpush1.msra.mxu0 0.0
    %2333 = vmatprep.subr.mxu0 0.0
    %2334 = vmatpush1.msra.mxu0 0.0
    %2335 = vmatprep.mubr.f32.mxu0 0.0
    %2336 = vmatmul.mubr.f32.gmra.mrb[0].mxu0 %v2266
    %v2337 = vpop.f32.mrb[0].mxu0
    %v2338 = vadd.f32 %v2263, %v2337
    %v2339 = vpop.f32.mrb[0].mxu0
    %2340 = vmatprep.mubr.f32.mxu0 0.0
    %2341 = vmatmul.mubr.f32.gmra.mrb[0].mxu0 %v2269
    %v2342 = vpop.f32.mrb[0].mxu0
    %v2343 = vadd.f32 %v2263, %v2342
    %v2344 = vpop.f32.mrb[0].mxu0
    %2345 = vdwg.mxu0
    %v2346 = vadd.f32 %v166, %v2338
    %v2347 = vadd.f32 %v167, %v2343
    %s2348 = scalar_lea.vmem %s25, 1
    %v2349 = vld [vmem:[%s2348] sm:$0x1]
    %s2350 = scalar_lea.vmem %s27, 1
    %v2351 = vld [vmem:[%s2350] sm:$0x1]
    %v2352 = vsel %vm231, %v2346, 0.0
    %2353 = vadd.xlane.f32.xlu0 %v2352
    %v2354 = vpop.xlane.xlu0 %2353
    %v2355 = vsel %vm231, %v2347, 0.0
    %2356 = vadd.xlane.f32.xlu0 %v2355
    %v2357 = vpop.xlane.xlu0 %2356
    %v2358 = vmul.f32 %v2354, %v1262
    %v2359 = vmul.f32 %v2357, %v1262
    %v2360 = vsub.f32 %v2346, %v2358
    %v2361 = vsub.f32 %v2347, %v2359
    %v2362 = vmul.f32 %v2360, %v2360
    %v2363 = vmul.f32 %v2361, %v2361
    %v2364 = vsel %vm231, %v2362, 0.0
    %2365 = vadd.xlane.f32.xlu0 %v2364
    %v2366 = vpop.xlane.xlu0 %2365
    %v2367 = vsel %vm231, %v2363, 0.0
    %2368 = vadd.xlane.f32.xlu0 %v2367
    %v2369 = vpop.xlane.xlu0 %2368
    %v2370 = vmul.f32 %v2366, %v1262
    %v2371 = vmul.f32 %v2369, %v1262
    %v2372 = vadd.f32 %v2370, 1e-05
    %v2373 = vadd.f32 %v2371, 1e-05
    %v2374 = vrsqrt.pop %v2372
    %v2375 = vrsqrt.pop %v2373
    %v2376 = vmul.f32 %v2360, %v2374
    %v2377 = vmul.f32 %v2361, %v2375
    %v2379 = vlaneseq
    %v2380 = vshrl.u32 %v2379, 7
    %v2381 = vsub.s32 0, %v2380
    %v2382 = vrot.slane %v2349, %v2381
    %v2384 = vmul.f32 %v2376, %v2382
    %v2385 = vmul.f32 %v2377, %v2382
    %v2387 = vlaneseq
    %v2388 = vshrl.u32 %v2387, 7
    %v2389 = vsub.s32 0, %v2388
    %v2390 = vrot.slane %v2351, %v2389
    %v2392 = vadd.f32 %v2384, %v2390
    %v2393 = vadd.f32 %v2385, %v2390
    %s2394 = scalar_lea.vmem %s29, 128
    %v2395 = vld [vmem:[%s2394] sm:$0xff]
    %v2396 = vld [vmem:[%s2394 + $0x8] sm:$0xff]
    %v2397 = vld [vmem:[%s2394 + $0x10] sm:$0xff]
    %v2398 = vld [vmem:[%s2394 + $0x18] sm:$0xff]
    %v2399 = vld [vmem:[%s2394 + $0x20] sm:$0xff]
    %v2400 = vld [vmem:[%s2394 + $0x28] sm:$0xff]
    %v2401 = vld [vmem:[%s2394 + $0x30] sm:$0xff]
    %v2402 = vld [vmem:[%s2394 + $0x38] sm:$0xff]
    %v2403 = vld [vmem:[%s2394 + $0x40] sm:$0xff]
    %v2404 = vld [vmem:[%s2394 + $0x48] sm:$0xff]
    %v2405 = vld [vmem:[%s2394 + $0x50] sm:$0xff]
    %v2406 = vld [vmem:[%s2394 + $0x58] sm:$0xff]
    %v2407 = vld [vmem:[%s2394 + $0x60] sm:$0xff]
    %v2408 = vld [vmem:[%s2394 + $0x68] sm:$0xff]
    %v2409 = vld [vmem:[%s2394 + $0x70] sm:$0xff]
    %v2410 = vld [vmem:[%s2394 + $0x78] sm:$0xff]
    %s2411 = scalar_lea.vmem %s31, 2
    %v2412 = vld [vmem:[%s2411] sm:$0x3]
    %v2414 = vlaneseq
    %v2415 = vshrl.u32 %v2414, 7
    %v2416 = vsub.s32 0, %v2415
    %v2417 = vrot.slane %v2412, %v2416
    %v2418 = vlaneseq
    %v2419 = vshrl.u32 %v2418, 7
    %v2420 = vsub.s32 1, %v2419
    %v2421 = vrot.slane %v2412, %v2420
    %v2425 = vsel %vm231, %v2392, 0
    %v2428 = vsel %vm231, %v2393, 0
    %2430 = vmatprep.subr.mxu0 %v2396
    %2431 = vmatpush1.msra.mxu0 %v2395
    %2432 = vmatprep.subr.mxu0 %v2398
    %2433 = vmatpush1.msra.mxu0 %v2397
    %2434 = vmatprep.subr.mxu0 %v2400
    %2435 = vmatpush1.msra.mxu0 %v2399
    %2436 = vmatprep.subr.mxu0 %v2402
    %2437 = vmatpush1.msra.mxu0 %v2401
    %2438 = vmatprep.subr.mxu0 %v2404
    %2439 = vmatpush1.msra.mxu0 %v2403
    %2440 = vmatprep.subr.mxu0 %v2406
    %2441 = vmatpush1.msra.mxu0 %v2405
    %2442 = vmatprep.subr.mxu0 %v2408
    %2443 = vmatpush1.msra.mxu0 %v2407
    %2444 = vmatprep.subr.mxu0 %v2410
    %2445 = vmatpush1.msra.mxu0 %v2409
    %2446 = vmatprep.subr.mxu0 0.0
    %2447 = vmatpush1.msra.mxu0 0.0
    %2448 = vmatprep.subr.mxu0 0.0
    %2449 = vmatpush1.msra.mxu0 0.0
    %2450 = vmatprep.subr.mxu0 0.0
    %2451 = vmatpush1.msra.mxu0 0.0
    %2452 = vmatprep.subr.mxu0 0.0
    %2453 = vmatpush1.msra.mxu0 0.0
    %2454 = vmatprep.subr.mxu0 0.0
    %2455 = vmatpush1.msra.mxu0 0.0
    %2456 = vmatprep.subr.mxu0 0.0
    %2457 = vmatpush1.msra.mxu0 0.0
    %2458 = vmatprep.subr.mxu0 0.0
    %2459 = vmatpush1.msra.mxu0 0.0
    %2460 = vmatprep.subr.mxu0 0.0
    %2461 = vmatpush1.msra.mxu0 0.0
    %2462 = vmatprep.subr.mxu0 0.0
    %2463 = vmatpush1.msra.mxu0 0.0
    %2464 = vmatprep.subr.mxu0 0.0
    %2465 = vmatpush1.msra.mxu0 0.0
    %2466 = vmatprep.subr.mxu0 0.0
    %2467 = vmatpush1.msra.mxu0 0.0
    %2468 = vmatprep.subr.mxu0 0.0
    %2469 = vmatpush1.msra.mxu0 0.0
    %2470 = vmatprep.subr.mxu0 0.0
    %2471 = vmatpush1.msra.mxu0 0.0
    %2472 = vmatprep.subr.mxu0 0.0
    %2473 = vmatpush1.msra.mxu0 0.0
    %2474 = vmatprep.subr.mxu0 0.0
    %2475 = vmatpush1.msra.mxu0 0.0
    %2476 = vmatprep.subr.mxu0 0.0
    %2477 = vmatpush1.msra.mxu0 0.0
    %2478 = vmatprep.subr.mxu0 0.0
    %2479 = vmatpush1.msra.mxu0 0.0
    %2480 = vmatprep.subr.mxu0 0.0
    %2481 = vmatpush1.msra.mxu0 0.0
    %2482 = vmatprep.subr.mxu0 0.0
    %2483 = vmatpush1.msra.mxu0 0.0
    %2484 = vmatprep.subr.mxu0 0.0
    %2485 = vmatpush1.msra.mxu0 0.0
    %2486 = vmatprep.subr.mxu0 0.0
    %2487 = vmatpush1.msra.mxu0 0.0
    %2488 = vmatprep.subr.mxu0 0.0
    %2489 = vmatpush1.msra.mxu0 0.0
    %2490 = vmatprep.subr.mxu0 0.0
    %2491 = vmatpush1.msra.mxu0 0.0
    %2492 = vmatprep.subr.mxu0 0.0
    %2493 = vmatpush1.msra.mxu0 0.0
    %2494 = vmatprep.mubr.f32.mxu0 0.0
    %2495 = vmatmul.mubr.f32.gmra.mrb[0].mxu0 %v2425
    %v2496 = vpop.f32.mrb[0].mxu0
    %v2497 = vadd.f32 %v2417, %v2496
    %v2498 = vpop.f32.mrb[0].mxu0
    %v2499 = vadd.f32 %v2421, %v2498
    %2500 = vmatprep.mubr.f32.mxu0 0.0
    %2501 = vmatmul.mubr.f32.gmra.mrb[0].mxu0 %v2428
    %v2502 = vpop.f32.mrb[0].mxu0
    %v2503 = vadd.f32 %v2417, %v2502
    %v2504 = vpop.f32.mrb[0].mxu0
    %v2505 = vadd.f32 %v2421, %v2504
    %2506 = vdwg.mxu0
    %v2507 = vmax.f32 %v2497, 0.0
    %v2508 = vmax.f32 %v2499, 0.0
    %v2509 = vmax.f32 %v2503, 0.0
    %v2510 = vmax.f32 %v2505, 0.0
    %s2511 = scalar_lea.vmem %s33, 256
    %v2512 = vld [vmem:[%s2511] sm:$0xff]
    %v2513 = vld [vmem:[%s2511 + $0x8] sm:$0xff]
    %v2514 = vld [vmem:[%s2511 + $0x10] sm:$0xff]
    %v2515 = vld [vmem:[%s2511 + $0x18] sm:$0xff]
    %v2516 = vld [vmem:[%s2511 + $0x20] sm:$0xff]
    %v2517 = vld [vmem:[%s2511 + $0x28] sm:$0xff]
    %v2518 = vld [vmem:[%s2511 + $0x30] sm:$0xff]
    %v2519 = vld [vmem:[%s2511 + $0x38] sm:$0xff]
    %v2520 = vld [vmem:[%s2511 + $0x40] sm:$0xff]
    %v2521 = vld [vmem:[%s2511 + $0x48] sm:$0xff]
    %v2522 = vld [vmem:[%s2511 + $0x50] sm:$0xff]
    %v2523 = vld [vmem:[%s2511 + $0x58] sm:$0xff]
    %v2524 = vld [vmem:[%s2511 + $0x60] sm:$0xff]
    %v2525 = vld [vmem:[%s2511 + $0x68] sm:$0xff]
    %v2526 = vld [vmem:[%s2511 + $0x70] sm:$0xff]
    %v2527 = vld [vmem:[%s2511 + $0x78] sm:$0xff]
    %v2528 = vld [vmem:[%s2511 + $0x80] sm:$0xff]
    %v2529 = vld [vmem:[%s2511 + $0x88] sm:$0xff]
    %v2530 = vld [vmem:[%s2511 + $0x90] sm:$0xff]
    %v2531 = vld [vmem:[%s2511 + $0x98] sm:$0xff]
    %v2532 = vld [vmem:[%s2511 + $0xa0] sm:$0xff]
    %v2533 = vld [vmem:[%s2511 + $0xa8] sm:$0xff]
    %v2534 = vld [vmem:[%s2511 + $0xb0] sm:$0xff]
    %v2535 = vld [vmem:[%s2511 + $0xb8] sm:$0xff]
    %v2536 = vld [vmem:[%s2511 + $0xc0] sm:$0xff]
    %v2537 = vld [vmem:[%s2511 + $0xc8] sm:$0xff]
    %v2538 = vld [vmem:[%s2511 + $0xd0] sm:$0xff]
    %v2539 = vld [vmem:[%s2511 + $0xd8] sm:$0xff]
    %v2540 = vld [vmem:[%s2511 + $0xe0] sm:$0xff]
    %v2541 = vld [vmem:[%s2511 + $0xe8] sm:$0xff]
    %v2542 = vld [vmem:[%s2511 + $0xf0] sm:$0xff]
    %v2543 = vld [vmem:[%s2511 + $0xf8] sm:$0xff]
    %s2544 = scalar_lea.vmem %s35, 1
    %v2545 = vld [vmem:[%s2544] sm:$0x1]
    %v2547 = vlaneseq
    %v2548 = vshrl.u32 %v2547, 7
    %v2549 = vsub.s32 0, %v2548
    %v2550 = vrot.slane %v2545, %v2549
    %2552 = vmatprep.subr.mxu0 0.0
    %2553 = vmatpush1.msra.mxu0 %v2512
    %2554 = vmatprep.subr.mxu0 0.0
    %2555 = vmatpush1.msra.mxu0 %v2513
    %2556 = vmatprep.subr.mxu0 0.0
    %2557 = vmatpush1.msra.mxu0 %v2514
    %2558 = vmatprep.subr.mxu0 0.0
    %2559 = vmatpush1.msra.mxu0 %v2515
    %2560 = vmatprep.subr.mxu0 0.0
    %2561 = vmatpush1.msra.mxu0 %v2516
    %2562 = vmatprep.subr.mxu0 0.0
    %2563 = vmatpush1.msra.mxu0 %v2517
    %2564 = vmatprep.subr.mxu0 0.0
    %2565 = vmatpush1.msra.mxu0 %v2518
    %2566 = vmatprep.subr.mxu0 0.0
    %2567 = vmatpush1.msra.mxu0 %v2519
    %2568 = vmatprep.subr.mxu0 0.0
    %2569 = vmatpush1.msra.mxu0 %v2520
    %2570 = vmatprep.subr.mxu0 0.0
    %2571 = vmatpush1.msra.mxu0 %v2521
    %2572 = vmatprep.subr.mxu0 0.0
    %2573 = vmatpush1.msra.mxu0 %v2522
    %2574 = vmatprep.subr.mxu0 0.0
    %2575 = vmatpush1.msra.mxu0 %v2523
    %2576 = vmatprep.subr.mxu0 0.0
    %2577 = vmatpush1.msra.mxu0 %v2524
    %2578 = vmatprep.subr.mxu0 0.0
    %2579 = vmatpush1.msra.mxu0 %v2525
    %2580 = vmatprep.subr.mxu0 0.0
    %2581 = vmatpush1.msra.mxu0 %v2526
    %2582 = vmatprep.subr.mxu0 0.0
    %2583 = vmatpush1.msra.mxu0 %v2527
    %2584 = vmatprep.subr.mxu0 0.0
    %2585 = vmatpush1.msra.mxu0 %v2528
    %2586 = vmatprep.subr.mxu0 0.0
    %2587 = vmatpush1.msra.mxu0 %v2529
    %2588 = vmatprep.subr.mxu0 0.0
    %2589 = vmatpush1.msra.mxu0 %v2530
    %2590 = vmatprep.subr.mxu0 0.0
    %2591 = vmatpush1.msra.mxu0 %v2531
    %2592 = vmatprep.subr.mxu0 0.0
    %2593 = vmatpush1.msra.mxu0 %v2532
    %2594 = vmatprep.subr.mxu0 0.0
    %2595 = vmatpush1.msra.mxu0 %v2533
    %2596 = vmatprep.subr.mxu0 0.0
    %2597 = vmatpush1.msra.mxu0 %v2534
    %2598 = vmatprep.subr.mxu0 0.0
    %2599 = vmatpush1.msra.mxu0 %v2535
    %2600 = vmatprep.subr.mxu0 0.0
    %2601 = vmatpush1.msra.mxu0 %v2536
    %2602 = vmatprep.subr.mxu0 0.0
    %2603 = vmatpush1.msra.mxu0 %v2537
    %2604 = vmatprep.subr.mxu0 0.0
    %2605 = vmatpush1.msra.mxu0 %v2538
    %2606 = vmatprep.subr.mxu0 0.0
    %2607 = vmatpush1.msra.mxu0 %v2539
    %2608 = vmatprep.subr.mxu0 0.0
    %2609 = vmatpush1.msra.mxu0 %v2540
    %2610 = vmatprep.subr.mxu0 0.0
    %2611 = vmatpush1.msra.mxu0 %v2541
    %2612 = vmatprep.subr.mxu0 0.0
    %2613 = vmatpush1.msra.mxu0 %v2542
    %2614 = vmatprep.subr.mxu0 0.0
    %2615 = vmatpush1.msra.mxu0 %v2543
    %2616 = vmatprep.mubr.f32.mxu0 %v2508
    %2617 = vmatmul.mubr.f32.gmra.mrb[0].mxu0 %v2507
    %v2618 = vpop.f32.mrb[0].mxu0
    %v2619 = vadd.f32 %v2550, %v2618
    %v2620 = vpop.f32.mrb[0].mxu0
    %2621 = vmatprep.mubr.f32.mxu0 %v2510
    %2622 = vmatmul.mubr.f32.gmra.mrb[0].mxu0 %v2509
    %v2623 = vpop.f32.mrb[0].mxu0
    %v2624 = vadd.f32 %v2550, %v2623
    %v2625 = vpop.f32.mrb[0].mxu0
    %2626 = vdwg.mxu0
    %v2627 = vadd.f32 %v2392, %v2619
    %v2628 = vadd.f32 %v2393, %v2624
    %s2629 = scalar_lea.vmem %s37, 1
    %v2630 = vld [vmem:[%s2629] sm:$0x1]
    %s2631 = scalar_lea.vmem %s39, 1
    %v2632 = vld [vmem:[%s2631] sm:$0x1]
    %v2633 = vsel %vm231, %v2627, 0.0
    %2634 = vadd.xlane.f32.xlu0 %v2633
    %v2635 = vpop.xlane.xlu0 %2634
    %v2636 = vsel %vm231, %v2628, 0.0
    %2637 = vadd.xlane.f32.xlu0 %v2636
    %v2638 = vpop.xlane.xlu0 %2637
    %v2639 = vmul.f32 %v2635, %v1262
    %v2640 = vmul.f32 %v2638, %v1262
    %v2641 = vsub.f32 %v2627, %v2639
    %v2642 = vsub.f32 %v2628, %v2640
    %v2643 = vmul.f32 %v2641, %v2641
    %v2644 = vmul.f32 %v2642, %v2642
    %v2645 = vsel %vm231, %v2643, 0.0
    %2646 = vadd.xlane.f32.xlu0 %v2645
    %v2647 = vpop.xlane.xlu0 %2646
    %v2648 = vsel %vm231, %v2644, 0.0
    %2649 = vadd.xlane.f32.xlu0 %v2648
    %v2650 = vpop.xlane.xlu0 %2649
    %v2651 = vmul.f32 %v2647, %v1262
    %v2652 = vmul.f32 %v2650, %v1262
    %v2653 = vadd.f32 %v2651, 1e-05
    %v2654 = vadd.f32 %v2652, 1e-05
    %v2655 = vrsqrt.pop %v2653
    %v2656 = vrsqrt.pop %v2654
    %v2657 = vmul.f32 %v2641, %v2655
    %v2658 = vmul.f32 %v2642, %v2656
    %v2660 = vlaneseq
    %v2661 = vshrl.u32 %v2660, 7
    %v2662 = vsub.s32 0, %v2661
    %v2663 = vrot.slane %v2630, %v2662
    %v2665 = vmul.f32 %v2657, %v2663
    %v2666 = vmul.f32 %v2658, %v2663
    %v2668 = vlaneseq
    %v2669 = vshrl.u32 %v2668, 7
    %v2670 = vsub.s32 0, %v2669
    %v2671 = vrot.slane %v2632, %v2670
    %v2673 = vadd.f32 %v2665, %v2671
    %v2674 = vadd.f32 %v2666, %v2671
    %s2675 = scalar_lea.vmem %s9, 128
    %v2676 = vld [vmem:[%s2675] sm:$0xff]
    %v2677 = vld [vmem:[%s2675 + $0x8] sm:$0xff]
    %v2678 = vld [vmem:[%s2675 + $0x10] sm:$0xff]
    %v2679 = vld [vmem:[%s2675 + $0x18] sm:$0xff]
    %v2680 = vld [vmem:[%s2675 + $0x20] sm:$0xff]
    %v2681 = vld [vmem:[%s2675 + $0x28] sm:$0xff]
    %v2682 = vld [vmem:[%s2675 + $0x30] sm:$0xff]
    %v2683 = vld [vmem:[%s2675 + $0x38] sm:$0xff]
    %s2684 = scalar_lea.vmem %s11, 2
    %v2685 = vld [vmem:[%s2684] sm:$0x1]
    %v2687 = vlaneseq
    %v2688 = vshrl.u32 %v2687, 7
    %v2689 = vsub.s32 0, %v2688
    %v2690 = vrot.slane %v2685, %v2689
    %v2693 = vsel %vm231, %v2673, 0
    %v2696 = vsel %vm231, %v2674, 0
    %2698 = vmatprep.subr.mxu0 0.0
    %2699 = vmatpush1.msra.mxu0 %v2676
    %2700 = vmatprep.subr.mxu0 0.0
    %2701 = vmatpush1.msra.mxu0 %v2677
    %2702 = vmatprep.subr.mxu0 0.0
    %2703 = vmatpush1.msra.mxu0 %v2678
    %2704 = vmatprep.subr.mxu0 0.0
    %2705 = vmatpush1.msra.mxu0 %v2679
    %2706 = vmatprep.subr.mxu0 0.0
    %2707 = vmatpush1.msra.mxu0 %v2680
    %2708 = vmatprep.subr.mxu0 0.0
    %2709 = vmatpush1.msra.mxu0 %v2681
    %2710 = vmatprep.subr.mxu0 0.0
    %2711 = vmatpush1.msra.mxu0 %v2682
    %2712 = vmatprep.subr.mxu0 0.0
    %2713 = vmatpush1.msra.mxu0 %v2683
    %2714 = vmatprep.subr.mxu0 0.0
    %2715 = vmatpush1.msra.mxu0 0.0
    %2716 = vmatprep.subr.mxu0 0.0
    %2717 = vmatpush1.msra.mxu0 0.0
    %2718 = vmatprep.subr.mxu0 0.0
    %2719 = vmatpush1.msra.mxu0 0.0
    %2720 = vmatprep.subr.mxu0 0.0
    %2721 = vmatpush1.msra.mxu0 0.0
    %2722 = vmatprep.subr.mxu0 0.0
    %2723 = vmatpush1.msra.mxu0 0.0
    %2724 = vmatprep.subr.mxu0 0.0
    %2725 = vmatpush1.msra.mxu0 0.0
    %2726 = vmatprep.subr.mxu0 0.0
    %2727 = vmatpush1.msra.mxu0 0.0
    %2728 = vmatprep.subr.mxu0 0.0
    %2729 = vmatpush1.msra.mxu0 0.0
    %2730 = vmatprep.subr.mxu0 0.0
    %2731 = vmatpush1.msra.mxu0 0.0
    %2732 = vmatprep.subr.mxu0 0.0
    %2733 = vmatpush1.msra.mxu0 0.0
    %2734 = vmatprep.subr.mxu0 0.0
    %2735 = vmatpush1.msra.mxu0 0.0
    %2736 = vmatprep.subr.mxu0 0.0
    %2737 = vmatpush1.msra.mxu0 0.0
    %2738 = vmatprep.subr.mxu0 0.0
    %2739 = vmatpush1.msra.mxu0 0.0
    %2740 = vmatprep.subr.mxu0 0.0
    %2741 = vmatpush1.msra.mxu0 0.0
    %2742 = vmatprep.subr.mxu0 0.0
    %2743 = vmatpush1.msra.mxu0 0.0
    %2744 = vmatprep.subr.mxu0 0.0
    %2745 = vmatpush1.msra.mxu0 0.0
    %2746 = vmatprep.subr.mxu0 0.0
    %2747 = vmatpush1.msra.mxu0 0.0
    %2748 = vmatprep.subr.mxu0 0.0
    %2749 = vmatpush1.msra.mxu0 0.0
    %2750 = vmatprep.subr.mxu0 0.0
    %2751 = vmatpush1.msra.mxu0 0.0
    %2752 = vmatprep.subr.mxu0 0.0
    %2753 = vmatpush1.msra.mxu0 0.0
    %2754 = vmatprep.subr.mxu0 0.0
    %2755 = vmatpush1.msra.mxu0 0.0
    %2756 = vmatprep.subr.mxu0 0.0
    %2757 = vmatpush1.msra.mxu0 0.0
    %2758 = vmatprep.subr.mxu0 0.0
    %2759 = vmatpush1.msra.mxu0 0.0
    %2760 = vmatprep.subr.mxu0 0.0
    %2761 = vmatpush1.msra.mxu0 0.0
    %2762 = vmatprep.mubr.f32.mxu0 0.0
    %2763 = vmatmul.mubr.f32.gmra.mrb[0].mxu0 %v2693
    %v2764 = vpop.f32.mrb[0].mxu0
    %v2765 = vadd.f32 %v2690, %v2764
    %v2766 = vpop.f32.mrb[0].mxu0
    %2767 = vmatprep.mubr.f32.mxu0 0.0
    %2768 = vmatmul.mubr.f32.gmra.mrb[0].mxu0 %v2696
    %v2769 = vpop.f32.mrb[0].mxu0
    %v2770 = vadd.f32 %v2690, %v2769
    %v2771 = vpop.f32.mrb[0].mxu0
    %2772 = vdwg.mxu0
    %s2773 = scalar_lea.vmem %s13, 128
    %v2774 = vld [vmem:[%s2773] sm:$0xff]
    %v2775 = vld [vmem:[%s2773 + $0x8] sm:$0xff]
    %v2776 = vld [vmem:[%s2773 + $0x10] sm:$0xff]
    %v2777 = vld [vmem:[%s2773 + $0x18] sm:$0xff]
    %v2778 = vld [vmem:[%s2773 + $0x20] sm:$0xff]
    %v2779 = vld [vmem:[%s2773 + $0x28] sm:$0xff]
    %v2780 = vld [vmem:[%s2773 + $0x30] sm:$0xff]
    %v2781 = vld [vmem:[%s2773 + $0x38] sm:$0xff]
    %s2782 = scalar_lea.vmem %s15, 2
    %v2783 = vld [vmem:[%s2782] sm:$0x1]
    %v2785 = vlaneseq
    %v2786 = vshrl.u32 %v2785, 7
    %v2787 = vsub.s32 0, %v2786
    %v2788 = vrot.slane %v2783, %v2787
    %2790 = vmatprep.subr.mxu0 0.0
    %2791 = vmatpush1.msra.mxu0 %v2774
    %2792 = vmatprep.subr.mxu0 0.0
    %2793 = vmatpush1.msra.mxu0 %v2775
    %2794 = vmatprep.subr.mxu0 0.0
    %2795 = vmatpush1.msra.mxu0 %v2776
    %2796 = vmatprep.subr.mxu0 0.0
    %2797 = vmatpush1.msra.mxu0 %v2777
    %2798 = vmatprep.subr.mxu0 0.0
    %2799 = vmatpush1.msra.mxu0 %v2778
    %2800 = vmatprep.subr.mxu0 0.0
    %2801 = vmatpush1.msra.mxu0 %v2779
    %2802 = vmatprep.subr.mxu0 0.0
    %2803 = vmatpush1.msra.mxu0 %v2780
    %2804 = vmatprep.subr.mxu0 0.0
    %2805 = vmatpush1.msra.mxu0 %v2781
    %2806 = vmatprep.subr.mxu0 0.0
    %2807 = vmatpush1.msra.mxu0 0.0
    %2808 = vmatprep.subr.mxu0 0.0
    %2809 = vmatpush1.msra.mxu0 0.0
    %2810 = vmatprep.subr.mxu0 0.0
    %2811 = vmatpush1.msra.mxu0 0.0
    %2812 = vmatprep.subr.mxu0 0.0
    %2813 = vmatpush1.msra.mxu0 0.0
    %2814 = vmatprep.subr.mxu0 0.0
    %2815 = vmatpush1.msra.mxu0 0.0
    %2816 = vmatprep.subr.mxu0 0.0
    %2817 = vmatpush1.msra.mxu0 0.0
    %2818 = vmatprep.subr.mxu0 0.0
    %2819 = vmatpush1.msra.mxu0 0.0
    %2820 = vmatprep.subr.mxu0 0.0
    %2821 = vmatpush1.msra.mxu0 0.0
    %2822 = vmatprep.subr.mxu0 0.0
    %2823 = vmatpush1.msra.mxu0 0.0
    %2824 = vmatprep.subr.mxu0 0.0
    %2825 = vmatpush1.msra.mxu0 0.0
    %2826 = vmatprep.subr.mxu0 0.0
    %2827 = vmatpush1.msra.mxu0 0.0
    %2828 = vmatprep.subr.mxu0 0.0
    %2829 = vmatpush1.msra.mxu0 0.0
    %2830 = vmatprep.subr.mxu0 0.0
    %2831 = vmatpush1.msra.mxu0 0.0
    %2832 = vmatprep.subr.mxu0 0.0
    %2833 = vmatpush1.msra.mxu0 0.0
    %2834 = vmatprep.subr.mxu0 0.0
    %2835 = vmatpush1.msra.mxu0 0.0
    %2836 = vmatprep.subr.mxu0 0.0
    %2837 = vmatpush1.msra.mxu0 0.0
    %2838 = vmatprep.subr.mxu0 0.0
    %2839 = vmatpush1.msra.mxu0 0.0
    %2840 = vmatprep.subr.mxu0 0.0
    %2841 = vmatpush1.msra.mxu0 0.0
    %2842 = vmatprep.subr.mxu0 0.0
    %2843 = vmatpush1.msra.mxu0 0.0
    %2844 = vmatprep.subr.mxu0 0.0
    %2845 = vmatpush1.msra.mxu0 0.0
    %2846 = vmatprep.subr.mxu0 0.0
    %2847 = vmatpush1.msra.mxu0 0.0
    %2848 = vmatprep.subr.mxu0 0.0
    %2849 = vmatpush1.msra.mxu0 0.0
    %2850 = vmatprep.subr.mxu0 0.0
    %2851 = vmatpush1.msra.mxu0 0.0
    %2852 = vmatprep.subr.mxu0 0.0
    %2853 = vmatpush1.msra.mxu0 0.0
    %2854 = vmatprep.mubr.f32.mxu0 0.0
    %2855 = vmatmul.mubr.f32.gmra.mrb[0].mxu0 %v2693
    %v2856 = vpop.f32.mrb[0].mxu0
    %v2857 = vadd.f32 %v2788, %v2856
    %v2858 = vpop.f32.mrb[0].mxu0
    %2859 = vmatprep.mubr.f32.mxu0 0.0
    %2860 = vmatmul.mubr.f32.gmra.mrb[0].mxu0 %v2696
    %v2861 = vpop.f32.mrb[0].mxu0
    %v2862 = vadd.f32 %v2788, %v2861
    %v2863 = vpop.f32.mrb[0].mxu0
    %2864 = vdwg.mxu0
    %s2865 = scalar_lea.vmem %s17, 128
    %v2866 = vld [vmem:[%s2865] sm:$0xff]
    %v2867 = vld [vmem:[%s2865 + $0x8] sm:$0xff]
    %v2868 = vld [vmem:[%s2865 + $0x10] sm:$0xff]
    %v2869 = vld [vmem:[%s2865 + $0x18] sm:$0xff]
    %v2870 = vld [vmem:[%s2865 + $0x20] sm:$0xff]
    %v2871 = vld [vmem:[%s2865 + $0x28] sm:$0xff]
    %v2872 = vld [vmem:[%s2865 + $0x30] sm:$0xff]
    %v2873 = vld [vmem:[%s2865 + $0x38] sm:$0xff]
    %s2874 = scalar_lea.vmem %s19, 2
    %v2875 = vld [vmem:[%s2874] sm:$0x1]
    %v2877 = vlaneseq
    %v2878 = vshrl.u32 %v2877, 7
    %v2879 = vsub.s32 0, %v2878
    %v2880 = vrot.slane %v2875, %v2879
    %2882 = vmatprep.subr.mxu0 0.0
    %2883 = vmatpush1.msra.mxu0 %v2866
    %2884 = vmatprep.subr.mxu0 0.0
    %2885 = vmatpush1.msra.mxu0 %v2867
    %2886 = vmatprep.subr.mxu0 0.0
    %2887 = vmatpush1.msra.mxu0 %v2868
    %2888 = vmatprep.subr.mxu0 0.0
    %2889 = vmatpush1.msra.mxu0 %v2869
    %2890 = vmatprep.subr.mxu0 0.0
    %2891 = vmatpush1.msra.mxu0 %v2870
    %2892 = vmatprep.subr.mxu0 0.0
    %2893 = vmatpush1.msra.mxu0 %v2871
    %2894 = vmatprep.subr.mxu0 0.0
    %2895 = vmatpush1.msra.mxu0 %v2872
    %2896 = vmatprep.subr.mxu0 0.0
    %2897 = vmatpush1.msra.mxu0 %v2873
    %2898 = vmatprep.subr.mxu0 0.0
    %2899 = vmatpush1.msra.mxu0 0.0
    %2900 = vmatprep.subr.mxu0 0.0
    %2901 = vmatpush1.msra.mxu0 0.0
    %2902 = vmatprep.subr.mxu0 0.0
    %2903 = vmatpush1.msra.mxu0 0.0
    %2904 = vmatprep.subr.mxu0 0.0
    %2905 = vmatpush1.msra.mxu0 0.0
    %2906 = vmatprep.subr.mxu0 0.0
    %2907 = vmatpush1.msra.mxu0 0.0
    %2908 = vmatprep.subr.mxu0 0.0
    %2909 = vmatpush1.msra.mxu0 0.0
    %2910 = vmatprep.subr.mxu0 0.0
    %2911 = vmatpush1.msra.mxu0 0.0
    %2912 = vmatprep.subr.mxu0 0.0
    %2913 = vmatpush1.msra.mxu0 0.0
    %2914 = vmatprep.subr.mxu0 0.0
    %2915 = vmatpush1.msra.mxu0 0.0
    %2916 = vmatprep.subr.mxu0 0.0
    %2917 = vmatpush1.msra.mxu0 0.0
    %2918 = vmatprep.subr.mxu0 0.0
    %2919 = vmatpush1.msra.mxu0 0.0
    %2920 = vmatprep.subr.mxu0 0.0
    %2921 = vmatpush1.msra.mxu0 0.0
    %2922 = vmatprep.subr.mxu0 0.0
    %2923 = vmatpush1.msra.mxu0 0.0
    %2924 = vmatprep.subr.mxu0 0.0
    %2925 = vmatpush1.msra.mxu0 0.0
    %2926 = vmatprep.subr.mxu0 0.0
    %2927 = vmatpush1.msra.mxu0 0.0
    %2928 = vmatprep.subr.mxu0 0.0
    %2929 = vmatpush1.msra.mxu0 0.0
    %2930 = vmatprep.subr.mxu0 0.0
    %2931 = vmatpush1.msra.mxu0 0.0
    %2932 = vmatprep.subr.mxu0 0.0
    %2933 = vmatpush1.msra.mxu0 0.0
    %2934 = vmatprep.subr.mxu0 0.0
    %2935 = vmatpush1.msra.mxu0 0.0
    %2936 = vmatprep.subr.mxu0 0.0
    %2937 = vmatpush1.msra.mxu0 0.0
    %2938 = vmatprep.subr.mxu0 0.0
    %2939 = vmatpush1.msra.mxu0 0.0
    %2940 = vmatprep.subr.mxu0 0.0
    %2941 = vmatpush1.msra.mxu0 0.0
    %2942 = vmatprep.subr.mxu0 0.0
    %2943 = vmatpush1.msra.mxu0 0.0
    %2944 = vmatprep.subr.mxu0 0.0
    %2945 = vmatpush1.msra.mxu0 0.0
    %2946 = vmatprep.mubr.f32.mxu0 0.0
    %2947 = vmatmul.mubr.f32.gmra.mrb[0].mxu0 %v2693
    %v2948 = vpop.f32.mrb[0].mxu0
    %v2949 = vadd.f32 %v2880, %v2948
    %v2950 = vpop.f32.mrb[0].mxu0
    %2951 = vmatprep.mubr.f32.mxu0 0.0
    %2952 = vmatmul.mubr.f32.gmra.mrb[0].mxu0 %v2696
    %v2953 = vpop.f32.mrb[0].mxu0
    %v2954 = vadd.f32 %v2880, %v2953
    %v2955 = vpop.f32.mrb[0].mxu0
    %2956 = vdwg.mxu0
    %v2957 = vmul.f32 %v2765, %v200
    %v2958 = vmul.f32 %v2770, %v201
    %v2959 = vmul.f32 %v2765, %v202
    %v2960 = vmul.f32 %v2770, %v203
    %v2961 = vmul.f32 %v2765, %v204
    %v2962 = vmul.f32 %v2770, %v205
    %v2963 = vmul.f32 %v2765, %v206
    %v2964 = vmul.f32 %v2770, %v207
    %v2966 = vsel %vm231, %v2957, 0
    %v2969 = vsel %vm231, %v2958, 0
    %v2972 = vsel %vm231, %v2959, 0
    %v2975 = vsel %vm231, %v2960, 0
    %v2978 = vsel %vm231, %v2961, 0
    %v2981 = vsel %vm231, %v2962, 0
    %v2984 = vsel %vm231, %v2963, 0
    %v2987 = vsel %vm231, %v2964, 0
    %v2990 = vsel %vm231, %v2857, 0
    %v2993 = vsel %vm231, %v2862, 0
    %2995 = vmatprep.subr.mxu0 0.0
    %2996 = vmatpush1.xpose.msra.mxu0 %v2990
    %2997 = vmatprep.subr.mxu0 0.0
    %2998 = vmatpush1.xpose.msra.mxu0 %v2993
    %2999 = vmatprep.subr.mxu0 0.0
    %3000 = vmatpush1.xpose.msra.mxu0 0.0
    %3001 = vmatprep.subr.mxu0 0.0
    %3002 = vmatpush1.xpose.msra.mxu0 0.0
    %3003 = vmatprep.subr.mxu0 0.0
    %3004 = vmatpush1.xpose.msra.mxu0 0.0
    %3005 = vmatprep.subr.mxu0 0.0
    %3006 = vmatpush1.xpose.msra.mxu0 0.0
    %3007 = vmatprep.subr.mxu0 0.0
    %3008 = vmatpush1.xpose.msra.mxu0 0.0
    %3009 = vmatprep.subr.mxu0 0.0
    %3010 = vmatpush1.xpose.msra.mxu0 0.0
    %3011 = vmatprep.subr.mxu0 0.0
    %3012 = vmatpush1.xpose.msra.mxu0 0.0
    %3013 = vmatprep.subr.mxu0 0.0
    %3014 = vmatpush1.xpose.msra.mxu0 0.0
    %3015 = vmatprep.subr.mxu0 0.0
    %3016 = vmatpush1.xpose.msra.mxu0 0.0
    %3017 = vmatprep.subr.mxu0 0.0
    %3018 = vmatpush1.xpose.msra.mxu0 0.0
    %3019 = vmatprep.subr.mxu0 0.0
    %3020 = vmatpush1.xpose.msra.mxu0 0.0
    %3021 = vmatprep.subr.mxu0 0.0
    %3022 = vmatpush1.xpose.msra.mxu0 0.0
    %3023 = vmatprep.subr.mxu0 0.0
    %3024 = vmatpush1.xpose.msra.mxu0 0.0
    %3025 = vmatprep.subr.mxu0 0.0
    %3026 = vmatpush1.xpose.msra.mxu0 0.0
    %3027 = vmatprep.subr.mxu0 0.0
    %3028 = vmatpush1.xpose.msra.mxu0 0.0
    %3029 = vmatprep.subr.mxu0 0.0
    %3030 = vmatpush1.xpose.msra.mxu0 0.0
    %3031 = vmatprep.subr.mxu0 0.0
    %3032 = vmatpush1.xpose.msra.mxu0 0.0
    %3033 = vmatprep.subr.mxu0 0.0
    %3034 = vmatpush1.xpose.msra.mxu0 0.0
    %3035 = vmatprep.subr.mxu0 0.0
    %3036 = vmatpush1.xpose.msra.mxu0 0.0
    %3037 = vmatprep.subr.mxu0 0.0
    %3038 = vmatpush1.xpose.msra.mxu0 0.0
    %3039 = vmatprep.subr.mxu0 0.0
    %3040 = vmatpush1.xpose.msra.mxu0 0.0
    %3041 = vmatprep.subr.mxu0 0.0
    %3042 = vmatpush1.xpose.msra.mxu0 0.0
    %3043 = vmatprep.subr.mxu0 0.0
    %3044 = vmatpush1.xpose.msra.mxu0 0.0
    %3045 = vmatprep.subr.mxu0 0.0
    %3046 = vmatpush1.xpose.msra.mxu0 0.0
    %3047 = vmatprep.subr.mxu0 0.0
    %3048 = vmatpush1.xpose.msra.mxu0 0.0
    %3049 = vmatprep.subr.mxu0 0.0
    %3050 = vmatpush1.xpose.msra.mxu0 0.0
    %3051 = vmatprep.subr.mxu0 0.0
    %3052 = vmatpush1.xpose.msra.mxu0 0.0
    %3053 = vmatprep.subr.mxu0 0.0
    %3054 = vmatpush1.xpose.msra.mxu0 0.0
    %3055 = vmatprep.subr.mxu0 0.0
    %3056 = vmatpush1.xpose.msra.mxu0 0.0
    %3057 = vmatprep.subr.mxu0 0.0
    %3058 = vmatpush1.xpose.msra.mxu0 0.0
    %3059 = vmatprep.mubr.f32.mxu0 0.0
    %3060 = vmatmul.mubr.f32.gmra.mrb[0].mxu0 %v2966
    %v3061 = vpop.f32.mrb[0].mxu0
    %v3062 = vadd.f32 0.0, %v3061
    %v3063 = vpop.f32.mrb[0].mxu0
    %3064 = vmatprep.mubr.f32.mxu0 0.0
    %3065 = vmatmul.mubr.f32.gmra.mrb[0].mxu0 %v2969
    %v3066 = vpop.f32.mrb[0].mxu0
    %v3067 = vadd.f32 0.0, %v3066
    %v3068 = vpop.f32.mrb[0].mxu0
    %3069 = vmatprep.mubr.f32.mxu0 0.0
    %3070 = vmatmul.mubr.f32.gmra.mrb[0].mxu0 %v2972
    %v3071 = vpop.f32.mrb[0].mxu0
    %v3072 = vadd.f32 0.0, %v3071
    %v3073 = vpop.f32.mrb[0].mxu0
    %3074 = vmatprep.mubr.f32.mxu0 0.0
    %3075 = vmatmul.mubr.f32.gmra.mrb[0].mxu0 %v2975
    %v3076 = vpop.f32.mrb[0].mxu0
    %v3077 = vadd.f32 0.0, %v3076
    %v3078 = vpop.f32.mrb[0].mxu0
    %3079 = vmatprep.mubr.f32.mxu0 0.0
    %3080 = vmatmul.mubr.f32.gmra.mrb[0].mxu0 %v2978
    %v3081 = vpop.f32.mrb[0].mxu0
    %v3082 = vadd.f32 0.0, %v3081
    %v3083 = vpop.f32.mrb[0].mxu0
    %3084 = vmatprep.mubr.f32.mxu0 0.0
    %3085 = vmatmul.mubr.f32.gmra.mrb[0].mxu0 %v2981
    %v3086 = vpop.f32.mrb[0].mxu0
    %v3087 = vadd.f32 0.0, %v3086
    %v3088 = vpop.f32.mrb[0].mxu0
    %3089 = vmatprep.mubr.f32.mxu0 0.0
    %3090 = vmatmul.mubr.f32.gmra.mrb[0].mxu0 %v2984
    %v3091 = vpop.f32.mrb[0].mxu0
    %v3092 = vadd.f32 0.0, %v3091
    %v3093 = vpop.f32.mrb[0].mxu0
    %3094 = vmatprep.mubr.f32.mxu0 0.0
    %3095 = vmatmul.mubr.f32.gmra.mrb[0].mxu0 %v2987
    %v3096 = vpop.f32.mrb[0].mxu0
    %v3097 = vadd.f32 0.0, %v3096
    %v3098 = vpop.f32.mrb[0].mxu0
    %3099 = vdwg.mxu0
    %v3100 = vmul.f32 %v3062, 0.25
    %v3101 = vmul.f32 %v3067, 0.25
    %v3102 = vmul.f32 %v3072, 0.25
    %v3103 = vmul.f32 %v3077, 0.25
    %v3104 = vmul.f32 %v3082, 0.25
    %v3105 = vmul.f32 %v3087, 0.25
    %v3106 = vmul.f32 %v3092, 0.25
    %v3107 = vmul.f32 %v3097, 0.25
    %v3108 = vadd.f32 %v3100, %v208
    %v3109 = vadd.f32 %v3101, %v209
    %v3110 = vadd.f32 %v3102, %v210
    %v3111 = vadd.f32 %v3103, %v211
    %v3112 = vadd.f32 %v3104, %v212
    %v3113 = vadd.f32 %v3105, %v213
    %v3114 = vadd.f32 %v3106, %v214
    %v3115 = vadd.f32 %v3107, %v215
    %v3116 = vsel %vm740, %v3108, -inf
    %3117 = vmax.xlane.f32.xlu0 %v3116
    %v3118 = vpop.xlane.xlu0 %3117
    %v3119 = vsel %vm740, %v3109, -inf
    %3120 = vmax.xlane.f32.xlu0 %v3119
    %v3121 = vpop.xlane.xlu0 %3120
    %v3122 = vsel %vm740, %v3110, -inf
    %3123 = vmax.xlane.f32.xlu0 %v3122
    %v3124 = vpop.xlane.xlu0 %3123
    %v3125 = vsel %vm740, %v3111, -inf
    %3126 = vmax.xlane.f32.xlu0 %v3125
    %v3127 = vpop.xlane.xlu0 %3126
    %v3128 = vsel %vm740, %v3112, -inf
    %3129 = vmax.xlane.f32.xlu0 %v3128
    %v3130 = vpop.xlane.xlu0 %3129
    %v3131 = vsel %vm740, %v3113, -inf
    %3132 = vmax.xlane.f32.xlu0 %v3131
    %v3133 = vpop.xlane.xlu0 %3132
    %v3134 = vsel %vm740, %v3114, -inf
    %3135 = vmax.xlane.f32.xlu0 %v3134
    %v3136 = vpop.xlane.xlu0 %3135
    %v3137 = vsel %vm740, %v3115, -inf
    %3138 = vmax.xlane.f32.xlu0 %v3137
    %v3139 = vpop.xlane.xlu0 %3138
    %v3140 = vsub.f32 %v3108, %v3118
    %v3141 = vsub.f32 %v3109, %v3121
    %v3142 = vsub.f32 %v3110, %v3124
    %v3143 = vsub.f32 %v3111, %v3127
    %v3144 = vsub.f32 %v3112, %v3130
    %v3145 = vsub.f32 %v3113, %v3133
    %v3146 = vsub.f32 %v3114, %v3136
    %v3147 = vsub.f32 %v3115, %v3139
    %v3148 = vmul.f32 %v3140, 1.442695
    %v3149 = vpow.pop %v3148
    %v3150 = vmul.f32 %v3141, 1.442695
    %v3151 = vpow.pop %v3150
    %v3152 = vmul.f32 %v3142, 1.442695
    %v3153 = vpow.pop %v3152
    %v3154 = vmul.f32 %v3143, 1.442695
    %v3155 = vpow.pop %v3154
    %v3156 = vmul.f32 %v3144, 1.442695
    %v3157 = vpow.pop %v3156
    %v3158 = vmul.f32 %v3145, 1.442695
    %v3159 = vpow.pop %v3158
    %v3160 = vmul.f32 %v3146, 1.442695
    %v3161 = vpow.pop %v3160
    %v3162 = vmul.f32 %v3147, 1.442695
    %v3163 = vpow.pop %v3162
    %v3164 = vsel %vm740, %v3149, 0.0
    %3165 = vadd.xlane.f32.xlu0 %v3164
    %v3166 = vpop.xlane.xlu0 %3165
    %v3167 = vsel %vm740, %v3151, 0.0
    %3168 = vadd.xlane.f32.xlu0 %v3167
    %v3169 = vpop.xlane.xlu0 %3168
    %v3170 = vsel %vm740, %v3153, 0.0
    %3171 = vadd.xlane.f32.xlu0 %v3170
    %v3172 = vpop.xlane.xlu0 %3171
    %v3173 = vsel %vm740, %v3155, 0.0
    %3174 = vadd.xlane.f32.xlu0 %v3173
    %v3175 = vpop.xlane.xlu0 %3174
    %v3176 = vsel %vm740, %v3157, 0.0
    %3177 = vadd.xlane.f32.xlu0 %v3176
    %v3178 = vpop.xlane.xlu0 %3177
    %v3179 = vsel %vm740, %v3159, 0.0
    %3180 = vadd.xlane.f32.xlu0 %v3179
    %v3181 = vpop.xlane.xlu0 %3180
    %v3182 = vsel %vm740, %v3161, 0.0
    %3183 = vadd.xlane.f32.xlu0 %v3182
    %v3184 = vpop.xlane.xlu0 %3183
    %v3185 = vsel %vm740, %v3163, 0.0
    %3186 = vadd.xlane.f32.xlu0 %v3185
    %v3187 = vpop.xlane.xlu0 %3186
    %v3188 = vrcp.pop %v3166
    %v3189 = vrcp.pop %v3169
    %v3190 = vrcp.pop %v3172
    %v3191 = vrcp.pop %v3175
    %v3192 = vrcp.pop %v3178
    %v3193 = vrcp.pop %v3181
    %v3194 = vrcp.pop %v3184
    %v3195 = vrcp.pop %v3187
    %v3196 = vmul.f32 %v3149, %v3188
    %v3197 = vmul.f32 %v3151, %v3189
    %v3198 = vmul.f32 %v3153, %v3190
    %v3199 = vmul.f32 %v3155, %v3191
    %v3200 = vmul.f32 %v3157, %v3192
    %v3201 = vmul.f32 %v3159, %v3193
    %v3202 = vmul.f32 %v3161, %v3194
    %v3203 = vmul.f32 %v3163, %v3195
    %v3205 = vsel %vm740, %v3196, 0
    %v3208 = vsel %vm740, %v3197, 0
    %v3211 = vsel %vm740, %v3198, 0
    %v3214 = vsel %vm740, %v3199, 0
    %v3217 = vsel %vm740, %v3200, 0
    %v3220 = vsel %vm740, %v3201, 0
    %v3223 = vsel %vm740, %v3202, 0
    %v3226 = vsel %vm740, %v3203, 0
    %3228 = vmatprep.subr.mxu0 0.0
    %3229 = vmatpush1.msra.mxu0 %v2949
    %3230 = vmatprep.subr.mxu0 0.0
    %3231 = vmatpush1.msra.mxu0 %v2954
    %3232 = vmatprep.subr.mxu0 0.0
    %3233 = vmatpush1.msra.mxu0 0.0
    %3234 = vmatprep.subr.mxu0 0.0
    %3235 = vmatpush1.msra.mxu0 0.0
    %3236 = vmatprep.subr.mxu0 0.0
    %3237 = vmatpush1.msra.mxu0 0.0
    %3238 = vmatprep.subr.mxu0 0.0
    %3239 = vmatpush1.msra.mxu0 0.0
    %3240 = vmatprep.subr.mxu0 0.0
    %3241 = vmatpush1.msra.mxu0 0.0
    %3242 = vmatprep.subr.mxu0 0.0
    %3243 = vmatpush1.msra.mxu0 0.0
    %3244 = vmatprep.subr.mxu0 0.0
    %3245 = vmatpush1.msra.mxu0 0.0
    %3246 = vmatprep.subr.mxu0 0.0
    %3247 = vmatpush1.msra.mxu0 0.0
    %3248 = vmatprep.subr.mxu0 0.0
    %3249 = vmatpush1.msra.mxu0 0.0
    %3250 = vmatprep.subr.mxu0 0.0
    %3251 = vmatpush1.msra.mxu0 0.0
    %3252 = vmatprep.subr.mxu0 0.0
    %3253 = vmatpush1.msra.mxu0 0.0
    %3254 = vmatprep.subr.mxu0 0.0
    %3255 = vmatpush1.msra.mxu0 0.0
    %3256 = vmatprep.subr.mxu0 0.0
    %3257 = vmatpush1.msra.mxu0 0.0
    %3258 = vmatprep.subr.mxu0 0.0
    %3259 = vmatpush1.msra.mxu0 0.0
    %3260 = vmatprep.subr.mxu0 0.0
    %3261 = vmatpush1.msra.mxu0 0.0
    %3262 = vmatprep.subr.mxu0 0.0
    %3263 = vmatpush1.msra.mxu0 0.0
    %3264 = vmatprep.subr.mxu0 0.0
    %3265 = vmatpush1.msra.mxu0 0.0
    %3266 = vmatprep.subr.mxu0 0.0
    %3267 = vmatpush1.msra.mxu0 0.0
    %3268 = vmatprep.subr.mxu0 0.0
    %3269 = vmatpush1.msra.mxu0 0.0
    %3270 = vmatprep.subr.mxu0 0.0
    %3271 = vmatpush1.msra.mxu0 0.0
    %3272 = vmatprep.subr.mxu0 0.0
    %3273 = vmatpush1.msra.mxu0 0.0
    %3274 = vmatprep.subr.mxu0 0.0
    %3275 = vmatpush1.msra.mxu0 0.0
    %3276 = vmatprep.subr.mxu0 0.0
    %3277 = vmatpush1.msra.mxu0 0.0
    %3278 = vmatprep.subr.mxu0 0.0
    %3279 = vmatpush1.msra.mxu0 0.0
    %3280 = vmatprep.subr.mxu0 0.0
    %3281 = vmatpush1.msra.mxu0 0.0
    %3282 = vmatprep.subr.mxu0 0.0
    %3283 = vmatpush1.msra.mxu0 0.0
    %3284 = vmatprep.subr.mxu0 0.0
    %3285 = vmatpush1.msra.mxu0 0.0
    %3286 = vmatprep.subr.mxu0 0.0
    %3287 = vmatpush1.msra.mxu0 0.0
    %3288 = vmatprep.subr.mxu0 0.0
    %3289 = vmatpush1.msra.mxu0 0.0
    %3290 = vmatprep.subr.mxu0 0.0
    %3291 = vmatpush1.msra.mxu0 0.0
    %3292 = vmatprep.mubr.f32.mxu0 0.0
    %3293 = vmatmul.mubr.f32.gmra.mrb[0].mxu0 %v3205
    %v3294 = vpop.f32.mrb[0].mxu0
    %v3295 = vadd.f32 0.0, %v3294
    %v3296 = vpop.f32.mrb[0].mxu0
    %3297 = vmatprep.mubr.f32.mxu0 0.0
    %3298 = vmatmul.mubr.f32.gmra.mrb[0].mxu0 %v3208
    %v3299 = vpop.f32.mrb[0].mxu0
    %v3300 = vadd.f32 0.0, %v3299
    %v3301 = vpop.f32.mrb[0].mxu0
    %3302 = vmatprep.mubr.f32.mxu0 0.0
    %3303 = vmatmul.mubr.f32.gmra.mrb[0].mxu0 %v3211
    %v3304 = vpop.f32.mrb[0].mxu0
    %v3305 = vadd.f32 0.0, %v3304
    %v3306 = vpop.f32.mrb[0].mxu0
    %3307 = vmatprep.mubr.f32.mxu0 0.0
    %3308 = vmatmul.mubr.f32.gmra.mrb[0].mxu0 %v3214
    %v3309 = vpop.f32.mrb[0].mxu0
    %v3310 = vadd.f32 0.0, %v3309
    %v3311 = vpop.f32.mrb[0].mxu0
    %3312 = vmatprep.mubr.f32.mxu0 0.0
    %3313 = vmatmul.mubr.f32.gmra.mrb[0].mxu0 %v3217
    %v3314 = vpop.f32.mrb[0].mxu0
    %v3315 = vadd.f32 0.0, %v3314
    %v3316 = vpop.f32.mrb[0].mxu0
    %3317 = vmatprep.mubr.f32.mxu0 0.0
    %3318 = vmatmul.mubr.f32.gmra.mrb[0].mxu0 %v3220
    %v3319 = vpop.f32.mrb[0].mxu0
    %v3320 = vadd.f32 0.0, %v3319
    %v3321 = vpop.f32.mrb[0].mxu0
    %3322 = vmatprep.mubr.f32.mxu0 0.0
    %3323 = vmatmul.mubr.f32.gmra.mrb[0].mxu0 %v3223
    %v3324 = vpop.f32.mrb[0].mxu0
    %v3325 = vadd.f32 0.0, %v3324
    %v3326 = vpop.f32.mrb[0].mxu0
    %3327 = vmatprep.mubr.f32.mxu0 0.0
    %3328 = vmatmul.mubr.f32.gmra.mrb[0].mxu0 %v3226
    %v3329 = vpop.f32.mrb[0].mxu0
    %v3330 = vadd.f32 0.0, %v3329
    %v3331 = vpop.f32.mrb[0].mxu0
    %3332 = vdwg.mxu0
    %v3333 = vmul.f32 %v3295, %v200
    %v3334 = vmul.f32 %v3300, %v201
    %v3335 = vmul.f32 %v3305, %v202
    %v3336 = vmul.f32 %v3310, %v203
    %v3337 = vmul.f32 %v3315, %v204
    %v3338 = vmul.f32 %v3320, %v205
    %v3339 = vmul.f32 %v3325, %v206
    %v3340 = vmul.f32 %v3330, %v207
    %v3341 = vsel %vm231, %v3333, 0.0
    %v3342 = vsel %vm231, %v3335, 0.0
    %v3343 = vadd.f32 %v3341, %v3342
    %v3344 = vsel %vm231, %v3337, 0.0
    %v3345 = vadd.f32 %v3343, %v3344
    %v3346 = vsel %vm231, %v3339, 0.0
    %v3347 = vadd.f32 %v3345, %v3346
    %v3348 = vsel %vm231, %v3334, 0.0
    %v3349 = vsel %vm231, %v3336, 0.0
    %v3350 = vadd.f32 %v3348, %v3349
    %v3351 = vsel %vm231, %v3338, 0.0
    %v3352 = vadd.f32 %v3350, %v3351
    %v3353 = vsel %vm231, %v3340, 0.0
    %v3354 = vadd.f32 %v3352, %v3353
    %s3355 = scalar_lea.vmem %s21, 128
    %v3356 = vld [vmem:[%s3355] sm:$0xff]
    %v3357 = vld [vmem:[%s3355 + $0x8] sm:$0xff]
    %v3358 = vld [vmem:[%s3355 + $0x10] sm:$0xff]
    %v3359 = vld [vmem:[%s3355 + $0x18] sm:$0xff]
    %v3360 = vld [vmem:[%s3355 + $0x20] sm:$0xff]
    %v3361 = vld [vmem:[%s3355 + $0x28] sm:$0xff]
    %v3362 = vld [vmem:[%s3355 + $0x30] sm:$0xff]
    %v3363 = vld [vmem:[%s3355 + $0x38] sm:$0xff]
    %s3364 = scalar_lea.vmem %s23, 2
    %v3365 = vld [vmem:[%s3364] sm:$0x1]
    %v3367 = vlaneseq
    %v3368 = vshrl.u32 %v3367, 7
    %v3369 = vsub.s32 0, %v3368
    %v3370 = vrot.slane %v3365, %v3369
    %v3373 = vsel %vm231, %v3347, 0
    %v3376 = vsel %vm231, %v3354, 0
    %3378 = vmatprep.subr.mxu0 0.0
    %3379 = vmatpush1.msra.mxu0 %v3356
    %3380 = vmatprep.subr.mxu0 0.0
    %3381 = vmatpush1.msra.mxu0 %v3357
    %3382 = vmatprep.subr.mxu0 0.0
    %3383 = vmatpush1.msra.mxu0 %v3358
    %3384 = vmatprep.subr.mxu0 0.0
    %3385 = vmatpush1.msra.mxu0 %v3359
    %3386 = vmatprep.subr.mxu0 0.0
    %3387 = vmatpush1.msra.mxu0 %v3360
    %3388 = vmatprep.subr.mxu0 0.0
    %3389 = vmatpush1.msra.mxu0 %v3361
    %3390 = vmatprep.subr.mxu0 0.0
    %3391 = vmatpush1.msra.mxu0 %v3362
    %3392 = vmatprep.subr.mxu0 0.0
    %3393 = vmatpush1.msra.mxu0 %v3363
    %3394 = vmatprep.subr.mxu0 0.0
    %3395 = vmatpush1.msra.mxu0 0.0
    %3396 = vmatprep.subr.mxu0 0.0
    %3397 = vmatpush1.msra.mxu0 0.0
    %3398 = vmatprep.subr.mxu0 0.0
    %3399 = vmatpush1.msra.mxu0 0.0
    %3400 = vmatprep.subr.mxu0 0.0
    %3401 = vmatpush1.msra.mxu0 0.0
    %3402 = vmatprep.subr.mxu0 0.0
    %3403 = vmatpush1.msra.mxu0 0.0
    %3404 = vmatprep.subr.mxu0 0.0
    %3405 = vmatpush1.msra.mxu0 0.0
    %3406 = vmatprep.subr.mxu0 0.0
    %3407 = vmatpush1.msra.mxu0 0.0
    %3408 = vmatprep.subr.mxu0 0.0
    %3409 = vmatpush1.msra.mxu0 0.0
    %3410 = vmatprep.subr.mxu0 0.0
    %3411 = vmatpush1.msra.mxu0 0.0
    %3412 = vmatprep.subr.mxu0 0.0
    %3413 = vmatpush1.msra.mxu0 0.0
    %3414 = vmatprep.subr.mxu0 0.0
    %3415 = vmatpush1.msra.mxu0 0.0
    %3416 = vmatprep.subr.mxu0 0.0
    %3417 = vmatpush1.msra.mxu0 0.0
    %3418 = vmatprep.subr.mxu0 0.0
    %3419 = vmatpush1.msra.mxu0 0.0
    %3420 = vmatprep.subr.mxu0 0.0
    %3421 = vmatpush1.msra.mxu0 0.0
    %3422 = vmatprep.subr.mxu0 0.0
    %3423 = vmatpush1.msra.mxu0 0.0
    %3424 = vmatprep.subr.mxu0 0.0
    %3425 = vmatpush1.msra.mxu0 0.0
    %3426 = vmatprep.subr.mxu0 0.0
    %3427 = vmatpush1.msra.mxu0 0.0
    %3428 = vmatprep.subr.mxu0 0.0
    %3429 = vmatpush1.msra.mxu0 0.0
    %3430 = vmatprep.subr.mxu0 0.0
    %3431 = vmatpush1.msra.mxu0 0.0
    %3432 = vmatprep.subr.mxu0 0.0
    %3433 = vmatpush1.msra.mxu0 0.0
    %3434 = vmatprep.subr.mxu0 0.0
    %3435 = vmatpush1.msra.mxu0 0.0
    %3436 = vmatprep.subr.mxu0 0.0
    %3437 = vmatpush1.msra.mxu0 0.0
    %3438 = vmatprep.subr.mxu0 0.0
    %3439 = vmatpush1.msra.mxu0 0.0
    %3440 = vmatprep.subr.mxu0 0.0
    %3441 = vmatpush1.msra.mxu0 0.0
    %3442 = vmatprep.mubr.f32.mxu0 0.0
    %3443 = vmatmul.mubr.f32.gmra.mrb[0].mxu0 %v3373
    %v3444 = vpop.f32.mrb[0].mxu0
    %v3445 = vadd.f32 %v3370, %v3444
    %v3446 = vpop.f32.mrb[0].mxu0
    %3447 = vmatprep.mubr.f32.mxu0 0.0
    %3448 = vmatmul.mubr.f32.gmra.mrb[0].mxu0 %v3376
    %v3449 = vpop.f32.mrb[0].mxu0
    %v3450 = vadd.f32 %v3370, %v3449
    %v3451 = vpop.f32.mrb[0].mxu0
    %3452 = vdwg.mxu0
    %v3453 = vadd.f32 %v2673, %v3445
    %v3454 = vadd.f32 %v2674, %v3450
    %s3455 = scalar_lea.vmem %s25, 2
    %v3456 = vld [vmem:[%s3455] sm:$0x1]
    %s3457 = scalar_lea.vmem %s27, 2
    %v3458 = vld [vmem:[%s3457] sm:$0x1]
    %v3459 = vsel %vm231, %v3453, 0.0
    %3460 = vadd.xlane.f32.xlu0 %v3459
    %v3461 = vpop.xlane.xlu0 %3460
    %v3462 = vsel %vm231, %v3454, 0.0
    %3463 = vadd.xlane.f32.xlu0 %v3462
    %v3464 = vpop.xlane.xlu0 %3463
    %v3465 = vmul.f32 %v3461, %v1262
    %v3466 = vmul.f32 %v3464, %v1262
    %v3467 = vsub.f32 %v3453, %v3465
    %v3468 = vsub.f32 %v3454, %v3466
    %v3469 = vmul.f32 %v3467, %v3467
    %v3470 = vmul.f32 %v3468, %v3468
    %v3471 = vsel %vm231, %v3469, 0.0
    %3472 = vadd.xlane.f32.xlu0 %v3471
    %v3473 = vpop.xlane.xlu0 %3472
    %v3474 = vsel %vm231, %v3470, 0.0
    %3475 = vadd.xlane.f32.xlu0 %v3474
    %v3476 = vpop.xlane.xlu0 %3475
    %v3477 = vmul.f32 %v3473, %v1262
    %v3478 = vmul.f32 %v3476, %v1262
    %v3479 = vadd.f32 %v3477, 1e-05
    %v3480 = vadd.f32 %v3478, 1e-05
    %v3481 = vrsqrt.pop %v3479
    %v3482 = vrsqrt.pop %v3480
    %v3483 = vmul.f32 %v3467, %v3481
    %v3484 = vmul.f32 %v3468, %v3482
    %v3486 = vlaneseq
    %v3487 = vshrl.u32 %v3486, 7
    %v3488 = vsub.s32 0, %v3487
    %v3489 = vrot.slane %v3456, %v3488
    %v3491 = vmul.f32 %v3483, %v3489
    %v3492 = vmul.f32 %v3484, %v3489
    %v3494 = vlaneseq
    %v3495 = vshrl.u32 %v3494, 7
    %v3496 = vsub.s32 0, %v3495
    %v3497 = vrot.slane %v3458, %v3496
    %v3499 = vadd.f32 %v3491, %v3497
    %v3500 = vadd.f32 %v3492, %v3497
    %s3501 = scalar_lea.vmem %s29, 256
    %v3502 = vld [vmem:[%s3501] sm:$0xff]
    %v3503 = vld [vmem:[%s3501 + $0x8] sm:$0xff]
    %v3504 = vld [vmem:[%s3501 + $0x10] sm:$0xff]
    %v3505 = vld [vmem:[%s3501 + $0x18] sm:$0xff]
    %v3506 = vld [vmem:[%s3501 + $0x20] sm:$0xff]
    %v3507 = vld [vmem:[%s3501 + $0x28] sm:$0xff]
    %v3508 = vld [vmem:[%s3501 + $0x30] sm:$0xff]
    %v3509 = vld [vmem:[%s3501 + $0x38] sm:$0xff]
    %v3510 = vld [vmem:[%s3501 + $0x40] sm:$0xff]
    %v3511 = vld [vmem:[%s3501 + $0x48] sm:$0xff]
    %v3512 = vld [vmem:[%s3501 + $0x50] sm:$0xff]
    %v3513 = vld [vmem:[%s3501 + $0x58] sm:$0xff]
    %v3514 = vld [vmem:[%s3501 + $0x60] sm:$0xff]
    %v3515 = vld [vmem:[%s3501 + $0x68] sm:$0xff]
    %v3516 = vld [vmem:[%s3501 + $0x70] sm:$0xff]
    %v3517 = vld [vmem:[%s3501 + $0x78] sm:$0xff]
    %s3518 = scalar_lea.vmem %s31, 4
    %v3519 = vld [vmem:[%s3518] sm:$0x3]
    %v3521 = vlaneseq
    %v3522 = vshrl.u32 %v3521, 7
    %v3523 = vsub.s32 0, %v3522
    %v3524 = vrot.slane %v3519, %v3523
    %v3525 = vlaneseq
    %v3526 = vshrl.u32 %v3525, 7
    %v3527 = vsub.s32 1, %v3526
    %v3528 = vrot.slane %v3519, %v3527
    %v3532 = vsel %vm231, %v3499, 0
    %v3535 = vsel %vm231, %v3500, 0
    %3537 = vmatprep.subr.mxu0 %v3503
    %3538 = vmatpush1.msra.mxu0 %v3502
    %3539 = vmatprep.subr.mxu0 %v3505
    %3540 = vmatpush1.msra.mxu0 %v3504
    %3541 = vmatprep.subr.mxu0 %v3507
    %3542 = vmatpush1.msra.mxu0 %v3506
    %3543 = vmatprep.subr.mxu0 %v3509
    %3544 = vmatpush1.msra.mxu0 %v3508
    %3545 = vmatprep.subr.mxu0 %v3511
    %3546 = vmatpush1.msra.mxu0 %v3510
    %3547 = vmatprep.subr.mxu0 %v3513
    %3548 = vmatpush1.msra.mxu0 %v3512
    %3549 = vmatprep.subr.mxu0 %v3515
    %3550 = vmatpush1.msra.mxu0 %v3514
    %3551 = vmatprep.subr.mxu0 %v3517
    %3552 = vmatpush1.msra.mxu0 %v3516
    %3553 = vmatprep.subr.mxu0 0.0
    %3554 = vmatpush1.msra.mxu0 0.0
    %3555 = vmatprep.subr.mxu0 0.0
    %3556 = vmatpush1.msra.mxu0 0.0
    %3557 = vmatprep.subr.mxu0 0.0
    %3558 = vmatpush1.msra.mxu0 0.0
    %3559 = vmatprep.subr.mxu0 0.0
    %3560 = vmatpush1.msra.mxu0 0.0
    %3561 = vmatprep.subr.mxu0 0.0
    %3562 = vmatpush1.msra.mxu0 0.0
    %3563 = vmatprep.subr.mxu0 0.0
    %3564 = vmatpush1.msra.mxu0 0.0
    %3565 = vmatprep.subr.mxu0 0.0
    %3566 = vmatpush1.msra.mxu0 0.0
    %3567 = vmatprep.subr.mxu0 0.0
    %3568 = vmatpush1.msra.mxu0 0.0
    %3569 = vmatprep.subr.mxu0 0.0
    %3570 = vmatpush1.msra.mxu0 0.0
    %3571 = vmatprep.subr.mxu0 0.0
    %3572 = vmatpush1.msra.mxu0 0.0
    %3573 = vmatprep.subr.mxu0 0.0
    %3574 = vmatpush1.msra.mxu0 0.0
    %3575 = vmatprep.subr.mxu0 0.0
    %3576 = vmatpush1.msra.mxu0 0.0
    %3577 = vmatprep.subr.mxu0 0.0
    %3578 = vmatpush1.msra.mxu0 0.0
    %3579 = vmatprep.subr.mxu0 0.0
    %3580 = vmatpush1.msra.mxu0 0.0
    %3581 = vmatprep.subr.mxu0 0.0
    %3582 = vmatpush1.msra.mxu0 0.0
    %3583 = vmatprep.subr.mxu0 0.0
    %3584 = vmatpush1.msra.mxu0 0.0
    %3585 = vmatprep.subr.mxu0 0.0
    %3586 = vmatpush1.msra.mxu0 0.0
    %3587 = vmatprep.subr.mxu0 0.0
    %3588 = vmatpush1.msra.mxu0 0.0
    %3589 = vmatprep.subr.mxu0 0.0
    %3590 = vmatpush1.msra.mxu0 0.0
    %3591 = vmatprep.subr.mxu0 0.0
    %3592 = vmatpush1.msra.mxu0 0.0
    %3593 = vmatprep.subr.mxu0 0.0
    %3594 = vmatpush1.msra.mxu0 0.0
    %3595 = vmatprep.subr.mxu0 0.0
    %3596 = vmatpush1.msra.mxu0 0.0
    %3597 = vmatprep.subr.mxu0 0.0
    %3598 = vmatpush1.msra.mxu0 0.0
    %3599 = vmatprep.subr.mxu0 0.0
    %3600 = vmatpush1.msra.mxu0 0.0
    %3601 = vmatprep.mubr.f32.mxu0 0.0
    %3602 = vmatmul.mubr.f32.gmra.mrb[0].mxu0 %v3532
    %v3603 = vpop.f32.mrb[0].mxu0
    %v3604 = vadd.f32 %v3524, %v3603
    %v3605 = vpop.f32.mrb[0].mxu0
    %v3606 = vadd.f32 %v3528, %v3605
    %3607 = vmatprep.mubr.f32.mxu0 0.0
    %3608 = vmatmul.mubr.f32.gmra.mrb[0].mxu0 %v3535
    %v3609 = vpop.f32.mrb[0].mxu0
    %v3610 = vadd.f32 %v3524, %v3609
    %v3611 = vpop.f32.mrb[0].mxu0
    %v3612 = vadd.f32 %v3528, %v3611
    %3613 = vdwg.mxu0
    %v3614 = vmax.f32 %v3604, 0.0
    %v3615 = vmax.f32 %v3606, 0.0
    %v3616 = vmax.f32 %v3610, 0.0
    %v3617 = vmax.f32 %v3612, 0.0
    %s3618 = scalar_lea.vmem %s33, 512
    %v3619 = vld [vmem:[%s3618] sm:$0xff]
    %v3620 = vld [vmem:[%s3618 + $0x8] sm:$0xff]
    %v3621 = vld [vmem:[%s3618 + $0x10] sm:$0xff]
    %v3622 = vld [vmem:[%s3618 + $0x18] sm:$0xff]
    %v3623 = vld [vmem:[%s3618 + $0x20] sm:$0xff]
    %v3624 = vld [vmem:[%s3618 + $0x28] sm:$0xff]
    %v3625 = vld [vmem:[%s3618 + $0x30] sm:$0xff]
    %v3626 = vld [vmem:[%s3618 + $0x38] sm:$0xff]
    %v3627 = vld [vmem:[%s3618 + $0x40] sm:$0xff]
    %v3628 = vld [vmem:[%s3618 + $0x48] sm:$0xff]
    %v3629 = vld [vmem:[%s3618 + $0x50] sm:$0xff]
    %v3630 = vld [vmem:[%s3618 + $0x58] sm:$0xff]
    %v3631 = vld [vmem:[%s3618 + $0x60] sm:$0xff]
    %v3632 = vld [vmem:[%s3618 + $0x68] sm:$0xff]
    %v3633 = vld [vmem:[%s3618 + $0x70] sm:$0xff]
    %v3634 = vld [vmem:[%s3618 + $0x78] sm:$0xff]
    %v3635 = vld [vmem:[%s3618 + $0x80] sm:$0xff]
    %v3636 = vld [vmem:[%s3618 + $0x88] sm:$0xff]
    %v3637 = vld [vmem:[%s3618 + $0x90] sm:$0xff]
    %v3638 = vld [vmem:[%s3618 + $0x98] sm:$0xff]
    %v3639 = vld [vmem:[%s3618 + $0xa0] sm:$0xff]
    %v3640 = vld [vmem:[%s3618 + $0xa8] sm:$0xff]
    %v3641 = vld [vmem:[%s3618 + $0xb0] sm:$0xff]
    %v3642 = vld [vmem:[%s3618 + $0xb8] sm:$0xff]
    %v3643 = vld [vmem:[%s3618 + $0xc0] sm:$0xff]
    %v3644 = vld [vmem:[%s3618 + $0xc8] sm:$0xff]
    %v3645 = vld [vmem:[%s3618 + $0xd0] sm:$0xff]
    %v3646 = vld [vmem:[%s3618 + $0xd8] sm:$0xff]
    %v3647 = vld [vmem:[%s3618 + $0xe0] sm:$0xff]
    %v3648 = vld [vmem:[%s3618 + $0xe8] sm:$0xff]
    %v3649 = vld [vmem:[%s3618 + $0xf0] sm:$0xff]
    %v3650 = vld [vmem:[%s3618 + $0xf8] sm:$0xff]
    %s3651 = scalar_lea.vmem %s35, 2
    %v3652 = vld [vmem:[%s3651] sm:$0x1]
    %v3654 = vlaneseq
    %v3655 = vshrl.u32 %v3654, 7
    %v3656 = vsub.s32 0, %v3655
    %v3657 = vrot.slane %v3652, %v3656
    %3659 = vmatprep.subr.mxu0 0.0
    %3660 = vmatpush1.msra.mxu0 %v3619
    %3661 = vmatprep.subr.mxu0 0.0
    %3662 = vmatpush1.msra.mxu0 %v3620
    %3663 = vmatprep.subr.mxu0 0.0
    %3664 = vmatpush1.msra.mxu0 %v3621
    %3665 = vmatprep.subr.mxu0 0.0
    %3666 = vmatpush1.msra.mxu0 %v3622
    %3667 = vmatprep.subr.mxu0 0.0
    %3668 = vmatpush1.msra.mxu0 %v3623
    %3669 = vmatprep.subr.mxu0 0.0
    %3670 = vmatpush1.msra.mxu0 %v3624
    %3671 = vmatprep.subr.mxu0 0.0
    %3672 = vmatpush1.msra.mxu0 %v3625
    %3673 = vmatprep.subr.mxu0 0.0
    %3674 = vmatpush1.msra.mxu0 %v3626
    %3675 = vmatprep.subr.mxu0 0.0
    %3676 = vmatpush1.msra.mxu0 %v3627
    %3677 = vmatprep.subr.mxu0 0.0
    %3678 = vmatpush1.msra.mxu0 %v3628
    %3679 = vmatprep.subr.mxu0 0.0
    %3680 = vmatpush1.msra.mxu0 %v3629
    %3681 = vmatprep.subr.mxu0 0.0
    %3682 = vmatpush1.msra.mxu0 %v3630
    %3683 = vmatprep.subr.mxu0 0.0
    %3684 = vmatpush1.msra.mxu0 %v3631
    %3685 = vmatprep.subr.mxu0 0.0
    %3686 = vmatpush1.msra.mxu0 %v3632
    %3687 = vmatprep.subr.mxu0 0.0
    %3688 = vmatpush1.msra.mxu0 %v3633
    %3689 = vmatprep.subr.mxu0 0.0
    %3690 = vmatpush1.msra.mxu0 %v3634
    %3691 = vmatprep.subr.mxu0 0.0
    %3692 = vmatpush1.msra.mxu0 %v3635
    %3693 = vmatprep.subr.mxu0 0.0
    %3694 = vmatpush1.msra.mxu0 %v3636
    %3695 = vmatprep.subr.mxu0 0.0
    %3696 = vmatpush1.msra.mxu0 %v3637
    %3697 = vmatprep.subr.mxu0 0.0
    %3698 = vmatpush1.msra.mxu0 %v3638
    %3699 = vmatprep.subr.mxu0 0.0
    %3700 = vmatpush1.msra.mxu0 %v3639
    %3701 = vmatprep.subr.mxu0 0.0
    %3702 = vmatpush1.msra.mxu0 %v3640
    %3703 = vmatprep.subr.mxu0 0.0
    %3704 = vmatpush1.msra.mxu0 %v3641
    %3705 = vmatprep.subr.mxu0 0.0
    %3706 = vmatpush1.msra.mxu0 %v3642
    %3707 = vmatprep.subr.mxu0 0.0
    %3708 = vmatpush1.msra.mxu0 %v3643
    %3709 = vmatprep.subr.mxu0 0.0
    %3710 = vmatpush1.msra.mxu0 %v3644
    %3711 = vmatprep.subr.mxu0 0.0
    %3712 = vmatpush1.msra.mxu0 %v3645
    %3713 = vmatprep.subr.mxu0 0.0
    %3714 = vmatpush1.msra.mxu0 %v3646
    %3715 = vmatprep.subr.mxu0 0.0
    %3716 = vmatpush1.msra.mxu0 %v3647
    %3717 = vmatprep.subr.mxu0 0.0
    %3718 = vmatpush1.msra.mxu0 %v3648
    %3719 = vmatprep.subr.mxu0 0.0
    %3720 = vmatpush1.msra.mxu0 %v3649
    %3721 = vmatprep.subr.mxu0 0.0
    %3722 = vmatpush1.msra.mxu0 %v3650
    %3723 = vmatprep.mubr.f32.mxu0 %v3615
    %3724 = vmatmul.mubr.f32.gmra.mrb[0].mxu0 %v3614
    %v3725 = vpop.f32.mrb[0].mxu0
    %v3726 = vadd.f32 %v3657, %v3725
    %v3727 = vpop.f32.mrb[0].mxu0
    %3728 = vmatprep.mubr.f32.mxu0 %v3617
    %3729 = vmatmul.mubr.f32.gmra.mrb[0].mxu0 %v3616
    %v3730 = vpop.f32.mrb[0].mxu0
    %v3731 = vadd.f32 %v3657, %v3730
    %v3732 = vpop.f32.mrb[0].mxu0
    %3733 = vdwg.mxu0
    %v3734 = vadd.f32 %v3499, %v3726
    %v3735 = vadd.f32 %v3500, %v3731
    %s3736 = scalar_lea.vmem %s37, 2
    %v3737 = vld [vmem:[%s3736] sm:$0x1]
    %s3738 = scalar_lea.vmem %s39, 2
    %v3739 = vld [vmem:[%s3738] sm:$0x1]
    %v3740 = vsel %vm231, %v3734, 0.0
    %3741 = vadd.xlane.f32.xlu0 %v3740
    %v3742 = vpop.xlane.xlu0 %3741
    %v3743 = vsel %vm231, %v3735, 0.0
    %3744 = vadd.xlane.f32.xlu0 %v3743
    %v3745 = vpop.xlane.xlu0 %3744
    %v3746 = vmul.f32 %v3742, %v1262
    %v3747 = vmul.f32 %v3745, %v1262
    %v3748 = vsub.f32 %v3734, %v3746
    %v3749 = vsub.f32 %v3735, %v3747
    %v3750 = vmul.f32 %v3748, %v3748
    %v3751 = vmul.f32 %v3749, %v3749
    %v3752 = vsel %vm231, %v3750, 0.0
    %3753 = vadd.xlane.f32.xlu0 %v3752
    %v3754 = vpop.xlane.xlu0 %3753
    %v3755 = vsel %vm231, %v3751, 0.0
    %3756 = vadd.xlane.f32.xlu0 %v3755
    %v3757 = vpop.xlane.xlu0 %3756
    %v3758 = vmul.f32 %v3754, %v1262
    %v3759 = vmul.f32 %v3757, %v1262
    %v3760 = vadd.f32 %v3758, 1e-05
    %v3761 = vadd.f32 %v3759, 1e-05
    %v3762 = vrsqrt.pop %v3760
    %v3763 = vrsqrt.pop %v3761
    %v3764 = vmul.f32 %v3748, %v3762
    %v3765 = vmul.f32 %v3749, %v3763
    %v3767 = vlaneseq
    %v3768 = vshrl.u32 %v3767, 7
    %v3769 = vsub.s32 0, %v3768
    %v3770 = vrot.slane %v3737, %v3769
    %v3772 = vmul.f32 %v3764, %v3770
    %v3773 = vmul.f32 %v3765, %v3770
    %v3775 = vlaneseq
    %v3776 = vshrl.u32 %v3775, 7
    %v3777 = vsub.s32 0, %v3776
    %v3778 = vrot.slane %v3739, %v3777
    %v3780 = vadd.f32 %v3772, %v3778
    %v3781 = vadd.f32 %v3773, %v3778
    %s3782 = scalar_lea.vmem %s9, 192
    %v3783 = vld [vmem:[%s3782] sm:$0xff]
    %v3784 = vld [vmem:[%s3782 + $0x8] sm:$0xff]
    %v3785 = vld [vmem:[%s3782 + $0x10] sm:$0xff]
    %v3786 = vld [vmem:[%s3782 + $0x18] sm:$0xff]
    %v3787 = vld [vmem:[%s3782 + $0x20] sm:$0xff]
    %v3788 = vld [vmem:[%s3782 + $0x28] sm:$0xff]
    %v3789 = vld [vmem:[%s3782 + $0x30] sm:$0xff]
    %v3790 = vld [vmem:[%s3782 + $0x38] sm:$0xff]
    %s3791 = scalar_lea.vmem %s11, 3
    %v3792 = vld [vmem:[%s3791] sm:$0x1]
    %v3794 = vlaneseq
    %v3795 = vshrl.u32 %v3794, 7
    %v3796 = vsub.s32 0, %v3795
    %v3797 = vrot.slane %v3792, %v3796
    %v3800 = vsel %vm231, %v3780, 0
    %v3803 = vsel %vm231, %v3781, 0
    %3805 = vmatprep.subr.mxu0 0.0
    %3806 = vmatpush1.msra.mxu0 %v3783
    %3807 = vmatprep.subr.mxu0 0.0
    %3808 = vmatpush1.msra.mxu0 %v3784
    %3809 = vmatprep.subr.mxu0 0.0
    %3810 = vmatpush1.msra.mxu0 %v3785
    %3811 = vmatprep.subr.mxu0 0.0
    %3812 = vmatpush1.msra.mxu0 %v3786
    %3813 = vmatprep.subr.mxu0 0.0
    %3814 = vmatpush1.msra.mxu0 %v3787
    %3815 = vmatprep.subr.mxu0 0.0
    %3816 = vmatpush1.msra.mxu0 %v3788
    %3817 = vmatprep.subr.mxu0 0.0
    %3818 = vmatpush1.msra.mxu0 %v3789
    %3819 = vmatprep.subr.mxu0 0.0
    %3820 = vmatpush1.msra.mxu0 %v3790
    %3821 = vmatprep.subr.mxu0 0.0
    %3822 = vmatpush1.msra.mxu0 0.0
    %3823 = vmatprep.subr.mxu0 0.0
    %3824 = vmatpush1.msra.mxu0 0.0
    %3825 = vmatprep.subr.mxu0 0.0
    %3826 = vmatpush1.msra.mxu0 0.0
    %3827 = vmatprep.subr.mxu0 0.0
    %3828 = vmatpush1.msra.mxu0 0.0
    %3829 = vmatprep.subr.mxu0 0.0
    %3830 = vmatpush1.msra.mxu0 0.0
    %3831 = vmatprep.subr.mxu0 0.0
    %3832 = vmatpush1.msra.mxu0 0.0
    %3833 = vmatprep.subr.mxu0 0.0
    %3834 = vmatpush1.msra.mxu0 0.0
    %3835 = vmatprep.subr.mxu0 0.0
    %3836 = vmatpush1.msra.mxu0 0.0
    %3837 = vmatprep.subr.mxu0 0.0
    %3838 = vmatpush1.msra.mxu0 0.0
    %3839 = vmatprep.subr.mxu0 0.0
    %3840 = vmatpush1.msra.mxu0 0.0
    %3841 = vmatprep.subr.mxu0 0.0
    %3842 = vmatpush1.msra.mxu0 0.0
    %3843 = vmatprep.subr.mxu0 0.0
    %3844 = vmatpush1.msra.mxu0 0.0
    %3845 = vmatprep.subr.mxu0 0.0
    %3846 = vmatpush1.msra.mxu0 0.0
    %3847 = vmatprep.subr.mxu0 0.0
    %3848 = vmatpush1.msra.mxu0 0.0
    %3849 = vmatprep.subr.mxu0 0.0
    %3850 = vmatpush1.msra.mxu0 0.0
    %3851 = vmatprep.subr.mxu0 0.0
    %3852 = vmatpush1.msra.mxu0 0.0
    %3853 = vmatprep.subr.mxu0 0.0
    %3854 = vmatpush1.msra.mxu0 0.0
    %3855 = vmatprep.subr.mxu0 0.0
    %3856 = vmatpush1.msra.mxu0 0.0
    %3857 = vmatprep.subr.mxu0 0.0
    %3858 = vmatpush1.msra.mxu0 0.0
    %3859 = vmatprep.subr.mxu0 0.0
    %3860 = vmatpush1.msra.mxu0 0.0
    %3861 = vmatprep.subr.mxu0 0.0
    %3862 = vmatpush1.msra.mxu0 0.0
    %3863 = vmatprep.subr.mxu0 0.0
    %3864 = vmatpush1.msra.mxu0 0.0
    %3865 = vmatprep.subr.mxu0 0.0
    %3866 = vmatpush1.msra.mxu0 0.0
    %3867 = vmatprep.subr.mxu0 0.0
    %3868 = vmatpush1.msra.mxu0 0.0
    %3869 = vmatprep.mubr.f32.mxu0 0.0
    %3870 = vmatmul.mubr.f32.gmra.mrb[0].mxu0 %v3800
    %v3871 = vpop.f32.mrb[0].mxu0
    %v3872 = vadd.f32 %v3797, %v3871
    %v3873 = vpop.f32.mrb[0].mxu0
    %3874 = vmatprep.mubr.f32.mxu0 0.0
    %3875 = vmatmul.mubr.f32.gmra.mrb[0].mxu0 %v3803
    %v3876 = vpop.f32.mrb[0].mxu0
    %v3877 = vadd.f32 %v3797, %v3876
    %v3878 = vpop.f32.mrb[0].mxu0
    %3879 = vdwg.mxu0
    %s3880 = scalar_lea.vmem %s13, 192
    %v3881 = vld [vmem:[%s3880] sm:$0xff]
    %v3882 = vld [vmem:[%s3880 + $0x8] sm:$0xff]
    %v3883 = vld [vmem:[%s3880 + $0x10] sm:$0xff]
    %v3884 = vld [vmem:[%s3880 + $0x18] sm:$0xff]
    %v3885 = vld [vmem:[%s3880 + $0x20] sm:$0xff]
    %v3886 = vld [vmem:[%s3880 + $0x28] sm:$0xff]
    %v3887 = vld [vmem:[%s3880 + $0x30] sm:$0xff]
    %v3888 = vld [vmem:[%s3880 + $0x38] sm:$0xff]
    %s3889 = scalar_lea.vmem %s15, 3
    %v3890 = vld [vmem:[%s3889] sm:$0x1]
    %v3892 = vlaneseq
    %v3893 = vshrl.u32 %v3892, 7
    %v3894 = vsub.s32 0, %v3893
    %v3895 = vrot.slane %v3890, %v3894
    %3897 = vmatprep.subr.mxu0 0.0
    %3898 = vmatpush1.msra.mxu0 %v3881
    %3899 = vmatprep.subr.mxu0 0.0
    %3900 = vmatpush1.msra.mxu0 %v3882
    %3901 = vmatprep.subr.mxu0 0.0
    %3902 = vmatpush1.msra.mxu0 %v3883
    %3903 = vmatprep.subr.mxu0 0.0
    %3904 = vmatpush1.msra.mxu0 %v3884
    %3905 = vmatprep.subr.mxu0 0.0
    %3906 = vmatpush1.msra.mxu0 %v3885
    %3907 = vmatprep.subr.mxu0 0.0
    %3908 = vmatpush1.msra.mxu0 %v3886
    %3909 = vmatprep.subr.mxu0 0.0
    %3910 = vmatpush1.msra.mxu0 %v3887
    %3911 = vmatprep.subr.mxu0 0.0
    %3912 = vmatpush1.msra.mxu0 %v3888
    %3913 = vmatprep.subr.mxu0 0.0
    %3914 = vmatpush1.msra.mxu0 0.0
    %3915 = vmatprep.subr.mxu0 0.0
    %3916 = vmatpush1.msra.mxu0 0.0
    %3917 = vmatprep.subr.mxu0 0.0
    %3918 = vmatpush1.msra.mxu0 0.0
    %3919 = vmatprep.subr.mxu0 0.0
    %3920 = vmatpush1.msra.mxu0 0.0
    %3921 = vmatprep.subr.mxu0 0.0
    %3922 = vmatpush1.msra.mxu0 0.0
    %3923 = vmatprep.subr.mxu0 0.0
    %3924 = vmatpush1.msra.mxu0 0.0
    %3925 = vmatprep.subr.mxu0 0.0
    %3926 = vmatpush1.msra.mxu0 0.0
    %3927 = vmatprep.subr.mxu0 0.0
    %3928 = vmatpush1.msra.mxu0 0.0
    %3929 = vmatprep.subr.mxu0 0.0
    %3930 = vmatpush1.msra.mxu0 0.0
    %3931 = vmatprep.subr.mxu0 0.0
    %3932 = vmatpush1.msra.mxu0 0.0
    %3933 = vmatprep.subr.mxu0 0.0
    %3934 = vmatpush1.msra.mxu0 0.0
    %3935 = vmatprep.subr.mxu0 0.0
    %3936 = vmatpush1.msra.mxu0 0.0
    %3937 = vmatprep.subr.mxu0 0.0
    %3938 = vmatpush1.msra.mxu0 0.0
    %3939 = vmatprep.subr.mxu0 0.0
    %3940 = vmatpush1.msra.mxu0 0.0
    %3941 = vmatprep.subr.mxu0 0.0
    %3942 = vmatpush1.msra.mxu0 0.0
    %3943 = vmatprep.subr.mxu0 0.0
    %3944 = vmatpush1.msra.mxu0 0.0
    %3945 = vmatprep.subr.mxu0 0.0
    %3946 = vmatpush1.msra.mxu0 0.0
    %3947 = vmatprep.subr.mxu0 0.0
    %3948 = vmatpush1.msra.mxu0 0.0
    %3949 = vmatprep.subr.mxu0 0.0
    %3950 = vmatpush1.msra.mxu0 0.0
    %3951 = vmatprep.subr.mxu0 0.0
    %3952 = vmatpush1.msra.mxu0 0.0
    %3953 = vmatprep.subr.mxu0 0.0
    %3954 = vmatpush1.msra.mxu0 0.0
    %3955 = vmatprep.subr.mxu0 0.0
    %3956 = vmatpush1.msra.mxu0 0.0
    %3957 = vmatprep.subr.mxu0 0.0
    %3958 = vmatpush1.msra.mxu0 0.0
    %3959 = vmatprep.subr.mxu0 0.0
    %3960 = vmatpush1.msra.mxu0 0.0
    %3961 = vmatprep.mubr.f32.mxu0 0.0
    %3962 = vmatmul.mubr.f32.gmra.mrb[0].mxu0 %v3800
    %v3963 = vpop.f32.mrb[0].mxu0
    %v3964 = vadd.f32 %v3895, %v3963
    %v3965 = vpop.f32.mrb[0].mxu0
    %3966 = vmatprep.mubr.f32.mxu0 0.0
    %3967 = vmatmul.mubr.f32.gmra.mrb[0].mxu0 %v3803
    %v3968 = vpop.f32.mrb[0].mxu0
    %v3969 = vadd.f32 %v3895, %v3968
    %v3970 = vpop.f32.mrb[0].mxu0
    %3971 = vdwg.mxu0
    %s3972 = scalar_lea.vmem %s17, 192
    %v3973 = vld [vmem:[%s3972] sm:$0xff]
    %v3974 = vld [vmem:[%s3972 + $0x8] sm:$0xff]
    %v3975 = vld [vmem:[%s3972 + $0x10] sm:$0xff]
    %v3976 = vld [vmem:[%s3972 + $0x18] sm:$0xff]
    %v3977 = vld [vmem:[%s3972 + $0x20] sm:$0xff]
    %v3978 = vld [vmem:[%s3972 + $0x28] sm:$0xff]
    %v3979 = vld [vmem:[%s3972 + $0x30] sm:$0xff]
    %v3980 = vld [vmem:[%s3972 + $0x38] sm:$0xff]
    %s3981 = scalar_lea.vmem %s19, 3
    %v3982 = vld [vmem:[%s3981] sm:$0x1]
    %v3984 = vlaneseq
    %v3985 = vshrl.u32 %v3984, 7
    %v3986 = vsub.s32 0, %v3985
    %v3987 = vrot.slane %v3982, %v3986
    %3989 = vmatprep.subr.mxu0 0.0
    %3990 = vmatpush1.msra.mxu0 %v3973
    %3991 = vmatprep.subr.mxu0 0.0
    %3992 = vmatpush1.msra.mxu0 %v3974
    %3993 = vmatprep.subr.mxu0 0.0
    %3994 = vmatpush1.msra.mxu0 %v3975
    %3995 = vmatprep.subr.mxu0 0.0
    %3996 = vmatpush1.msra.mxu0 %v3976
    %3997 = vmatprep.subr.mxu0 0.0
    %3998 = vmatpush1.msra.mxu0 %v3977
    %3999 = vmatprep.subr.mxu0 0.0
    %4000 = vmatpush1.msra.mxu0 %v3978
    %4001 = vmatprep.subr.mxu0 0.0
    %4002 = vmatpush1.msra.mxu0 %v3979
    %4003 = vmatprep.subr.mxu0 0.0
    %4004 = vmatpush1.msra.mxu0 %v3980
    %4005 = vmatprep.subr.mxu0 0.0
    %4006 = vmatpush1.msra.mxu0 0.0
    %4007 = vmatprep.subr.mxu0 0.0
    %4008 = vmatpush1.msra.mxu0 0.0
    %4009 = vmatprep.subr.mxu0 0.0
    %4010 = vmatpush1.msra.mxu0 0.0
    %4011 = vmatprep.subr.mxu0 0.0
    %4012 = vmatpush1.msra.mxu0 0.0
    %4013 = vmatprep.subr.mxu0 0.0
    %4014 = vmatpush1.msra.mxu0 0.0
    %4015 = vmatprep.subr.mxu0 0.0
    %4016 = vmatpush1.msra.mxu0 0.0
    %4017 = vmatprep.subr.mxu0 0.0
    %4018 = vmatpush1.msra.mxu0 0.0
    %4019 = vmatprep.subr.mxu0 0.0
    %4020 = vmatpush1.msra.mxu0 0.0
    %4021 = vmatprep.subr.mxu0 0.0
    %4022 = vmatpush1.msra.mxu0 0.0
    %4023 = vmatprep.subr.mxu0 0.0
    %4024 = vmatpush1.msra.mxu0 0.0
    %4025 = vmatprep.subr.mxu0 0.0
    %4026 = vmatpush1.msra.mxu0 0.0
    %4027 = vmatprep.subr.mxu0 0.0
    %4028 = vmatpush1.msra.mxu0 0.0
    %4029 = vmatprep.subr.mxu0 0.0
    %4030 = vmatpush1.msra.mxu0 0.0
    %4031 = vmatprep.subr.mxu0 0.0
    %4032 = vmatpush1.msra.mxu0 0.0
    %4033 = vmatprep.subr.mxu0 0.0
    %4034 = vmatpush1.msra.mxu0 0.0
    %4035 = vmatprep.subr.mxu0 0.0
    %4036 = vmatpush1.msra.mxu0 0.0
    %4037 = vmatprep.subr.mxu0 0.0
    %4038 = vmatpush1.msra.mxu0 0.0
    %4039 = vmatprep.subr.mxu0 0.0
    %4040 = vmatpush1.msra.mxu0 0.0
    %4041 = vmatprep.subr.mxu0 0.0
    %4042 = vmatpush1.msra.mxu0 0.0
    %4043 = vmatprep.subr.mxu0 0.0
    %4044 = vmatpush1.msra.mxu0 0.0
    %4045 = vmatprep.subr.mxu0 0.0
    %4046 = vmatpush1.msra.mxu0 0.0
    %4047 = vmatprep.subr.mxu0 0.0
    %4048 = vmatpush1.msra.mxu0 0.0
    %4049 = vmatprep.subr.mxu0 0.0
    %4050 = vmatpush1.msra.mxu0 0.0
    %4051 = vmatprep.subr.mxu0 0.0
    %4052 = vmatpush1.msra.mxu0 0.0
    %4053 = vmatprep.mubr.f32.mxu0 0.0
    %4054 = vmatmul.mubr.f32.gmra.mrb[0].mxu0 %v3800
    %v4055 = vpop.f32.mrb[0].mxu0
    %v4056 = vadd.f32 %v3987, %v4055
    %v4057 = vpop.f32.mrb[0].mxu0
    %4058 = vmatprep.mubr.f32.mxu0 0.0
    %4059 = vmatmul.mubr.f32.gmra.mrb[0].mxu0 %v3803
    %v4060 = vpop.f32.mrb[0].mxu0
    %v4061 = vadd.f32 %v3987, %v4060
    %v4062 = vpop.f32.mrb[0].mxu0
    %4063 = vdwg.mxu0
    %v4064 = vmul.f32 %v3872, %v200
    %v4065 = vmul.f32 %v3877, %v201
    %v4066 = vmul.f32 %v3872, %v202
    %v4067 = vmul.f32 %v3877, %v203
    %v4068 = vmul.f32 %v3872, %v204
    %v4069 = vmul.f32 %v3877, %v205
    %v4070 = vmul.f32 %v3872, %v206
    %v4071 = vmul.f32 %v3877, %v207
    %v4073 = vsel %vm231, %v4064, 0
    %v4076 = vsel %vm231, %v4065, 0
    %v4079 = vsel %vm231, %v4066, 0
    %v4082 = vsel %vm231, %v4067, 0
    %v4085 = vsel %vm231, %v4068, 0
    %v4088 = vsel %vm231, %v4069, 0
    %v4091 = vsel %vm231, %v4070, 0
    %v4094 = vsel %vm231, %v4071, 0
    %v4097 = vsel %vm231, %v3964, 0
    %v4100 = vsel %vm231, %v3969, 0
    %4102 = vmatprep.subr.mxu0 0.0
    %4103 = vmatpush1.xpose.msra.mxu0 %v4097
    %4104 = vmatprep.subr.mxu0 0.0
    %4105 = vmatpush1.xpose.msra.mxu0 %v4100
    %4106 = vmatprep.subr.mxu0 0.0
    %4107 = vmatpush1.xpose.msra.mxu0 0.0
    %4108 = vmatprep.subr.mxu0 0.0
    %4109 = vmatpush1.xpose.msra.mxu0 0.0
    %4110 = vmatprep.subr.mxu0 0.0
    %4111 = vmatpush1.xpose.msra.mxu0 0.0
    %4112 = vmatprep.subr.mxu0 0.0
    %4113 = vmatpush1.xpose.msra.mxu0 0.0
    %4114 = vmatprep.subr.mxu0 0.0
    %4115 = vmatpush1.xpose.msra.mxu0 0.0
    %4116 = vmatprep.subr.mxu0 0.0
    %4117 = vmatpush1.xpose.msra.mxu0 0.0
    %4118 = vmatprep.subr.mxu0 0.0
    %4119 = vmatpush1.xpose.msra.mxu0 0.0
    %4120 = vmatprep.subr.mxu0 0.0
    %4121 = vmatpush1.xpose.msra.mxu0 0.0
    %4122 = vmatprep.subr.mxu0 0.0
    %4123 = vmatpush1.xpose.msra.mxu0 0.0
    %4124 = vmatprep.subr.mxu0 0.0
    %4125 = vmatpush1.xpose.msra.mxu0 0.0
    %4126 = vmatprep.subr.mxu0 0.0
    %4127 = vmatpush1.xpose.msra.mxu0 0.0
    %4128 = vmatprep.subr.mxu0 0.0
    %4129 = vmatpush1.xpose.msra.mxu0 0.0
    %4130 = vmatprep.subr.mxu0 0.0
    %4131 = vmatpush1.xpose.msra.mxu0 0.0
    %4132 = vmatprep.subr.mxu0 0.0
    %4133 = vmatpush1.xpose.msra.mxu0 0.0
    %4134 = vmatprep.subr.mxu0 0.0
    %4135 = vmatpush1.xpose.msra.mxu0 0.0
    %4136 = vmatprep.subr.mxu0 0.0
    %4137 = vmatpush1.xpose.msra.mxu0 0.0
    %4138 = vmatprep.subr.mxu0 0.0
    %4139 = vmatpush1.xpose.msra.mxu0 0.0
    %4140 = vmatprep.subr.mxu0 0.0
    %4141 = vmatpush1.xpose.msra.mxu0 0.0
    %4142 = vmatprep.subr.mxu0 0.0
    %4143 = vmatpush1.xpose.msra.mxu0 0.0
    %4144 = vmatprep.subr.mxu0 0.0
    %4145 = vmatpush1.xpose.msra.mxu0 0.0
    %4146 = vmatprep.subr.mxu0 0.0
    %4147 = vmatpush1.xpose.msra.mxu0 0.0
    %4148 = vmatprep.subr.mxu0 0.0
    %4149 = vmatpush1.xpose.msra.mxu0 0.0
    %4150 = vmatprep.subr.mxu0 0.0
    %4151 = vmatpush1.xpose.msra.mxu0 0.0
    %4152 = vmatprep.subr.mxu0 0.0
    %4153 = vmatpush1.xpose.msra.mxu0 0.0
    %4154 = vmatprep.subr.mxu0 0.0
    %4155 = vmatpush1.xpose.msra.mxu0 0.0
    %4156 = vmatprep.subr.mxu0 0.0
    %4157 = vmatpush1.xpose.msra.mxu0 0.0
    %4158 = vmatprep.subr.mxu0 0.0
    %4159 = vmatpush1.xpose.msra.mxu0 0.0
    %4160 = vmatprep.subr.mxu0 0.0
    %4161 = vmatpush1.xpose.msra.mxu0 0.0
    %4162 = vmatprep.subr.mxu0 0.0
    %4163 = vmatpush1.xpose.msra.mxu0 0.0
    %4164 = vmatprep.subr.mxu0 0.0
    %4165 = vmatpush1.xpose.msra.mxu0 0.0
    %4166 = vmatprep.mubr.f32.mxu0 0.0
    %4167 = vmatmul.mubr.f32.gmra.mrb[0].mxu0 %v4073
    %v4168 = vpop.f32.mrb[0].mxu0
    %v4169 = vadd.f32 0.0, %v4168
    %v4170 = vpop.f32.mrb[0].mxu0
    %4171 = vmatprep.mubr.f32.mxu0 0.0
    %4172 = vmatmul.mubr.f32.gmra.mrb[0].mxu0 %v4076
    %v4173 = vpop.f32.mrb[0].mxu0
    %v4174 = vadd.f32 0.0, %v4173
    %v4175 = vpop.f32.mrb[0].mxu0
    %4176 = vmatprep.mubr.f32.mxu0 0.0
    %4177 = vmatmul.mubr.f32.gmra.mrb[0].mxu0 %v4079
    %v4178 = vpop.f32.mrb[0].mxu0
    %v4179 = vadd.f32 0.0, %v4178
    %v4180 = vpop.f32.mrb[0].mxu0
    %4181 = vmatprep.mubr.f32.mxu0 0.0
    %4182 = vmatmul.mubr.f32.gmra.mrb[0].mxu0 %v4082
    %v4183 = vpop.f32.mrb[0].mxu0
    %v4184 = vadd.f32 0.0, %v4183
    %v4185 = vpop.f32.mrb[0].mxu0
    %4186 = vmatprep.mubr.f32.mxu0 0.0
    %4187 = vmatmul.mubr.f32.gmra.mrb[0].mxu0 %v4085
    %v4188 = vpop.f32.mrb[0].mxu0
    %v4189 = vadd.f32 0.0, %v4188
    %v4190 = vpop.f32.mrb[0].mxu0
    %4191 = vmatprep.mubr.f32.mxu0 0.0
    %4192 = vmatmul.mubr.f32.gmra.mrb[0].mxu0 %v4088
    %v4193 = vpop.f32.mrb[0].mxu0
    %v4194 = vadd.f32 0.0, %v4193
    %v4195 = vpop.f32.mrb[0].mxu0
    %4196 = vmatprep.mubr.f32.mxu0 0.0
    %4197 = vmatmul.mubr.f32.gmra.mrb[0].mxu0 %v4091
    %v4198 = vpop.f32.mrb[0].mxu0
    %v4199 = vadd.f32 0.0, %v4198
    %v4200 = vpop.f32.mrb[0].mxu0
    %4201 = vmatprep.mubr.f32.mxu0 0.0
    %4202 = vmatmul.mubr.f32.gmra.mrb[0].mxu0 %v4094
    %v4203 = vpop.f32.mrb[0].mxu0
    %v4204 = vadd.f32 0.0, %v4203
    %v4205 = vpop.f32.mrb[0].mxu0
    %4206 = vdwg.mxu0
    %v4207 = vmul.f32 %v4169, 0.25
    %v4208 = vmul.f32 %v4174, 0.25
    %v4209 = vmul.f32 %v4179, 0.25
    %v4210 = vmul.f32 %v4184, 0.25
    %v4211 = vmul.f32 %v4189, 0.25
    %v4212 = vmul.f32 %v4194, 0.25
    %v4213 = vmul.f32 %v4199, 0.25
    %v4214 = vmul.f32 %v4204, 0.25
    %v4215 = vadd.f32 %v4207, %v208
    %v4216 = vadd.f32 %v4208, %v209
    %v4217 = vadd.f32 %v4209, %v210
    %v4218 = vadd.f32 %v4210, %v211
    %v4219 = vadd.f32 %v4211, %v212
    %v4220 = vadd.f32 %v4212, %v213
    %v4221 = vadd.f32 %v4213, %v214
    %v4222 = vadd.f32 %v4214, %v215
    %v4223 = vsel %vm740, %v4215, -inf
    %4224 = vmax.xlane.f32.xlu0 %v4223
    %v4225 = vpop.xlane.xlu0 %4224
    %v4226 = vsel %vm740, %v4216, -inf
    %4227 = vmax.xlane.f32.xlu0 %v4226
    %v4228 = vpop.xlane.xlu0 %4227
    %v4229 = vsel %vm740, %v4217, -inf
    %4230 = vmax.xlane.f32.xlu0 %v4229
    %v4231 = vpop.xlane.xlu0 %4230
    %v4232 = vsel %vm740, %v4218, -inf
    %4233 = vmax.xlane.f32.xlu0 %v4232
    %v4234 = vpop.xlane.xlu0 %4233
    %v4235 = vsel %vm740, %v4219, -inf
    %4236 = vmax.xlane.f32.xlu0 %v4235
    %v4237 = vpop.xlane.xlu0 %4236
    %v4238 = vsel %vm740, %v4220, -inf
    %4239 = vmax.xlane.f32.xlu0 %v4238
    %v4240 = vpop.xlane.xlu0 %4239
    %v4241 = vsel %vm740, %v4221, -inf
    %4242 = vmax.xlane.f32.xlu0 %v4241
    %v4243 = vpop.xlane.xlu0 %4242
    %v4244 = vsel %vm740, %v4222, -inf
    %4245 = vmax.xlane.f32.xlu0 %v4244
    %v4246 = vpop.xlane.xlu0 %4245
    %v4247 = vsub.f32 %v4215, %v4225
    %v4248 = vsub.f32 %v4216, %v4228
    %v4249 = vsub.f32 %v4217, %v4231
    %v4250 = vsub.f32 %v4218, %v4234
    %v4251 = vsub.f32 %v4219, %v4237
    %v4252 = vsub.f32 %v4220, %v4240
    %v4253 = vsub.f32 %v4221, %v4243
    %v4254 = vsub.f32 %v4222, %v4246
    %v4255 = vmul.f32 %v4247, 1.442695
    %v4256 = vpow.pop %v4255
    %v4257 = vmul.f32 %v4248, 1.442695
    %v4258 = vpow.pop %v4257
    %v4259 = vmul.f32 %v4249, 1.442695
    %v4260 = vpow.pop %v4259
    %v4261 = vmul.f32 %v4250, 1.442695
    %v4262 = vpow.pop %v4261
    %v4263 = vmul.f32 %v4251, 1.442695
    %v4264 = vpow.pop %v4263
    %v4265 = vmul.f32 %v4252, 1.442695
    %v4266 = vpow.pop %v4265
    %v4267 = vmul.f32 %v4253, 1.442695
    %v4268 = vpow.pop %v4267
    %v4269 = vmul.f32 %v4254, 1.442695
    %v4270 = vpow.pop %v4269
    %v4271 = vsel %vm740, %v4256, 0.0
    %4272 = vadd.xlane.f32.xlu0 %v4271
    %v4273 = vpop.xlane.xlu0 %4272
    %v4274 = vsel %vm740, %v4258, 0.0
    %4275 = vadd.xlane.f32.xlu0 %v4274
    %v4276 = vpop.xlane.xlu0 %4275
    %v4277 = vsel %vm740, %v4260, 0.0
    %4278 = vadd.xlane.f32.xlu0 %v4277
    %v4279 = vpop.xlane.xlu0 %4278
    %v4280 = vsel %vm740, %v4262, 0.0
    %4281 = vadd.xlane.f32.xlu0 %v4280
    %v4282 = vpop.xlane.xlu0 %4281
    %v4283 = vsel %vm740, %v4264, 0.0
    %4284 = vadd.xlane.f32.xlu0 %v4283
    %v4285 = vpop.xlane.xlu0 %4284
    %v4286 = vsel %vm740, %v4266, 0.0
    %4287 = vadd.xlane.f32.xlu0 %v4286
    %v4288 = vpop.xlane.xlu0 %4287
    %v4289 = vsel %vm740, %v4268, 0.0
    %4290 = vadd.xlane.f32.xlu0 %v4289
    %v4291 = vpop.xlane.xlu0 %4290
    %v4292 = vsel %vm740, %v4270, 0.0
    %4293 = vadd.xlane.f32.xlu0 %v4292
    %v4294 = vpop.xlane.xlu0 %4293
    %v4295 = vrcp.pop %v4273
    %v4296 = vrcp.pop %v4276
    %v4297 = vrcp.pop %v4279
    %v4298 = vrcp.pop %v4282
    %v4299 = vrcp.pop %v4285
    %v4300 = vrcp.pop %v4288
    %v4301 = vrcp.pop %v4291
    %v4302 = vrcp.pop %v4294
    %v4303 = vmul.f32 %v4256, %v4295
    %v4304 = vmul.f32 %v4258, %v4296
    %v4305 = vmul.f32 %v4260, %v4297
    %v4306 = vmul.f32 %v4262, %v4298
    %v4307 = vmul.f32 %v4264, %v4299
    %v4308 = vmul.f32 %v4266, %v4300
    %v4309 = vmul.f32 %v4268, %v4301
    %v4310 = vmul.f32 %v4270, %v4302
    %v4312 = vsel %vm740, %v4303, 0
    %v4315 = vsel %vm740, %v4304, 0
    %v4318 = vsel %vm740, %v4305, 0
    %v4321 = vsel %vm740, %v4306, 0
    %v4324 = vsel %vm740, %v4307, 0
    %v4327 = vsel %vm740, %v4308, 0
    %v4330 = vsel %vm740, %v4309, 0
    %v4333 = vsel %vm740, %v4310, 0
    %4335 = vmatprep.subr.mxu0 0.0
    %4336 = vmatpush1.msra.mxu0 %v4056
    %4337 = vmatprep.subr.mxu0 0.0
    %4338 = vmatpush1.msra.mxu0 %v4061
    %4339 = vmatprep.subr.mxu0 0.0
    %4340 = vmatpush1.msra.mxu0 0.0
    %4341 = vmatprep.subr.mxu0 0.0
    %4342 = vmatpush1.msra.mxu0 0.0
    %4343 = vmatprep.subr.mxu0 0.0
    %4344 = vmatpush1.msra.mxu0 0.0
    %4345 = vmatprep.subr.mxu0 0.0
    %4346 = vmatpush1.msra.mxu0 0.0
    %4347 = vmatprep.subr.mxu0 0.0
    %4348 = vmatpush1.msra.mxu0 0.0
    %4349 = vmatprep.subr.mxu0 0.0
    %4350 = vmatpush1.msra.mxu0 0.0
    %4351 = vmatprep.subr.mxu0 0.0
    %4352 = vmatpush1.msra.mxu0 0.0
    %4353 = vmatprep.subr.mxu0 0.0
    %4354 = vmatpush1.msra.mxu0 0.0
    %4355 = vmatprep.subr.mxu0 0.0
    %4356 = vmatpush1.msra.mxu0 0.0
    %4357 = vmatprep.subr.mxu0 0.0
    %4358 = vmatpush1.msra.mxu0 0.0
    %4359 = vmatprep.subr.mxu0 0.0
    %4360 = vmatpush1.msra.mxu0 0.0
    %4361 = vmatprep.subr.mxu0 0.0
    %4362 = vmatpush1.msra.mxu0 0.0
    %4363 = vmatprep.subr.mxu0 0.0
    %4364 = vmatpush1.msra.mxu0 0.0
    %4365 = vmatprep.subr.mxu0 0.0
    %4366 = vmatpush1.msra.mxu0 0.0
    %4367 = vmatprep.subr.mxu0 0.0
    %4368 = vmatpush1.msra.mxu0 0.0
    %4369 = vmatprep.subr.mxu0 0.0
    %4370 = vmatpush1.msra.mxu0 0.0
    %4371 = vmatprep.subr.mxu0 0.0
    %4372 = vmatpush1.msra.mxu0 0.0
    %4373 = vmatprep.subr.mxu0 0.0
    %4374 = vmatpush1.msra.mxu0 0.0
    %4375 = vmatprep.subr.mxu0 0.0
    %4376 = vmatpush1.msra.mxu0 0.0
    %4377 = vmatprep.subr.mxu0 0.0
    %4378 = vmatpush1.msra.mxu0 0.0
    %4379 = vmatprep.subr.mxu0 0.0
    %4380 = vmatpush1.msra.mxu0 0.0
    %4381 = vmatprep.subr.mxu0 0.0
    %4382 = vmatpush1.msra.mxu0 0.0
    %4383 = vmatprep.subr.mxu0 0.0
    %4384 = vmatpush1.msra.mxu0 0.0
    %4385 = vmatprep.subr.mxu0 0.0
    %4386 = vmatpush1.msra.mxu0 0.0
    %4387 = vmatprep.subr.mxu0 0.0
    %4388 = vmatpush1.msra.mxu0 0.0
    %4389 = vmatprep.subr.mxu0 0.0
    %4390 = vmatpush1.msra.mxu0 0.0
    %4391 = vmatprep.subr.mxu0 0.0
    %4392 = vmatpush1.msra.mxu0 0.0
    %4393 = vmatprep.subr.mxu0 0.0
    %4394 = vmatpush1.msra.mxu0 0.0
    %4395 = vmatprep.subr.mxu0 0.0
    %4396 = vmatpush1.msra.mxu0 0.0
    %4397 = vmatprep.subr.mxu0 0.0
    %4398 = vmatpush1.msra.mxu0 0.0
    %4399 = vmatprep.mubr.f32.mxu0 0.0
    %4400 = vmatmul.mubr.f32.gmra.mrb[0].mxu0 %v4312
    %v4401 = vpop.f32.mrb[0].mxu0
    %v4402 = vadd.f32 0.0, %v4401
    %v4403 = vpop.f32.mrb[0].mxu0
    %4404 = vmatprep.mubr.f32.mxu0 0.0
    %4405 = vmatmul.mubr.f32.gmra.mrb[0].mxu0 %v4315
    %v4406 = vpop.f32.mrb[0].mxu0
    %v4407 = vadd.f32 0.0, %v4406
    %v4408 = vpop.f32.mrb[0].mxu0
    %4409 = vmatprep.mubr.f32.mxu0 0.0
    %4410 = vmatmul.mubr.f32.gmra.mrb[0].mxu0 %v4318
    %v4411 = vpop.f32.mrb[0].mxu0
    %v4412 = vadd.f32 0.0, %v4411
    %v4413 = vpop.f32.mrb[0].mxu0
    %4414 = vmatprep.mubr.f32.mxu0 0.0
    %4415 = vmatmul.mubr.f32.gmra.mrb[0].mxu0 %v4321
    %v4416 = vpop.f32.mrb[0].mxu0
    %v4417 = vadd.f32 0.0, %v4416
    %v4418 = vpop.f32.mrb[0].mxu0
    %4419 = vmatprep.mubr.f32.mxu0 0.0
    %4420 = vmatmul.mubr.f32.gmra.mrb[0].mxu0 %v4324
    %v4421 = vpop.f32.mrb[0].mxu0
    %v4422 = vadd.f32 0.0, %v4421
    %v4423 = vpop.f32.mrb[0].mxu0
    %4424 = vmatprep.mubr.f32.mxu0 0.0
    %4425 = vmatmul.mubr.f32.gmra.mrb[0].mxu0 %v4327
    %v4426 = vpop.f32.mrb[0].mxu0
    %v4427 = vadd.f32 0.0, %v4426
    %v4428 = vpop.f32.mrb[0].mxu0
    %4429 = vmatprep.mubr.f32.mxu0 0.0
    %4430 = vmatmul.mubr.f32.gmra.mrb[0].mxu0 %v4330
    %v4431 = vpop.f32.mrb[0].mxu0
    %v4432 = vadd.f32 0.0, %v4431
    %v4433 = vpop.f32.mrb[0].mxu0
    %4434 = vmatprep.mubr.f32.mxu0 0.0
    %4435 = vmatmul.mubr.f32.gmra.mrb[0].mxu0 %v4333
    %v4436 = vpop.f32.mrb[0].mxu0
    %v4437 = vadd.f32 0.0, %v4436
    %v4438 = vpop.f32.mrb[0].mxu0
    %4439 = vdwg.mxu0
    %v4440 = vmul.f32 %v4402, %v200
    %v4441 = vmul.f32 %v4407, %v201
    %v4442 = vmul.f32 %v4412, %v202
    %v4443 = vmul.f32 %v4417, %v203
    %v4444 = vmul.f32 %v4422, %v204
    %v4445 = vmul.f32 %v4427, %v205
    %v4446 = vmul.f32 %v4432, %v206
    %v4447 = vmul.f32 %v4437, %v207
    %v4448 = vsel %vm231, %v4440, 0.0
    %v4449 = vsel %vm231, %v4442, 0.0
    %v4450 = vadd.f32 %v4448, %v4449
    %v4451 = vsel %vm231, %v4444, 0.0
    %v4452 = vadd.f32 %v4450, %v4451
    %v4453 = vsel %vm231, %v4446, 0.0
    %v4454 = vadd.f32 %v4452, %v4453
    %v4455 = vsel %vm231, %v4441, 0.0
    %v4456 = vsel %vm231, %v4443, 0.0
    %v4457 = vadd.f32 %v4455, %v4456
    %v4458 = vsel %vm231, %v4445, 0.0
    %v4459 = vadd.f32 %v4457, %v4458
    %v4460 = vsel %vm231, %v4447, 0.0
    %v4461 = vadd.f32 %v4459, %v4460
    %s4462 = scalar_lea.vmem %s21, 192
    %v4463 = vld [vmem:[%s4462] sm:$0xff]
    %v4464 = vld [vmem:[%s4462 + $0x8] sm:$0xff]
    %v4465 = vld [vmem:[%s4462 + $0x10] sm:$0xff]
    %v4466 = vld [vmem:[%s4462 + $0x18] sm:$0xff]
    %v4467 = vld [vmem:[%s4462 + $0x20] sm:$0xff]
    %v4468 = vld [vmem:[%s4462 + $0x28] sm:$0xff]
    %v4469 = vld [vmem:[%s4462 + $0x30] sm:$0xff]
    %v4470 = vld [vmem:[%s4462 + $0x38] sm:$0xff]
    %s4471 = scalar_lea.vmem %s23, 3
    %v4472 = vld [vmem:[%s4471] sm:$0x1]
    %v4474 = vlaneseq
    %v4475 = vshrl.u32 %v4474, 7
    %v4476 = vsub.s32 0, %v4475
    %v4477 = vrot.slane %v4472, %v4476
    %v4480 = vsel %vm231, %v4454, 0
    %v4483 = vsel %vm231, %v4461, 0
    %4485 = vmatprep.subr.mxu0 0.0
    %4486 = vmatpush1.msra.mxu0 %v4463
    %4487 = vmatprep.subr.mxu0 0.0
    %4488 = vmatpush1.msra.mxu0 %v4464
    %4489 = vmatprep.subr.mxu0 0.0
    %4490 = vmatpush1.msra.mxu0 %v4465
    %4491 = vmatprep.subr.mxu0 0.0
    %4492 = vmatpush1.msra.mxu0 %v4466
    %4493 = vmatprep.subr.mxu0 0.0
    %4494 = vmatpush1.msra.mxu0 %v4467
    %4495 = vmatprep.subr.mxu0 0.0
    %4496 = vmatpush1.msra.mxu0 %v4468
    %4497 = vmatprep.subr.mxu0 0.0
    %4498 = vmatpush1.msra.mxu0 %v4469
    %4499 = vmatprep.subr.mxu0 0.0
    %4500 = vmatpush1.msra.mxu0 %v4470
    %4501 = vmatprep.subr.mxu0 0.0
    %4502 = vmatpush1.msra.mxu0 0.0
    %4503 = vmatprep.subr.mxu0 0.0
    %4504 = vmatpush1.msra.mxu0 0.0
    %4505 = vmatprep.subr.mxu0 0.0
    %4506 = vmatpush1.msra.mxu0 0.0
    %4507 = vmatprep.subr.mxu0 0.0
    %4508 = vmatpush1.msra.mxu0 0.0
    %4509 = vmatprep.subr.mxu0 0.0
    %4510 = vmatpush1.msra.mxu0 0.0
    %4511 = vmatprep.subr.mxu0 0.0
    %4512 = vmatpush1.msra.mxu0 0.0
    %4513 = vmatprep.subr.mxu0 0.0
    %4514 = vmatpush1.msra.mxu0 0.0
    %4515 = vmatprep.subr.mxu0 0.0
    %4516 = vmatpush1.msra.mxu0 0.0
    %4517 = vmatprep.subr.mxu0 0.0
    %4518 = vmatpush1.msra.mxu0 0.0
    %4519 = vmatprep.subr.mxu0 0.0
    %4520 = vmatpush1.msra.mxu0 0.0
    %4521 = vmatprep.subr.mxu0 0.0
    %4522 = vmatpush1.msra.mxu0 0.0
    %4523 = vmatprep.subr.mxu0 0.0
    %4524 = vmatpush1.msra.mxu0 0.0
    %4525 = vmatprep.subr.mxu0 0.0
    %4526 = vmatpush1.msra.mxu0 0.0
    %4527 = vmatprep.subr.mxu0 0.0
    %4528 = vmatpush1.msra.mxu0 0.0
    %4529 = vmatprep.subr.mxu0 0.0
    %4530 = vmatpush1.msra.mxu0 0.0
    %4531 = vmatprep.subr.mxu0 0.0
    %4532 = vmatpush1.msra.mxu0 0.0
    %4533 = vmatprep.subr.mxu0 0.0
    %4534 = vmatpush1.msra.mxu0 0.0
    %4535 = vmatprep.subr.mxu0 0.0
    %4536 = vmatpush1.msra.mxu0 0.0
    %4537 = vmatprep.subr.mxu0 0.0
    %4538 = vmatpush1.msra.mxu0 0.0
    %4539 = vmatprep.subr.mxu0 0.0
    %4540 = vmatpush1.msra.mxu0 0.0
    %4541 = vmatprep.subr.mxu0 0.0
    %4542 = vmatpush1.msra.mxu0 0.0
    %4543 = vmatprep.subr.mxu0 0.0
    %4544 = vmatpush1.msra.mxu0 0.0
    %4545 = vmatprep.subr.mxu0 0.0
    %4546 = vmatpush1.msra.mxu0 0.0
    %4547 = vmatprep.subr.mxu0 0.0
    %4548 = vmatpush1.msra.mxu0 0.0
    %4549 = vmatprep.mubr.f32.mxu0 0.0
    %4550 = vmatmul.mubr.f32.gmra.mrb[0].mxu0 %v4480
    %v4551 = vpop.f32.mrb[0].mxu0
    %v4552 = vadd.f32 %v4477, %v4551
    %v4553 = vpop.f32.mrb[0].mxu0
    %4554 = vmatprep.mubr.f32.mxu0 0.0
    %4555 = vmatmul.mubr.f32.gmra.mrb[0].mxu0 %v4483
    %v4556 = vpop.f32.mrb[0].mxu0
    %v4557 = vadd.f32 %v4477, %v4556
    %v4558 = vpop.f32.mrb[0].mxu0
    %4559 = vdwg.mxu0
    %v4560 = vadd.f32 %v3780, %v4552
    %v4561 = vadd.f32 %v3781, %v4557
    %s4562 = scalar_lea.vmem %s25, 3
    %v4563 = vld [vmem:[%s4562] sm:$0x1]
    %s4564 = scalar_lea.vmem %s27, 3
    %v4565 = vld [vmem:[%s4564] sm:$0x1]
    %v4566 = vsel %vm231, %v4560, 0.0
    %4567 = vadd.xlane.f32.xlu0 %v4566
    %v4568 = vpop.xlane.xlu0 %4567
    %v4569 = vsel %vm231, %v4561, 0.0
    %4570 = vadd.xlane.f32.xlu0 %v4569
    %v4571 = vpop.xlane.xlu0 %4570
    %v4572 = vmul.f32 %v4568, %v1262
    %v4573 = vmul.f32 %v4571, %v1262
    %v4574 = vsub.f32 %v4560, %v4572
    %v4575 = vsub.f32 %v4561, %v4573
    %v4576 = vmul.f32 %v4574, %v4574
    %v4577 = vmul.f32 %v4575, %v4575
    %v4578 = vsel %vm231, %v4576, 0.0
    %4579 = vadd.xlane.f32.xlu0 %v4578
    %v4580 = vpop.xlane.xlu0 %4579
    %v4581 = vsel %vm231, %v4577, 0.0
    %4582 = vadd.xlane.f32.xlu0 %v4581
    %v4583 = vpop.xlane.xlu0 %4582
    %v4584 = vmul.f32 %v4580, %v1262
    %v4585 = vmul.f32 %v4583, %v1262
    %v4586 = vadd.f32 %v4584, 1e-05
    %v4587 = vadd.f32 %v4585, 1e-05
    %v4588 = vrsqrt.pop %v4586
    %v4589 = vrsqrt.pop %v4587
    %v4590 = vmul.f32 %v4574, %v4588
    %v4591 = vmul.f32 %v4575, %v4589
    %v4593 = vlaneseq
    %v4594 = vshrl.u32 %v4593, 7
    %v4595 = vsub.s32 0, %v4594
    %v4596 = vrot.slane %v4563, %v4595
    %v4598 = vmul.f32 %v4590, %v4596
    %v4599 = vmul.f32 %v4591, %v4596
    %v4601 = vlaneseq
    %v4602 = vshrl.u32 %v4601, 7
    %v4603 = vsub.s32 0, %v4602
    %v4604 = vrot.slane %v4565, %v4603
    %v4606 = vadd.f32 %v4598, %v4604
    %v4607 = vadd.f32 %v4599, %v4604
    %s4608 = scalar_lea.vmem %s29, 384
    %v4609 = vld [vmem:[%s4608] sm:$0xff]
    %v4610 = vld [vmem:[%s4608 + $0x8] sm:$0xff]
    %v4611 = vld [vmem:[%s4608 + $0x10] sm:$0xff]
    %v4612 = vld [vmem:[%s4608 + $0x18] sm:$0xff]
    %v4613 = vld [vmem:[%s4608 + $0x20] sm:$0xff]
    %v4614 = vld [vmem:[%s4608 + $0x28] sm:$0xff]
    %v4615 = vld [vmem:[%s4608 + $0x30] sm:$0xff]
    %v4616 = vld [vmem:[%s4608 + $0x38] sm:$0xff]
    %v4617 = vld [vmem:[%s4608 + $0x40] sm:$0xff]
    %v4618 = vld [vmem:[%s4608 + $0x48] sm:$0xff]
    %v4619 = vld [vmem:[%s4608 + $0x50] sm:$0xff]
    %v4620 = vld [vmem:[%s4608 + $0x58] sm:$0xff]
    %v4621 = vld [vmem:[%s4608 + $0x60] sm:$0xff]
    %v4622 = vld [vmem:[%s4608 + $0x68] sm:$0xff]
    %v4623 = vld [vmem:[%s4608 + $0x70] sm:$0xff]
    %v4624 = vld [vmem:[%s4608 + $0x78] sm:$0xff]
    %s4625 = scalar_lea.vmem %s31, 6
    %v4626 = vld [vmem:[%s4625] sm:$0x3]
    %v4628 = vlaneseq
    %v4629 = vshrl.u32 %v4628, 7
    %v4630 = vsub.s32 0, %v4629
    %v4631 = vrot.slane %v4626, %v4630
    %v4632 = vlaneseq
    %v4633 = vshrl.u32 %v4632, 7
    %v4634 = vsub.s32 1, %v4633
    %v4635 = vrot.slane %v4626, %v4634
    %v4639 = vsel %vm231, %v4606, 0
    %v4642 = vsel %vm231, %v4607, 0
    %4644 = vmatprep.subr.mxu0 %v4610
    %4645 = vmatpush1.msra.mxu0 %v4609
    %4646 = vmatprep.subr.mxu0 %v4612
    %4647 = vmatpush1.msra.mxu0 %v4611
    %4648 = vmatprep.subr.mxu0 %v4614
    %4649 = vmatpush1.msra.mxu0 %v4613
    %4650 = vmatprep.subr.mxu0 %v4616
    %4651 = vmatpush1.msra.mxu0 %v4615
    %4652 = vmatprep.subr.mxu0 %v4618
    %4653 = vmatpush1.msra.mxu0 %v4617
    %4654 = vmatprep.subr.mxu0 %v4620
    %4655 = vmatpush1.msra.mxu0 %v4619
    %4656 = vmatprep.subr.mxu0 %v4622
    %4657 = vmatpush1.msra.mxu0 %v4621
    %4658 = vmatprep.subr.mxu0 %v4624
    %4659 = vmatpush1.msra.mxu0 %v4623
    %4660 = vmatprep.subr.mxu0 0.0
    %4661 = vmatpush1.msra.mxu0 0.0
    %4662 = vmatprep.subr.mxu0 0.0
    %4663 = vmatpush1.msra.mxu0 0.0
    %4664 = vmatprep.subr.mxu0 0.0
    %4665 = vmatpush1.msra.mxu0 0.0
    %4666 = vmatprep.subr.mxu0 0.0
    %4667 = vmatpush1.msra.mxu0 0.0
    %4668 = vmatprep.subr.mxu0 0.0
    %4669 = vmatpush1.msra.mxu0 0.0
    %4670 = vmatprep.subr.mxu0 0.0
    %4671 = vmatpush1.msra.mxu0 0.0
    %4672 = vmatprep.subr.mxu0 0.0
    %4673 = vmatpush1.msra.mxu0 0.0
    %4674 = vmatprep.subr.mxu0 0.0
    %4675 = vmatpush1.msra.mxu0 0.0
    %4676 = vmatprep.subr.mxu0 0.0
    %4677 = vmatpush1.msra.mxu0 0.0
    %4678 = vmatprep.subr.mxu0 0.0
    %4679 = vmatpush1.msra.mxu0 0.0
    %4680 = vmatprep.subr.mxu0 0.0
    %4681 = vmatpush1.msra.mxu0 0.0
    %4682 = vmatprep.subr.mxu0 0.0
    %4683 = vmatpush1.msra.mxu0 0.0
    %4684 = vmatprep.subr.mxu0 0.0
    %4685 = vmatpush1.msra.mxu0 0.0
    %4686 = vmatprep.subr.mxu0 0.0
    %4687 = vmatpush1.msra.mxu0 0.0
    %4688 = vmatprep.subr.mxu0 0.0
    %4689 = vmatpush1.msra.mxu0 0.0
    %4690 = vmatprep.subr.mxu0 0.0
    %4691 = vmatpush1.msra.mxu0 0.0
    %4692 = vmatprep.subr.mxu0 0.0
    %4693 = vmatpush1.msra.mxu0 0.0
    %4694 = vmatprep.subr.mxu0 0.0
    %4695 = vmatpush1.msra.mxu0 0.0
    %4696 = vmatprep.subr.mxu0 0.0
    %4697 = vmatpush1.msra.mxu0 0.0
    %4698 = vmatprep.subr.mxu0 0.0
    %4699 = vmatpush1.msra.mxu0 0.0
    %4700 = vmatprep.subr.mxu0 0.0
    %4701 = vmatpush1.msra.mxu0 0.0
    %4702 = vmatprep.subr.mxu0 0.0
    %4703 = vmatpush1.msra.mxu0 0.0
    %4704 = vmatprep.subr.mxu0 0.0
    %4705 = vmatpush1.msra.mxu0 0.0
    %4706 = vmatprep.subr.mxu0 0.0
    %4707 = vmatpush1.msra.mxu0 0.0
    %4708 = vmatprep.mubr.f32.mxu0 0.0
    %4709 = vmatmul.mubr.f32.gmra.mrb[0].mxu0 %v4639
    %v4710 = vpop.f32.mrb[0].mxu0
    %v4711 = vadd.f32 %v4631, %v4710
    %v4712 = vpop.f32.mrb[0].mxu0
    %v4713 = vadd.f32 %v4635, %v4712
    %4714 = vmatprep.mubr.f32.mxu0 0.0
    %4715 = vmatmul.mubr.f32.gmra.mrb[0].mxu0 %v4642
    %v4716 = vpop.f32.mrb[0].mxu0
    %v4717 = vadd.f32 %v4631, %v4716
    %v4718 = vpop.f32.mrb[0].mxu0
    %v4719 = vadd.f32 %v4635, %v4718
    %4720 = vdwg.mxu0
    %v4721 = vmax.f32 %v4711, 0.0
    %v4722 = vmax.f32 %v4713, 0.0
    %v4723 = vmax.f32 %v4717, 0.0
    %v4724 = vmax.f32 %v4719, 0.0
    %s4725 = scalar_lea.vmem %s33, 768
    %v4726 = vld [vmem:[%s4725] sm:$0xff]
    %v4727 = vld [vmem:[%s4725 + $0x8] sm:$0xff]
    %v4728 = vld [vmem:[%s4725 + $0x10] sm:$0xff]
    %v4729 = vld [vmem:[%s4725 + $0x18] sm:$0xff]
    %v4730 = vld [vmem:[%s4725 + $0x20] sm:$0xff]
    %v4731 = vld [vmem:[%s4725 + $0x28] sm:$0xff]
    %v4732 = vld [vmem:[%s4725 + $0x30] sm:$0xff]
    %v4733 = vld [vmem:[%s4725 + $0x38] sm:$0xff]
    %v4734 = vld [vmem:[%s4725 + $0x40] sm:$0xff]
    %v4735 = vld [vmem:[%s4725 + $0x48] sm:$0xff]
    %v4736 = vld [vmem:[%s4725 + $0x50] sm:$0xff]
    %v4737 = vld [vmem:[%s4725 + $0x58] sm:$0xff]
    %v4738 = vld [vmem:[%s4725 + $0x60] sm:$0xff]
    %v4739 = vld [vmem:[%s4725 + $0x68] sm:$0xff]
    %v4740 = vld [vmem:[%s4725 + $0x70] sm:$0xff]
    %v4741 = vld [vmem:[%s4725 + $0x78] sm:$0xff]
    %v4742 = vld [vmem:[%s4725 + $0x80] sm:$0xff]
    %v4743 = vld [vmem:[%s4725 + $0x88] sm:$0xff]
    %v4744 = vld [vmem:[%s4725 + $0x90] sm:$0xff]
    %v4745 = vld [vmem:[%s4725 + $0x98] sm:$0xff]
    %v4746 = vld [vmem:[%s4725 + $0xa0] sm:$0xff]
    %v4747 = vld [vmem:[%s4725 + $0xa8] sm:$0xff]
    %v4748 = vld [vmem:[%s4725 + $0xb0] sm:$0xff]
    %v4749 = vld [vmem:[%s4725 + $0xb8] sm:$0xff]
    %v4750 = vld [vmem:[%s4725 + $0xc0] sm:$0xff]
    %v4751 = vld [vmem:[%s4725 + $0xc8] sm:$0xff]
    %v4752 = vld [vmem:[%s4725 + $0xd0] sm:$0xff]
    %v4753 = vld [vmem:[%s4725 + $0xd8] sm:$0xff]
    %v4754 = vld [vmem:[%s4725 + $0xe0] sm:$0xff]
    %v4755 = vld [vmem:[%s4725 + $0xe8] sm:$0xff]
    %v4756 = vld [vmem:[%s4725 + $0xf0] sm:$0xff]
    %v4757 = vld [vmem:[%s4725 + $0xf8] sm:$0xff]
    %s4758 = scalar_lea.vmem %s35, 3
    %v4759 = vld [vmem:[%s4758] sm:$0x1]
    %v4761 = vlaneseq
    %v4762 = vshrl.u32 %v4761, 7
    %v4763 = vsub.s32 0, %v4762
    %v4764 = vrot.slane %v4759, %v4763
    %4766 = vmatprep.subr.mxu0 0.0
    %4767 = vmatpush1.msra.mxu0 %v4726
    %4768 = vmatprep.subr.mxu0 0.0
    %4769 = vmatpush1.msra.mxu0 %v4727
    %4770 = vmatprep.subr.mxu0 0.0
    %4771 = vmatpush1.msra.mxu0 %v4728
    %4772 = vmatprep.subr.mxu0 0.0
    %4773 = vmatpush1.msra.mxu0 %v4729
    %4774 = vmatprep.subr.mxu0 0.0
    %4775 = vmatpush1.msra.mxu0 %v4730
    %4776 = vmatprep.subr.mxu0 0.0
    %4777 = vmatpush1.msra.mxu0 %v4731
    %4778 = vmatprep.subr.mxu0 0.0
    %4779 = vmatpush1.msra.mxu0 %v4732
    %4780 = vmatprep.subr.mxu0 0.0
    %4781 = vmatpush1.msra.mxu0 %v4733
    %4782 = vmatprep.subr.mxu0 0.0
    %4783 = vmatpush1.msra.mxu0 %v4734
    %4784 = vmatprep.subr.mxu0 0.0
    %4785 = vmatpush1.msra.mxu0 %v4735
    %4786 = vmatprep.subr.mxu0 0.0
    %4787 = vmatpush1.msra.mxu0 %v4736
    %4788 = vmatprep.subr.mxu0 0.0
    %4789 = vmatpush1.msra.mxu0 %v4737
    %4790 = vmatprep.subr.mxu0 0.0
    %4791 = vmatpush1.msra.mxu0 %v4738
    %4792 = vmatprep.subr.mxu0 0.0
    %4793 = vmatpush1.msra.mxu0 %v4739
    %4794 = vmatprep.subr.mxu0 0.0
    %4795 = vmatpush1.msra.mxu0 %v4740
    %4796 = vmatprep.subr.mxu0 0.0
    %4797 = vmatpush1.msra.mxu0 %v4741
    %4798 = vmatprep.subr.mxu0 0.0
    %4799 = vmatpush1.msra.mxu0 %v4742
    %4800 = vmatprep.subr.mxu0 0.0
    %4801 = vmatpush1.msra.mxu0 %v4743
    %4802 = vmatprep.subr.mxu0 0.0
    %4803 = vmatpush1.msra.mxu0 %v4744
    %4804 = vmatprep.subr.mxu0 0.0
    %4805 = vmatpush1.msra.mxu0 %v4745
    %4806 = vmatprep.subr.mxu0 0.0
    %4807 = vmatpush1.msra.mxu0 %v4746
    %4808 = vmatprep.subr.mxu0 0.0
    %4809 = vmatpush1.msra.mxu0 %v4747
    %4810 = vmatprep.subr.mxu0 0.0
    %4811 = vmatpush1.msra.mxu0 %v4748
    %4812 = vmatprep.subr.mxu0 0.0
    %4813 = vmatpush1.msra.mxu0 %v4749
    %4814 = vmatprep.subr.mxu0 0.0
    %4815 = vmatpush1.msra.mxu0 %v4750
    %4816 = vmatprep.subr.mxu0 0.0
    %4817 = vmatpush1.msra.mxu0 %v4751
    %4818 = vmatprep.subr.mxu0 0.0
    %4819 = vmatpush1.msra.mxu0 %v4752
    %4820 = vmatprep.subr.mxu0 0.0
    %4821 = vmatpush1.msra.mxu0 %v4753
    %4822 = vmatprep.subr.mxu0 0.0
    %4823 = vmatpush1.msra.mxu0 %v4754
    %4824 = vmatprep.subr.mxu0 0.0
    %4825 = vmatpush1.msra.mxu0 %v4755
    %4826 = vmatprep.subr.mxu0 0.0
    %4827 = vmatpush1.msra.mxu0 %v4756
    %4828 = vmatprep.subr.mxu0 0.0
    %4829 = vmatpush1.msra.mxu0 %v4757
    %4830 = vmatprep.mubr.f32.mxu0 %v4722
    %4831 = vmatmul.mubr.f32.gmra.mrb[0].mxu0 %v4721
    %v4832 = vpop.f32.mrb[0].mxu0
    %v4833 = vadd.f32 %v4764, %v4832
    %v4834 = vpop.f32.mrb[0].mxu0
    %4835 = vmatprep.mubr.f32.mxu0 %v4724
    %4836 = vmatmul.mubr.f32.gmra.mrb[0].mxu0 %v4723
    %v4837 = vpop.f32.mrb[0].mxu0
    %v4838 = vadd.f32 %v4764, %v4837
    %v4839 = vpop.f32.mrb[0].mxu0
    %4840 = vdwg.mxu0
    %v4841 = vadd.f32 %v4606, %v4833
    %v4842 = vadd.f32 %v4607, %v4838
    %s4843 = scalar_lea.vmem %s37, 3
    %v4844 = vld [vmem:[%s4843] sm:$0x1]
    %s4845 = scalar_lea.vmem %s39, 3
    %v4846 = vld [vmem:[%s4845] sm:$0x1]
    %v4847 = vsel %vm231, %v4841, 0.0
    %4848 = vadd.xlane.f32.xlu0 %v4847
    %v4849 = vpop.xlane.xlu0 %4848
    %v4850 = vsel %vm231, %v4842, 0.0
    %4851 = vadd.xlane.f32.xlu0 %v4850
    %v4852 = vpop.xlane.xlu0 %4851
    %v4853 = vmul.f32 %v4849, %v1262
    %v4854 = vmul.f32 %v4852, %v1262
    %v4855 = vsub.f32 %v4841, %v4853
    %v4856 = vsub.f32 %v4842, %v4854
    %v4857 = vmul.f32 %v4855, %v4855
    %v4858 = vmul.f32 %v4856, %v4856
    %v4859 = vsel %vm231, %v4857, 0.0
    %4860 = vadd.xlane.f32.xlu0 %v4859
    %v4861 = vpop.xlane.xlu0 %4860
    %v4862 = vsel %vm231, %v4858, 0.0
    %4863 = vadd.xlane.f32.xlu0 %v4862
    %v4864 = vpop.xlane.xlu0 %4863
    %v4865 = vmul.f32 %v4861, %v1262
    %v4866 = vmul.f32 %v4864, %v1262
    %v4867 = vadd.f32 %v4865, 1e-05
    %v4868 = vadd.f32 %v4866, 1e-05
    %v4869 = vrsqrt.pop %v4867
    %v4870 = vrsqrt.pop %v4868
    %v4871 = vmul.f32 %v4855, %v4869
    %v4872 = vmul.f32 %v4856, %v4870
    %v4874 = vlaneseq
    %v4875 = vshrl.u32 %v4874, 7
    %v4876 = vsub.s32 0, %v4875
    %v4877 = vrot.slane %v4844, %v4876
    %v4879 = vmul.f32 %v4871, %v4877
    %v4880 = vmul.f32 %v4872, %v4877
    %v4882 = vlaneseq
    %v4883 = vshrl.u32 %v4882, 7
    %v4884 = vsub.s32 0, %v4883
    %v4885 = vrot.slane %v4846, %v4884
    %v4887 = vadd.f32 %v4879, %v4885
    %v4888 = vadd.f32 %v4880, %v4885
    %s4889 = scalar_lea.vmem %s9, 256
    %v4890 = vld [vmem:[%s4889] sm:$0xff]
    %v4891 = vld [vmem:[%s4889 + $0x8] sm:$0xff]
    %v4892 = vld [vmem:[%s4889 + $0x10] sm:$0xff]
    %v4893 = vld [vmem:[%s4889 + $0x18] sm:$0xff]
    %v4894 = vld [vmem:[%s4889 + $0x20] sm:$0xff]
    %v4895 = vld [vmem:[%s4889 + $0x28] sm:$0xff]
    %v4896 = vld [vmem:[%s4889 + $0x30] sm:$0xff]
    %v4897 = vld [vmem:[%s4889 + $0x38] sm:$0xff]
    %s4898 = scalar_lea.vmem %s11, 4
    %v4899 = vld [vmem:[%s4898] sm:$0x1]
    %v4901 = vlaneseq
    %v4902 = vshrl.u32 %v4901, 7
    %v4903 = vsub.s32 0, %v4902
    %v4904 = vrot.slane %v4899, %v4903
    %v4907 = vsel %vm231, %v4887, 0
    %v4910 = vsel %vm231, %v4888, 0
    %4912 = vmatprep.subr.mxu0 0.0
    %4913 = vmatpush1.msra.mxu0 %v4890
    %4914 = vmatprep.subr.mxu0 0.0
    %4915 = vmatpush1.msra.mxu0 %v4891
    %4916 = vmatprep.subr.mxu0 0.0
    %4917 = vmatpush1.msra.mxu0 %v4892
    %4918 = vmatprep.subr.mxu0 0.0
    %4919 = vmatpush1.msra.mxu0 %v4893
    %4920 = vmatprep.subr.mxu0 0.0
    %4921 = vmatpush1.msra.mxu0 %v4894
    %4922 = vmatprep.subr.mxu0 0.0
    %4923 = vmatpush1.msra.mxu0 %v4895
    %4924 = vmatprep.subr.mxu0 0.0
    %4925 = vmatpush1.msra.mxu0 %v4896
    %4926 = vmatprep.subr.mxu0 0.0
    %4927 = vmatpush1.msra.mxu0 %v4897
    %4928 = vmatprep.subr.mxu0 0.0
    %4929 = vmatpush1.msra.mxu0 0.0
    %4930 = vmatprep.subr.mxu0 0.0
    %4931 = vmatpush1.msra.mxu0 0.0
    %4932 = vmatprep.subr.mxu0 0.0
    %4933 = vmatpush1.msra.mxu0 0.0
    %4934 = vmatprep.subr.mxu0 0.0
    %4935 = vmatpush1.msra.mxu0 0.0
    %4936 = vmatprep.subr.mxu0 0.0
    %4937 = vmatpush1.msra.mxu0 0.0
    %4938 = vmatprep.subr.mxu0 0.0
    %4939 = vmatpush1.msra.mxu0 0.0
    %4940 = vmatprep.subr.mxu0 0.0
    %4941 = vmatpush1.msra.mxu0 0.0
    %4942 = vmatprep.subr.mxu0 0.0
    %4943 = vmatpush1.msra.mxu0 0.0
    %4944 = vmatprep.subr.mxu0 0.0
    %4945 = vmatpush1.msra.mxu0 0.0
    %4946 = vmatprep.subr.mxu0 0.0
    %4947 = vmatpush1.msra.mxu0 0.0
    %4948 = vmatprep.subr.mxu0 0.0
    %4949 = vmatpush1.msra.mxu0 0.0
    %4950 = vmatprep.subr.mxu0 0.0
    %4951 = vmatpush1.msra.mxu0 0.0
    %4952 = vmatprep.subr.mxu0 0.0
    %4953 = vmatpush1.msra.mxu0 0.0
    %4954 = vmatprep.subr.mxu0 0.0
    %4955 = vmatpush1.msra.mxu0 0.0
    %4956 = vmatprep.subr.mxu0 0.0
    %4957 = vmatpush1.msra.mxu0 0.0
    %4958 = vmatprep.subr.mxu0 0.0
    %4959 = vmatpush1.msra.mxu0 0.0
    %4960 = vmatprep.subr.mxu0 0.0
    %4961 = vmatpush1.msra.mxu0 0.0
    %4962 = vmatprep.subr.mxu0 0.0
    %4963 = vmatpush1.msra.mxu0 0.0
    %4964 = vmatprep.subr.mxu0 0.0
    %4965 = vmatpush1.msra.mxu0 0.0
    %4966 = vmatprep.subr.mxu0 0.0
    %4967 = vmatpush1.msra.mxu0 0.0
    %4968 = vmatprep.subr.mxu0 0.0
    %4969 = vmatpush1.msra.mxu0 0.0
    %4970 = vmatprep.subr.mxu0 0.0
    %4971 = vmatpush1.msra.mxu0 0.0
    %4972 = vmatprep.subr.mxu0 0.0
    %4973 = vmatpush1.msra.mxu0 0.0
    %4974 = vmatprep.subr.mxu0 0.0
    %4975 = vmatpush1.msra.mxu0 0.0
    %4976 = vmatprep.mubr.f32.mxu0 0.0
    %4977 = vmatmul.mubr.f32.gmra.mrb[0].mxu0 %v4907
    %v4978 = vpop.f32.mrb[0].mxu0
    %v4979 = vadd.f32 %v4904, %v4978
    %v4980 = vpop.f32.mrb[0].mxu0
    %4981 = vmatprep.mubr.f32.mxu0 0.0
    %4982 = vmatmul.mubr.f32.gmra.mrb[0].mxu0 %v4910
    %v4983 = vpop.f32.mrb[0].mxu0
    %v4984 = vadd.f32 %v4904, %v4983
    %v4985 = vpop.f32.mrb[0].mxu0
    %4986 = vdwg.mxu0
    %s4987 = scalar_lea.vmem %s13, 256
    %v4988 = vld [vmem:[%s4987] sm:$0xff]
    %v4989 = vld [vmem:[%s4987 + $0x8] sm:$0xff]
    %v4990 = vld [vmem:[%s4987 + $0x10] sm:$0xff]
    %v4991 = vld [vmem:[%s4987 + $0x18] sm:$0xff]
    %v4992 = vld [vmem:[%s4987 + $0x20] sm:$0xff]
    %v4993 = vld [vmem:[%s4987 + $0x28] sm:$0xff]
    %v4994 = vld [vmem:[%s4987 + $0x30] sm:$0xff]
    %v4995 = vld [vmem:[%s4987 + $0x38] sm:$0xff]
    %s4996 = scalar_lea.vmem %s15, 4
    %v4997 = vld [vmem:[%s4996] sm:$0x1]
    %v4999 = vlaneseq
    %v5000 = vshrl.u32 %v4999, 7
    %v5001 = vsub.s32 0, %v5000
    %v5002 = vrot.slane %v4997, %v5001
    %5004 = vmatprep.subr.mxu0 0.0
    %5005 = vmatpush1.msra.mxu0 %v4988
    %5006 = vmatprep.subr.mxu0 0.0
    %5007 = vmatpush1.msra.mxu0 %v4989
    %5008 = vmatprep.subr.mxu0 0.0
    %5009 = vmatpush1.msra.mxu0 %v4990
    %5010 = vmatprep.subr.mxu0 0.0
    %5011 = vmatpush1.msra.mxu0 %v4991
    %5012 = vmatprep.subr.mxu0 0.0
    %5013 = vmatpush1.msra.mxu0 %v4992
    %5014 = vmatprep.subr.mxu0 0.0
    %5015 = vmatpush1.msra.mxu0 %v4993
    %5016 = vmatprep.subr.mxu0 0.0
    %5017 = vmatpush1.msra.mxu0 %v4994
    %5018 = vmatprep.subr.mxu0 0.0
    %5019 = vmatpush1.msra.mxu0 %v4995
    %5020 = vmatprep.subr.mxu0 0.0
    %5021 = vmatpush1.msra.mxu0 0.0
    %5022 = vmatprep.subr.mxu0 0.0
    %5023 = vmatpush1.msra.mxu0 0.0
    %5024 = vmatprep.subr.mxu0 0.0
    %5025 = vmatpush1.msra.mxu0 0.0
    %5026 = vmatprep.subr.mxu0 0.0
    %5027 = vmatpush1.msra.mxu0 0.0
    %5028 = vmatprep.subr.mxu0 0.0
    %5029 = vmatpush1.msra.mxu0 0.0
    %5030 = vmatprep.subr.mxu0 0.0
    %5031 = vmatpush1.msra.mxu0 0.0
    %5032 = vmatprep.subr.mxu0 0.0
    %5033 = vmatpush1.msra.mxu0 0.0
    %5034 = vmatprep.subr.mxu0 0.0
    %5035 = vmatpush1.msra.mxu0 0.0
    %5036 = vmatprep.subr.mxu0 0.0
    %5037 = vmatpush1.msra.mxu0 0.0
    %5038 = vmatprep.subr.mxu0 0.0
    %5039 = vmatpush1.msra.mxu0 0.0
    %5040 = vmatprep.subr.mxu0 0.0
    %5041 = vmatpush1.msra.mxu0 0.0
    %5042 = vmatprep.subr.mxu0 0.0
    %5043 = vmatpush1.msra.mxu0 0.0
    %5044 = vmatprep.subr.mxu0 0.0
    %5045 = vmatpush1.msra.mxu0 0.0
    %5046 = vmatprep.subr.mxu0 0.0
    %5047 = vmatpush1.msra.mxu0 0.0
    %5048 = vmatprep.subr.mxu0 0.0
    %5049 = vmatpush1.msra.mxu0 0.0
    %5050 = vmatprep.subr.mxu0 0.0
    %5051 = vmatpush1.msra.mxu0 0.0
    %5052 = vmatprep.subr.mxu0 0.0
    %5053 = vmatpush1.msra.mxu0 0.0
    %5054 = vmatprep.subr.mxu0 0.0
    %5055 = vmatpush1.msra.mxu0 0.0
    %5056 = vmatprep.subr.mxu0 0.0
    %5057 = vmatpush1.msra.mxu0 0.0
    %5058 = vmatprep.subr.mxu0 0.0
    %5059 = vmatpush1.msra.mxu0 0.0
    %5060 = vmatprep.subr.mxu0 0.0
    %5061 = vmatpush1.msra.mxu0 0.0
    %5062 = vmatprep.subr.mxu0 0.0
    %5063 = vmatpush1.msra.mxu0 0.0
    %5064 = vmatprep.subr.mxu0 0.0
    %5065 = vmatpush1.msra.mxu0 0.0
    %5066 = vmatprep.subr.mxu0 0.0
    %5067 = vmatpush1.msra.mxu0 0.0
    %5068 = vmatprep.mubr.f32.mxu0 0.0
    %5069 = vmatmul.mubr.f32.gmra.mrb[0].mxu0 %v4907
    %v5070 = vpop.f32.mrb[0].mxu0
    %v5071 = vadd.f32 %v5002, %v5070
    %v5072 = vpop.f32.mrb[0].mxu0
    %5073 = vmatprep.mubr.f32.mxu0 0.0
    %5074 = vmatmul.mubr.f32.gmra.mrb[0].mxu0 %v4910
    %v5075 = vpop.f32.mrb[0].mxu0
    %v5076 = vadd.f32 %v5002, %v5075
    %v5077 = vpop.f32.mrb[0].mxu0
    %5078 = vdwg.mxu0
    %s5079 = scalar_lea.vmem %s17, 256
    %v5080 = vld [vmem:[%s5079] sm:$0xff]
    %v5081 = vld [vmem:[%s5079 + $0x8] sm:$0xff]
    %v5082 = vld [vmem:[%s5079 + $0x10] sm:$0xff]
    %v5083 = vld [vmem:[%s5079 + $0x18] sm:$0xff]
    %v5084 = vld [vmem:[%s5079 + $0x20] sm:$0xff]
    %v5085 = vld [vmem:[%s5079 + $0x28] sm:$0xff]
    %v5086 = vld [vmem:[%s5079 + $0x30] sm:$0xff]
    %v5087 = vld [vmem:[%s5079 + $0x38] sm:$0xff]
    %s5088 = scalar_lea.vmem %s19, 4
    %v5089 = vld [vmem:[%s5088] sm:$0x1]
    %v5091 = vlaneseq
    %v5092 = vshrl.u32 %v5091, 7
    %v5093 = vsub.s32 0, %v5092
    %v5094 = vrot.slane %v5089, %v5093
    %5096 = vmatprep.subr.mxu0 0.0
    %5097 = vmatpush1.msra.mxu0 %v5080
    %5098 = vmatprep.subr.mxu0 0.0
    %5099 = vmatpush1.msra.mxu0 %v5081
    %5100 = vmatprep.subr.mxu0 0.0
    %5101 = vmatpush1.msra.mxu0 %v5082
    %5102 = vmatprep.subr.mxu0 0.0
    %5103 = vmatpush1.msra.mxu0 %v5083
    %5104 = vmatprep.subr.mxu0 0.0
    %5105 = vmatpush1.msra.mxu0 %v5084
    %5106 = vmatprep.subr.mxu0 0.0
    %5107 = vmatpush1.msra.mxu0 %v5085
    %5108 = vmatprep.subr.mxu0 0.0
    %5109 = vmatpush1.msra.mxu0 %v5086
    %5110 = vmatprep.subr.mxu0 0.0
    %5111 = vmatpush1.msra.mxu0 %v5087
    %5112 = vmatprep.subr.mxu0 0.0
    %5113 = vmatpush1.msra.mxu0 0.0
    %5114 = vmatprep.subr.mxu0 0.0
    %5115 = vmatpush1.msra.mxu0 0.0
    %5116 = vmatprep.subr.mxu0 0.0
    %5117 = vmatpush1.msra.mxu0 0.0
    %5118 = vmatprep.subr.mxu0 0.0
    %5119 = vmatpush1.msra.mxu0 0.0
    %5120 = vmatprep.subr.mxu0 0.0
    %5121 = vmatpush1.msra.mxu0 0.0
    %5122 = vmatprep.subr.mxu0 0.0
    %5123 = vmatpush1.msra.mxu0 0.0
    %5124 = vmatprep.subr.mxu0 0.0
    %5125 = vmatpush1.msra.mxu0 0.0
    %5126 = vmatprep.subr.mxu0 0.0
    %5127 = vmatpush1.msra.mxu0 0.0
    %5128 = vmatprep.subr.mxu0 0.0
    %5129 = vmatpush1.msra.mxu0 0.0
    %5130 = vmatprep.subr.mxu0 0.0
    %5131 = vmatpush1.msra.mxu0 0.0
    %5132 = vmatprep.subr.mxu0 0.0
    %5133 = vmatpush1.msra.mxu0 0.0
    %5134 = vmatprep.subr.mxu0 0.0
    %5135 = vmatpush1.msra.mxu0 0.0
    %5136 = vmatprep.subr.mxu0 0.0
    %5137 = vmatpush1.msra.mxu0 0.0
    %5138 = vmatprep.subr.mxu0 0.0
    %5139 = vmatpush1.msra.mxu0 0.0
    %5140 = vmatprep.subr.mxu0 0.0
    %5141 = vmatpush1.msra.mxu0 0.0
    %5142 = vmatprep.subr.mxu0 0.0
    %5143 = vmatpush1.msra.mxu0 0.0
    %5144 = vmatprep.subr.mxu0 0.0
    %5145 = vmatpush1.msra.mxu0 0.0
    %5146 = vmatprep.subr.mxu0 0.0
    %5147 = vmatpush1.msra.mxu0 0.0
    %5148 = vmatprep.subr.mxu0 0.0
    %5149 = vmatpush1.msra.mxu0 0.0
    %5150 = vmatprep.subr.mxu0 0.0
    %5151 = vmatpush1.msra.mxu0 0.0
    %5152 = vmatprep.subr.mxu0 0.0
    %5153 = vmatpush1.msra.mxu0 0.0
    %5154 = vmatprep.subr.mxu0 0.0
    %5155 = vmatpush1.msra.mxu0 0.0
    %5156 = vmatprep.subr.mxu0 0.0
    %5157 = vmatpush1.msra.mxu0 0.0
    %5158 = vmatprep.subr.mxu0 0.0
    %5159 = vmatpush1.msra.mxu0 0.0
    %5160 = vmatprep.mubr.f32.mxu0 0.0
    %5161 = vmatmul.mubr.f32.gmra.mrb[0].mxu0 %v4907
    %v5162 = vpop.f32.mrb[0].mxu0
    %v5163 = vadd.f32 %v5094, %v5162
    %v5164 = vpop.f32.mrb[0].mxu0
    %5165 = vmatprep.mubr.f32.mxu0 0.0
    %5166 = vmatmul.mubr.f32.gmra.mrb[0].mxu0 %v4910
    %v5167 = vpop.f32.mrb[0].mxu0
    %v5168 = vadd.f32 %v5094, %v5167
    %v5169 = vpop.f32.mrb[0].mxu0
    %5170 = vdwg.mxu0
    %v5171 = vmul.f32 %v4979, %v200
    %v5172 = vmul.f32 %v4984, %v201
    %v5173 = vmul.f32 %v4979, %v202
    %v5174 = vmul.f32 %v4984, %v203
    %v5175 = vmul.f32 %v4979, %v204
    %v5176 = vmul.f32 %v4984, %v205
    %v5177 = vmul.f32 %v4979, %v206
    %v5178 = vmul.f32 %v4984, %v207
    %v5180 = vsel %vm231, %v5171, 0
    %v5183 = vsel %vm231, %v5172, 0
    %v5186 = vsel %vm231, %v5173, 0
    %v5189 = vsel %vm231, %v5174, 0
    %v5192 = vsel %vm231, %v5175, 0
    %v5195 = vsel %vm231, %v5176, 0
    %v5198 = vsel %vm231, %v5177, 0
    %v5201 = vsel %vm231, %v5178, 0
    %v5204 = vsel %vm231, %v5071, 0
    %v5207 = vsel %vm231, %v5076, 0
    %5209 = vmatprep.subr.mxu0 0.0
    %5210 = vmatpush1.xpose.msra.mxu0 %v5204
    %5211 = vmatprep.subr.mxu0 0.0
    %5212 = vmatpush1.xpose.msra.mxu0 %v5207
    %5213 = vmatprep.subr.mxu0 0.0
    %5214 = vmatpush1.xpose.msra.mxu0 0.0
    %5215 = vmatprep.subr.mxu0 0.0
    %5216 = vmatpush1.xpose.msra.mxu0 0.0
    %5217 = vmatprep.subr.mxu0 0.0
    %5218 = vmatpush1.xpose.msra.mxu0 0.0
    %5219 = vmatprep.subr.mxu0 0.0
    %5220 = vmatpush1.xpose.msra.mxu0 0.0
    %5221 = vmatprep.subr.mxu0 0.0
    %5222 = vmatpush1.xpose.msra.mxu0 0.0
    %5223 = vmatprep.subr.mxu0 0.0
    %5224 = vmatpush1.xpose.msra.mxu0 0.0
    %5225 = vmatprep.subr.mxu0 0.0
    %5226 = vmatpush1.xpose.msra.mxu0 0.0
    %5227 = vmatprep.subr.mxu0 0.0
    %5228 = vmatpush1.xpose.msra.mxu0 0.0
    %5229 = vmatprep.subr.mxu0 0.0
    %5230 = vmatpush1.xpose.msra.mxu0 0.0
    %5231 = vmatprep.subr.mxu0 0.0
    %5232 = vmatpush1.xpose.msra.mxu0 0.0
    %5233 = vmatprep.subr.mxu0 0.0
    %5234 = vmatpush1.xpose.msra.mxu0 0.0
    %5235 = vmatprep.subr.mxu0 0.0
    %5236 = vmatpush1.xpose.msra.mxu0 0.0
    %5237 = vmatprep.subr.mxu0 0.0
    %5238 = vmatpush1.xpose.msra.mxu0 0.0
    %5239 = vmatprep.subr.mxu0 0.0
    %5240 = vmatpush1.xpose.msra.mxu0 0.0
    %5241 = vmatprep.subr.mxu0 0.0
    %5242 = vmatpush1.xpose.msra.mxu0 0.0
    %5243 = vmatprep.subr.mxu0 0.0
    %5244 = vmatpush1.xpose.msra.mxu0 0.0
    %5245 = vmatprep.subr.mxu0 0.0
    %5246 = vmatpush1.xpose.msra.mxu0 0.0
    %5247 = vmatprep.subr.mxu0 0.0
    %5248 = vmatpush1.xpose.msra.mxu0 0.0
    %5249 = vmatprep.subr.mxu0 0.0
    %5250 = vmatpush1.xpose.msra.mxu0 0.0
    %5251 = vmatprep.subr.mxu0 0.0
    %5252 = vmatpush1.xpose.msra.mxu0 0.0
    %5253 = vmatprep.subr.mxu0 0.0
    %5254 = vmatpush1.xpose.msra.mxu0 0.0
    %5255 = vmatprep.subr.mxu0 0.0
    %5256 = vmatpush1.xpose.msra.mxu0 0.0
    %5257 = vmatprep.subr.mxu0 0.0
    %5258 = vmatpush1.xpose.msra.mxu0 0.0
    %5259 = vmatprep.subr.mxu0 0.0
    %5260 = vmatpush1.xpose.msra.mxu0 0.0
    %5261 = vmatprep.subr.mxu0 0.0
    %5262 = vmatpush1.xpose.msra.mxu0 0.0
    %5263 = vmatprep.subr.mxu0 0.0
    %5264 = vmatpush1.xpose.msra.mxu0 0.0
    %5265 = vmatprep.subr.mxu0 0.0
    %5266 = vmatpush1.xpose.msra.mxu0 0.0
    %5267 = vmatprep.subr.mxu0 0.0
    %5268 = vmatpush1.xpose.msra.mxu0 0.0
    %5269 = vmatprep.subr.mxu0 0.0
    %5270 = vmatpush1.xpose.msra.mxu0 0.0
    %5271 = vmatprep.subr.mxu0 0.0
    %5272 = vmatpush1.xpose.msra.mxu0 0.0
    %5273 = vmatprep.mubr.f32.mxu0 0.0
    %5274 = vmatmul.mubr.f32.gmra.mrb[0].mxu0 %v5180
    %v5275 = vpop.f32.mrb[0].mxu0
    %v5276 = vadd.f32 0.0, %v5275
    %v5277 = vpop.f32.mrb[0].mxu0
    %5278 = vmatprep.mubr.f32.mxu0 0.0
    %5279 = vmatmul.mubr.f32.gmra.mrb[0].mxu0 %v5183
    %v5280 = vpop.f32.mrb[0].mxu0
    %v5281 = vadd.f32 0.0, %v5280
    %v5282 = vpop.f32.mrb[0].mxu0
    %5283 = vmatprep.mubr.f32.mxu0 0.0
    %5284 = vmatmul.mubr.f32.gmra.mrb[0].mxu0 %v5186
    %v5285 = vpop.f32.mrb[0].mxu0
    %v5286 = vadd.f32 0.0, %v5285
    %v5287 = vpop.f32.mrb[0].mxu0
    %5288 = vmatprep.mubr.f32.mxu0 0.0
    %5289 = vmatmul.mubr.f32.gmra.mrb[0].mxu0 %v5189
    %v5290 = vpop.f32.mrb[0].mxu0
    %v5291 = vadd.f32 0.0, %v5290
    %v5292 = vpop.f32.mrb[0].mxu0
    %5293 = vmatprep.mubr.f32.mxu0 0.0
    %5294 = vmatmul.mubr.f32.gmra.mrb[0].mxu0 %v5192
    %v5295 = vpop.f32.mrb[0].mxu0
    %v5296 = vadd.f32 0.0, %v5295
    %v5297 = vpop.f32.mrb[0].mxu0
    %5298 = vmatprep.mubr.f32.mxu0 0.0
    %5299 = vmatmul.mubr.f32.gmra.mrb[0].mxu0 %v5195
    %v5300 = vpop.f32.mrb[0].mxu0
    %v5301 = vadd.f32 0.0, %v5300
    %v5302 = vpop.f32.mrb[0].mxu0
    %5303 = vmatprep.mubr.f32.mxu0 0.0
    %5304 = vmatmul.mubr.f32.gmra.mrb[0].mxu0 %v5198
    %v5305 = vpop.f32.mrb[0].mxu0
    %v5306 = vadd.f32 0.0, %v5305
    %v5307 = vpop.f32.mrb[0].mxu0
    %5308 = vmatprep.mubr.f32.mxu0 0.0
    %5309 = vmatmul.mubr.f32.gmra.mrb[0].mxu0 %v5201
    %v5310 = vpop.f32.mrb[0].mxu0
    %v5311 = vadd.f32 0.0, %v5310
    %v5312 = vpop.f32.mrb[0].mxu0
    %5313 = vdwg.mxu0
    %v5314 = vmul.f32 %v5276, 0.25
    %v5315 = vmul.f32 %v5281, 0.25
    %v5316 = vmul.f32 %v5286, 0.25
    %v5317 = vmul.f32 %v5291, 0.25
    %v5318 = vmul.f32 %v5296, 0.25
    %v5319 = vmul.f32 %v5301, 0.25
    %v5320 = vmul.f32 %v5306, 0.25
    %v5321 = vmul.f32 %v5311, 0.25
    %v5322 = vadd.f32 %v5314, %v208
    %v5323 = vadd.f32 %v5315, %v209
    %v5324 = vadd.f32 %v5316, %v210
    %v5325 = vadd.f32 %v5317, %v211
    %v5326 = vadd.f32 %v5318, %v212
    %v5327 = vadd.f32 %v5319, %v213
    %v5328 = vadd.f32 %v5320, %v214
    %v5329 = vadd.f32 %v5321, %v215
    %v5330 = vsel %vm740, %v5322, -inf
    %5331 = vmax.xlane.f32.xlu0 %v5330
    %v5332 = vpop.xlane.xlu0 %5331
    %v5333 = vsel %vm740, %v5323, -inf
    %5334 = vmax.xlane.f32.xlu0 %v5333
    %v5335 = vpop.xlane.xlu0 %5334
    %v5336 = vsel %vm740, %v5324, -inf
    %5337 = vmax.xlane.f32.xlu0 %v5336
    %v5338 = vpop.xlane.xlu0 %5337
    %v5339 = vsel %vm740, %v5325, -inf
    %5340 = vmax.xlane.f32.xlu0 %v5339
    %v5341 = vpop.xlane.xlu0 %5340
    %v5342 = vsel %vm740, %v5326, -inf
    %5343 = vmax.xlane.f32.xlu0 %v5342
    %v5344 = vpop.xlane.xlu0 %5343
    %v5345 = vsel %vm740, %v5327, -inf
    %5346 = vmax.xlane.f32.xlu0 %v5345
    %v5347 = vpop.xlane.xlu0 %5346
    %v5348 = vsel %vm740, %v5328, -inf
    %5349 = vmax.xlane.f32.xlu0 %v5348
    %v5350 = vpop.xlane.xlu0 %5349
    %v5351 = vsel %vm740, %v5329, -inf
    %5352 = vmax.xlane.f32.xlu0 %v5351
    %v5353 = vpop.xlane.xlu0 %5352
    %v5354 = vsub.f32 %v5322, %v5332
    %v5355 = vsub.f32 %v5323, %v5335
    %v5356 = vsub.f32 %v5324, %v5338
    %v5357 = vsub.f32 %v5325, %v5341
    %v5358 = vsub.f32 %v5326, %v5344
    %v5359 = vsub.f32 %v5327, %v5347
    %v5360 = vsub.f32 %v5328, %v5350
    %v5361 = vsub.f32 %v5329, %v5353
    %v5362 = vmul.f32 %v5354, 1.442695
    %v5363 = vpow.pop %v5362
    %v5364 = vmul.f32 %v5355, 1.442695
    %v5365 = vpow.pop %v5364
    %v5366 = vmul.f32 %v5356, 1.442695
    %v5367 = vpow.pop %v5366
    %v5368 = vmul.f32 %v5357, 1.442695
    %v5369 = vpow.pop %v5368
    %v5370 = vmul.f32 %v5358, 1.442695
    %v5371 = vpow.pop %v5370
    %v5372 = vmul.f32 %v5359, 1.442695
    %v5373 = vpow.pop %v5372
    %v5374 = vmul.f32 %v5360, 1.442695
    %v5375 = vpow.pop %v5374
    %v5376 = vmul.f32 %v5361, 1.442695
    %v5377 = vpow.pop %v5376
    %v5378 = vsel %vm740, %v5363, 0.0
    %5379 = vadd.xlane.f32.xlu0 %v5378
    %v5380 = vpop.xlane.xlu0 %5379
    %v5381 = vsel %vm740, %v5365, 0.0
    %5382 = vadd.xlane.f32.xlu0 %v5381
    %v5383 = vpop.xlane.xlu0 %5382
    %v5384 = vsel %vm740, %v5367, 0.0
    %5385 = vadd.xlane.f32.xlu0 %v5384
    %v5386 = vpop.xlane.xlu0 %5385
    %v5387 = vsel %vm740, %v5369, 0.0
    %5388 = vadd.xlane.f32.xlu0 %v5387
    %v5389 = vpop.xlane.xlu0 %5388
    %v5390 = vsel %vm740, %v5371, 0.0
    %5391 = vadd.xlane.f32.xlu0 %v5390
    %v5392 = vpop.xlane.xlu0 %5391
    %v5393 = vsel %vm740, %v5373, 0.0
    %5394 = vadd.xlane.f32.xlu0 %v5393
    %v5395 = vpop.xlane.xlu0 %5394
    %v5396 = vsel %vm740, %v5375, 0.0
    %5397 = vadd.xlane.f32.xlu0 %v5396
    %v5398 = vpop.xlane.xlu0 %5397
    %v5399 = vsel %vm740, %v5377, 0.0
    %5400 = vadd.xlane.f32.xlu0 %v5399
    %v5401 = vpop.xlane.xlu0 %5400
    %v5402 = vrcp.pop %v5380
    %v5403 = vrcp.pop %v5383
    %v5404 = vrcp.pop %v5386
    %v5405 = vrcp.pop %v5389
    %v5406 = vrcp.pop %v5392
    %v5407 = vrcp.pop %v5395
    %v5408 = vrcp.pop %v5398
    %v5409 = vrcp.pop %v5401
    %v5410 = vmul.f32 %v5363, %v5402
    %v5411 = vmul.f32 %v5365, %v5403
    %v5412 = vmul.f32 %v5367, %v5404
    %v5413 = vmul.f32 %v5369, %v5405
    %v5414 = vmul.f32 %v5371, %v5406
    %v5415 = vmul.f32 %v5373, %v5407
    %v5416 = vmul.f32 %v5375, %v5408
    %v5417 = vmul.f32 %v5377, %v5409
    %v5419 = vsel %vm740, %v5410, 0
    %v5422 = vsel %vm740, %v5411, 0
    %v5425 = vsel %vm740, %v5412, 0
    %v5428 = vsel %vm740, %v5413, 0
    %v5431 = vsel %vm740, %v5414, 0
    %v5434 = vsel %vm740, %v5415, 0
    %v5437 = vsel %vm740, %v5416, 0
    %v5440 = vsel %vm740, %v5417, 0
    %5442 = vmatprep.subr.mxu0 0.0
    %5443 = vmatpush1.msra.mxu0 %v5163
    %5444 = vmatprep.subr.mxu0 0.0
    %5445 = vmatpush1.msra.mxu0 %v5168
    %5446 = vmatprep.subr.mxu0 0.0
    %5447 = vmatpush1.msra.mxu0 0.0
    %5448 = vmatprep.subr.mxu0 0.0
    %5449 = vmatpush1.msra.mxu0 0.0
    %5450 = vmatprep.subr.mxu0 0.0
    %5451 = vmatpush1.msra.mxu0 0.0
    %5452 = vmatprep.subr.mxu0 0.0
    %5453 = vmatpush1.msra.mxu0 0.0
    %5454 = vmatprep.subr.mxu0 0.0
    %5455 = vmatpush1.msra.mxu0 0.0
    %5456 = vmatprep.subr.mxu0 0.0
    %5457 = vmatpush1.msra.mxu0 0.0
    %5458 = vmatprep.subr.mxu0 0.0
    %5459 = vmatpush1.msra.mxu0 0.0
    %5460 = vmatprep.subr.mxu0 0.0
    %5461 = vmatpush1.msra.mxu0 0.0
    %5462 = vmatprep.subr.mxu0 0.0
    %5463 = vmatpush1.msra.mxu0 0.0
    %5464 = vmatprep.subr.mxu0 0.0
    %5465 = vmatpush1.msra.mxu0 0.0
    %5466 = vmatprep.subr.mxu0 0.0
    %5467 = vmatpush1.msra.mxu0 0.0
    %5468 = vmatprep.subr.mxu0 0.0
    %5469 = vmatpush1.msra.mxu0 0.0
    %5470 = vmatprep.subr.mxu0 0.0
    %5471 = vmatpush1.msra.mxu0 0.0
    %5472 = vmatprep.subr.mxu0 0.0
    %5473 = vmatpush1.msra.mxu0 0.0
    %5474 = vmatprep.subr.mxu0 0.0
    %5475 = vmatpush1.msra.mxu0 0.0
    %5476 = vmatprep.subr.mxu0 0.0
    %5477 = vmatpush1.msra.mxu0 0.0
    %5478 = vmatprep.subr.mxu0 0.0
    %5479 = vmatpush1.msra.mxu0 0.0
    %5480 = vmatprep.subr.mxu0 0.0
    %5481 = vmatpush1.msra.mxu0 0.0
    %5482 = vmatprep.subr.mxu0 0.0
    %5483 = vmatpush1.msra.mxu0 0.0
    %5484 = vmatprep.subr.mxu0 0.0
    %5485 = vmatpush1.msra.mxu0 0.0
    %5486 = vmatprep.subr.mxu0 0.0
    %5487 = vmatpush1.msra.mxu0 0.0
    %5488 = vmatprep.subr.mxu0 0.0
    %5489 = vmatpush1.msra.mxu0 0.0
    %5490 = vmatprep.subr.mxu0 0.0
    %5491 = vmatpush1.msra.mxu0 0.0
    %5492 = vmatprep.subr.mxu0 0.0
    %5493 = vmatpush1.msra.mxu0 0.0
    %5494 = vmatprep.subr.mxu0 0.0
    %5495 = vmatpush1.msra.mxu0 0.0
    %5496 = vmatprep.subr.mxu0 0.0
    %5497 = vmatpush1.msra.mxu0 0.0
    %5498 = vmatprep.subr.mxu0 0.0
    %5499 = vmatpush1.msra.mxu0 0.0
    %5500 = vmatprep.subr.mxu0 0.0
    %5501 = vmatpush1.msra.mxu0 0.0
    %5502 = vmatprep.subr.mxu0 0.0
    %5503 = vmatpush1.msra.mxu0 0.0
    %5504 = vmatprep.subr.mxu0 0.0
    %5505 = vmatpush1.msra.mxu0 0.0
    %5506 = vmatprep.mubr.f32.mxu0 0.0
    %5507 = vmatmul.mubr.f32.gmra.mrb[0].mxu0 %v5419
    %v5508 = vpop.f32.mrb[0].mxu0
    %v5509 = vadd.f32 0.0, %v5508
    %v5510 = vpop.f32.mrb[0].mxu0
    %5511 = vmatprep.mubr.f32.mxu0 0.0
    %5512 = vmatmul.mubr.f32.gmra.mrb[0].mxu0 %v5422
    %v5513 = vpop.f32.mrb[0].mxu0
    %v5514 = vadd.f32 0.0, %v5513
    %v5515 = vpop.f32.mrb[0].mxu0
    %5516 = vmatprep.mubr.f32.mxu0 0.0
    %5517 = vmatmul.mubr.f32.gmra.mrb[0].mxu0 %v5425
    %v5518 = vpop.f32.mrb[0].mxu0
    %v5519 = vadd.f32 0.0, %v5518
    %v5520 = vpop.f32.mrb[0].mxu0
    %5521 = vmatprep.mubr.f32.mxu0 0.0
    %5522 = vmatmul.mubr.f32.gmra.mrb[0].mxu0 %v5428
    %v5523 = vpop.f32.mrb[0].mxu0
    %v5524 = vadd.f32 0.0, %v5523
    %v5525 = vpop.f32.mrb[0].mxu0
    %5526 = vmatprep.mubr.f32.mxu0 0.0
    %5527 = vmatmul.mubr.f32.gmra.mrb[0].mxu0 %v5431
    %v5528 = vpop.f32.mrb[0].mxu0
    %v5529 = vadd.f32 0.0, %v5528
    %v5530 = vpop.f32.mrb[0].mxu0
    %5531 = vmatprep.mubr.f32.mxu0 0.0
    %5532 = vmatmul.mubr.f32.gmra.mrb[0].mxu0 %v5434
    %v5533 = vpop.f32.mrb[0].mxu0
    %v5534 = vadd.f32 0.0, %v5533
    %v5535 = vpop.f32.mrb[0].mxu0
    %5536 = vmatprep.mubr.f32.mxu0 0.0
    %5537 = vmatmul.mubr.f32.gmra.mrb[0].mxu0 %v5437
    %v5538 = vpop.f32.mrb[0].mxu0
    %v5539 = vadd.f32 0.0, %v5538
    %v5540 = vpop.f32.mrb[0].mxu0
    %5541 = vmatprep.mubr.f32.mxu0 0.0
    %5542 = vmatmul.mubr.f32.gmra.mrb[0].mxu0 %v5440
    %v5543 = vpop.f32.mrb[0].mxu0
    %v5544 = vadd.f32 0.0, %v5543
    %v5545 = vpop.f32.mrb[0].mxu0
    %5546 = vdwg.mxu0
    %v5547 = vmul.f32 %v5509, %v200
    %v5548 = vmul.f32 %v5514, %v201
    %v5549 = vmul.f32 %v5519, %v202
    %v5550 = vmul.f32 %v5524, %v203
    %v5551 = vmul.f32 %v5529, %v204
    %v5552 = vmul.f32 %v5534, %v205
    %v5553 = vmul.f32 %v5539, %v206
    %v5554 = vmul.f32 %v5544, %v207
    %v5555 = vsel %vm231, %v5547, 0.0
    %v5556 = vsel %vm231, %v5549, 0.0
    %v5557 = vadd.f32 %v5555, %v5556
    %v5558 = vsel %vm231, %v5551, 0.0
    %v5559 = vadd.f32 %v5557, %v5558
    %v5560 = vsel %vm231, %v5553, 0.0
    %v5561 = vadd.f32 %v5559, %v5560
    %v5562 = vsel %vm231, %v5548, 0.0
    %v5563 = vsel %vm231, %v5550, 0.0
    %v5564 = vadd.f32 %v5562, %v5563
    %v5565 = vsel %vm231, %v5552, 0.0
    %v5566 = vadd.f32 %v5564, %v5565
    %v5567 = vsel %vm231, %v5554, 0.0
    %v5568 = vadd.f32 %v5566, %v5567
    %s5569 = scalar_lea.vmem %s21, 256
    %v5570 = vld [vmem:[%s5569] sm:$0xff]
    %v5571 = vld [vmem:[%s5569 + $0x8] sm:$0xff]
    %v5572 = vld [vmem:[%s5569 + $0x10] sm:$0xff]
    %v5573 = vld [vmem:[%s5569 + $0x18] sm:$0xff]
    %v5574 = vld [vmem:[%s5569 + $0x20] sm:$0xff]
    %v5575 = vld [vmem:[%s5569 + $0x28] sm:$0xff]
    %v5576 = vld [vmem:[%s5569 + $0x30] sm:$0xff]
    %v5577 = vld [vmem:[%s5569 + $0x38] sm:$0xff]
    %s5578 = scalar_lea.vmem %s23, 4
    %v5579 = vld [vmem:[%s5578] sm:$0x1]
    %v5581 = vlaneseq
    %v5582 = vshrl.u32 %v5581, 7
    %v5583 = vsub.s32 0, %v5582
    %v5584 = vrot.slane %v5579, %v5583
    %v5587 = vsel %vm231, %v5561, 0
    %v5590 = vsel %vm231, %v5568, 0
    %5592 = vmatprep.subr.mxu0 0.0
    %5593 = vmatpush1.msra.mxu0 %v5570
    %5594 = vmatprep.subr.mxu0 0.0
    %5595 = vmatpush1.msra.mxu0 %v5571
    %5596 = vmatprep.subr.mxu0 0.0
    %5597 = vmatpush1.msra.mxu0 %v5572
    %5598 = vmatprep.subr.mxu0 0.0
    %5599 = vmatpush1.msra.mxu0 %v5573
    %5600 = vmatprep.subr.mxu0 0.0
    %5601 = vmatpush1.msra.mxu0 %v5574
    %5602 = vmatprep.subr.mxu0 0.0
    %5603 = vmatpush1.msra.mxu0 %v5575
    %5604 = vmatprep.subr.mxu0 0.0
    %5605 = vmatpush1.msra.mxu0 %v5576
    %5606 = vmatprep.subr.mxu0 0.0
    %5607 = vmatpush1.msra.mxu0 %v5577
    %5608 = vmatprep.subr.mxu0 0.0
    %5609 = vmatpush1.msra.mxu0 0.0
    %5610 = vmatprep.subr.mxu0 0.0
    %5611 = vmatpush1.msra.mxu0 0.0
    %5612 = vmatprep.subr.mxu0 0.0
    %5613 = vmatpush1.msra.mxu0 0.0
    %5614 = vmatprep.subr.mxu0 0.0
    %5615 = vmatpush1.msra.mxu0 0.0
    %5616 = vmatprep.subr.mxu0 0.0
    %5617 = vmatpush1.msra.mxu0 0.0
    %5618 = vmatprep.subr.mxu0 0.0
    %5619 = vmatpush1.msra.mxu0 0.0
    %5620 = vmatprep.subr.mxu0 0.0
    %5621 = vmatpush1.msra.mxu0 0.0
    %5622 = vmatprep.subr.mxu0 0.0
    %5623 = vmatpush1.msra.mxu0 0.0
    %5624 = vmatprep.subr.mxu0 0.0
    %5625 = vmatpush1.msra.mxu0 0.0
    %5626 = vmatprep.subr.mxu0 0.0
    %5627 = vmatpush1.msra.mxu0 0.0
    %5628 = vmatprep.subr.mxu0 0.0
    %5629 = vmatpush1.msra.mxu0 0.0
    %5630 = vmatprep.subr.mxu0 0.0
    %5631 = vmatpush1.msra.mxu0 0.0
    %5632 = vmatprep.subr.mxu0 0.0
    %5633 = vmatpush1.msra.mxu0 0.0
    %5634 = vmatprep.subr.mxu0 0.0
    %5635 = vmatpush1.msra.mxu0 0.0
    %5636 = vmatprep.subr.mxu0 0.0
    %5637 = vmatpush1.msra.mxu0 0.0
    %5638 = vmatprep.subr.mxu0 0.0
    %5639 = vmatpush1.msra.mxu0 0.0
    %5640 = vmatprep.subr.mxu0 0.0
    %5641 = vmatpush1.msra.mxu0 0.0
    %5642 = vmatprep.subr.mxu0 0.0
    %5643 = vmatpush1.msra.mxu0 0.0
    %5644 = vmatprep.subr.mxu0 0.0
    %5645 = vmatpush1.msra.mxu0 0.0
    %5646 = vmatprep.subr.mxu0 0.0
    %5647 = vmatpush1.msra.mxu0 0.0
    %5648 = vmatprep.subr.mxu0 0.0
    %5649 = vmatpush1.msra.mxu0 0.0
    %5650 = vmatprep.subr.mxu0 0.0
    %5651 = vmatpush1.msra.mxu0 0.0
    %5652 = vmatprep.subr.mxu0 0.0
    %5653 = vmatpush1.msra.mxu0 0.0
    %5654 = vmatprep.subr.mxu0 0.0
    %5655 = vmatpush1.msra.mxu0 0.0
    %5656 = vmatprep.mubr.f32.mxu0 0.0
    %5657 = vmatmul.mubr.f32.gmra.mrb[0].mxu0 %v5587
    %v5658 = vpop.f32.mrb[0].mxu0
    %v5659 = vadd.f32 %v5584, %v5658
    %v5660 = vpop.f32.mrb[0].mxu0
    %5661 = vmatprep.mubr.f32.mxu0 0.0
    %5662 = vmatmul.mubr.f32.gmra.mrb[0].mxu0 %v5590
    %v5663 = vpop.f32.mrb[0].mxu0
    %v5664 = vadd.f32 %v5584, %v5663
    %v5665 = vpop.f32.mrb[0].mxu0
    %5666 = vdwg.mxu0
    %v5667 = vadd.f32 %v4887, %v5659
    %v5668 = vadd.f32 %v4888, %v5664
    %s5669 = scalar_lea.vmem %s25, 4
    %v5670 = vld [vmem:[%s5669] sm:$0x1]
    %s5671 = scalar_lea.vmem %s27, 4
    %v5672 = vld [vmem:[%s5671] sm:$0x1]
    %v5673 = vsel %vm231, %v5667, 0.0
    %5674 = vadd.xlane.f32.xlu0 %v5673
    %v5675 = vpop.xlane.xlu0 %5674
    %v5676 = vsel %vm231, %v5668, 0.0
    %5677 = vadd.xlane.f32.xlu0 %v5676
    %v5678 = vpop.xlane.xlu0 %5677
    %v5679 = vmul.f32 %v5675, %v1262
    %v5680 = vmul.f32 %v5678, %v1262
    %v5681 = vsub.f32 %v5667, %v5679
    %v5682 = vsub.f32 %v5668, %v5680
    %v5683 = vmul.f32 %v5681, %v5681
    %v5684 = vmul.f32 %v5682, %v5682
    %v5685 = vsel %vm231, %v5683, 0.0
    %5686 = vadd.xlane.f32.xlu0 %v5685
    %v5687 = vpop.xlane.xlu0 %5686
    %v5688 = vsel %vm231, %v5684, 0.0
    %5689 = vadd.xlane.f32.xlu0 %v5688
    %v5690 = vpop.xlane.xlu0 %5689
    %v5691 = vmul.f32 %v5687, %v1262
    %v5692 = vmul.f32 %v5690, %v1262
    %v5693 = vadd.f32 %v5691, 1e-05
    %v5694 = vadd.f32 %v5692, 1e-05
    %v5695 = vrsqrt.pop %v5693
    %v5696 = vrsqrt.pop %v5694
    %v5697 = vmul.f32 %v5681, %v5695
    %v5698 = vmul.f32 %v5682, %v5696
    %v5700 = vlaneseq
    %v5701 = vshrl.u32 %v5700, 7
    %v5702 = vsub.s32 0, %v5701
    %v5703 = vrot.slane %v5670, %v5702
    %v5705 = vmul.f32 %v5697, %v5703
    %v5706 = vmul.f32 %v5698, %v5703
    %v5708 = vlaneseq
    %v5709 = vshrl.u32 %v5708, 7
    %v5710 = vsub.s32 0, %v5709
    %v5711 = vrot.slane %v5672, %v5710
    %v5713 = vadd.f32 %v5705, %v5711
    %v5714 = vadd.f32 %v5706, %v5711
    %s5715 = scalar_lea.vmem %s29, 512
    %v5716 = vld [vmem:[%s5715] sm:$0xff]
    %v5717 = vld [vmem:[%s5715 + $0x8] sm:$0xff]
    %v5718 = vld [vmem:[%s5715 + $0x10] sm:$0xff]
    %v5719 = vld [vmem:[%s5715 + $0x18] sm:$0xff]
    %v5720 = vld [vmem:[%s5715 + $0x20] sm:$0xff]
    %v5721 = vld [vmem:[%s5715 + $0x28] sm:$0xff]
    %v5722 = vld [vmem:[%s5715 + $0x30] sm:$0xff]
    %v5723 = vld [vmem:[%s5715 + $0x38] sm:$0xff]
    %v5724 = vld [vmem:[%s5715 + $0x40] sm:$0xff]
    %v5725 = vld [vmem:[%s5715 + $0x48] sm:$0xff]
    %v5726 = vld [vmem:[%s5715 + $0x50] sm:$0xff]
    %v5727 = vld [vmem:[%s5715 + $0x58] sm:$0xff]
    %v5728 = vld [vmem:[%s5715 + $0x60] sm:$0xff]
    %v5729 = vld [vmem:[%s5715 + $0x68] sm:$0xff]
    %v5730 = vld [vmem:[%s5715 + $0x70] sm:$0xff]
    %v5731 = vld [vmem:[%s5715 + $0x78] sm:$0xff]
    %s5732 = scalar_lea.vmem %s31, 8
    %v5733 = vld [vmem:[%s5732] sm:$0x3]
    %v5735 = vlaneseq
    %v5736 = vshrl.u32 %v5735, 7
    %v5737 = vsub.s32 0, %v5736
    %v5738 = vrot.slane %v5733, %v5737
    %v5739 = vlaneseq
    %v5740 = vshrl.u32 %v5739, 7
    %v5741 = vsub.s32 1, %v5740
    %v5742 = vrot.slane %v5733, %v5741
    %v5746 = vsel %vm231, %v5713, 0
    %v5749 = vsel %vm231, %v5714, 0
    %5751 = vmatprep.subr.mxu0 %v5717
    %5752 = vmatpush1.msra.mxu0 %v5716
    %5753 = vmatprep.subr.mxu0 %v5719
    %5754 = vmatpush1.msra.mxu0 %v5718
    %5755 = vmatprep.subr.mxu0 %v5721
    %5756 = vmatpush1.msra.mxu0 %v5720
    %5757 = vmatprep.subr.mxu0 %v5723
    %5758 = vmatpush1.msra.mxu0 %v5722
    %5759 = vmatprep.subr.mxu0 %v5725
    %5760 = vmatpush1.msra.mxu0 %v5724
    %5761 = vmatprep.subr.mxu0 %v5727
    %5762 = vmatpush1.msra.mxu0 %v5726
    %5763 = vmatprep.subr.mxu0 %v5729
    %5764 = vmatpush1.msra.mxu0 %v5728
    %5765 = vmatprep.subr.mxu0 %v5731
    %5766 = vmatpush1.msra.mxu0 %v5730
    %5767 = vmatprep.subr.mxu0 0.0
    %5768 = vmatpush1.msra.mxu0 0.0
    %5769 = vmatprep.subr.mxu0 0.0
    %5770 = vmatpush1.msra.mxu0 0.0
    %5771 = vmatprep.subr.mxu0 0.0
    %5772 = vmatpush1.msra.mxu0 0.0
    %5773 = vmatprep.subr.mxu0 0.0
    %5774 = vmatpush1.msra.mxu0 0.0
    %5775 = vmatprep.subr.mxu0 0.0
    %5776 = vmatpush1.msra.mxu0 0.0
    %5777 = vmatprep.subr.mxu0 0.0
    %5778 = vmatpush1.msra.mxu0 0.0
    %5779 = vmatprep.subr.mxu0 0.0
    %5780 = vmatpush1.msra.mxu0 0.0
    %5781 = vmatprep.subr.mxu0 0.0
    %5782 = vmatpush1.msra.mxu0 0.0
    %5783 = vmatprep.subr.mxu0 0.0
    %5784 = vmatpush1.msra.mxu0 0.0
    %5785 = vmatprep.subr.mxu0 0.0
    %5786 = vmatpush1.msra.mxu0 0.0
    %5787 = vmatprep.subr.mxu0 0.0
    %5788 = vmatpush1.msra.mxu0 0.0
    %5789 = vmatprep.subr.mxu0 0.0
    %5790 = vmatpush1.msra.mxu0 0.0
    %5791 = vmatprep.subr.mxu0 0.0
    %5792 = vmatpush1.msra.mxu0 0.0
    %5793 = vmatprep.subr.mxu0 0.0
    %5794 = vmatpush1.msra.mxu0 0.0
    %5795 = vmatprep.subr.mxu0 0.0
    %5796 = vmatpush1.msra.mxu0 0.0
    %5797 = vmatprep.subr.mxu0 0.0
    %5798 = vmatpush1.msra.mxu0 0.0
    %5799 = vmatprep.subr.mxu0 0.0
    %5800 = vmatpush1.msra.mxu0 0.0
    %5801 = vmatprep.subr.mxu0 0.0
    %5802 = vmatpush1.msra.mxu0 0.0
    %5803 = vmatprep.subr.mxu0 0.0
    %5804 = vmatpush1.msra.mxu0 0.0
    %5805 = vmatprep.subr.mxu0 0.0
    %5806 = vmatpush1.msra.mxu0 0.0
    %5807 = vmatprep.subr.mxu0 0.0
    %5808 = vmatpush1.msra.mxu0 0.0
    %5809 = vmatprep.subr.mxu0 0.0
    %5810 = vmatpush1.msra.mxu0 0.0
    %5811 = vmatprep.subr.mxu0 0.0
    %5812 = vmatpush1.msra.mxu0 0.0
    %5813 = vmatprep.subr.mxu0 0.0
    %5814 = vmatpush1.msra.mxu0 0.0
    %5815 = vmatprep.mubr.f32.mxu0 0.0
    %5816 = vmatmul.mubr.f32.gmra.mrb[0].mxu0 %v5746
    %v5817 = vpop.f32.mrb[0].mxu0
    %v5818 = vadd.f32 %v5738, %v5817
    %v5819 = vpop.f32.mrb[0].mxu0
    %v5820 = vadd.f32 %v5742, %v5819
    %5821 = vmatprep.mubr.f32.mxu0 0.0
    %5822 = vmatmul.mubr.f32.gmra.mrb[0].mxu0 %v5749
    %v5823 = vpop.f32.mrb[0].mxu0
    %v5824 = vadd.f32 %v5738, %v5823
    %v5825 = vpop.f32.mrb[0].mxu0
    %v5826 = vadd.f32 %v5742, %v5825
    %5827 = vdwg.mxu0
    %v5828 = vmax.f32 %v5818, 0.0
    %v5829 = vmax.f32 %v5820, 0.0
    %v5830 = vmax.f32 %v5824, 0.0
    %v5831 = vmax.f32 %v5826, 0.0
    %s5832 = scalar_lea.vmem %s33, 1024
    %v5833 = vld [vmem:[%s5832] sm:$0xff]
    %v5834 = vld [vmem:[%s5832 + $0x8] sm:$0xff]
    %v5835 = vld [vmem:[%s5832 + $0x10] sm:$0xff]
    %v5836 = vld [vmem:[%s5832 + $0x18] sm:$0xff]
    %v5837 = vld [vmem:[%s5832 + $0x20] sm:$0xff]
    %v5838 = vld [vmem:[%s5832 + $0x28] sm:$0xff]
    %v5839 = vld [vmem:[%s5832 + $0x30] sm:$0xff]
    %v5840 = vld [vmem:[%s5832 + $0x38] sm:$0xff]
    %v5841 = vld [vmem:[%s5832 + $0x40] sm:$0xff]
    %v5842 = vld [vmem:[%s5832 + $0x48] sm:$0xff]
    %v5843 = vld [vmem:[%s5832 + $0x50] sm:$0xff]
    %v5844 = vld [vmem:[%s5832 + $0x58] sm:$0xff]
    %v5845 = vld [vmem:[%s5832 + $0x60] sm:$0xff]
    %v5846 = vld [vmem:[%s5832 + $0x68] sm:$0xff]
    %v5847 = vld [vmem:[%s5832 + $0x70] sm:$0xff]
    %v5848 = vld [vmem:[%s5832 + $0x78] sm:$0xff]
    %v5849 = vld [vmem:[%s5832 + $0x80] sm:$0xff]
    %v5850 = vld [vmem:[%s5832 + $0x88] sm:$0xff]
    %v5851 = vld [vmem:[%s5832 + $0x90] sm:$0xff]
    %v5852 = vld [vmem:[%s5832 + $0x98] sm:$0xff]
    %v5853 = vld [vmem:[%s5832 + $0xa0] sm:$0xff]
    %v5854 = vld [vmem:[%s5832 + $0xa8] sm:$0xff]
    %v5855 = vld [vmem:[%s5832 + $0xb0] sm:$0xff]
    %v5856 = vld [vmem:[%s5832 + $0xb8] sm:$0xff]
    %v5857 = vld [vmem:[%s5832 + $0xc0] sm:$0xff]
    %v5858 = vld [vmem:[%s5832 + $0xc8] sm:$0xff]
    %v5859 = vld [vmem:[%s5832 + $0xd0] sm:$0xff]
    %v5860 = vld [vmem:[%s5832 + $0xd8] sm:$0xff]
    %v5861 = vld [vmem:[%s5832 + $0xe0] sm:$0xff]
    %v5862 = vld [vmem:[%s5832 + $0xe8] sm:$0xff]
    %v5863 = vld [vmem:[%s5832 + $0xf0] sm:$0xff]
    %v5864 = vld [vmem:[%s5832 + $0xf8] sm:$0xff]
    %s5865 = scalar_lea.vmem %s35, 4
    %v5866 = vld [vmem:[%s5865] sm:$0x1]
    %v5868 = vlaneseq
    %v5869 = vshrl.u32 %v5868, 7
    %v5870 = vsub.s32 0, %v5869
    %v5871 = vrot.slane %v5866, %v5870
    %5873 = vmatprep.subr.mxu0 0.0
    %5874 = vmatpush1.msra.mxu0 %v5833
    %5875 = vmatprep.subr.mxu0 0.0
    %5876 = vmatpush1.msra.mxu0 %v5834
    %5877 = vmatprep.subr.mxu0 0.0
    %5878 = vmatpush1.msra.mxu0 %v5835
    %5879 = vmatprep.subr.mxu0 0.0
    %5880 = vmatpush1.msra.mxu0 %v5836
    %5881 = vmatprep.subr.mxu0 0.0
    %5882 = vmatpush1.msra.mxu0 %v5837
    %5883 = vmatprep.subr.mxu0 0.0
    %5884 = vmatpush1.msra.mxu0 %v5838
    %5885 = vmatprep.subr.mxu0 0.0
    %5886 = vmatpush1.msra.mxu0 %v5839
    %5887 = vmatprep.subr.mxu0 0.0
    %5888 = vmatpush1.msra.mxu0 %v5840
    %5889 = vmatprep.subr.mxu0 0.0
    %5890 = vmatpush1.msra.mxu0 %v5841
    %5891 = vmatprep.subr.mxu0 0.0
    %5892 = vmatpush1.msra.mxu0 %v5842
    %5893 = vmatprep.subr.mxu0 0.0
    %5894 = vmatpush1.msra.mxu0 %v5843
    %5895 = vmatprep.subr.mxu0 0.0
    %5896 = vmatpush1.msra.mxu0 %v5844
    %5897 = vmatprep.subr.mxu0 0.0
    %5898 = vmatpush1.msra.mxu0 %v5845
    %5899 = vmatprep.subr.mxu0 0.0
    %5900 = vmatpush1.msra.mxu0 %v5846
    %5901 = vmatprep.subr.mxu0 0.0
    %5902 = vmatpush1.msra.mxu0 %v5847
    %5903 = vmatprep.subr.mxu0 0.0
    %5904 = vmatpush1.msra.mxu0 %v5848
    %5905 = vmatprep.subr.mxu0 0.0
    %5906 = vmatpush1.msra.mxu0 %v5849
    %5907 = vmatprep.subr.mxu0 0.0
    %5908 = vmatpush1.msra.mxu0 %v5850
    %5909 = vmatprep.subr.mxu0 0.0
    %5910 = vmatpush1.msra.mxu0 %v5851
    %5911 = vmatprep.subr.mxu0 0.0
    %5912 = vmatpush1.msra.mxu0 %v5852
    %5913 = vmatprep.subr.mxu0 0.0
    %5914 = vmatpush1.msra.mxu0 %v5853
    %5915 = vmatprep.subr.mxu0 0.0
    %5916 = vmatpush1.msra.mxu0 %v5854
    %5917 = vmatprep.subr.mxu0 0.0
    %5918 = vmatpush1.msra.mxu0 %v5855
    %5919 = vmatprep.subr.mxu0 0.0
    %5920 = vmatpush1.msra.mxu0 %v5856
    %5921 = vmatprep.subr.mxu0 0.0
    %5922 = vmatpush1.msra.mxu0 %v5857
    %5923 = vmatprep.subr.mxu0 0.0
    %5924 = vmatpush1.msra.mxu0 %v5858
    %5925 = vmatprep.subr.mxu0 0.0
    %5926 = vmatpush1.msra.mxu0 %v5859
    %5927 = vmatprep.subr.mxu0 0.0
    %5928 = vmatpush1.msra.mxu0 %v5860
    %5929 = vmatprep.subr.mxu0 0.0
    %5930 = vmatpush1.msra.mxu0 %v5861
    %5931 = vmatprep.subr.mxu0 0.0
    %5932 = vmatpush1.msra.mxu0 %v5862
    %5933 = vmatprep.subr.mxu0 0.0
    %5934 = vmatpush1.msra.mxu0 %v5863
    %5935 = vmatprep.subr.mxu0 0.0
    %5936 = vmatpush1.msra.mxu0 %v5864
    %5937 = vmatprep.mubr.f32.mxu0 %v5829
    %5938 = vmatmul.mubr.f32.gmra.mrb[0].mxu0 %v5828
    %v5939 = vpop.f32.mrb[0].mxu0
    %v5940 = vadd.f32 %v5871, %v5939
    %v5941 = vpop.f32.mrb[0].mxu0
    %5942 = vmatprep.mubr.f32.mxu0 %v5831
    %5943 = vmatmul.mubr.f32.gmra.mrb[0].mxu0 %v5830
    %v5944 = vpop.f32.mrb[0].mxu0
    %v5945 = vadd.f32 %v5871, %v5944
    %v5946 = vpop.f32.mrb[0].mxu0
    %5947 = vdwg.mxu0
    %v5948 = vadd.f32 %v5713, %v5940
    %v5949 = vadd.f32 %v5714, %v5945
    %s5950 = scalar_lea.vmem %s37, 4
    %v5951 = vld [vmem:[%s5950] sm:$0x1]
    %s5952 = scalar_lea.vmem %s39, 4
    %v5953 = vld [vmem:[%s5952] sm:$0x1]
    %v5954 = vsel %vm231, %v5948, 0.0
    %5955 = vadd.xlane.f32.xlu0 %v5954
    %v5956 = vpop.xlane.xlu0 %5955
    %v5957 = vsel %vm231, %v5949, 0.0
    %5958 = vadd.xlane.f32.xlu0 %v5957
    %v5959 = vpop.xlane.xlu0 %5958
    %v5960 = vmul.f32 %v5956, %v1262
    %v5961 = vmul.f32 %v5959, %v1262
    %v5962 = vsub.f32 %v5948, %v5960
    %v5963 = vsub.f32 %v5949, %v5961
    %v5964 = vmul.f32 %v5962, %v5962
    %v5965 = vmul.f32 %v5963, %v5963
    %v5966 = vsel %vm231, %v5964, 0.0
    %5967 = vadd.xlane.f32.xlu0 %v5966
    %v5968 = vpop.xlane.xlu0 %5967
    %v5969 = vsel %vm231, %v5965, 0.0
    %5970 = vadd.xlane.f32.xlu0 %v5969
    %v5971 = vpop.xlane.xlu0 %5970
    %v5972 = vmul.f32 %v5968, %v1262
    %v5973 = vmul.f32 %v5971, %v1262
    %v5974 = vadd.f32 %v5972, 1e-05
    %v5975 = vadd.f32 %v5973, 1e-05
    %v5976 = vrsqrt.pop %v5974
    %v5977 = vrsqrt.pop %v5975
    %v5978 = vmul.f32 %v5962, %v5976
    %v5979 = vmul.f32 %v5963, %v5977
    %v5981 = vlaneseq
    %v5982 = vshrl.u32 %v5981, 7
    %v5983 = vsub.s32 0, %v5982
    %v5984 = vrot.slane %v5951, %v5983
    %v5986 = vmul.f32 %v5978, %v5984
    %v5987 = vmul.f32 %v5979, %v5984
    %v5989 = vlaneseq
    %v5990 = vshrl.u32 %v5989, 7
    %v5991 = vsub.s32 0, %v5990
    %v5992 = vrot.slane %v5953, %v5991
    %v5994 = vadd.f32 %v5986, %v5992
    %v5995 = vadd.f32 %v5987, %v5992
    %v5996 = vld [vmem:[%s49] sm:$0x3]
    %v5998 = vsel %vm740, %v5996, 0
    %6000 = vmatprep.subr.mxu0 0.0
    %6001 = vmatpush1.msra.mxu0 %v1572
    %6002 = vmatprep.subr.mxu0 0.0
    %6003 = vmatpush1.msra.mxu0 %v1573
    %6004 = vmatprep.subr.mxu0 0.0
    %6005 = vmatpush1.msra.mxu0 0.0
    %6006 = vmatprep.subr.mxu0 0.0
    %6007 = vmatpush1.msra.mxu0 0.0
    %6008 = vmatprep.subr.mxu0 0.0
    %6009 = vmatpush1.msra.mxu0 0.0
    %6010 = vmatprep.subr.mxu0 0.0
    %6011 = vmatpush1.msra.mxu0 0.0
    %6012 = vmatprep.subr.mxu0 0.0
    %6013 = vmatpush1.msra.mxu0 0.0
    %6014 = vmatprep.subr.mxu0 0.0
    %6015 = vmatpush1.msra.mxu0 0.0
    %6016 = vmatprep.subr.mxu0 0.0
    %6017 = vmatpush1.msra.mxu0 0.0
    %6018 = vmatprep.subr.mxu0 0.0
    %6019 = vmatpush1.msra.mxu0 0.0
    %6020 = vmatprep.subr.mxu0 0.0
    %6021 = vmatpush1.msra.mxu0 0.0
    %6022 = vmatprep.subr.mxu0 0.0
    %6023 = vmatpush1.msra.mxu0 0.0
    %6024 = vmatprep.subr.mxu0 0.0
    %6025 = vmatpush1.msra.mxu0 0.0
    %6026 = vmatprep.subr.mxu0 0.0
    %6027 = vmatpush1.msra.mxu0 0.0
    %6028 = vmatprep.subr.mxu0 0.0
    %6029 = vmatpush1.msra.mxu0 0.0
    %6030 = vmatprep.subr.mxu0 0.0
    %6031 = vmatpush1.msra.mxu0 0.0
    %6032 = vmatprep.subr.mxu0 0.0
    %6033 = vmatpush1.msra.mxu0 0.0
    %6034 = vmatprep.subr.mxu0 0.0
    %6035 = vmatpush1.msra.mxu0 0.0
    %6036 = vmatprep.subr.mxu0 0.0
    %6037 = vmatpush1.msra.mxu0 0.0
    %6038 = vmatprep.subr.mxu0 0.0
    %6039 = vmatpush1.msra.mxu0 0.0
    %6040 = vmatprep.subr.mxu0 0.0
    %6041 = vmatpush1.msra.mxu0 0.0
    %6042 = vmatprep.subr.mxu0 0.0
    %6043 = vmatpush1.msra.mxu0 0.0
    %6044 = vmatprep.subr.mxu0 0.0
    %6045 = vmatpush1.msra.mxu0 0.0
    %6046 = vmatprep.subr.mxu0 0.0
    %6047 = vmatpush1.msra.mxu0 0.0
    %6048 = vmatprep.subr.mxu0 0.0
    %6049 = vmatpush1.msra.mxu0 0.0
    %6050 = vmatprep.subr.mxu0 0.0
    %6051 = vmatpush1.msra.mxu0 0.0
    %6052 = vmatprep.subr.mxu0 0.0
    %6053 = vmatpush1.msra.mxu0 0.0
    %6054 = vmatprep.subr.mxu0 0.0
    %6055 = vmatpush1.msra.mxu0 0.0
    %6056 = vmatprep.subr.mxu0 0.0
    %6057 = vmatpush1.msra.mxu0 0.0
    %6058 = vmatprep.subr.mxu0 0.0
    %6059 = vmatpush1.msra.mxu0 0.0
    %6060 = vmatprep.subr.mxu0 0.0
    %6061 = vmatpush1.msra.mxu0 0.0
    %6062 = vmatprep.subr.mxu0 0.0
    %6063 = vmatpush1.msra.mxu0 0.0
    %6064 = vmatprep.mubr.f32.mxu0 0.0
    %6065 = vmatmul.mubr.f32.gmra.mrb[0].mxu0 %v5998
    %v6066 = vpop.f32.mrb[0].mxu0
    %v6067 = vadd.f32 0.0, %v6066
    %v6068 = vpop.f32.mrb[0].mxu0
    %6069 = vdwg.mxu0
    %6070 = vmatprep.subr.mxu0 0.0
    %6071 = vmatpush1.msra.mxu0 %v5994
    %6072 = vmatprep.subr.mxu0 0.0
    %6073 = vmatpush1.msra.mxu0 %v5995
    %6074 = vmatprep.subr.mxu0 0.0
    %6075 = vmatpush1.msra.mxu0 0.0
    %6076 = vmatprep.subr.mxu0 0.0
    %6077 = vmatpush1.msra.mxu0 0.0
    %6078 = vmatprep.subr.mxu0 0.0
    %6079 = vmatpush1.msra.mxu0 0.0
    %6080 = vmatprep.subr.mxu0 0.0
    %6081 = vmatpush1.msra.mxu0 0.0
    %6082 = vmatprep.subr.mxu0 0.0
    %6083 = vmatpush1.msra.mxu0 0.0
    %6084 = vmatprep.subr.mxu0 0.0
    %6085 = vmatpush1.msra.mxu0 0.0
    %6086 = vmatprep.subr.mxu0 0.0
    %6087 = vmatpush1.msra.mxu0 0.0
    %6088 = vmatprep.subr.mxu0 0.0
    %6089 = vmatpush1.msra.mxu0 0.0
    %6090 = vmatprep.subr.mxu0 0.0
    %6091 = vmatpush1.msra.mxu0 0.0
    %6092 = vmatprep.subr.mxu0 0.0
    %6093 = vmatpush1.msra.mxu0 0.0
    %6094 = vmatprep.subr.mxu0 0.0
    %6095 = vmatpush1.msra.mxu0 0.0
    %6096 = vmatprep.subr.mxu0 0.0
    %6097 = vmatpush1.msra.mxu0 0.0
    %6098 = vmatprep.subr.mxu0 0.0
    %6099 = vmatpush1.msra.mxu0 0.0
    %6100 = vmatprep.subr.mxu0 0.0
    %6101 = vmatpush1.msra.mxu0 0.0
    %6102 = vmatprep.subr.mxu0 0.0
    %6103 = vmatpush1.msra.mxu0 0.0
    %6104 = vmatprep.subr.mxu0 0.0
    %6105 = vmatpush1.msra.mxu0 0.0
    %6106 = vmatprep.subr.mxu0 0.0
    %6107 = vmatpush1.msra.mxu0 0.0
    %6108 = vmatprep.subr.mxu0 0.0
    %6109 = vmatpush1.msra.mxu0 0.0
    %6110 = vmatprep.subr.mxu0 0.0
    %6111 = vmatpush1.msra.mxu0 0.0
    %6112 = vmatprep.subr.mxu0 0.0
    %6113 = vmatpush1.msra.mxu0 0.0
    %6114 = vmatprep.subr.mxu0 0.0
    %6115 = vmatpush1.msra.mxu0 0.0
    %6116 = vmatprep.subr.mxu0 0.0
    %6117 = vmatpush1.msra.mxu0 0.0
    %6118 = vmatprep.subr.mxu0 0.0
    %6119 = vmatpush1.msra.mxu0 0.0
    %6120 = vmatprep.subr.mxu0 0.0
    %6121 = vmatpush1.msra.mxu0 0.0
    %6122 = vmatprep.subr.mxu0 0.0
    %6123 = vmatpush1.msra.mxu0 0.0
    %6124 = vmatprep.subr.mxu0 0.0
    %6125 = vmatpush1.msra.mxu0 0.0
    %6126 = vmatprep.subr.mxu0 0.0
    %6127 = vmatpush1.msra.mxu0 0.0
    %6128 = vmatprep.subr.mxu0 0.0
    %6129 = vmatpush1.msra.mxu0 0.0
    %6130 = vmatprep.subr.mxu0 0.0
    %6131 = vmatpush1.msra.mxu0 0.0
    %6132 = vmatprep.subr.mxu0 0.0
    %6133 = vmatpush1.msra.mxu0 0.0
    %6134 = vmatprep.mubr.f32.mxu0 0.0
    %6135 = vmatmul.mubr.f32.gmra.mrb[0].mxu0 %v5998
    %v6136 = vpop.f32.mrb[0].mxu0
    %v6137 = vadd.f32 0.0, %v6136
    %v6138 = vpop.f32.mrb[0].mxu0
    %6139 = vdwg.mxu0
    %v6140 = vld [vmem:[%s51] sm:$0xff]
    %v6141 = vld [vmem:[%s51 + $0x8] sm:$0xff]
    %v6142 = vld [vmem:[%s51 + $0x10] sm:$0xff]
    %v6143 = vld [vmem:[%s51 + $0x18] sm:$0xff]
    %v6144 = vld [vmem:[%s51 + $0x20] sm:$0xff]
    %v6145 = vld [vmem:[%s51 + $0x28] sm:$0xff]
    %v6146 = vld [vmem:[%s51 + $0x30] sm:$0xff]
    %v6147 = vld [vmem:[%s51 + $0x38] sm:$0xff]
    %v6148 = vld [vmem:[%s53] sm:$0xff]
    %v6149 = vld [vmem:[%s53 + $0x8] sm:$0xff]
    %v6150 = vld [vmem:[%s53 + $0x10] sm:$0xff]
    %v6151 = vld [vmem:[%s53 + $0x18] sm:$0xff]
    %v6152 = vld [vmem:[%s53 + $0x20] sm:$0xff]
    %v6153 = vld [vmem:[%s53 + $0x28] sm:$0xff]
    %v6154 = vld [vmem:[%s53 + $0x30] sm:$0xff]
    %v6155 = vld [vmem:[%s53 + $0x38] sm:$0xff]
    %v6157 = vsel %vm231, %v6137, 0
    %6159 = vmatprep.subr.mxu0 0.0
    %6160 = vmatpush1.msra.mxu0 %v6148
    %6161 = vmatprep.subr.mxu0 0.0
    %6162 = vmatpush1.msra.mxu0 %v6149
    %6163 = vmatprep.subr.mxu0 0.0
    %6164 = vmatpush1.msra.mxu0 %v6150
    %6165 = vmatprep.subr.mxu0 0.0
    %6166 = vmatpush1.msra.mxu0 %v6151
    %6167 = vmatprep.subr.mxu0 0.0
    %6168 = vmatpush1.msra.mxu0 %v6152
    %6169 = vmatprep.subr.mxu0 0.0
    %6170 = vmatpush1.msra.mxu0 %v6153
    %6171 = vmatprep.subr.mxu0 0.0
    %6172 = vmatpush1.msra.mxu0 %v6154
    %6173 = vmatprep.subr.mxu0 0.0
    %6174 = vmatpush1.msra.mxu0 %v6155
    %6175 = vmatprep.subr.mxu0 0.0
    %6176 = vmatpush1.msra.mxu0 0.0
    %6177 = vmatprep.subr.mxu0 0.0
    %6178 = vmatpush1.msra.mxu0 0.0
    %6179 = vmatprep.subr.mxu0 0.0
    %6180 = vmatpush1.msra.mxu0 0.0
    %6181 = vmatprep.subr.mxu0 0.0
    %6182 = vmatpush1.msra.mxu0 0.0
    %6183 = vmatprep.subr.mxu0 0.0
    %6184 = vmatpush1.msra.mxu0 0.0
    %6185 = vmatprep.subr.mxu0 0.0
    %6186 = vmatpush1.msra.mxu0 0.0
    %6187 = vmatprep.subr.mxu0 0.0
    %6188 = vmatpush1.msra.mxu0 0.0
    %6189 = vmatprep.subr.mxu0 0.0
    %6190 = vmatpush1.msra.mxu0 0.0
    %6191 = vmatprep.subr.mxu0 0.0
    %6192 = vmatpush1.msra.mxu0 0.0
    %6193 = vmatprep.subr.mxu0 0.0
    %6194 = vmatpush1.msra.mxu0 0.0
    %6195 = vmatprep.subr.mxu0 0.0
    %6196 = vmatpush1.msra.mxu0 0.0
    %6197 = vmatprep.subr.mxu0 0.0
    %6198 = vmatpush1.msra.mxu0 0.0
    %6199 = vmatprep.subr.mxu0 0.0
    %6200 = vmatpush1.msra.mxu0 0.0
    %6201 = vmatprep.subr.mxu0 0.0
    %6202 = vmatpush1.msra.mxu0 0.0
    %6203 = vmatprep.subr.mxu0 0.0
    %6204 = vmatpush1.msra.mxu0 0.0
    %6205 = vmatprep.subr.mxu0 0.0
    %6206 = vmatpush1.msra.mxu0 0.0
    %6207 = vmatprep.subr.mxu0 0.0
    %6208 = vmatpush1.msra.mxu0 0.0
    %6209 = vmatprep.subr.mxu0 0.0
    %6210 = vmatpush1.msra.mxu0 0.0
    %6211 = vmatprep.subr.mxu0 0.0
    %6212 = vmatpush1.msra.mxu0 0.0
    %6213 = vmatprep.subr.mxu0 0.0
    %6214 = vmatpush1.msra.mxu0 0.0
    %6215 = vmatprep.subr.mxu0 0.0
    %6216 = vmatpush1.msra.mxu0 0.0
    %6217 = vmatprep.subr.mxu0 0.0
    %6218 = vmatpush1.msra.mxu0 0.0
    %6219 = vmatprep.subr.mxu0 0.0
    %6220 = vmatpush1.msra.mxu0 0.0
    %6221 = vmatprep.subr.mxu0 0.0
    %6222 = vmatpush1.msra.mxu0 0.0
    %6223 = vmatprep.mubr.f32.mxu0 0.0
    %6224 = vmatmul.mubr.f32.gmra.mrb[0].mxu0 %v6157
    %v6225 = vpop.f32.mrb[0].mxu0
    %v6226 = vadd.f32 0.0, %v6225
    %v6227 = vpop.f32.mrb[0].mxu0
    %6228 = vdwg.mxu0
    %v6230 = vsel %vm231, %v6067, 0
    %6232 = vmatprep.subr.mxu0 0.0
    %6233 = vmatpush1.msra.mxu0 %v6140
    %6234 = vmatprep.subr.mxu0 0.0
    %6235 = vmatpush1.msra.mxu0 %v6141
    %6236 = vmatprep.subr.mxu0 0.0
    %6237 = vmatpush1.msra.mxu0 %v6142
    %6238 = vmatprep.subr.mxu0 0.0
    %6239 = vmatpush1.msra.mxu0 %v6143
    %6240 = vmatprep.subr.mxu0 0.0
    %6241 = vmatpush1.msra.mxu0 %v6144
    %6242 = vmatprep.subr.mxu0 0.0
    %6243 = vmatpush1.msra.mxu0 %v6145
    %6244 = vmatprep.subr.mxu0 0.0
    %6245 = vmatpush1.msra.mxu0 %v6146
    %6246 = vmatprep.subr.mxu0 0.0
    %6247 = vmatpush1.msra.mxu0 %v6147
    %6248 = vmatprep.subr.mxu0 0.0
    %6249 = vmatpush1.msra.mxu0 0.0
    %6250 = vmatprep.subr.mxu0 0.0
    %6251 = vmatpush1.msra.mxu0 0.0
    %6252 = vmatprep.subr.mxu0 0.0
    %6253 = vmatpush1.msra.mxu0 0.0
    %6254 = vmatprep.subr.mxu0 0.0
    %6255 = vmatpush1.msra.mxu0 0.0
    %6256 = vmatprep.subr.mxu0 0.0
    %6257 = vmatpush1.msra.mxu0 0.0
    %6258 = vmatprep.subr.mxu0 0.0
    %6259 = vmatpush1.msra.mxu0 0.0
    %6260 = vmatprep.subr.mxu0 0.0
    %6261 = vmatpush1.msra.mxu0 0.0
    %6262 = vmatprep.subr.mxu0 0.0
    %6263 = vmatpush1.msra.mxu0 0.0
    %6264 = vmatprep.subr.mxu0 0.0
    %6265 = vmatpush1.msra.mxu0 0.0
    %6266 = vmatprep.subr.mxu0 0.0
    %6267 = vmatpush1.msra.mxu0 0.0
    %6268 = vmatprep.subr.mxu0 0.0
    %6269 = vmatpush1.msra.mxu0 0.0
    %6270 = vmatprep.subr.mxu0 0.0
    %6271 = vmatpush1.msra.mxu0 0.0
    %6272 = vmatprep.subr.mxu0 0.0
    %6273 = vmatpush1.msra.mxu0 0.0
    %6274 = vmatprep.subr.mxu0 0.0
    %6275 = vmatpush1.msra.mxu0 0.0
    %6276 = vmatprep.subr.mxu0 0.0
    %6277 = vmatpush1.msra.mxu0 0.0
    %6278 = vmatprep.subr.mxu0 0.0
    %6279 = vmatpush1.msra.mxu0 0.0
    %6280 = vmatprep.subr.mxu0 0.0
    %6281 = vmatpush1.msra.mxu0 0.0
    %6282 = vmatprep.subr.mxu0 0.0
    %6283 = vmatpush1.msra.mxu0 0.0
    %6284 = vmatprep.subr.mxu0 0.0
    %6285 = vmatpush1.msra.mxu0 0.0
    %6286 = vmatprep.subr.mxu0 0.0
    %6287 = vmatpush1.msra.mxu0 0.0
    %6288 = vmatprep.subr.mxu0 0.0
    %6289 = vmatpush1.msra.mxu0 0.0
    %6290 = vmatprep.subr.mxu0 0.0
    %6291 = vmatpush1.msra.mxu0 0.0
    %6292 = vmatprep.subr.mxu0 0.0
    %6293 = vmatpush1.msra.mxu0 0.0
    %6294 = vmatprep.subr.mxu0 0.0
    %6295 = vmatpush1.msra.mxu0 0.0
    %6296 = vmatprep.mubr.f32.mxu0 0.0
    %6297 = vmatmul.mubr.f32.gmra.mrb[0].mxu0 %v6230
    %v6298 = vpop.f32.mrb[0].mxu0
    %v6299 = vadd.f32 %v6226, %v6298
    %v6300 = vpop.f32.mrb[0].mxu0
    %6301 = vdwg.mxu0
    %v6302 = vld [vmem:[%s55] sm:$0x1]
    %v6304 = vlaneseq
    %v6305 = vshrl.u32 %v6304, 7
    %v6306 = vsub.s32 0, %v6305
    %v6307 = vrot.slane %v6302, %v6306
    %v6309 = vadd.f32 %v6299, %v6307
    %v6310 = vld [vmem:[%s57] sm:$0xff]
    %v6311 = vld [vmem:[%s57 + $0x8] sm:$0xff]
    %v6312 = vld [vmem:[%s57 + $0x10] sm:$0xff]
    %v6313 = vld [vmem:[%s57 + $0x18] sm:$0xff]
    %v6314 = vld [vmem:[%s57 + $0x20] sm:$0xff]
    %v6315 = vld [vmem:[%s57 + $0x28] sm:$0xff]
    %v6316 = vld [vmem:[%s57 + $0x30] sm:$0xff]
    %v6317 = vld [vmem:[%s57 + $0x38] sm:$0xff]
    %v6318 = vld [vmem:[%s59] sm:$0x1]
    %v6320 = vlaneseq
    %v6321 = vshrl.u32 %v6320, 7
    %v6322 = vsub.s32 0, %v6321
    %v6323 = vrot.slane %v6318, %v6322
    %v6326 = vsel %vm231, %v6309, 0
    %6328 = vmatprep.subr.mxu0 0.0
    %6329 = vmatpush1.msra.mxu0 %v6310
    %6330 = vmatprep.subr.mxu0 0.0
    %6331 = vmatpush1.msra.mxu0 %v6311
    %6332 = vmatprep.subr.mxu0 0.0
    %6333 = vmatpush1.msra.mxu0 %v6312
    %6334 = vmatprep.subr.mxu0 0.0
    %6335 = vmatpush1.msra.mxu0 %v6313
    %6336 = vmatprep.subr.mxu0 0.0
    %6337 = vmatpush1.msra.mxu0 %v6314
    %6338 = vmatprep.subr.mxu0 0.0
    %6339 = vmatpush1.msra.mxu0 %v6315
    %6340 = vmatprep.subr.mxu0 0.0
    %6341 = vmatpush1.msra.mxu0 %v6316
    %6342 = vmatprep.subr.mxu0 0.0
    %6343 = vmatpush1.msra.mxu0 %v6317
    %6344 = vmatprep.subr.mxu0 0.0
    %6345 = vmatpush1.msra.mxu0 0.0
    %6346 = vmatprep.subr.mxu0 0.0
    %6347 = vmatpush1.msra.mxu0 0.0
    %6348 = vmatprep.subr.mxu0 0.0
    %6349 = vmatpush1.msra.mxu0 0.0
    %6350 = vmatprep.subr.mxu0 0.0
    %6351 = vmatpush1.msra.mxu0 0.0
    %6352 = vmatprep.subr.mxu0 0.0
    %6353 = vmatpush1.msra.mxu0 0.0
    %6354 = vmatprep.subr.mxu0 0.0
    %6355 = vmatpush1.msra.mxu0 0.0
    %6356 = vmatprep.subr.mxu0 0.0
    %6357 = vmatpush1.msra.mxu0 0.0
    %6358 = vmatprep.subr.mxu0 0.0
    %6359 = vmatpush1.msra.mxu0 0.0
    %6360 = vmatprep.subr.mxu0 0.0
    %6361 = vmatpush1.msra.mxu0 0.0
    %6362 = vmatprep.subr.mxu0 0.0
    %6363 = vmatpush1.msra.mxu0 0.0
    %6364 = vmatprep.subr.mxu0 0.0
    %6365 = vmatpush1.msra.mxu0 0.0
    %6366 = vmatprep.subr.mxu0 0.0
    %6367 = vmatpush1.msra.mxu0 0.0
    %6368 = vmatprep.subr.mxu0 0.0
    %6369 = vmatpush1.msra.mxu0 0.0
    %6370 = vmatprep.subr.mxu0 0.0
    %6371 = vmatpush1.msra.mxu0 0.0
    %6372 = vmatprep.subr.mxu0 0.0
    %6373 = vmatpush1.msra.mxu0 0.0
    %6374 = vmatprep.subr.mxu0 0.0
    %6375 = vmatpush1.msra.mxu0 0.0
    %6376 = vmatprep.subr.mxu0 0.0
    %6377 = vmatpush1.msra.mxu0 0.0
    %6378 = vmatprep.subr.mxu0 0.0
    %6379 = vmatpush1.msra.mxu0 0.0
    %6380 = vmatprep.subr.mxu0 0.0
    %6381 = vmatpush1.msra.mxu0 0.0
    %6382 = vmatprep.subr.mxu0 0.0
    %6383 = vmatpush1.msra.mxu0 0.0
    %6384 = vmatprep.subr.mxu0 0.0
    %6385 = vmatpush1.msra.mxu0 0.0
    %6386 = vmatprep.subr.mxu0 0.0
    %6387 = vmatpush1.msra.mxu0 0.0
    %6388 = vmatprep.subr.mxu0 0.0
    %6389 = vmatpush1.msra.mxu0 0.0
    %6390 = vmatprep.subr.mxu0 0.0
    %6391 = vmatpush1.msra.mxu0 0.0
    %6392 = vmatprep.mubr.f32.mxu0 0.0
    %6393 = vmatmul.mubr.f32.gmra.mrb[0].mxu0 %v6326
    %v6394 = vpop.f32.mrb[0].mxu0
    %v6395 = vadd.f32 %v6323, %v6394
    %v6396 = vpop.f32.mrb[0].mxu0
    %6397 = vdwg.mxu0
    %v6398 = vmax.f32 %v6395, 0.0
    %v6399 = vld [vmem:[%s61] sm:$0xff]
    %v6400 = vld [vmem:[%s61 + $0x8] sm:$0xff]
    %v6401 = vld [vmem:[%s61 + $0x10] sm:$0xff]
    %v6402 = vld [vmem:[%s61 + $0x18] sm:$0xff]
    %v6403 = vld [vmem:[%s61 + $0x20] sm:$0xff]
    %v6404 = vld [vmem:[%s61 + $0x28] sm:$0xff]
    %v6405 = vld [vmem:[%s61 + $0x30] sm:$0xff]
    %v6406 = vld [vmem:[%s61 + $0x38] sm:$0xff]
    %v6407 = vld [vmem:[%s63] sm:$0x1]
    %v6409 = vlaneseq
    %v6410 = vshrl.u32 %v6409, 7
    %v6411 = vsub.s32 0, %v6410
    %v6412 = vrot.slane %v6407, %v6411
    %v6415 = vsel %vm231, %v6398, 0
    %6417 = vmatprep.subr.mxu0 0.0
    %6418 = vmatpush1.msra.mxu0 %v6399
    %6419 = vmatprep.subr.mxu0 0.0
    %6420 = vmatpush1.msra.mxu0 %v6400
    %6421 = vmatprep.subr.mxu0 0.0
    %6422 = vmatpush1.msra.mxu0 %v6401
    %6423 = vmatprep.subr.mxu0 0.0
    %6424 = vmatpush1.msra.mxu0 %v6402
    %6425 = vmatprep.subr.mxu0 0.0
    %6426 = vmatpush1.msra.mxu0 %v6403
    %6427 = vmatprep.subr.mxu0 0.0
    %6428 = vmatpush1.msra.mxu0 %v6404
    %6429 = vmatprep.subr.mxu0 0.0
    %6430 = vmatpush1.msra.mxu0 %v6405
    %6431 = vmatprep.subr.mxu0 0.0
    %6432 = vmatpush1.msra.mxu0 %v6406
    %6433 = vmatprep.subr.mxu0 0.0
    %6434 = vmatpush1.msra.mxu0 0.0
    %6435 = vmatprep.subr.mxu0 0.0
    %6436 = vmatpush1.msra.mxu0 0.0
    %6437 = vmatprep.subr.mxu0 0.0
    %6438 = vmatpush1.msra.mxu0 0.0
    %6439 = vmatprep.subr.mxu0 0.0
    %6440 = vmatpush1.msra.mxu0 0.0
    %6441 = vmatprep.subr.mxu0 0.0
    %6442 = vmatpush1.msra.mxu0 0.0
    %6443 = vmatprep.subr.mxu0 0.0
    %6444 = vmatpush1.msra.mxu0 0.0
    %6445 = vmatprep.subr.mxu0 0.0
    %6446 = vmatpush1.msra.mxu0 0.0
    %6447 = vmatprep.subr.mxu0 0.0
    %6448 = vmatpush1.msra.mxu0 0.0
    %6449 = vmatprep.subr.mxu0 0.0
    %6450 = vmatpush1.msra.mxu0 0.0
    %6451 = vmatprep.subr.mxu0 0.0
    %6452 = vmatpush1.msra.mxu0 0.0
    %6453 = vmatprep.subr.mxu0 0.0
    %6454 = vmatpush1.msra.mxu0 0.0
    %6455 = vmatprep.subr.mxu0 0.0
    %6456 = vmatpush1.msra.mxu0 0.0
    %6457 = vmatprep.subr.mxu0 0.0
    %6458 = vmatpush1.msra.mxu0 0.0
    %6459 = vmatprep.subr.mxu0 0.0
    %6460 = vmatpush1.msra.mxu0 0.0
    %6461 = vmatprep.subr.mxu0 0.0
    %6462 = vmatpush1.msra.mxu0 0.0
    %6463 = vmatprep.subr.mxu0 0.0
    %6464 = vmatpush1.msra.mxu0 0.0
    %6465 = vmatprep.subr.mxu0 0.0
    %6466 = vmatpush1.msra.mxu0 0.0
    %6467 = vmatprep.subr.mxu0 0.0
    %6468 = vmatpush1.msra.mxu0 0.0
    %6469 = vmatprep.subr.mxu0 0.0
    %6470 = vmatpush1.msra.mxu0 0.0
    %6471 = vmatprep.subr.mxu0 0.0
    %6472 = vmatpush1.msra.mxu0 0.0
    %6473 = vmatprep.subr.mxu0 0.0
    %6474 = vmatpush1.msra.mxu0 0.0
    %6475 = vmatprep.subr.mxu0 0.0
    %6476 = vmatpush1.msra.mxu0 0.0
    %6477 = vmatprep.subr.mxu0 0.0
    %6478 = vmatpush1.msra.mxu0 0.0
    %6479 = vmatprep.subr.mxu0 0.0
    %6480 = vmatpush1.msra.mxu0 0.0
    %6481 = vmatprep.mubr.f32.mxu0 0.0
    %6482 = vmatmul.mubr.f32.gmra.mrb[0].mxu0 %v6415
    %v6483 = vpop.f32.mrb[0].mxu0
    %v6484 = vadd.f32 %v6412, %v6483
    %v6485 = vpop.f32.mrb[0].mxu0
    %6486 = vdwg.mxu0
    %vm6487 = vcmask 58368
    %6488 = vst.msk [vmem:[#allocation2] sm:$0x3] %vm6487, %v6484
    // Predicated region
    $region130: #{tpu_custom_call.1} parent=1 // pred_check
      _
    $region131: #{tpu_custom_call.1} parent=1 // pred_check_branch
      %6490 = sbr.rel (0) target = $region133
    $region132: #{tpu_custom_call.1} parent=1 // pred_region
      %s6492 = ssub.s32 32, 32
      %6493 = vsyncadd [#allocation3], %s6492
      %s6495 = sshll.u32 [#allocation2], 4
      %s6496 = int_to_ptr.vmem [resolvable:$true] %s6495
      %6498 = dma.vmem_to_hbm [thread:$0]  %s6496, 32, %s65, [#allocation3]
    $region133: #{tpu_custom_call.1} parent=1 // pred_fallthru
      _
    // Predicated region
    $region134: #{tpu_custom_call.1} parent=1 // pred_check
      _
    $region135: #{tpu_custom_call.1} parent=1 // pred_check_branch
      %6500 = sbr.rel (0) target = $region137
    $region136: #{tpu_custom_call.1} parent=1 // pred_region
      %6501 = dma.done [#allocation3], 32
    $region137: #{tpu_custom_call.1} parent=1 // pred_fallthru
      _
    %6502 = vsyncpa [#allocation3], 1

</llo_original>
